<compile_context>
chip_gen: v6e
topology: v6e:2x2x1
jax: 0.10.0
libtpu: 0.0.40
codegen_flags: <defaults>
</compile_context>

<pallas_src>
import functools

import jax
import jax.numpy as jnp
from jax.experimental import pallas as pl
from jax.experimental.pallas import tpu as pltpu


LANE = 128


def _round_up(x, m):
    return (x + m - 1) // m * m


def _tpu_vmem_capacity_bytes():
    """Physical VMEM of the current generation (64 MiB on v7x, 128 MiB else)."""
    try:
        cap = getattr(pltpu.get_tpu_info(), "vmem_capacity_bytes", None)
        if cap:
            return int(cap)
    except Exception:
        pass
    return 64 * 1024 * 1024          # conservative default (v7x)


def _vmem_limit_bytes():
    return min(_tpu_vmem_capacity_bytes() * 3 // 4, 100 * 1024 * 1024)


def _scratch_budget_bytes():
    return min(_tpu_vmem_capacity_bytes() * 2 // 5, 40 * 1024 * 1024)


def _plan_rows(H, W, Cp, cap=64):
    """Pick the 3x3-conv row tile TH and padded height Hp.

    TH is bounded by a generation-aware VMEM byte budget, then chosen (near
    the cap) to minimize the padded rows Hp - H, so awkward H never collapses
    to a tiny tile.
    """
    budget = _scratch_budget_bytes()

    def est(th):
        tile = W * Cp
        return (2 * (th + 2) * tile * 2     # halo scratch, double-buffered bf16
                + 4 * th * tile * 2         # out + residual, double-buffered bf16
                + 3 * th * tile * 4         # f32 accumulator / partial temporaries
                + 4 * 9 * Cp * Cp)          # weights, double-buffered bf16

    th_max = max(8, min(cap, H))
    while th_max > 8 and est(th_max) > budget:
        th_max -= 8

    best_th = th_max
    best_waste = _round_up(H, th_max) - H
    for th in range(th_max, max(1, th_max // 2) - 1, -1):
        waste = _round_up(H, th) - H
        if waste < best_waste or (waste == best_waste and th > best_th):
            best_th, best_waste = th, waste
    return best_th, H + best_waste


# ----------------------------------------------------------------------------
# Kernel 1: pointwise (1x1) conv + folded-BN bias + SiLU as a tiled matmul.
# ----------------------------------------------------------------------------
def _pw_conv_silu_kernel(x_ref, w_ref, b_ref, o_ref):
    # x_ref: (TM, Cin) bf16, w_ref: (Cin, Cp) bf16, b_ref: (1, Cp) f32
    acc = jnp.dot(x_ref[...], w_ref[...], preferred_element_type=jnp.float32)
    acc = acc + b_ref[...]
    y = acc * jax.nn.sigmoid(acc)                       # SiLU
    o_ref[...] = y.astype(o_ref.dtype)


def pw_conv_silu(x_flat, w, b, *, tm=2048):
    """x_flat: (M, Cin) bf16, w: (Cin, Cp) bf16, b: (1, Cp) f32 -> (M, Cp) bf16."""
    M, Cin = x_flat.shape
    Cp = w.shape[1]
    tm = min(tm, M)
    # v7x has two TensorCores: give the (parallel) grid at least two steps
    # when there is enough work to split.
    if M > 1024 and pl.cdiv(M, tm) < 2:
        tm = _round_up(pl.cdiv(M, 2), 8)
    return pl.pallas_call(
        _pw_conv_silu_kernel,
        out_shape=jax.ShapeDtypeStruct((M, Cp), jnp.bfloat16),
        grid_spec=pltpu.PrefetchScalarGridSpec(
            num_scalar_prefetch=0,
            grid=(pl.cdiv(M, tm),),
            in_specs=[
                pl.BlockSpec((tm, Cin), lambda i: (i, 0)),
                pl.BlockSpec((Cin, Cp), lambda i: (0, 0)),
                pl.BlockSpec((1, Cp), lambda i: (0, 0)),
            ],
            out_specs=pl.BlockSpec((tm, Cp), lambda i: (i, 0)),
        ),
        compiler_params=pltpu.CompilerParams(
            dimension_semantics=("parallel",),
            vmem_limit_bytes=_vmem_limit_bytes()),
    )(x_flat, w, b)


# ----------------------------------------------------------------------------
# Kernel 2: 3x3 conv (stride 1, pad 1) + folded-BN bias + SiLU (+ residual).
# Spatially tiled over (N, Hp//TH); the (TH+2)-row halo window is DMA'd from
# HBM with manual double buffering so the fetch overlaps the previous tile's
# compute.  pad = 1 along H/W is handled in-kernel.
# ----------------------------------------------------------------------------
def _conv3x3_silu_kernel(*refs, TH, n_th, W, Cp, pad_h, add_res):
    if add_res:
        x_hbm, w_ref, b_ref, res_ref, o_ref, buf, sem = refs
    else:
        x_hbm, w_ref, b_ref, o_ref, buf, sem = refs
        res_ref = None

    n = pl.program_id(0)
    i = pl.program_id(1)
    Hp = n_th * TH
    M = TH * W

    # ---- double-buffered halo fetch -----------------------------------------
    # Copies are always the same shapes (main TH rows + clamped top/bot rows),
    # so the wait at step i matches the descriptors issued at step i-1.
    def window_copies(i_idx, slot_idx):
        row0 = i_idx * TH
        top = jnp.maximum(row0 - 1, 0)
        bot = jnp.minimum(row0 + TH, Hp - 1)
        return (
            pltpu.make_async_copy(x_hbm.at[n, pl.ds(row0, TH), :, :],
                                  buf.at[slot_idx, pl.ds(1, TH), :, :],
                                  sem.at[slot_idx, 0]),
            pltpu.make_async_copy(x_hbm.at[n, pl.ds(top, 1), :, :],
                                  buf.at[slot_idx, pl.ds(0, 1), :, :],
                                  sem.at[slot_idx, 1]),
            pltpu.make_async_copy(x_hbm.at[n, pl.ds(bot, 1), :, :],
                                  buf.at[slot_idx, pl.ds(TH + 1, 1), :, :],
                                  sem.at[slot_idx, 2]),
        )

    slot = i % 2

    @pl.when(i == 0)                 # prologue: first row-tile of this image
    def _():
        for c in window_copies(0, 0):
            c.start()

    @pl.when(i + 1 < n_th)           # prefetch next row-tile into other slot
    def _():
        for c in window_copies(i + 1, 1 - slot):
            c.start()

    for c in window_copies(i, slot):  # wait for the current window
        c.wait()

    win = buf.at[slot]               # (TH+2, W, Cp) view of the current slot

    # pad = 1 along H: out-of-image halo rows become zeros (after the wait).
    @pl.when(i == 0)
    def _():
        win[0:1, :, :] = jnp.zeros((1, W, Cp), buf.dtype)

    @pl.when(i == n_th - 1)
    def _():
        win[TH + 1:TH + 2, :, :] = jnp.zeros((1, W, Cp), buf.dtype)

    # ---- 3x3 conv: 9 bf16 MXU dots, single f32 accumulation chain -----------
    # Output column index as a skinny (M, 1) predicate source (pad=1 along W).
    col_w = jax.lax.broadcasted_iota(jnp.int32, (M, 1), 0) % W

    def ky_dots(kx):
        dots = []
        for ky in range(3):
            lhs = win[ky:ky + TH, :, :].reshape(M, Cp)           # bf16
            dots.append(jnp.dot(lhs, w_ref[ky * 3 + kx, :, :],
                                preferred_element_type=jnp.float32))
        return dots

    def shift_mask(p, dx):
        # Contribution of the kx = dx tap to output i is p[i + dx]; the roll
        # wraps across the W seam / tile end, masked via the column predicate.
        shifted = pltpu.roll(p, shift=(-dx) % M, axis=0)
        valid = (col_w >= 1) if dx < 0 else (col_w <= W - 2)
        return jnp.where(valid, shifted, 0.0)

    d = ky_dots(0)                                    # kx = 0 (dx = -1): seed
    acc = shift_mask(d[0] + d[1] + d[2], -1)
    for t in ky_dots(1):                              # kx = 1 (dx = 0)
        acc = acc + t
    d = ky_dots(2)                                    # kx = 2 (dx = +1)
    acc = acc + shift_mask(d[0] + d[1] + d[2], 1)

    acc = acc + b_ref[...]
    y = acc * jax.nn.sigmoid(acc)                     # SiLU
    if add_res:
        y = y + res_ref[...].reshape(M, Cp).astype(jnp.float32)
    o_ref[...] = y.reshape(1, TH, W, Cp).astype(o_ref.dtype)

    if pad_h:
        # Keep the rows beyond the true image height zero so the next layer's
        # pad=1 semantics stay exact.
        @pl.when(i == n_th - 1)
        def _():
            o_ref[0, TH - pad_h:, :, :] = jnp.zeros((pad_h, W, Cp), o_ref.dtype)


def conv3x3_silu(x_nhwc, w9, b, res=None, *, th, pad_h=0):
    """x_nhwc: (N,Hp,W,Cp) bf16 (Cp % 128 == 0, Hp % th == 0), w9: (9,Cp,Cp) bf16
    in (ky*3+kx, Cin, Cout) order, b: (1,Cp) f32, res: optional (N,Hp,W,Cp) bf16."""
    N, Hp, W, Cp = x_nhwc.shape
    assert Hp % th == 0
    n_th = Hp // th
    add_res = res is not None

    in_specs = [
        pl.BlockSpec(memory_space=pl.ANY),                     # x stays in HBM
        pl.BlockSpec((9, Cp, Cp), lambda n, i: (0, 0, 0)),
        pl.BlockSpec((1, Cp), lambda n, i: (0, 0)),
    ]
    args = [x_nhwc, w9, b]
    if add_res:
        in_specs.append(pl.BlockSpec((1, th, W, Cp), lambda n, i: (n, i, 0, 0)))
        args.append(res)

    return pl.pallas_call(
        functools.partial(_conv3x3_silu_kernel,
                          TH=th, n_th=n_th, W=W, Cp=Cp,
                          pad_h=pad_h, add_res=add_res),
        out_shape=jax.ShapeDtypeStruct((N, Hp, W, Cp), jnp.bfloat16),
        grid_spec=pltpu.PrefetchScalarGridSpec(
            num_scalar_prefetch=0,
            grid=(N, n_th),
            in_specs=in_specs,
            out_specs=pl.BlockSpec((1, th, W, Cp), lambda n, i: (n, i, 0, 0)),
            scratch_shapes=[
                pltpu.VMEM((2, th + 2, W, Cp), jnp.bfloat16),   # halo, 2 slots
                pltpu.SemaphoreType.DMA((2, 3)),
            ],
        ),
        # Batch axis parallel (megacore on v7x); row-tile axis arbitrary so the
        # cross-step double-buffered DMA state never crosses a core boundary.
        compiler_params=pltpu.CompilerParams(
            dimension_semantics=("parallel", "arbitrary"),
            vmem_limit_bytes=_vmem_limit_bytes()),
    )(*args)


# ----------------------------------------------------------------------------
# Parameter construction (deterministic), BN folded, channel-padded, bf16.
# ----------------------------------------------------------------------------
def _fold_bn(w, gamma, beta, mean, var, eps=1e-3):
    # eps=1e-3 matches ultralytics Conv's BatchNorm2d(eps=0.001).
    scale = gamma / jnp.sqrt(var + eps)
    return w * scale, (beta - mean * scale)


def init_c1_params(key, c1, c2, n=1):
    Cp = max(_round_up(c2, LANE), LANE)          # lane-dense channel padding
    keys = jax.random.split(key, 4 + 4 * n)
    it = iter(keys)

    # cv1: 1x1 conv, PyTorch weight (c2, c1, 1, 1) -> matmul (c1, c2)
    w1 = jax.random.normal(next(it), (c1, c2), jnp.float32) * 0.1
    g = 1.0 + 0.05 * jax.random.normal(next(it), (c2,), jnp.float32)
    be = 0.05 * jax.random.normal(next(it), (c2,), jnp.float32)
    mu = 0.05 * jax.random.normal(next(it), (c2,), jnp.float32)
    w1f, b1f = _fold_bn(w1, g, be, mu, jnp.ones((c2,), jnp.float32))
    cv1_w = jnp.zeros((c1, Cp), jnp.bfloat16).at[:, :c2].set(
        w1f.astype(jnp.bfloat16))
    cv1_b = jnp.zeros((1, Cp), jnp.float32).at[:, :c2].set(b1f)

    m = []
    for _ in range(n):
        # 3x3 conv, weights generated directly in (ky, kx, Cin, Cout) order.
        w = jax.random.normal(next(it), (3, 3, c2, c2), jnp.float32) * 0.05
        g = 1.0 + 0.05 * jax.random.normal(next(it), (c2,), jnp.float32)
        be = 0.05 * jax.random.normal(next(it), (c2,), jnp.float32)
        mu = 0.05 * jax.random.normal(next(it), (c2,), jnp.float32)
        wf, bf = _fold_bn(w, g, be, mu, jnp.ones((c2,), jnp.float32))
        w9 = jnp.zeros((3, 3, Cp, Cp), jnp.bfloat16).at[:, :, :c2, :c2].set(
            wf.astype(jnp.bfloat16)).reshape(9, Cp, Cp)
        b9 = jnp.zeros((1, Cp), jnp.float32).at[:, :c2].set(bf)
        m.append((w9, b9))

    return {"cv1_w": cv1_w, "cv1_b": cv1_b, "m": m}


# ----------------------------------------------------------------------------
# Full C1 forward.
# ----------------------------------------------------------------------------
@functools.partial(jax.jit, static_argnames=("c2",))
def c1_forward(x_nchw, params, *, c2):
    N, Cin, H, W = x_nchw.shape
    Cp = params["cv1_w"].shape[1]

    # NCHW -> NHWC layout glue + bf16 cast (fused by XLA; halves cv1 HBM read).
    x_nhwc = jnp.transpose(x_nchw, (0, 2, 3, 1)).astype(jnp.bfloat16)

    # cv1: 1x1 conv + BN + SiLU
    y = pw_conv_silu(x_nhwc.reshape(N * H * W, Cin),
                     params["cv1_w"], params["cv1_b"]).reshape(N, H, W, Cp)

    convs = params["m"]
    if len(convs) == 0:
        z = y + y                          # empty nn.Sequential is identity
    else:
        TH, Hp = _plan_rows(H, W, Cp)      # generation-aware row tile
        pad_h = Hp - H
        if pad_h:
            # Zero rows keep pad=1 semantics exact; the kernel re-zeroes them
            # each layer so the invariant holds along the chain.
            y = jnp.pad(y, ((0, 0), (0, pad_h), (0, 0), (0, 0)))
        z = y
        for li, (w9, b) in enumerate(convs):
            res = y if li == len(convs) - 1 else None   # residual only in last conv
            z = conv3x3_silu(z, w9, b, res, th=TH, pad_h=pad_h)
        if pad_h:
            z = z[:, :H]

    # NHWC(+channel pad) -> NCHW, real channels only, f32 like PyTorch output.
    return jnp.transpose(z[..., :c2].astype(jnp.float32), (0, 3, 1, 2))


# ----------------------------------------------------------------------------
# Pure-JAX reference mirroring the kernels' bf16 storage points.
# ----------------------------------------------------------------------------
def c1_reference(x_nchw, params, c2):
    Cp = params["cv1_w"].shape[1]
    f32 = jnp.float32

    def bf16_round(a):
        return a.astype(jnp.bfloat16).astype(f32)

    x = bf16_round(jnp.transpose(x_nchw, (0, 2, 3, 1)).astype(f32))
    w1 = params["cv1_w"].astype(f32)
    y = jax.nn.silu(jnp.einsum("nhwc,cd->nhwd", x, w1) + params["cv1_b"])
    y = bf16_round(y)

    convs = params["m"]
    if len(convs) == 0:
        z = y + y
    else:
        z = y
        for li, (w9, b) in enumerate(convs):
            w = w9.astype(f32).reshape(3, 3, Cp, Cp)            # HWIO
            zc = jax.lax.conv_general_dilated(
                z, w, window_strides=(1, 1), padding="SAME",
                dimension_numbers=("NHWC", "HWIO", "NHWC"))
            s = jax.nn.silu(zc + b)
            if li == len(convs) - 1:
                s = s + y
            z = bf16_round(s)
    return jnp.transpose(z[..., :c2], (0, 3, 1, 2))


if __name__ == "__main__":
    key = jax.random.PRNGKey(0)
    k_x, k_p = jax.random.split(key)

    N, c_in, c_out, H, W, n = 2, 4, 8, 16, 16, 1
    x = jax.random.normal(k_x, (N, c_in, H, W), jnp.float32)

    params = init_c1_params(k_p, c_in, c_out, n=n)
    out = jax.block_until_ready(c1_forward(x, params, c2=c_out))
    ref = c1_reference(x, params, c_out)
    assert out.shape == (N, c_out, H, W), out.shape
    err = float(jnp.max(jnp.abs(out - ref)))
    assert jnp.allclose(out, ref, atol=2e-2, rtol=2e-2), err

    # n = 0 edge case: self.m is an empty Sequential -> out = y + y.
    params0 = init_c1_params(k_p, c_in, c_out, n=0)
    out0 = jax.block_until_ready(c1_forward(x, params0, c2=c_out))
    ref0 = c1_reference(x, params0, c_out)
    err0 = float(jnp.max(jnp.abs(out0 - ref0)))
    assert jnp.allclose(out0, ref0, atol=2e-2, rtol=2e-2), err0

    print("KERNEL_OK")
</pallas_src>

<mosaic_0001>
module attributes {stable_mosaic.version = 11 : i64} {
  func.func @_pw_conv_silu_kernel(%arg0: i32, %arg1: memref<512x4xbf16, #tpu.memory_space<vmem>>, %arg2: memref<4x128xbf16, #tpu.memory_space<vmem>>, %arg3: memref<1x128xf32, #tpu.memory_space<vmem>>, %arg4: memref<512x128xbf16, #tpu.memory_space<vmem>>) attributes {dimension_semantics = [#tpu.dimension_semantics<parallel>], iteration_bounds = array<i64: 1>, scalar_prefetch = 0 : i64, scratch_operands = 0 : i64, tpu.core_type = #tpu.core_type<tc>, window_params = [{transform_indices = @transform_0, window_bounds = array<i64: 512, 4>}, {pipeline_mode = #tpu.pipeline_mode<synchronous>, transform_indices = @transform_1, window_bounds = array<i64: 4, 128>}, {pipeline_mode = #tpu.pipeline_mode<synchronous>, transform_indices = @transform_2, window_bounds = array<i64: 1, 128>}, {transform_indices = @transform_3, window_bounds = array<i64: 512, 128>}]} {
    %c0 = arith.constant 0 : index
    %c0_0 = arith.constant 0 : index
    %0 = vector.load %arg1[%c0, %c0_0] : memref<512x4xbf16, #tpu.memory_space<vmem>>, vector<512x4xbf16>
    %c0_1 = arith.constant 0 : index
    %c0_2 = arith.constant 0 : index
    %1 = vector.load %arg2[%c0_1, %c0_2] : memref<4x128xbf16, #tpu.memory_space<vmem>>, vector<4x128xbf16>
    %cst = arith.constant dense<0.000000e+00> : vector<512x128xf32>
    %2 = tpu.matmul %0, %1, %cst {dimension_numbers = #tpu.dot_dimension_numbers<[1], [0], [0], [1], [0, 0, 1, 1], [], []>} : vector<512x4xbf16>, vector<4x128xbf16>, vector<512x128xf32> -> vector<512x128xf32>
    %c0_3 = arith.constant 0 : index
    %c0_4 = arith.constant 0 : index
    %3 = vector.load %arg3[%c0_3, %c0_4] : memref<1x128xf32, #tpu.memory_space<vmem>>, vector<1x128xf32>
    %4 = vector.broadcast %3 : vector<1x128xf32> to vector<512x128xf32>
    %5 = arith.addf %2, %4 : vector<512x128xf32>
    %6 = arith.negf %5 : vector<512x128xf32>
    %7 = math.exp %6 : vector<512x128xf32>
    %cst_5 = arith.constant 1.000000e+00 : f32
    %8 = vector.broadcast %cst_5 : f32 to vector<512x128xf32>
    %9 = arith.addf %8, %7 : vector<512x128xf32>
    %10 = arith.divf %8, %9 : vector<512x128xf32>
    %11 = arith.mulf %5, %10 : vector<512x128xf32>
    %12 = arith.truncf %11 : vector<512x128xf32> to vector<512x128xbf16>
    %c0_6 = arith.constant 0 : index
    %c0_7 = arith.constant 0 : index
    %13 = vector.load %arg4[%c0_6, %c0_7] : memref<512x128xbf16, #tpu.memory_space<vmem>>, vector<512x128xbf16>
    tpu.vector_store %arg4[%c0_6, %c0_7], %12 {strides = array<i32>} : memref<512x128xbf16, #tpu.memory_space<vmem>>, vector<512x128xbf16>,
    return
  }
  func.func @transform_0(%arg0: i32) -> (i32, i32) {
    %c0_i32 = arith.constant 0 : i32
    %c0_i32_0 = arith.constant 0 : i32
    return %arg0, %c0_i32 : i32, i32
  }
  func.func @transform_1(%arg0: i32) -> (i32, i32) {
    %c0_i32 = arith.constant 0 : i32
    %c0_i32_0 = arith.constant 0 : i32
    %c0_i32_1 = arith.constant 0 : i32
    return %c0_i32, %c0_i32_0 : i32, i32
  }
  func.func @transform_2(%arg0: i32) -> (i32, i32) {
    %c0_i32 = arith.constant 0 : i32
    %c0_i32_0 = arith.constant 0 : i32
    %c0_i32_1 = arith.constant 0 : i32
    return %c0_i32, %c0_i32_0 : i32, i32
  }
  func.func @transform_3(%arg0: i32) -> (i32, i32) {
    %c0_i32 = arith.constant 0 : i32
    %c0_i32_0 = arith.constant 0 : i32
    return %arg0, %c0_i32 : i32, i32
  }
}

module attributes {stable_mosaic.version = 11 : i64} {
  func.func @_conv3x3_silu_kernel(%arg0: i32, %arg1: i32, %arg2: memref<2x16x16x128xbf16, #tpu.memory_space<any>>, %arg3: memref<9x128x128xbf16, #tpu.memory_space<vmem>>, %arg4: memref<1x128xf32, #tpu.memory_space<vmem>>, %arg5: memref<1x16x16x128xbf16, #tpu.memory_space<vmem>>, %arg6: memref<1x16x16x128xbf16, #tpu.memory_space<vmem>>, %arg7: memref<2x18x16x128xbf16, #tpu.memory_space<vmem>>, %arg8: memref<2x3x!tpu.dma_semaphore, #tpu.memory_space<semaphore_mem>>) attributes {dimension_semantics = [#tpu.dimension_semantics<parallel>, #tpu.dimension_semantics<arbitrary>], iteration_bounds = array<i64: 2, 1>, scalar_prefetch = 0 : i64, scratch_operands = 2 : i64, tpu.core_type = #tpu.core_type<tc>, window_params = [{}, {pipeline_mode = #tpu.pipeline_mode<synchronous>, transform_indices = @transform_1, window_bounds = array<i64: 9, 128, 128>}, {pipeline_mode = #tpu.pipeline_mode<synchronous>, transform_indices = @transform_2, window_bounds = array<i64: 1, 128>}, {transform_indices = @transform_3, window_bounds = array<i64: 1, 16, 16, 128>}, {transform_indices = @transform_4, window_bounds = array<i64: 1, 16, 16, 128>}]} {
    %c2_i32 = arith.constant 2 : i32
    %c0_i32 = arith.constant 0 : i32
    %0 = arith.cmpi eq, %c2_i32, %c0_i32 : i32
    %c1_i32 = arith.constant 1 : i32
    %1 = arith.select %0, %c1_i32, %c2_i32 : i32
    %2 = arith.remsi %arg1, %1 : i32
    %c0_i32_0 = arith.constant 0 : i32
    %3 = arith.cmpi ne, %2, %c0_i32_0 : i32
    %c0_i32_1 = arith.constant 0 : i32
    %4 = arith.cmpi slt, %2, %c0_i32_1 : i32
    %c0_i32_2 = arith.constant 0 : i32
    %5 = arith.cmpi slt, %1, %c0_i32_2 : i32
    %6 = arith.xori %4, %5 : i1
    %7 = arith.andi %6, %3 : i1
    %8 = arith.addi %2, %1 : i32
    %9 = arith.select %7, %8, %2 : i32
    %c0_i32_3 = arith.constant 0 : i32
    %10 = arith.cmpi eq, %arg1, %c0_i32_3 : i32
    %11 = arith.extui %10 : i1 to i32
    %c0_i32_4 = arith.constant 0 : i32
    %12 = arith.cmpi ne, %11, %c0_i32_4 : i32
    scf.if %12 {
      %c-1_i32 = arith.constant -1 : i32
      %c0_i32_133 = arith.constant 0 : i32
      %164 = arith.maxsi %c-1_i32, %c0_i32_133 : i32
      %c16_i32_134 = arith.constant 16 : i32
      %c15_i32_135 = arith.constant 15 : i32
      %165 = arith.minsi %c16_i32_134, %c15_i32_135 : i32
      %c0_i32_136 = arith.constant 0 : i32
      %c0_i32_137 = arith.constant 0 : i32
      %c0_i32_138 = arith.constant 0 : i32
      %c0_i32_139 = arith.constant 0 : i32
      %c0_i32_140 = arith.constant 0 : i32
      %c0_i32_141 = arith.constant 0 : i32
      %166 = tpu.memref_slice %arg2[%arg0, %c0_i32_139, %c0_i32_140, %c0_i32_141] : memref<2x16x16x128xbf16, #tpu.memory_space<any>> -> memref<1x16x16x128xbf16, #tpu.memory_space<any>>
      %167 = tpu.memref_squeeze %166 : memref<1x16x16x128xbf16, #tpu.memory_space<any>> -> memref<16x16x128xbf16, #tpu.memory_space<any>>
      %c1_i32_142 = arith.constant 1 : i32
      %c0_i32_143 = arith.constant 0 : i32
      %c0_i32_144 = arith.constant 0 : i32
      %168 = tpu.memref_slice %arg7[%c0_i32_136, %c1_i32_142, %c0_i32_143, %c0_i32_144] : memref<2x18x16x128xbf16, #tpu.memory_space<vmem>> -> memref<1x16x16x128xbf16, #tpu.memory_space<vmem>>
      %169 = tpu.memref_squeeze %168 : memref<1x16x16x128xbf16, #tpu.memory_space<vmem>> -> memref<16x16x128xbf16, #tpu.memory_space<vmem>>
      %170 = tpu.memref_slice %arg8[%c0_i32_137, %c0_i32_138] : memref<2x3x!tpu.dma_semaphore, #tpu.memory_space<semaphore_mem>> -> memref<1x1x!tpu.dma_semaphore, #tpu.memory_space<semaphore_mem>>
      %171 = tpu.memref_squeeze %170 : memref<1x1x!tpu.dma_semaphore, #tpu.memory_space<semaphore_mem>> -> memref<!tpu.dma_semaphore, #tpu.memory_space<semaphore_mem>>
      tpu.enqueue_dma source(%167 : memref<16x16x128xbf16, #tpu.memory_space<any>>) target(%169 : memref<16x16x128xbf16, #tpu.memory_space<vmem>>) target_semaphore(%171 : memref<!tpu.dma_semaphore, #tpu.memory_space<semaphore_mem>>)
      %c0_i32_145 = arith.constant 0 : i32
      %c0_i32_146 = arith.constant 0 : i32
      %c1_i32_147 = arith.constant 1 : i32
      %c0_i32_148 = arith.constant 0 : i32
      %c0_i32_149 = arith.constant 0 : i32
      %172 = tpu.memref_slice %arg2[%arg0, %164, %c0_i32_148, %c0_i32_149] : memref<2x16x16x128xbf16, #tpu.memory_space<any>> -> memref<1x1x16x128xbf16, #tpu.memory_space<any>>
      %173 = tpu.memref_squeeze %172 : memref<1x1x16x128xbf16, #tpu.memory_space<any>> -> memref<1x16x128xbf16, #tpu.memory_space<any>>
      %c0_i32_150 = arith.constant 0 : i32
      %c0_i32_151 = arith.constant 0 : i32
      %c0_i32_152 = arith.constant 0 : i32
      %174 = tpu.memref_slice %arg7[%c0_i32_145, %c0_i32_150, %c0_i32_151, %c0_i32_152] : memref<2x18x16x128xbf16, #tpu.memory_space<vmem>> -> memref<1x1x16x128xbf16, #tpu.memory_space<vmem>>
      %175 = tpu.memref_squeeze %174 : memref<1x1x16x128xbf16, #tpu.memory_space<vmem>> -> memref<1x16x128xbf16, #tpu.memory_space<vmem>>
      %176 = tpu.memref_slice %arg8[%c0_i32_146, %c1_i32_147] : memref<2x3x!tpu.dma_semaphore, #tpu.memory_space<semaphore_mem>> -> memref<1x1x!tpu.dma_semaphore, #tpu.memory_space<semaphore_mem>>
      %177 = tpu.memref_squeeze %176 : memref<1x1x!tpu.dma_semaphore, #tpu.memory_space<semaphore_mem>> -> memref<!tpu.dma_semaphore, #tpu.memory_space<semaphore_mem>>
      tpu.enqueue_dma source(%173 : memref<1x16x128xbf16, #tpu.memory_space<any>>) target(%175 : memref<1x16x128xbf16, #tpu.memory_space<vmem>>) target_semaphore(%177 : memref<!tpu.dma_semaphore, #tpu.memory_space<semaphore_mem>>)
      %c0_i32_153 = arith.constant 0 : i32
      %c0_i32_154 = arith.constant 0 : i32
      %c2_i32_155 = arith.constant 2 : i32
      %c0_i32_156 = arith.constant 0 : i32
      %c0_i32_157 = arith.constant 0 : i32
      %178 = tpu.memref_slice %arg2[%arg0, %165, %c0_i32_156, %c0_i32_157] : memref<2x16x16x128xbf16, #tpu.memory_space<any>> -> memref<1x1x16x128xbf16, #tpu.memory_space<any>>
      %179 = tpu.memref_squeeze %178 : memref<1x1x16x128xbf16, #tpu.memory_space<any>> -> memref<1x16x128xbf16, #tpu.memory_space<any>>
      %c17_i32_158 = arith.constant 17 : i32
      %c0_i32_159 = arith.constant 0 : i32
      %c0_i32_160 = arith.constant 0 : i32
      %180 = tpu.memref_slice %arg7[%c0_i32_153, %c17_i32_158, %c0_i32_159, %c0_i32_160] : memref<2x18x16x128xbf16, #tpu.memory_space<vmem>> -> memref<1x1x16x128xbf16, #tpu.memory_space<vmem>>
      %181 = tpu.memref_squeeze %180 : memref<1x1x16x128xbf16, #tpu.memory_space<vmem>> -> memref<1x16x128xbf16, #tpu.memory_space<vmem>>
      %182 = tpu.memref_slice %arg8[%c0_i32_154, %c2_i32_155] : memref<2x3x!tpu.dma_semaphore, #tpu.memory_space<semaphore_mem>> -> memref<1x1x!tpu.dma_semaphore, #tpu.memory_space<semaphore_mem>>
      %183 = tpu.memref_squeeze %182 : memref<1x1x!tpu.dma_semaphore, #tpu.memory_space<semaphore_mem>> -> memref<!tpu.dma_semaphore, #tpu.memory_space<semaphore_mem>>
      tpu.enqueue_dma source(%179 : memref<1x16x128xbf16, #tpu.memory_space<any>>) target(%181 : memref<1x16x128xbf16, #tpu.memory_space<vmem>>) target_semaphore(%183 : memref<!tpu.dma_semaphore, #tpu.memory_space<semaphore_mem>>)
    } else {
    }
    %c1_i32_5 = arith.constant 1 : i32
    %13 = arith.addi %arg1, %c1_i32_5 : i32
    %c1_i32_6 = arith.constant 1 : i32
    %14 = arith.cmpi slt, %13, %c1_i32_6 : i32
    %15 = arith.extui %14 : i1 to i32
    %c0_i32_7 = arith.constant 0 : i32
    %16 = arith.cmpi ne, %15, %c0_i32_7 : i32
    scf.if %16 {
      %c1_i32_133 = arith.constant 1 : i32
      %164 = arith.addi %arg1, %c1_i32_133 : i32
      %c1_i32_134 = arith.constant 1 : i32
      %165 = arith.subi %c1_i32_134, %9 : i32
      %c16_i32_135 = arith.constant 16 : i32
      %166 = arith.muli %164, %c16_i32_135 : i32
      %c1_i32_136 = arith.constant 1 : i32
      %167 = arith.subi %166, %c1_i32_136 : i32
      %c0_i32_137 = arith.constant 0 : i32
      %168 = arith.maxsi %167, %c0_i32_137 : i32
      %c16_i32_138 = arith.constant 16 : i32
      %169 = arith.addi %166, %c16_i32_138 : i32
      %c15_i32_139 = arith.constant 15 : i32
      %170 = arith.minsi %169, %c15_i32_139 : i32
      %c0_i32_140 = arith.constant 0 : i32
      %c0_i32_141 = arith.constant 0 : i32
      %c0_i32_142 = arith.constant 0 : i32
      %171 = tpu.memref_slice %arg2[%arg0, %166, %c0_i32_141, %c0_i32_142] : memref<2x16x16x128xbf16, #tpu.memory_space<any>> -> memref<1x16x16x128xbf16, #tpu.memory_space<any>>
      %172 = tpu.memref_squeeze %171 : memref<1x16x16x128xbf16, #tpu.memory_space<any>> -> memref<16x16x128xbf16, #tpu.memory_space<any>>
      %c1_i32_143 = arith.constant 1 : i32
      %c0_i32_144 = arith.constant 0 : i32
      %c0_i32_145 = arith.constant 0 : i32
      %173 = tpu.memref_slice %arg7[%165, %c1_i32_143, %c0_i32_144, %c0_i32_145] : memref<2x18x16x128xbf16, #tpu.memory_space<vmem>> -> memref<1x16x16x128xbf16, #tpu.memory_space<vmem>>
      %174 = tpu.memref_squeeze %173 : memref<1x16x16x128xbf16, #tpu.memory_space<vmem>> -> memref<16x16x128xbf16, #tpu.memory_space<vmem>>
      %175 = tpu.memref_slice %arg8[%165, %c0_i32_140] : memref<2x3x!tpu.dma_semaphore, #tpu.memory_space<semaphore_mem>> -> memref<1x1x!tpu.dma_semaphore, #tpu.memory_space<semaphore_mem>>
      %176 = tpu.memref_squeeze %175 : memref<1x1x!tpu.dma_semaphore, #tpu.memory_space<semaphore_mem>> -> memref<!tpu.dma_semaphore, #tpu.memory_space<semaphore_mem>>
      tpu.enqueue_dma source(%172 : memref<16x16x128xbf16, #tpu.memory_space<any>>) target(%174 : memref<16x16x128xbf16, #tpu.memory_space<vmem>>) target_semaphore(%176 : memref<!tpu.dma_semaphore, #tpu.memory_space<semaphore_mem>>)
      %c1_i32_146 = arith.constant 1 : i32
      %c0_i32_147 = arith.constant 0 : i32
      %c0_i32_148 = arith.constant 0 : i32
      %177 = tpu.memref_slice %arg2[%arg0, %168, %c0_i32_147, %c0_i32_148] : memref<2x16x16x128xbf16, #tpu.memory_space<any>> -> memref<1x1x16x128xbf16, #tpu.memory_space<any>>
      %178 = tpu.memref_squeeze %177 : memref<1x1x16x128xbf16, #tpu.memory_space<any>> -> memref<1x16x128xbf16, #tpu.memory_space<any>>
      %c0_i32_149 = arith.constant 0 : i32
      %c0_i32_150 = arith.constant 0 : i32
      %c0_i32_151 = arith.constant 0 : i32
      %179 = tpu.memref_slice %arg7[%165, %c0_i32_149, %c0_i32_150, %c0_i32_151] : memref<2x18x16x128xbf16, #tpu.memory_space<vmem>> -> memref<1x1x16x128xbf16, #tpu.memory_space<vmem>>
      %180 = tpu.memref_squeeze %179 : memref<1x1x16x128xbf16, #tpu.memory_space<vmem>> -> memref<1x16x128xbf16, #tpu.memory_space<vmem>>
      %181 = tpu.memref_slice %arg8[%165, %c1_i32_146] : memref<2x3x!tpu.dma_semaphore, #tpu.memory_space<semaphore_mem>> -> memref<1x1x!tpu.dma_semaphore, #tpu.memory_space<semaphore_mem>>
      %182 = tpu.memref_squeeze %181 : memref<1x1x!tpu.dma_semaphore, #tpu.memory_space<semaphore_mem>> -> memref<!tpu.dma_semaphore, #tpu.memory_space<semaphore_mem>>
      tpu.enqueue_dma source(%178 : memref<1x16x128xbf16, #tpu.memory_space<any>>) target(%180 : memref<1x16x128xbf16, #tpu.memory_space<vmem>>) target_semaphore(%182 : memref<!tpu.dma_semaphore, #tpu.memory_space<semaphore_mem>>)
      %c2_i32_152 = arith.constant 2 : i32
      %c0_i32_153 = arith.constant 0 : i32
      %c0_i32_154 = arith.constant 0 : i32
      %183 = tpu.memref_slice %arg2[%arg0, %170, %c0_i32_153, %c0_i32_154] : memref<2x16x16x128xbf16, #tpu.memory_space<any>> -> memref<1x1x16x128xbf16, #tpu.memory_space<any>>
      %184 = tpu.memref_squeeze %183 : memref<1x1x16x128xbf16, #tpu.memory_space<any>> -> memref<1x16x128xbf16, #tpu.memory_space<any>>
      %c17_i32_155 = arith.constant 17 : i32
      %c0_i32_156 = arith.constant 0 : i32
      %c0_i32_157 = arith.constant 0 : i32
      %185 = tpu.memref_slice %arg7[%165, %c17_i32_155, %c0_i32_156, %c0_i32_157] : memref<2x18x16x128xbf16, #tpu.memory_space<vmem>> -> memref<1x1x16x128xbf16, #tpu.memory_space<vmem>>
      %186 = tpu.memref_squeeze %185 : memref<1x1x16x128xbf16, #tpu.memory_space<vmem>> -> memref<1x16x128xbf16, #tpu.memory_space<vmem>>
      %187 = tpu.memref_slice %arg8[%165, %c2_i32_152] : memref<2x3x!tpu.dma_semaphore, #tpu.memory_space<semaphore_mem>> -> memref<1x1x!tpu.dma_semaphore, #tpu.memory_space<semaphore_mem>>
      %188 = tpu.memref_squeeze %187 : memref<1x1x!tpu.dma_semaphore, #tpu.memory_space<semaphore_mem>> -> memref<!tpu.dma_semaphore, #tpu.memory_space<semaphore_mem>>
      tpu.enqueue_dma source(%184 : memref<1x16x128xbf16, #tpu.memory_space<any>>) target(%186 : memref<1x16x128xbf16, #tpu.memory_space<vmem>>) target_semaphore(%188 : memref<!tpu.dma_semaphore, #tpu.memory_space<semaphore_mem>>)
    } else {
    }
    %c16_i32 = arith.constant 16 : i32
    %17 = arith.muli %arg1, %c16_i32 : i32
    %c1_i32_8 = arith.constant 1 : i32
    %18 = arith.subi %17, %c1_i32_8 : i32
    %c0_i32_9 = arith.constant 0 : i32
    %19 = arith.maxsi %18, %c0_i32_9 : i32
    %c16_i32_10 = arith.constant 16 : i32
    %20 = arith.addi %17, %c16_i32_10 : i32
    %c15_i32 = arith.constant 15 : i32
    %21 = arith.minsi %20, %c15_i32 : i32
    %c0_i32_11 = arith.constant 0 : i32
    %c0_i32_12 = arith.constant 0 : i32
    %c0_i32_13 = arith.constant 0 : i32
    %22 = tpu.memref_slice %arg2[%arg0, %17, %c0_i32_12, %c0_i32_13] : memref<2x16x16x128xbf16, #tpu.memory_space<any>> -> memref<1x16x16x128xbf16, #tpu.memory_space<any>>
    %23 = tpu.memref_squeeze %22 : memref<1x16x16x128xbf16, #tpu.memory_space<any>> -> memref<16x16x128xbf16, #tpu.memory_space<any>>
    %c1_i32_14 = arith.constant 1 : i32
    %c0_i32_15 = arith.constant 0 : i32
    %c0_i32_16 = arith.constant 0 : i32
    %24 = tpu.memref_slice %arg7[%9, %c1_i32_14, %c0_i32_15, %c0_i32_16] : memref<2x18x16x128xbf16, #tpu.memory_space<vmem>> -> memref<1x16x16x128xbf16, #tpu.memory_space<vmem>>
    %25 = tpu.memref_squeeze %24 : memref<1x16x16x128xbf16, #tpu.memory_space<vmem>> -> memref<16x16x128xbf16, #tpu.memory_space<vmem>>
    %26 = tpu.memref_slice %arg8[%9, %c0_i32_11] : memref<2x3x!tpu.dma_semaphore, #tpu.memory_space<semaphore_mem>> -> memref<1x1x!tpu.dma_semaphore, #tpu.memory_space<semaphore_mem>>
    %27 = tpu.memref_squeeze %26 : memref<1x1x!tpu.dma_semaphore, #tpu.memory_space<semaphore_mem>> -> memref<!tpu.dma_semaphore, #tpu.memory_space<semaphore_mem>>
    tpu.wait_dma2 semaphore(%27 : memref<!tpu.dma_semaphore, #tpu.memory_space<semaphore_mem>>) src(%23 : memref<16x16x128xbf16, #tpu.memory_space<any>>) dst(%25 : memref<16x16x128xbf16, #tpu.memory_space<vmem>>)
    %c1_i32_17 = arith.constant 1 : i32
    %c0_i32_18 = arith.constant 0 : i32
    %c0_i32_19 = arith.constant 0 : i32
    %28 = tpu.memref_slice %arg2[%arg0, %19, %c0_i32_18, %c0_i32_19] : memref<2x16x16x128xbf16, #tpu.memory_space<any>> -> memref<1x1x16x128xbf16, #tpu.memory_space<any>>
    %29 = tpu.memref_squeeze %28 : memref<1x1x16x128xbf16, #tpu.memory_space<any>> -> memref<1x16x128xbf16, #tpu.memory_space<any>>
    %c0_i32_20 = arith.constant 0 : i32
    %c0_i32_21 = arith.constant 0 : i32
    %c0_i32_22 = arith.constant 0 : i32
    %30 = tpu.memref_slice %arg7[%9, %c0_i32_20, %c0_i32_21, %c0_i32_22] : memref<2x18x16x128xbf16, #tpu.memory_space<vmem>> -> memref<1x1x16x128xbf16, #tpu.memory_space<vmem>>
    %31 = tpu.memref_squeeze %30 : memref<1x1x16x128xbf16, #tpu.memory_space<vmem>> -> memref<1x16x128xbf16, #tpu.memory_space<vmem>>
    %32 = tpu.memref_slice %arg8[%9, %c1_i32_17] : memref<2x3x!tpu.dma_semaphore, #tpu.memory_space<semaphore_mem>> -> memref<1x1x!tpu.dma_semaphore, #tpu.memory_space<semaphore_mem>>
    %33 = tpu.memref_squeeze %32 : memref<1x1x!tpu.dma_semaphore, #tpu.memory_space<semaphore_mem>> -> memref<!tpu.dma_semaphore, #tpu.memory_space<semaphore_mem>>
    tpu.wait_dma2 semaphore(%33 : memref<!tpu.dma_semaphore, #tpu.memory_space<semaphore_mem>>) src(%29 : memref<1x16x128xbf16, #tpu.memory_space<any>>) dst(%31 : memref<1x16x128xbf16, #tpu.memory_space<vmem>>)
    %c2_i32_23 = arith.constant 2 : i32
    %c0_i32_24 = arith.constant 0 : i32
    %c0_i32_25 = arith.constant 0 : i32
    %34 = tpu.memref_slice %arg2[%arg0, %21, %c0_i32_24, %c0_i32_25] : memref<2x16x16x128xbf16, #tpu.memory_space<any>> -> memref<1x1x16x128xbf16, #tpu.memory_space<any>>
    %35 = tpu.memref_squeeze %34 : memref<1x1x16x128xbf16, #tpu.memory_space<any>> -> memref<1x16x128xbf16, #tpu.memory_space<any>>
    %c17_i32 = arith.constant 17 : i32
    %c0_i32_26 = arith.constant 0 : i32
    %c0_i32_27 = arith.constant 0 : i32
    %36 = tpu.memref_slice %arg7[%9, %c17_i32, %c0_i32_26, %c0_i32_27] : memref<2x18x16x128xbf16, #tpu.memory_space<vmem>> -> memref<1x1x16x128xbf16, #tpu.memory_space<vmem>>
    %37 = tpu.memref_squeeze %36 : memref<1x1x16x128xbf16, #tpu.memory_space<vmem>> -> memref<1x16x128xbf16, #tpu.memory_space<vmem>>
    %38 = tpu.memref_slice %arg8[%9, %c2_i32_23] : memref<2x3x!tpu.dma_semaphore, #tpu.memory_space<semaphore_mem>> -> memref<1x1x!tpu.dma_semaphore, #tpu.memory_space<semaphore_mem>>
    %39 = tpu.memref_squeeze %38 : memref<1x1x!tpu.dma_semaphore, #tpu.memory_space<semaphore_mem>> -> memref<!tpu.dma_semaphore, #tpu.memory_space<semaphore_mem>>
    tpu.wait_dma2 semaphore(%39 : memref<!tpu.dma_semaphore, #tpu.memory_space<semaphore_mem>>) src(%35 : memref<1x16x128xbf16, #tpu.memory_space<any>>) dst(%37 : memref<1x16x128xbf16, #tpu.memory_space<vmem>>)
    %c0_i32_28 = arith.constant 0 : i32
    %40 = arith.cmpi eq, %arg1, %c0_i32_28 : i32
    %41 = arith.extui %40 : i1 to i32
    %c0_i32_29 = arith.constant 0 : i32
    %42 = arith.cmpi ne, %41, %c0_i32_29 : i32
    scf.if %42 {
      %cst_133 = arith.constant 0.000000e+00 : bf16
      %164 = vector.broadcast %cst_133 : bf16 to vector<1x16x128xbf16>
      %c0_i32_134 = arith.constant 0 : i32
      %c0_i32_135 = arith.constant 0 : i32
      %c0_i32_136 = arith.constant 0 : i32
      %165 = tpu.memref_slice %arg7[%9, %c0_i32_134, %c0_i32_135, %c0_i32_136] : memref<2x18x16x128xbf16, #tpu.memory_space<vmem>> -> memref<1x18x16x128xbf16, #tpu.memory_space<vmem>>
      %166 = tpu.memref_squeeze %165 : memref<1x18x16x128xbf16, #tpu.memory_space<vmem>> -> memref<18x16x128xbf16, #tpu.memory_space<vmem>>
      %c0_137 = arith.constant 0 : index
      %c0_138 = arith.constant 0 : index
      %c0_139 = arith.constant 0 : index
      %167 = vector.load %166[%c0_137, %c0_138, %c0_139] : memref<18x16x128xbf16, #tpu.memory_space<vmem>>, vector<1x16x128xbf16>
      tpu.vector_store %166[%c0_137, %c0_138, %c0_139], %164 {strides = array<i32>} : memref<18x16x128xbf16, #tpu.memory_space<vmem>>, vector<1x16x128xbf16>,
    } else {
    }
    %c0_i32_30 = arith.constant 0 : i32
    %43 = arith.cmpi eq, %arg1, %c0_i32_30 : i32
    %44 = arith.extui %43 : i1 to i32
    %c0_i32_31 = arith.constant 0 : i32
    %45 = arith.cmpi ne, %44, %c0_i32_31 : i32
    scf.if %45 {
      %cst_133 = arith.constant 0.000000e+00 : bf16
      %164 = vector.broadcast %cst_133 : bf16 to vector<1x16x128xbf16>
      %c0_i32_134 = arith.constant 0 : i32
      %c0_i32_135 = arith.constant 0 : i32
      %c0_i32_136 = arith.constant 0 : i32
      %165 = tpu.memref_slice %arg7[%9, %c0_i32_134, %c0_i32_135, %c0_i32_136] : memref<2x18x16x128xbf16, #tpu.memory_space<vmem>> -> memref<1x18x16x128xbf16, #tpu.memory_space<vmem>>
      %166 = tpu.memref_squeeze %165 : memref<1x18x16x128xbf16, #tpu.memory_space<vmem>> -> memref<18x16x128xbf16, #tpu.memory_space<vmem>>
      %c17 = arith.constant 17 : index
      %c0_137 = arith.constant 0 : index
      %c0_138 = arith.constant 0 : index
      %167 = vector.load %166[%c17, %c0_137, %c0_138] : memref<18x16x128xbf16, #tpu.memory_space<vmem>>, vector<1x16x128xbf16>
      tpu.vector_store %166[%c17, %c0_137, %c0_138], %164 {strides = array<i32>} : memref<18x16x128xbf16, #tpu.memory_space<vmem>>, vector<1x16x128xbf16>,
    } else {
    }
    %46 = tpu.iota {dimensions = array<i32: 0>} : vector<256x1xi32>
    %c16_i32_32 = arith.constant 16 : i32
    %c0_i32_33 = arith.constant 0 : i32
    %47 = arith.cmpi eq, %c16_i32_32, %c0_i32_33 : i32
    %c1_i32_34 = arith.constant 1 : i32
    %48 = arith.select %47, %c1_i32_34, %c16_i32_32 : i32
    %49 = vector.broadcast %48 : i32 to vector<256x1xi32>
    %50 = arith.remsi %46, %49 : vector<256x1xi32>
    %c0_i32_35 = arith.constant 0 : i32
    %51 = vector.broadcast %c0_i32_35 : i32 to vector<256x1xi32>
    %52 = arith.cmpi ne, %50, %51 : vector<256x1xi32>
    %c0_i32_36 = arith.constant 0 : i32
    %53 = vector.broadcast %c0_i32_36 : i32 to vector<256x1xi32>
    %54 = arith.cmpi slt, %50, %53 : vector<256x1xi32>
    %c0_i32_37 = arith.constant 0 : i32
    %55 = arith.cmpi slt, %48, %c0_i32_37 : i32
    %56 = vector.broadcast %55 : i1 to vector<256x1xi1>
    %57 = vector.broadcast %56 : vector<256x1xi1> to vector<256x1xi1>
    %58 = arith.xori %54, %57 : vector<256x1xi1>
    %59 = arith.andi %58, %52 : vector<256x1xi1>
    %60 = vector.broadcast %48 : i32 to vector<256x1xi32>
    %61 = arith.addi %50, %60 : vector<256x1xi32>
    %62 = arith.select %59, %61, %50 : vector<256x1xi1>, vector<256x1xi32>
    %c0_i32_38 = arith.constant 0 : i32
    %c0_i32_39 = arith.constant 0 : i32
    %c0_i32_40 = arith.constant 0 : i32
    %63 = tpu.memref_slice %arg7[%9, %c0_i32_38, %c0_i32_39, %c0_i32_40] : memref<2x18x16x128xbf16, #tpu.memory_space<vmem>> -> memref<1x18x16x128xbf16, #tpu.memory_space<vmem>>
    %64 = tpu.memref_squeeze %63 : memref<1x18x16x128xbf16, #tpu.memory_space<vmem>> -> memref<18x16x128xbf16, #tpu.memory_space<vmem>>
    %c0 = arith.constant 0 : index
    %c0_41 = arith.constant 0 : index
    %c0_42 = arith.constant 0 : index
    %65 = vector.load %64[%c0, %c0_41, %c0_42] : memref<18x16x128xbf16, #tpu.memory_space<vmem>>, vector<16x16x128xbf16>
    %66 = vector.shape_cast %65 : vector<16x16x128xbf16> to vector<256x128xbf16>
    %c0_43 = arith.constant 0 : index
    %c0_44 = arith.constant 0 : index
    %c0_45 = arith.constant 0 : index
    %67 = vector.load %arg3[%c0_43, %c0_44, %c0_45] : memref<9x128x128xbf16, #tpu.memory_space<vmem>>, vector<1x128x128xbf16>
    %68 = vector.shape_cast %67 : vector<1x128x128xbf16> to vector<128x128xbf16>
    %cst = arith.constant dense<0.000000e+00> : vector<256x128xf32>
    %69 = tpu.matmul %66, %68, %cst {dimension_numbers = #tpu.dot_dimension_numbers<[1], [0], [0], [1], [0, 0, 1, 1], [], []>} : vector<256x128xbf16>, vector<128x128xbf16>, vector<256x128xf32> -> vector<256x128xf32>
    %c0_i32_46 = arith.constant 0 : i32
    %c0_i32_47 = arith.constant 0 : i32
    %c0_i32_48 = arith.constant 0 : i32
    %70 = tpu.memref_slice %arg7[%9, %c0_i32_46, %c0_i32_47, %c0_i32_48] : memref<2x18x16x128xbf16, #tpu.memory_space<vmem>> -> memref<1x18x16x128xbf16, #tpu.memory_space<vmem>>
    %71 = tpu.memref_squeeze %70 : memref<1x18x16x128xbf16, #tpu.memory_space<vmem>> -> memref<18x16x128xbf16, #tpu.memory_space<vmem>>
    %c1 = arith.constant 1 : index
    %c0_49 = arith.constant 0 : index
    %c0_50 = arith.constant 0 : index
    %72 = vector.load %71[%c1, %c0_49, %c0_50] : memref<18x16x128xbf16, #tpu.memory_space<vmem>>, vector<16x16x128xbf16>
    %73 = vector.shape_cast %72 : vector<16x16x128xbf16> to vector<256x128xbf16>
    %c3 = arith.constant 3 : index
    %c0_51 = arith.constant 0 : index
    %c0_52 = arith.constant 0 : index
    %74 = vector.load %arg3[%c3, %c0_51, %c0_52] : memref<9x128x128xbf16, #tpu.memory_space<vmem>>, vector<1x128x128xbf16>
    %75 = vector.shape_cast %74 : vector<1x128x128xbf16> to vector<128x128xbf16>
    %cst_53 = arith.constant dense<0.000000e+00> : vector<256x128xf32>
    %76 = tpu.matmul %73, %75, %cst_53 {dimension_numbers = #tpu.dot_dimension_numbers<[1], [0], [0], [1], [0, 0, 1, 1], [], []>} : vector<256x128xbf16>, vector<128x128xbf16>, vector<256x128xf32> -> vector<256x128xf32>
    %c0_i32_54 = arith.constant 0 : i32
    %c0_i32_55 = arith.constant 0 : i32
    %c0_i32_56 = arith.constant 0 : i32
    %77 = tpu.memref_slice %arg7[%9, %c0_i32_54, %c0_i32_55, %c0_i32_56] : memref<2x18x16x128xbf16, #tpu.memory_space<vmem>> -> memref<1x18x16x128xbf16, #tpu.memory_space<vmem>>
    %78 = tpu.memref_squeeze %77 : memref<1x18x16x128xbf16, #tpu.memory_space<vmem>> -> memref<18x16x128xbf16, #tpu.memory_space<vmem>>
    %c2 = arith.constant 2 : index
    %c0_57 = arith.constant 0 : index
    %c0_58 = arith.constant 0 : index
    %79 = vector.load %78[%c2, %c0_57, %c0_58] : memref<18x16x128xbf16, #tpu.memory_space<vmem>>, vector<16x16x128xbf16>
    %80 = vector.shape_cast %79 : vector<16x16x128xbf16> to vector<256x128xbf16>
    %c6 = arith.constant 6 : index
    %c0_59 = arith.constant 0 : index
    %c0_60 = arith.constant 0 : index
    %81 = vector.load %arg3[%c6, %c0_59, %c0_60] : memref<9x128x128xbf16, #tpu.memory_space<vmem>>, vector<1x128x128xbf16>
    %82 = vector.shape_cast %81 : vector<1x128x128xbf16> to vector<128x128xbf16>
    %cst_61 = arith.constant dense<0.000000e+00> : vector<256x128xf32>
    %83 = tpu.matmul %80, %82, %cst_61 {dimension_numbers = #tpu.dot_dimension_numbers<[1], [0], [0], [1], [0, 0, 1, 1], [], []>} : vector<256x128xbf16>, vector<128x128xbf16>, vector<256x128xf32> -> vector<256x128xf32>
    %84 = arith.addf %69, %76 : vector<256x128xf32>
    %85 = arith.addf %84, %83 : vector<256x128xf32>
    %c1_i32_62 = arith.constant 1 : i32
    %86 = tpu.dynamic_rotate %85 by %c1_i32_62 dim 0 : vector<256x128xf32>, i32 -> vector<256x128xf32>
    %c1_i32_63 = arith.constant 1 : i32
    %87 = vector.broadcast %c1_i32_63 : i32 to vector<256x1xi32>
    %88 = arith.cmpi sge, %62, %87 : vector<256x1xi32>
    %cst_64 = arith.constant 0.000000e+00 : f32
    %89 = vector.shape_cast %88 : vector<256x1xi1> to vector<256x1xi1>
    %90 = vector.broadcast %89 : vector<256x1xi1> to vector<256x128xi1>
    %91 = vector.broadcast %cst_64 : f32 to vector<256x128xf32>
    %92 = arith.select %90, %86, %91 : vector<256x128xi1>, vector<256x128xf32>
    %c0_i32_65 = arith.constant 0 : i32
    %c0_i32_66 = arith.constant 0 : i32
    %c0_i32_67 = arith.constant 0 : i32
    %93 = tpu.memref_slice %arg7[%9, %c0_i32_65, %c0_i32_66, %c0_i32_67] : memref<2x18x16x128xbf16, #tpu.memory_space<vmem>> -> memref<1x18x16x128xbf16, #tpu.memory_space<vmem>>
    %94 = tpu.memref_squeeze %93 : memref<1x18x16x128xbf16, #tpu.memory_space<vmem>> -> memref<18x16x128xbf16, #tpu.memory_space<vmem>>
    %c0_68 = arith.constant 0 : index
    %c0_69 = arith.constant 0 : index
    %c0_70 = arith.constant 0 : index
    %95 = vector.load %94[%c0_68, %c0_69, %c0_70] : memref<18x16x128xbf16, #tpu.memory_space<vmem>>, vector<16x16x128xbf16>
    %96 = vector.shape_cast %95 : vector<16x16x128xbf16> to vector<256x128xbf16>
    %c1_71 = arith.constant 1 : index
    %c0_72 = arith.constant 0 : index
    %c0_73 = arith.constant 0 : index
    %97 = vector.load %arg3[%c1_71, %c0_72, %c0_73] : memref<9x128x128xbf16, #tpu.memory_space<vmem>>, vector<1x128x128xbf16>
    %98 = vector.shape_cast %97 : vector<1x128x128xbf16> to vector<128x128xbf16>
    %cst_74 = arith.constant dense<0.000000e+00> : vector<256x128xf32>
    %99 = tpu.matmul %96, %98, %cst_74 {dimension_numbers = #tpu.dot_dimension_numbers<[1], [0], [0], [1], [0, 0, 1, 1], [], []>} : vector<256x128xbf16>, vector<128x128xbf16>, vector<256x128xf32> -> vector<256x128xf32>
    %c0_i32_75 = arith.constant 0 : i32
    %c0_i32_76 = arith.constant 0 : i32
    %c0_i32_77 = arith.constant 0 : i32
    %100 = tpu.memref_slice %arg7[%9, %c0_i32_75, %c0_i32_76, %c0_i32_77] : memref<2x18x16x128xbf16, #tpu.memory_space<vmem>> -> memref<1x18x16x128xbf16, #tpu.memory_space<vmem>>
    %101 = tpu.memref_squeeze %100 : memref<1x18x16x128xbf16, #tpu.memory_space<vmem>> -> memref<18x16x128xbf16, #tpu.memory_space<vmem>>
    %c1_78 = arith.constant 1 : index
    %c0_79 = arith.constant 0 : index
    %c0_80 = arith.constant 0 : index
    %102 = vector.load %101[%c1_78, %c0_79, %c0_80] : memref<18x16x128xbf16, #tpu.memory_space<vmem>>, vector<16x16x128xbf16>
    %103 = vector.shape_cast %102 : vector<16x16x128xbf16> to vector<256x128xbf16>
    %c4 = arith.constant 4 : index
    %c0_81 = arith.constant 0 : index
    %c0_82 = arith.constant 0 : index
    %104 = vector.load %arg3[%c4, %c0_81, %c0_82] : memref<9x128x128xbf16, #tpu.memory_space<vmem>>, vector<1x128x128xbf16>
    %105 = vector.shape_cast %104 : vector<1x128x128xbf16> to vector<128x128xbf16>
    %cst_83 = arith.constant dense<0.000000e+00> : vector<256x128xf32>
    %106 = tpu.matmul %103, %105, %cst_83 {dimension_numbers = #tpu.dot_dimension_numbers<[1], [0], [0], [1], [0, 0, 1, 1], [], []>} : vector<256x128xbf16>, vector<128x128xbf16>, vector<256x128xf32> -> vector<256x128xf32>
    %c0_i32_84 = arith.constant 0 : i32
    %c0_i32_85 = arith.constant 0 : i32
    %c0_i32_86 = arith.constant 0 : i32
    %107 = tpu.memref_slice %arg7[%9, %c0_i32_84, %c0_i32_85, %c0_i32_86] : memref<2x18x16x128xbf16, #tpu.memory_space<vmem>> -> memref<1x18x16x128xbf16, #tpu.memory_space<vmem>>
    %108 = tpu.memref_squeeze %107 : memref<1x18x16x128xbf16, #tpu.memory_space<vmem>> -> memref<18x16x128xbf16, #tpu.memory_space<vmem>>
    %c2_87 = arith.constant 2 : index
    %c0_88 = arith.constant 0 : index
    %c0_89 = arith.constant 0 : index
    %109 = vector.load %108[%c2_87, %c0_88, %c0_89] : memref<18x16x128xbf16, #tpu.memory_space<vmem>>, vector<16x16x128xbf16>
    %110 = vector.shape_cast %109 : vector<16x16x128xbf16> to vector<256x128xbf16>
    %c7 = arith.constant 7 : index
    %c0_90 = arith.constant 0 : index
    %c0_91 = arith.constant 0 : index
    %111 = vector.load %arg3[%c7, %c0_90, %c0_91] : memref<9x128x128xbf16, #tpu.memory_space<vmem>>, vector<1x128x128xbf16>
    %112 = vector.shape_cast %111 : vector<1x128x128xbf16> to vector<128x128xbf16>
    %cst_92 = arith.constant dense<0.000000e+00> : vector<256x128xf32>
    %113 = tpu.matmul %110, %112, %cst_92 {dimension_numbers = #tpu.dot_dimension_numbers<[1], [0], [0], [1], [0, 0, 1, 1], [], []>} : vector<256x128xbf16>, vector<128x128xbf16>, vector<256x128xf32> -> vector<256x128xf32>
    %114 = arith.addf %92, %99 : vector<256x128xf32>
    %115 = arith.addf %114, %106 : vector<256x128xf32>
    %116 = arith.addf %115, %113 : vector<256x128xf32>
    %c0_i32_93 = arith.constant 0 : i32
    %c0_i32_94 = arith.constant 0 : i32
    %c0_i32_95 = arith.constant 0 : i32
    %117 = tpu.memref_slice %arg7[%9, %c0_i32_93, %c0_i32_94, %c0_i32_95] : memref<2x18x16x128xbf16, #tpu.memory_space<vmem>> -> memref<1x18x16x128xbf16, #tpu.memory_space<vmem>>
    %118 = tpu.memref_squeeze %117 : memref<1x18x16x128xbf16, #tpu.memory_space<vmem>> -> memref<18x16x128xbf16, #tpu.memory_space<vmem>>
    %c0_96 = arith.constant 0 : index
    %c0_97 = arith.constant 0 : index
    %c0_98 = arith.constant 0 : index
    %119 = vector.load %118[%c0_96, %c0_97, %c0_98] : memref<18x16x128xbf16, #tpu.memory_space<vmem>>, vector<16x16x128xbf16>
    %120 = vector.shape_cast %119 : vector<16x16x128xbf16> to vector<256x128xbf16>
    %c2_99 = arith.constant 2 : index
    %c0_100 = arith.constant 0 : index
    %c0_101 = arith.constant 0 : index
    %121 = vector.load %arg3[%c2_99, %c0_100, %c0_101] : memref<9x128x128xbf16, #tpu.memory_space<vmem>>, vector<1x128x128xbf16>
    %122 = vector.shape_cast %121 : vector<1x128x128xbf16> to vector<128x128xbf16>
    %cst_102 = arith.constant dense<0.000000e+00> : vector<256x128xf32>
    %123 = tpu.matmul %120, %122, %cst_102 {dimension_numbers = #tpu.dot_dimension_numbers<[1], [0], [0], [1], [0, 0, 1, 1], [], []>} : vector<256x128xbf16>, vector<128x128xbf16>, vector<256x128xf32> -> vector<256x128xf32>
    %c0_i32_103 = arith.constant 0 : i32
    %c0_i32_104 = arith.constant 0 : i32
    %c0_i32_105 = arith.constant 0 : i32
    %124 = tpu.memref_slice %arg7[%9, %c0_i32_103, %c0_i32_104, %c0_i32_105] : memref<2x18x16x128xbf16, #tpu.memory_space<vmem>> -> memref<1x18x16x128xbf16, #tpu.memory_space<vmem>>
    %125 = tpu.memref_squeeze %124 : memref<1x18x16x128xbf16, #tpu.memory_space<vmem>> -> memref<18x16x128xbf16, #tpu.memory_space<vmem>>
    %c1_106 = arith.constant 1 : index
    %c0_107 = arith.constant 0 : index
    %c0_108 = arith.constant 0 : index
    %126 = vector.load %125[%c1_106, %c0_107, %c0_108] : memref<18x16x128xbf16, #tpu.memory_space<vmem>>, vector<16x16x128xbf16>
    %127 = vector.shape_cast %126 : vector<16x16x128xbf16> to vector<256x128xbf16>
    %c5 = arith.constant 5 : index
    %c0_109 = arith.constant 0 : index
    %c0_110 = arith.constant 0 : index
    %128 = vector.load %arg3[%c5, %c0_109, %c0_110] : memref<9x128x128xbf16, #tpu.memory_space<vmem>>, vector<1x128x128xbf16>
    %129 = vector.shape_cast %128 : vector<1x128x128xbf16> to vector<128x128xbf16>
    %cst_111 = arith.constant dense<0.000000e+00> : vector<256x128xf32>
    %130 = tpu.matmul %127, %129, %cst_111 {dimension_numbers = #tpu.dot_dimension_numbers<[1], [0], [0], [1], [0, 0, 1, 1], [], []>} : vector<256x128xbf16>, vector<128x128xbf16>, vector<256x128xf32> -> vector<256x128xf32>
    %c0_i32_112 = arith.constant 0 : i32
    %c0_i32_113 = arith.constant 0 : i32
    %c0_i32_114 = arith.constant 0 : i32
    %131 = tpu.memref_slice %arg7[%9, %c0_i32_112, %c0_i32_113, %c0_i32_114] : memref<2x18x16x128xbf16, #tpu.memory_space<vmem>> -> memref<1x18x16x128xbf16, #tpu.memory_space<vmem>>
    %132 = tpu.memref_squeeze %131 : memref<1x18x16x128xbf16, #tpu.memory_space<vmem>> -> memref<18x16x128xbf16, #tpu.memory_space<vmem>>
    %c2_115 = arith.constant 2 : index
    %c0_116 = arith.constant 0 : index
    %c0_117 = arith.constant 0 : index
    %133 = vector.load %132[%c2_115, %c0_116, %c0_117] : memref<18x16x128xbf16, #tpu.memory_space<vmem>>, vector<16x16x128xbf16>
    %134 = vector.shape_cast %133 : vector<16x16x128xbf16> to vector<256x128xbf16>
    %c8 = arith.constant 8 : index
    %c0_118 = arith.constant 0 : index
    %c0_119 = arith.constant 0 : index
    %135 = vector.load %arg3[%c8, %c0_118, %c0_119] : memref<9x128x128xbf16, #tpu.memory_space<vmem>>, vector<1x128x128xbf16>
    %136 = vector.shape_cast %135 : vector<1x128x128xbf16> to vector<128x128xbf16>
    %cst_120 = arith.constant dense<0.000000e+00> : vector<256x128xf32>
    %137 = tpu.matmul %134, %136, %cst_120 {dimension_numbers = #tpu.dot_dimension_numbers<[1], [0], [0], [1], [0, 0, 1, 1], [], []>} : vector<256x128xbf16>, vector<128x128xbf16>, vector<256x128xf32> -> vector<256x128xf32>
    %138 = arith.addf %123, %130 : vector<256x128xf32>
    %139 = arith.addf %138, %137 : vector<256x128xf32>
    %c255_i32 = arith.constant 255 : i32
    %140 = tpu.dynamic_rotate %139 by %c255_i32 dim 0 : vector<256x128xf32>, i32 -> vector<256x128xf32>
    %c14_i32 = arith.constant 14 : i32
    %141 = vector.broadcast %c14_i32 : i32 to vector<256x1xi32>
    %142 = arith.cmpi sle, %62, %141 : vector<256x1xi32>
    %cst_121 = arith.constant 0.000000e+00 : f32
    %143 = vector.shape_cast %142 : vector<256x1xi1> to vector<256x1xi1>
    %144 = vector.broadcast %143 : vector<256x1xi1> to vector<256x128xi1>
    %145 = vector.broadcast %cst_121 : f32 to vector<256x128xf32>
    %146 = arith.select %144, %140, %145 : vector<256x128xi1>, vector<256x128xf32>
    %147 = arith.addf %116, %146 : vector<256x128xf32>
    %c0_122 = arith.constant 0 : index
    %c0_123 = arith.constant 0 : index
    %148 = vector.load %arg4[%c0_122, %c0_123] : memref<1x128xf32, #tpu.memory_space<vmem>>, vector<1x128xf32>
    %149 = vector.broadcast %148 : vector<1x128xf32> to vector<256x128xf32>
    %150 = arith.addf %147, %149 : vector<256x128xf32>
    %151 = arith.negf %150 : vector<256x128xf32>
    %152 = math.exp %151 : vector<256x128xf32>
    %cst_124 = arith.constant 1.000000e+00 : f32
    %153 = vector.broadcast %cst_124 : f32 to vector<256x128xf32>
    %154 = arith.addf %153, %152 : vector<256x128xf32>
    %155 = arith.divf %153, %154 : vector<256x128xf32>
    %156 = arith.mulf %150, %155 : vector<256x128xf32>
    %c0_125 = arith.constant 0 : index
    %c0_126 = arith.constant 0 : index
    %c0_127 = arith.constant 0 : index
    %c0_128 = arith.constant 0 : index
    %157 = vector.load %arg5[%c0_125, %c0_126, %c0_127, %c0_128] : memref<1x16x16x128xbf16, #tpu.memory_space<vmem>>, vector<1x16x16x128xbf16>
    %158 = vector.shape_cast %157 : vector<1x16x16x128xbf16> to vector<256x128xbf16>
    %159 = arith.extf %158 : vector<256x128xbf16> to vector<256x128xf32>
    %160 = arith.addf %156, %159 : vector<256x128xf32>
    %161 = vector.shape_cast %160 : vector<256x128xf32> to vector<1x16x16x128xf32>
    %162 = arith.truncf %161 : vector<1x16x16x128xf32> to vector<1x16x16x128xbf16>
    %c0_129 = arith.constant 0 : index
    %c0_130 = arith.constant 0 : index
    %c0_131 = arith.constant 0 : index
    %c0_132 = arith.constant 0 : index
    %163 = vector.load %arg6[%c0_129, %c0_130, %c0_131, %c0_132] : memref<1x16x16x128xbf16, #tpu.memory_space<vmem>>, vector<1x16x16x128xbf16>
    tpu.vector_store %arg6[%c0_129, %c0_130, %c0_131, %c0_132], %162 {strides = array<i32>} : memref<1x16x16x128xbf16, #tpu.memory_space<vmem>>, vector<1x16x16x128xbf16>,
    return
  }
  func.func @transform_1(%arg0: i32, %arg1: i32) -> (i32, i32, i32) {
    %c0_i32 = arith.constant 0 : i32
    %c0_i32_0 = arith.constant 0 : i32
    %c0_i32_1 = arith.constant 0 : i32
    %c0_i32_2 = arith.constant 0 : i32
    return %c0_i32, %c0_i32_0, %c0_i32_1 : i32, i32, i32
  }
  func.func @transform_2(%arg0: i32, %arg1: i32) -> (i32, i32) {
    %c0_i32 = arith.constant 0 : i32
    %c0_i32_0 = arith.constant 0 : i32
    %c0_i32_1 = arith.constant 0 : i32
    return %c0_i32, %c0_i32_0 : i32, i32
  }
  func.func @transform_3(%arg0: i32, %arg1: i32) -> (i32, i32, i32, i32) {
    %c0_i32 = arith.constant 0 : i32
    %c0_i32_0 = arith.constant 0 : i32
    %c0_i32_1 = arith.constant 0 : i32
    return %arg0, %arg1, %c0_i32, %c0_i32_0 : i32, i32, i32, i32
  }
  func.func @transform_4(%arg0: i32, %arg1: i32) -> (i32, i32, i32, i32) {
    %c0_i32 = arith.constant 0 : i32
    %c0_i32_0 = arith.constant 0 : i32
    %c0_i32_1 = arith.constant 0 : i32
    return %arg0, %arg1, %c0_i32, %c0_i32_0 : i32, i32, i32, i32
  }
}

</mosaic_0001>

<llo_original>
// kernel: c1_forward.2
$region0: #{c1_forward.2}
  #allocation0 [shape = 'u32[]', space=smem, size = 0x4, offset = 0x4, fixed_abs, tag = 'smem constant byte address 0x4 - core index']
  #allocation1 [shape = 'u32[144,128]{1,0:T(1,128)}', space=vmem, size = 0x12000, scoped, tag = 'internal scratch']
  %s0 = inlined_call_operand.vmem [shape: bf16[512,4], index: 0, kind: input, shape index: {}]
  %s1 = inlined_call_operand.hbm [shape: bf16[4,128], index: 1, kind: input, shape index: {}]
  %s2 = inlined_call_operand.hbm [shape: f32[1,128], index: 2, kind: input, shape index: {}]
  %s3 = inlined_call_operand.vmem [shape: bf16[512,128], index: 3, kind: output, shape index: {}]
  %s4 = sld [smem:[#allocation0]]
  $region30: #{c1_forward.2} parent=0
    _
  %s6 = ssub.s32 1, %s4
  %s7 = scalar_select 0, %s6, %s4
  $region1: #{c1_forward.2} parent=0
    #allocation2 [shape = 'u8[1024]{0}', space=vmem, size = 0x400, scoped, tag = 'input window, operand 1, single buffered']
    #allocation3 [shape = 's32[1]{0}', space=sflag, size = 0x4, scoped, tag = 'scoped memory for c1_forward.2']
    #allocation4 [shape = 'u8[512]{0}', space=vmem, size = 0x400, scoped, tag = 'input window, operand 2, single buffered']
    #allocation5 [shape = 's32[1]{0}', space=sflag, size = 0x4, scoped, tag = 'scoped memory for c1_forward.2']
    %8 = vsyncpa [#allocation3], 0
    %9 = vsyncpa [#allocation5], 0
    // Predicated region
    $region2: #{c1_forward.2} parent=1 // pred_check
      _
    $region3: #{c1_forward.2} parent=1 // pred_check_branch
      %11 = sbr.rel (0) target = $region5
    $region4: #{c1_forward.2} parent=1 // pred_region
      _
    $region5: #{c1_forward.2} parent=1 // pred_fallthru
      _
    // Predicated region
    $region6: #{c1_forward.2} parent=1 // pred_check
      _
    $region7: #{c1_forward.2} parent=1 // pred_check_branch
      %13 = sbr.rel (0) target = $region9
    $region8: #{c1_forward.2} parent=1 // pred_region
      %s15 = ssub.s32 32, 32
      %16 = vsyncadd [#allocation3], %s15
      %s18 = sshll.u32 [#allocation2], 4
      %s19 = int_to_ptr.vmem [resolvable:$true] %s18
      %21 = dma.hbm_to_vmem [thread:$0]  %s1, 32, %s19, [#allocation3]
    $region9: #{c1_forward.2} parent=1 // pred_fallthru
      _
    // Predicated region
    $region10: #{c1_forward.2} parent=1 // pred_check
      _
    $region11: #{c1_forward.2} parent=1 // pred_check_branch
      %23 = sbr.rel (0) target = $region13
    $region12: #{c1_forward.2} parent=1 // pred_region
      %s25 = ssub.s32 16, 16
      %26 = vsyncadd [#allocation5], %s25
      %s28 = sshll.u32 [#allocation4], 4
      %s29 = int_to_ptr.vmem [resolvable:$true] %s28
      %31 = dma.hbm_to_vmem [thread:$0]  %s2, 16, %s29, [#allocation5]
    $region13: #{c1_forward.2} parent=1 // pred_fallthru
      _
    // Predicated region
    $region14: #{c1_forward.2} parent=1 // pred_check
      _
    $region15: #{c1_forward.2} parent=1 // pred_check_branch
      %33 = sbr.rel (0) target = $region17
    $region16: #{c1_forward.2} parent=1 // pred_region
      %34 = dma.done [#allocation3], 32
    $region17: #{c1_forward.2} parent=1 // pred_fallthru
      _
    // Predicated region
    $region18: #{c1_forward.2} parent=1 // pred_check
      _
    $region19: #{c1_forward.2} parent=1 // pred_check_branch
      %36 = sbr.rel (0) target = $region21
    $region20: #{c1_forward.2} parent=1 // pred_region
      %37 = dma.done [#allocation5], 16
    $region21: #{c1_forward.2} parent=1 // pred_fallthru
      _
    %v39 = vld [vmem:[%s0] sm:$0xf]
    %v40 = vld [vmem:[%s0 + $0x4] sm:$0xf]
    %v41 = vld [vmem:[%s0 + $0x8] sm:$0xf]
    %v42 = vld [vmem:[%s0 + $0xc] sm:$0xf]
    %v43 = vld [vmem:[%s0 + $0x10] sm:$0xf]
    %v44 = vld [vmem:[%s0 + $0x14] sm:$0xf]
    %v45 = vld [vmem:[%s0 + $0x18] sm:$0xf]
    %v46 = vld [vmem:[%s0 + $0x1c] sm:$0xf]
    %v47 = vld [vmem:[%s0 + $0x20] sm:$0xf]
    %v48 = vld [vmem:[%s0 + $0x24] sm:$0xf]
    %v49 = vld [vmem:[%s0 + $0x28] sm:$0xf]
    %v50 = vld [vmem:[%s0 + $0x2c] sm:$0xf]
    %v51 = vld [vmem:[%s0 + $0x30] sm:$0xf]
    %v52 = vld [vmem:[%s0 + $0x34] sm:$0xf]
    %v53 = vld [vmem:[%s0 + $0x38] sm:$0xf]
    %v54 = vld [vmem:[%s0 + $0x3c] sm:$0xf]
    %v55 = vld [vmem:[%s0 + $0x40] sm:$0xf]
    %v56 = vld [vmem:[%s0 + $0x44] sm:$0xf]
    %v57 = vld [vmem:[%s0 + $0x48] sm:$0xf]
    %v58 = vld [vmem:[%s0 + $0x4c] sm:$0xf]
    %v59 = vld [vmem:[%s0 + $0x50] sm:$0xf]
    %v60 = vld [vmem:[%s0 + $0x54] sm:$0xf]
    %v61 = vld [vmem:[%s0 + $0x58] sm:$0xf]
    %v62 = vld [vmem:[%s0 + $0x5c] sm:$0xf]
    %v63 = vld [vmem:[%s0 + $0x60] sm:$0xf]
    %v64 = vld [vmem:[%s0 + $0x64] sm:$0xf]
    %v65 = vld [vmem:[%s0 + $0x68] sm:$0xf]
    %v66 = vld [vmem:[%s0 + $0x6c] sm:$0xf]
    %v67 = vld [vmem:[%s0 + $0x70] sm:$0xf]
    %v68 = vld [vmem:[%s0 + $0x74] sm:$0xf]
    %v69 = vld [vmem:[%s0 + $0x78] sm:$0xf]
    %v70 = vld [vmem:[%s0 + $0x7c] sm:$0xf]
    %v71 = vld [vmem:[%s0 + $0x80] sm:$0xf]
    %v72 = vld [vmem:[%s0 + $0x84] sm:$0xf]
    %v73 = vld [vmem:[%s0 + $0x88] sm:$0xf]
    %v74 = vld [vmem:[%s0 + $0x8c] sm:$0xf]
    %v75 = vld [vmem:[%s0 + $0x90] sm:$0xf]
    %v76 = vld [vmem:[%s0 + $0x94] sm:$0xf]
    %v77 = vld [vmem:[%s0 + $0x98] sm:$0xf]
    %v78 = vld [vmem:[%s0 + $0x9c] sm:$0xf]
    %v79 = vld [vmem:[%s0 + $0xa0] sm:$0xf]
    %v80 = vld [vmem:[%s0 + $0xa4] sm:$0xf]
    %v81 = vld [vmem:[%s0 + $0xa8] sm:$0xf]
    %v82 = vld [vmem:[%s0 + $0xac] sm:$0xf]
    %v83 = vld [vmem:[%s0 + $0xb0] sm:$0xf]
    %v84 = vld [vmem:[%s0 + $0xb4] sm:$0xf]
    %v85 = vld [vmem:[%s0 + $0xb8] sm:$0xf]
    %v86 = vld [vmem:[%s0 + $0xbc] sm:$0xf]
    %v87 = vld [vmem:[%s0 + $0xc0] sm:$0xf]
    %v88 = vld [vmem:[%s0 + $0xc4] sm:$0xf]
    %v89 = vld [vmem:[%s0 + $0xc8] sm:$0xf]
    %v90 = vld [vmem:[%s0 + $0xcc] sm:$0xf]
    %v91 = vld [vmem:[%s0 + $0xd0] sm:$0xf]
    %v92 = vld [vmem:[%s0 + $0xd4] sm:$0xf]
    %v93 = vld [vmem:[%s0 + $0xd8] sm:$0xf]
    %v94 = vld [vmem:[%s0 + $0xdc] sm:$0xf]
    %v95 = vld [vmem:[%s0 + $0xe0] sm:$0xf]
    %v96 = vld [vmem:[%s0 + $0xe4] sm:$0xf]
    %v97 = vld [vmem:[%s0 + $0xe8] sm:$0xf]
    %v98 = vld [vmem:[%s0 + $0xec] sm:$0xf]
    %v99 = vld [vmem:[%s0 + $0xf0] sm:$0xf]
    %v100 = vld [vmem:[%s0 + $0xf4] sm:$0xf]
    %v101 = vld [vmem:[%s0 + $0xf8] sm:$0xf]
    %v102 = vld [vmem:[%s0 + $0xfc] sm:$0xf]
    %v103 = vld [vmem:[#allocation2] sm:$0x3]
    %v104 = vld [vmem:[#allocation4] sm:$0x1]
    %v106 = vlaneseq
    %v107 = vshrl.u32 %v106, 7
    %v108 = vsub.s32 0, %v107
    %v109 = vrot.slane %v104, %v108
    %v175 = vunpack.c.l.b16 %v39
    %v176 = vunpack.c.l.b16 %v40
    %v177 = vunpack.c.l.b16 %v41
    %v178 = vunpack.c.l.b16 %v42
    %v179 = vunpack.c.l.b16 %v43
    %v180 = vunpack.c.l.b16 %v44
    %v181 = vunpack.c.l.b16 %v45
    %v182 = vunpack.c.l.b16 %v46
    %v183 = vunpack.c.l.b16 %v47
    %v184 = vunpack.c.l.b16 %v48
    %v185 = vunpack.c.l.b16 %v49
    %v186 = vunpack.c.l.b16 %v50
    %v187 = vunpack.c.l.b16 %v51
    %v188 = vunpack.c.l.b16 %v52
    %v189 = vunpack.c.l.b16 %v53
    %v190 = vunpack.c.l.b16 %v54
    %v191 = vunpack.c.l.b16 %v55
    %v192 = vunpack.c.l.b16 %v56
    %v193 = vunpack.c.l.b16 %v57
    %v194 = vunpack.c.l.b16 %v58
    %v195 = vunpack.c.l.b16 %v59
    %v196 = vunpack.c.l.b16 %v60
    %v197 = vunpack.c.l.b16 %v61
    %v198 = vunpack.c.l.b16 %v62
    %v199 = vunpack.c.l.b16 %v63
    %v200 = vunpack.c.l.b16 %v64
    %v201 = vunpack.c.l.b16 %v65
    %v202 = vunpack.c.l.b16 %v66
    %v203 = vunpack.c.l.b16 %v67
    %v204 = vunpack.c.l.b16 %v68
    %v205 = vunpack.c.l.b16 %v69
    %v206 = vunpack.c.l.b16 %v70
    %v207 = vunpack.c.l.b16 %v71
    %v208 = vunpack.c.l.b16 %v72
    %v209 = vunpack.c.l.b16 %v73
    %v210 = vunpack.c.l.b16 %v74
    %v211 = vunpack.c.l.b16 %v75
    %v212 = vunpack.c.l.b16 %v76
    %v213 = vunpack.c.l.b16 %v77
    %v214 = vunpack.c.l.b16 %v78
    %v215 = vunpack.c.l.b16 %v79
    %v216 = vunpack.c.l.b16 %v80
    %v217 = vunpack.c.l.b16 %v81
    %v218 = vunpack.c.l.b16 %v82
    %v219 = vunpack.c.l.b16 %v83
    %v220 = vunpack.c.l.b16 %v84
    %v221 = vunpack.c.l.b16 %v85
    %v222 = vunpack.c.l.b16 %v86
    %v223 = vunpack.c.l.b16 %v87
    %v224 = vunpack.c.l.b16 %v88
    %v225 = vunpack.c.l.b16 %v89
    %v226 = vunpack.c.l.b16 %v90
    %v227 = vunpack.c.l.b16 %v91
    %v228 = vunpack.c.l.b16 %v92
    %v229 = vunpack.c.l.b16 %v93
    %v230 = vunpack.c.l.b16 %v94
    %v231 = vunpack.c.l.b16 %v95
    %v232 = vunpack.c.l.b16 %v96
    %v233 = vunpack.c.l.b16 %v97
    %v234 = vunpack.c.l.b16 %v98
    %v235 = vunpack.c.l.b16 %v99
    %v236 = vunpack.c.l.b16 %v100
    %v237 = vunpack.c.l.b16 %v101
    %v238 = vunpack.c.l.b16 %v102
    %v239 = vpack.c.b16 %v176, %v175
    %v240 = vpack.c.b16 %v178, %v177
    %v241 = vpack.c.b16 %v180, %v179
    %v242 = vpack.c.b16 %v182, %v181
    %v243 = vpack.c.b16 %v184, %v183
    %v244 = vpack.c.b16 %v186, %v185
    %v245 = vpack.c.b16 %v188, %v187
    %v246 = vpack.c.b16 %v190, %v189
    %v247 = vpack.c.b16 %v192, %v191
    %v248 = vpack.c.b16 %v194, %v193
    %v249 = vpack.c.b16 %v196, %v195
    %v250 = vpack.c.b16 %v198, %v197
    %v251 = vpack.c.b16 %v200, %v199
    %v252 = vpack.c.b16 %v202, %v201
    %v253 = vpack.c.b16 %v204, %v203
    %v254 = vpack.c.b16 %v206, %v205
    %v255 = vpack.c.b16 %v208, %v207
    %v256 = vpack.c.b16 %v210, %v209
    %v257 = vpack.c.b16 %v212, %v211
    %v258 = vpack.c.b16 %v214, %v213
    %v259 = vpack.c.b16 %v216, %v215
    %v260 = vpack.c.b16 %v218, %v217
    %v261 = vpack.c.b16 %v220, %v219
    %v262 = vpack.c.b16 %v222, %v221
    %v263 = vpack.c.b16 %v224, %v223
    %v264 = vpack.c.b16 %v226, %v225
    %v265 = vpack.c.b16 %v228, %v227
    %v266 = vpack.c.b16 %v230, %v229
    %v267 = vpack.c.b16 %v232, %v231
    %v268 = vpack.c.b16 %v234, %v233
    %v269 = vpack.c.b16 %v236, %v235
    %v270 = vpack.c.b16 %v238, %v237
    %vm271 = vcmask 31744
    %v273 = vsel %vm271, %v239, 0
    %v276 = vsel %vm271, %v240, 0
    %v279 = vsel %vm271, %v241, 0
    %v282 = vsel %vm271, %v242, 0
    %v285 = vsel %vm271, %v243, 0
    %v288 = vsel %vm271, %v244, 0
    %v291 = vsel %vm271, %v245, 0
    %v294 = vsel %vm271, %v246, 0
    %v297 = vsel %vm271, %v247, 0
    %v300 = vsel %vm271, %v248, 0
    %v303 = vsel %vm271, %v249, 0
    %v306 = vsel %vm271, %v250, 0
    %v309 = vsel %vm271, %v251, 0
    %v312 = vsel %vm271, %v252, 0
    %v315 = vsel %vm271, %v253, 0
    %v318 = vsel %vm271, %v254, 0
    %v321 = vsel %vm271, %v255, 0
    %v324 = vsel %vm271, %v256, 0
    %v327 = vsel %vm271, %v257, 0
    %v330 = vsel %vm271, %v258, 0
    %v333 = vsel %vm271, %v259, 0
    %v336 = vsel %vm271, %v260, 0
    %v339 = vsel %vm271, %v261, 0
    %v342 = vsel %vm271, %v262, 0
    %v345 = vsel %vm271, %v263, 0
    %v348 = vsel %vm271, %v264, 0
    %v351 = vsel %vm271, %v265, 0
    %v354 = vsel %vm271, %v266, 0
    %v357 = vsel %vm271, %v267, 0
    %v360 = vsel %vm271, %v268, 0
    %v363 = vsel %vm271, %v269, 0
    %v366 = vsel %vm271, %v270, 0
    %vm368 = vcmask 1041408
    %v370 = vsel %vm368, %v103, 0
    %372 = vmatprep.subr.bf16.mxu0 0
    %373 = vmatpush1.bf16.msra.mxu0 0
    %374 = vmatprep.subr.bf16.mxu0 0
    %375 = vmatpush1.bf16.msra.mxu0 0
    %376 = vmatprep.subr.bf16.mxu0 0
    %377 = vmatpush1.bf16.msra.mxu0 0
    %378 = vmatprep.subr.bf16.mxu0 0
    %379 = vmatpush1.bf16.msra.mxu0 0
    %380 = vmatprep.subr.bf16.mxu0 0
    %381 = vmatpush1.bf16.msra.mxu0 0
    %382 = vmatprep.subr.bf16.mxu0 0
    %383 = vmatpush1.bf16.msra.mxu0 0
    %384 = vmatprep.subr.bf16.mxu0 0
    %385 = vmatpush1.bf16.msra.mxu0 0
    %386 = vmatprep.subr.bf16.mxu0 0
    %387 = vmatpush1.bf16.msra.mxu0 %v370
    %388 = vmatprep.subr.bf16.mxu0 0
    %389 = vmatpush2.bf16.msra.mxu0 0
    %390 = vmatprep.subr.bf16.mxu0 0
    %391 = vmatpush2.bf16.msra.mxu0 0
    %392 = vmatprep.subr.bf16.mxu0 0
    %393 = vmatpush2.bf16.msra.mxu0 0
    %394 = vmatprep.subr.bf16.mxu0 0
    %395 = vmatpush2.bf16.msra.mxu0 0
    %396 = vmatprep.subr.bf16.mxu0 0
    %397 = vmatpush2.bf16.msra.mxu0 0
    %398 = vmatprep.subr.bf16.mxu0 0
    %399 = vmatpush2.bf16.msra.mxu0 0
    %400 = vmatprep.subr.bf16.mxu0 0
    %401 = vmatpush2.bf16.msra.mxu0 0
    %402 = vmatprep.subr.bf16.mxu0 0
    %403 = vmatpush2.bf16.msra.mxu0 0
    %404 = vmatprep.mubr.bf16.mxu0 0
    %405 = vmatmul.mubr.bf16.gmra.mxu0 %v273
    %v406 = vpop.f32.mrf.mxu0
    %v407 = vadd.f32 %v109, %v406
    %v408 = vpop.f32.mrf.mxu0
    %v409 = vpop.f32.mrf.mxu0
    %v410 = vadd.f32 %v109, %v409
    %v411 = vpop.f32.mrf.mxu0
    %412 = vmatprep.mubr.bf16.mxu0 0
    %413 = vmatmul.mubr.bf16.gmra.mxu0 %v276
    %v414 = vpop.f32.mrf.mxu0
    %v415 = vadd.f32 %v109, %v414
    %v416 = vpop.f32.mrf.mxu0
    %v417 = vpop.f32.mrf.mxu0
    %v418 = vadd.f32 %v109, %v417
    %v419 = vpop.f32.mrf.mxu0
    %420 = vmatprep.mubr.bf16.mxu0 0
    %421 = vmatmul.mubr.bf16.gmra.mxu0 %v279
    %v422 = vpop.f32.mrf.mxu0
    %v423 = vadd.f32 %v109, %v422
    %v424 = vpop.f32.mrf.mxu0
    %v425 = vpop.f32.mrf.mxu0
    %v426 = vadd.f32 %v109, %v425
    %v427 = vpop.f32.mrf.mxu0
    %428 = vmatprep.mubr.bf16.mxu0 0
    %429 = vmatmul.mubr.bf16.gmra.mxu0 %v282
    %v430 = vpop.f32.mrf.mxu0
    %v431 = vadd.f32 %v109, %v430
    %v432 = vpop.f32.mrf.mxu0
    %v433 = vpop.f32.mrf.mxu0
    %v434 = vadd.f32 %v109, %v433
    %v435 = vpop.f32.mrf.mxu0
    %436 = vmatprep.mubr.bf16.mxu0 0
    %437 = vmatmul.mubr.bf16.gmra.mxu0 %v285
    %v438 = vpop.f32.mrf.mxu0
    %v439 = vadd.f32 %v109, %v438
    %v440 = vpop.f32.mrf.mxu0
    %v441 = vpop.f32.mrf.mxu0
    %v442 = vadd.f32 %v109, %v441
    %v443 = vpop.f32.mrf.mxu0
    %444 = vmatprep.mubr.bf16.mxu0 0
    %445 = vmatmul.mubr.bf16.gmra.mxu0 %v288
    %v446 = vpop.f32.mrf.mxu0
    %v447 = vadd.f32 %v109, %v446
    %v448 = vpop.f32.mrf.mxu0
    %v449 = vpop.f32.mrf.mxu0
    %v450 = vadd.f32 %v109, %v449
    %v451 = vpop.f32.mrf.mxu0
    %452 = vmatprep.mubr.bf16.mxu0 0
    %453 = vmatmul.mubr.bf16.gmra.mxu0 %v291
    %v454 = vpop.f32.mrf.mxu0
    %v455 = vadd.f32 %v109, %v454
    %v456 = vpop.f32.mrf.mxu0
    %v457 = vpop.f32.mrf.mxu0
    %v458 = vadd.f32 %v109, %v457
    %v459 = vpop.f32.mrf.mxu0
    %460 = vmatprep.mubr.bf16.mxu0 0
    %461 = vmatmul.mubr.bf16.gmra.mxu0 %v294
    %v462 = vpop.f32.mrf.mxu0
    %v463 = vadd.f32 %v109, %v462
    %v464 = vpop.f32.mrf.mxu0
    %v465 = vpop.f32.mrf.mxu0
    %v466 = vadd.f32 %v109, %v465
    %v467 = vpop.f32.mrf.mxu0
    %468 = vmatprep.mubr.bf16.mxu0 0
    %469 = vmatmul.mubr.bf16.gmra.mxu0 %v297
    %v470 = vpop.f32.mrf.mxu0
    %v471 = vadd.f32 %v109, %v470
    %v472 = vpop.f32.mrf.mxu0
    %v473 = vpop.f32.mrf.mxu0
    %v474 = vadd.f32 %v109, %v473
    %v475 = vpop.f32.mrf.mxu0
    %476 = vmatprep.mubr.bf16.mxu0 0
    %477 = vmatmul.mubr.bf16.gmra.mxu0 %v300
    %v478 = vpop.f32.mrf.mxu0
    %v479 = vadd.f32 %v109, %v478
    %v480 = vpop.f32.mrf.mxu0
    %v481 = vpop.f32.mrf.mxu0
    %v482 = vadd.f32 %v109, %v481
    %v483 = vpop.f32.mrf.mxu0
    %484 = vmatprep.mubr.bf16.mxu0 0
    %485 = vmatmul.mubr.bf16.gmra.mxu0 %v303
    %v486 = vpop.f32.mrf.mxu0
    %v487 = vadd.f32 %v109, %v486
    %v488 = vpop.f32.mrf.mxu0
    %v489 = vpop.f32.mrf.mxu0
    %v490 = vadd.f32 %v109, %v489
    %v491 = vpop.f32.mrf.mxu0
    %492 = vmatprep.mubr.bf16.mxu0 0
    %493 = vmatmul.mubr.bf16.gmra.mxu0 %v306
    %v494 = vpop.f32.mrf.mxu0
    %v495 = vadd.f32 %v109, %v494
    %v496 = vpop.f32.mrf.mxu0
    %v497 = vpop.f32.mrf.mxu0
    %v498 = vadd.f32 %v109, %v497
    %v499 = vpop.f32.mrf.mxu0
    %500 = vmatprep.mubr.bf16.mxu0 0
    %501 = vmatmul.mubr.bf16.gmra.mxu0 %v309
    %v502 = vpop.f32.mrf.mxu0
    %v503 = vadd.f32 %v109, %v502
    %v504 = vpop.f32.mrf.mxu0
    %v505 = vpop.f32.mrf.mxu0
    %v506 = vadd.f32 %v109, %v505
    %v507 = vpop.f32.mrf.mxu0
    %508 = vmatprep.mubr.bf16.mxu0 0
    %509 = vmatmul.mubr.bf16.gmra.mxu0 %v312
    %v510 = vpop.f32.mrf.mxu0
    %v511 = vadd.f32 %v109, %v510
    %v512 = vpop.f32.mrf.mxu0
    %v513 = vpop.f32.mrf.mxu0
    %v514 = vadd.f32 %v109, %v513
    %v515 = vpop.f32.mrf.mxu0
    %516 = vmatprep.mubr.bf16.mxu0 0
    %517 = vmatmul.mubr.bf16.gmra.mxu0 %v315
    %v518 = vpop.f32.mrf.mxu0
    %v519 = vadd.f32 %v109, %v518
    %v520 = vpop.f32.mrf.mxu0
    %v521 = vpop.f32.mrf.mxu0
    %v522 = vadd.f32 %v109, %v521
    %v523 = vpop.f32.mrf.mxu0
    %524 = vmatprep.mubr.bf16.mxu0 0
    %525 = vmatmul.mubr.bf16.gmra.mxu0 %v318
    %v526 = vpop.f32.mrf.mxu0
    %v527 = vadd.f32 %v109, %v526
    %v528 = vpop.f32.mrf.mxu0
    %v529 = vpop.f32.mrf.mxu0
    %v530 = vadd.f32 %v109, %v529
    %v531 = vpop.f32.mrf.mxu0
    %532 = vmatprep.mubr.bf16.mxu0 0
    %533 = vmatmul.mubr.bf16.gmra.mxu0 %v321
    %v534 = vpop.f32.mrf.mxu0
    %v535 = vadd.f32 %v109, %v534
    %v536 = vpop.f32.mrf.mxu0
    %v537 = vpop.f32.mrf.mxu0
    %v538 = vadd.f32 %v109, %v537
    %v539 = vpop.f32.mrf.mxu0
    %540 = vmatprep.mubr.bf16.mxu0 0
    %541 = vmatmul.mubr.bf16.gmra.mxu0 %v324
    %v542 = vpop.f32.mrf.mxu0
    %v543 = vadd.f32 %v109, %v542
    %v544 = vpop.f32.mrf.mxu0
    %v545 = vpop.f32.mrf.mxu0
    %v546 = vadd.f32 %v109, %v545
    %v547 = vpop.f32.mrf.mxu0
    %548 = vmatprep.mubr.bf16.mxu0 0
    %549 = vmatmul.mubr.bf16.gmra.mxu0 %v327
    %v550 = vpop.f32.mrf.mxu0
    %v551 = vadd.f32 %v109, %v550
    %v552 = vpop.f32.mrf.mxu0
    %v553 = vpop.f32.mrf.mxu0
    %v554 = vadd.f32 %v109, %v553
    %v555 = vpop.f32.mrf.mxu0
    %556 = vmatprep.mubr.bf16.mxu0 0
    %557 = vmatmul.mubr.bf16.gmra.mxu0 %v330
    %v558 = vpop.f32.mrf.mxu0
    %v559 = vadd.f32 %v109, %v558
    %v560 = vpop.f32.mrf.mxu0
    %v561 = vpop.f32.mrf.mxu0
    %v562 = vadd.f32 %v109, %v561
    %v563 = vpop.f32.mrf.mxu0
    %564 = vmatprep.mubr.bf16.mxu0 0
    %565 = vmatmul.mubr.bf16.gmra.mxu0 %v333
    %v566 = vpop.f32.mrf.mxu0
    %v567 = vadd.f32 %v109, %v566
    %v568 = vpop.f32.mrf.mxu0
    %v569 = vpop.f32.mrf.mxu0
    %v570 = vadd.f32 %v109, %v569
    %v571 = vpop.f32.mrf.mxu0
    %572 = vmatprep.mubr.bf16.mxu0 0
    %573 = vmatmul.mubr.bf16.gmra.mxu0 %v336
    %v574 = vpop.f32.mrf.mxu0
    %v575 = vadd.f32 %v109, %v574
    %v576 = vpop.f32.mrf.mxu0
    %v577 = vpop.f32.mrf.mxu0
    %v578 = vadd.f32 %v109, %v577
    %v579 = vpop.f32.mrf.mxu0
    %580 = vmatprep.mubr.bf16.mxu0 0
    %581 = vmatmul.mubr.bf16.gmra.mxu0 %v339
    %v582 = vpop.f32.mrf.mxu0
    %v583 = vadd.f32 %v109, %v582
    %v584 = vpop.f32.mrf.mxu0
    %v585 = vpop.f32.mrf.mxu0
    %v586 = vadd.f32 %v109, %v585
    %v587 = vpop.f32.mrf.mxu0
    %588 = vmatprep.mubr.bf16.mxu0 0
    %589 = vmatmul.mubr.bf16.gmra.mxu0 %v342
    %v590 = vpop.f32.mrf.mxu0
    %v591 = vadd.f32 %v109, %v590
    %v592 = vpop.f32.mrf.mxu0
    %v593 = vpop.f32.mrf.mxu0
    %v594 = vadd.f32 %v109, %v593
    %v595 = vpop.f32.mrf.mxu0
    %596 = vmatprep.mubr.bf16.mxu0 0
    %597 = vmatmul.mubr.bf16.gmra.mxu0 %v345
    %v598 = vpop.f32.mrf.mxu0
    %v599 = vadd.f32 %v109, %v598
    %v600 = vpop.f32.mrf.mxu0
    %v601 = vpop.f32.mrf.mxu0
    %v602 = vadd.f32 %v109, %v601
    %v603 = vpop.f32.mrf.mxu0
    %604 = vmatprep.mubr.bf16.mxu0 0
    %605 = vmatmul.mubr.bf16.gmra.mxu0 %v348
    %v606 = vpop.f32.mrf.mxu0
    %v607 = vadd.f32 %v109, %v606
    %v608 = vpop.f32.mrf.mxu0
    %v609 = vpop.f32.mrf.mxu0
    %v610 = vadd.f32 %v109, %v609
    %v611 = vpop.f32.mrf.mxu0
    %612 = vmatprep.mubr.bf16.mxu0 0
    %613 = vmatmul.mubr.bf16.gmra.mxu0 %v351
    %v614 = vpop.f32.mrf.mxu0
    %v615 = vadd.f32 %v109, %v614
    %v616 = vpop.f32.mrf.mxu0
    %v617 = vpop.f32.mrf.mxu0
    %v618 = vadd.f32 %v109, %v617
    %v619 = vpop.f32.mrf.mxu0
    %620 = vmatprep.mubr.bf16.mxu0 0
    %621 = vmatmul.mubr.bf16.gmra.mxu0 %v354
    %v622 = vpop.f32.mrf.mxu0
    %v623 = vadd.f32 %v109, %v622
    %v624 = vpop.f32.mrf.mxu0
    %v625 = vpop.f32.mrf.mxu0
    %v626 = vadd.f32 %v109, %v625
    %v627 = vpop.f32.mrf.mxu0
    %628 = vmatprep.mubr.bf16.mxu0 0
    %629 = vmatmul.mubr.bf16.gmra.mxu0 %v357
    %v630 = vpop.f32.mrf.mxu0
    %v631 = vadd.f32 %v109, %v630
    %v632 = vpop.f32.mrf.mxu0
    %v633 = vpop.f32.mrf.mxu0
    %v634 = vadd.f32 %v109, %v633
    %v635 = vpop.f32.mrf.mxu0
    %636 = vmatprep.mubr.bf16.mxu0 0
    %637 = vmatmul.mubr.bf16.gmra.mxu0 %v360
    %v638 = vpop.f32.mrf.mxu0
    %v639 = vadd.f32 %v109, %v638
    %v640 = vpop.f32.mrf.mxu0
    %v641 = vpop.f32.mrf.mxu0
    %v642 = vadd.f32 %v109, %v641
    %v643 = vpop.f32.mrf.mxu0
    %644 = vmatprep.mubr.bf16.mxu0 0
    %645 = vmatmul.mubr.bf16.gmra.mxu0 %v363
    %v646 = vpop.f32.mrf.mxu0
    %v647 = vadd.f32 %v109, %v646
    %v648 = vpop.f32.mrf.mxu0
    %v649 = vpop.f32.mrf.mxu0
    %v650 = vadd.f32 %v109, %v649
    %v651 = vpop.f32.mrf.mxu0
    %652 = vmatprep.mubr.bf16.mxu0 0
    %653 = vmatmul.mubr.bf16.gmra.mxu0 %v366
    %v654 = vpop.f32.mrf.mxu0
    %v655 = vadd.f32 %v109, %v654
    %v656 = vpop.f32.mrf.mxu0
    %v657 = vpop.f32.mrf.mxu0
    %v658 = vadd.f32 %v109, %v657
    %v659 = vpop.f32.mrf.mxu0
    %660 = vdwg.mxu0
    %v661 = vxor.u32 %v407, 2147483648
    %v662 = vxor.u32 %v410, 2147483648
    %v663 = vxor.u32 %v415, 2147483648
    %v664 = vxor.u32 %v418, 2147483648
    %v665 = vxor.u32 %v423, 2147483648
    %v666 = vxor.u32 %v426, 2147483648
    %v667 = vxor.u32 %v431, 2147483648
    %v668 = vxor.u32 %v434, 2147483648
    %v669 = vxor.u32 %v439, 2147483648
    %v670 = vxor.u32 %v442, 2147483648
    %v671 = vxor.u32 %v447, 2147483648
    %v672 = vxor.u32 %v450, 2147483648
    %v673 = vxor.u32 %v455, 2147483648
    %v674 = vxor.u32 %v458, 2147483648
    %v675 = vxor.u32 %v463, 2147483648
    %v676 = vxor.u32 %v466, 2147483648
    %v677 = vxor.u32 %v471, 2147483648
    %v678 = vxor.u32 %v474, 2147483648
    %v679 = vxor.u32 %v479, 2147483648
    %v680 = vxor.u32 %v482, 2147483648
    %v681 = vxor.u32 %v487, 2147483648
    %v682 = vxor.u32 %v490, 2147483648
    %v683 = vxor.u32 %v495, 2147483648
    %v684 = vxor.u32 %v498, 2147483648
    %v685 = vxor.u32 %v503, 2147483648
    %v686 = vxor.u32 %v506, 2147483648
    %v687 = vxor.u32 %v511, 2147483648
    %v688 = vxor.u32 %v514, 2147483648
    %v689 = vxor.u32 %v519, 2147483648
    %v690 = vxor.u32 %v522, 2147483648
    %v691 = vxor.u32 %v527, 2147483648
    %v692 = vxor.u32 %v530, 2147483648
    %v693 = vxor.u32 %v535, 2147483648
    %v694 = vxor.u32 %v538, 2147483648
    %v695 = vxor.u32 %v543, 2147483648
    %v696 = vxor.u32 %v546, 2147483648
    %v697 = vxor.u32 %v551, 2147483648
    %v698 = vxor.u32 %v554, 2147483648
    %v699 = vxor.u32 %v559, 2147483648
    %v700 = vxor.u32 %v562, 2147483648
    %v701 = vxor.u32 %v567, 2147483648
    %v702 = vxor.u32 %v570, 2147483648
    %v703 = vxor.u32 %v575, 2147483648
    %v704 = vxor.u32 %v578, 2147483648
    %v705 = vxor.u32 %v583, 2147483648
    %v706 = vxor.u32 %v586, 2147483648
    %v707 = vxor.u32 %v591, 2147483648
    %v708 = vxor.u32 %v594, 2147483648
    %v709 = vxor.u32 %v599, 2147483648
    %v710 = vxor.u32 %v602, 2147483648
    %v711 = vxor.u32 %v607, 2147483648
    %v712 = vxor.u32 %v610, 2147483648
    %v713 = vxor.u32 %v615, 2147483648
    %v714 = vxor.u32 %v618, 2147483648
    %v715 = vxor.u32 %v623, 2147483648
    %v716 = vxor.u32 %v626, 2147483648
    %v717 = vxor.u32 %v631, 2147483648
    %v718 = vxor.u32 %v634, 2147483648
    %v719 = vxor.u32 %v639, 2147483648
    %v720 = vxor.u32 %v642, 2147483648
    %v721 = vxor.u32 %v647, 2147483648
    %v722 = vxor.u32 %v650, 2147483648
    %v723 = vxor.u32 %v655, 2147483648
    %v724 = vxor.u32 %v658, 2147483648
    %v725 = vmul.f32 %v661, 1.442695
    %v726 = vpow.pop %v725
    %v727 = vmul.f32 %v662, 1.442695
    %v728 = vpow.pop %v727
    %v729 = vmul.f32 %v663, 1.442695
    %v730 = vpow.pop %v729
    %v731 = vmul.f32 %v664, 1.442695
    %v732 = vpow.pop %v731
    %v733 = vmul.f32 %v665, 1.442695
    %v734 = vpow.pop %v733
    %v735 = vmul.f32 %v666, 1.442695
    %v736 = vpow.pop %v735
    %v737 = vmul.f32 %v667, 1.442695
    %v738 = vpow.pop %v737
    %v739 = vmul.f32 %v668, 1.442695
    %v740 = vpow.pop %v739
    %v741 = vmul.f32 %v669, 1.442695
    %v742 = vpow.pop %v741
    %v743 = vmul.f32 %v670, 1.442695
    %v744 = vpow.pop %v743
    %v745 = vmul.f32 %v671, 1.442695
    %v746 = vpow.pop %v745
    %v747 = vmul.f32 %v672, 1.442695
    %v748 = vpow.pop %v747
    %v749 = vmul.f32 %v673, 1.442695
    %v750 = vpow.pop %v749
    %v751 = vmul.f32 %v674, 1.442695
    %v752 = vpow.pop %v751
    %v753 = vmul.f32 %v675, 1.442695
    %v754 = vpow.pop %v753
    %v755 = vmul.f32 %v676, 1.442695
    %v756 = vpow.pop %v755
    %v757 = vmul.f32 %v677, 1.442695
    %v758 = vpow.pop %v757
    %v759 = vmul.f32 %v678, 1.442695
    %v760 = vpow.pop %v759
    %v761 = vmul.f32 %v679, 1.442695
    %v762 = vpow.pop %v761
    %v763 = vmul.f32 %v680, 1.442695
    %v764 = vpow.pop %v763
    %v765 = vmul.f32 %v681, 1.442695
    %v766 = vpow.pop %v765
    %v767 = vmul.f32 %v682, 1.442695
    %v768 = vpow.pop %v767
    %v769 = vmul.f32 %v683, 1.442695
    %v770 = vpow.pop %v769
    %v771 = vmul.f32 %v684, 1.442695
    %v772 = vpow.pop %v771
    %v773 = vmul.f32 %v685, 1.442695
    %v774 = vpow.pop %v773
    %v775 = vmul.f32 %v686, 1.442695
    %v776 = vpow.pop %v775
    %v777 = vmul.f32 %v687, 1.442695
    %v778 = vpow.pop %v777
    %v779 = vmul.f32 %v688, 1.442695
    %v780 = vpow.pop %v779
    %v781 = vmul.f32 %v689, 1.442695
    %v782 = vpow.pop %v781
    %v783 = vmul.f32 %v690, 1.442695
    %v784 = vpow.pop %v783
    %v785 = vmul.f32 %v691, 1.442695
    %v786 = vpow.pop %v785
    %v787 = vmul.f32 %v692, 1.442695
    %v788 = vpow.pop %v787
    %v789 = vmul.f32 %v693, 1.442695
    %v790 = vpow.pop %v789
    %v791 = vmul.f32 %v694, 1.442695
    %v792 = vpow.pop %v791
    %v793 = vmul.f32 %v695, 1.442695
    %v794 = vpow.pop %v793
    %v795 = vmul.f32 %v696, 1.442695
    %v796 = vpow.pop %v795
    %v797 = vmul.f32 %v697, 1.442695
    %v798 = vpow.pop %v797
    %v799 = vmul.f32 %v698, 1.442695
    %v800 = vpow.pop %v799
    %v801 = vmul.f32 %v699, 1.442695
    %v802 = vpow.pop %v801
    %v803 = vmul.f32 %v700, 1.442695
    %v804 = vpow.pop %v803
    %v805 = vmul.f32 %v701, 1.442695
    %v806 = vpow.pop %v805
    %v807 = vmul.f32 %v702, 1.442695
    %v808 = vpow.pop %v807
    %v809 = vmul.f32 %v703, 1.442695
    %v810 = vpow.pop %v809
    %v811 = vmul.f32 %v704, 1.442695
    %v812 = vpow.pop %v811
    %v813 = vmul.f32 %v705, 1.442695
    %v814 = vpow.pop %v813
    %v815 = vmul.f32 %v706, 1.442695
    %v816 = vpow.pop %v815
    %v817 = vmul.f32 %v707, 1.442695
    %v818 = vpow.pop %v817
    %v819 = vmul.f32 %v708, 1.442695
    %v820 = vpow.pop %v819
    %v821 = vmul.f32 %v709, 1.442695
    %v822 = vpow.pop %v821
    %v823 = vmul.f32 %v710, 1.442695
    %v824 = vpow.pop %v823
    %v825 = vmul.f32 %v711, 1.442695
    %v826 = vpow.pop %v825
    %v827 = vmul.f32 %v712, 1.442695
    %v828 = vpow.pop %v827
    %v829 = vmul.f32 %v713, 1.442695
    %v830 = vpow.pop %v829
    %v831 = vmul.f32 %v714, 1.442695
    %v832 = vpow.pop %v831
    %v833 = vmul.f32 %v715, 1.442695
    %v834 = vpow.pop %v833
    %v835 = vmul.f32 %v716, 1.442695
    %v836 = vpow.pop %v835
    %v837 = vmul.f32 %v717, 1.442695
    %v838 = vpow.pop %v837
    %v839 = vmul.f32 %v718, 1.442695
    %v840 = vpow.pop %v839
    %v841 = vmul.f32 %v719, 1.442695
    %v842 = vpow.pop %v841
    %v843 = vmul.f32 %v720, 1.442695
    %v844 = vpow.pop %v843
    %v845 = vmul.f32 %v721, 1.442695
    %v846 = vpow.pop %v845
    %v847 = vmul.f32 %v722, 1.442695
    %v848 = vpow.pop %v847
    %v849 = vmul.f32 %v723, 1.442695
    %v850 = vpow.pop %v849
    %v851 = vmul.f32 %v724, 1.442695
    %v852 = vpow.pop %v851
    %v853 = vadd.f32 %v726, 1.0
    %v854 = vadd.f32 %v728, 1.0
    %v855 = vadd.f32 %v730, 1.0
    %v856 = vadd.f32 %v732, 1.0
    %v857 = vadd.f32 %v734, 1.0
    %v858 = vadd.f32 %v736, 1.0
    %v859 = vadd.f32 %v738, 1.0
    %v860 = vadd.f32 %v740, 1.0
    %v861 = vadd.f32 %v742, 1.0
    %v862 = vadd.f32 %v744, 1.0
    %v863 = vadd.f32 %v746, 1.0
    %v864 = vadd.f32 %v748, 1.0
    %v865 = vadd.f32 %v750, 1.0
    %v866 = vadd.f32 %v752, 1.0
    %v867 = vadd.f32 %v754, 1.0
    %v868 = vadd.f32 %v756, 1.0
    %v869 = vadd.f32 %v758, 1.0
    %v870 = vadd.f32 %v760, 1.0
    %v871 = vadd.f32 %v762, 1.0
    %v872 = vadd.f32 %v764, 1.0
    %v873 = vadd.f32 %v766, 1.0
    %v874 = vadd.f32 %v768, 1.0
    %v875 = vadd.f32 %v770, 1.0
    %v876 = vadd.f32 %v772, 1.0
    %v877 = vadd.f32 %v774, 1.0
    %v878 = vadd.f32 %v776, 1.0
    %v879 = vadd.f32 %v778, 1.0
    %v880 = vadd.f32 %v780, 1.0
    %v881 = vadd.f32 %v782, 1.0
    %v882 = vadd.f32 %v784, 1.0
    %v883 = vadd.f32 %v786, 1.0
    %v884 = vadd.f32 %v788, 1.0
    %v885 = vadd.f32 %v790, 1.0
    %v886 = vadd.f32 %v792, 1.0
    %v887 = vadd.f32 %v794, 1.0
    %v888 = vadd.f32 %v796, 1.0
    %v889 = vadd.f32 %v798, 1.0
    %v890 = vadd.f32 %v800, 1.0
    %v891 = vadd.f32 %v802, 1.0
    %v892 = vadd.f32 %v804, 1.0
    %v893 = vadd.f32 %v806, 1.0
    %v894 = vadd.f32 %v808, 1.0
    %v895 = vadd.f32 %v810, 1.0
    %v896 = vadd.f32 %v812, 1.0
    %v897 = vadd.f32 %v814, 1.0
    %v898 = vadd.f32 %v816, 1.0
    %v899 = vadd.f32 %v818, 1.0
    %v900 = vadd.f32 %v820, 1.0
    %v901 = vadd.f32 %v822, 1.0
    %v902 = vadd.f32 %v824, 1.0
    %v903 = vadd.f32 %v826, 1.0
    %v904 = vadd.f32 %v828, 1.0
    %v905 = vadd.f32 %v830, 1.0
    %v906 = vadd.f32 %v832, 1.0
    %v907 = vadd.f32 %v834, 1.0
    %v908 = vadd.f32 %v836, 1.0
    %v909 = vadd.f32 %v838, 1.0
    %v910 = vadd.f32 %v840, 1.0
    %v911 = vadd.f32 %v842, 1.0
    %v912 = vadd.f32 %v844, 1.0
    %v913 = vadd.f32 %v846, 1.0
    %v914 = vadd.f32 %v848, 1.0
    %v915 = vadd.f32 %v850, 1.0
    %v916 = vadd.f32 %v852, 1.0
    %v917 = vrcp.pop %v853
    %v918 = vmul.f32 1.0, %v917
    %v919 = vrcp.pop %v854
    %v920 = vmul.f32 1.0, %v919
    %v921 = vrcp.pop %v855
    %v922 = vmul.f32 1.0, %v921
    %v923 = vrcp.pop %v856
    %v924 = vmul.f32 1.0, %v923
    %v925 = vrcp.pop %v857
    %v926 = vmul.f32 1.0, %v925
    %v927 = vrcp.pop %v858
    %v928 = vmul.f32 1.0, %v927
    %v929 = vrcp.pop %v859
    %v930 = vmul.f32 1.0, %v929
    %v931 = vrcp.pop %v860
    %v932 = vmul.f32 1.0, %v931
    %v933 = vrcp.pop %v861
    %v934 = vmul.f32 1.0, %v933
    %v935 = vrcp.pop %v862
    %v936 = vmul.f32 1.0, %v935
    %v937 = vrcp.pop %v863
    %v938 = vmul.f32 1.0, %v937
    %v939 = vrcp.pop %v864
    %v940 = vmul.f32 1.0, %v939
    %v941 = vrcp.pop %v865
    %v942 = vmul.f32 1.0, %v941
    %v943 = vrcp.pop %v866
    %v944 = vmul.f32 1.0, %v943
    %v945 = vrcp.pop %v867
    %v946 = vmul.f32 1.0, %v945
    %v947 = vrcp.pop %v868
    %v948 = vmul.f32 1.0, %v947
    %v949 = vrcp.pop %v869
    %v950 = vmul.f32 1.0, %v949
    %v951 = vrcp.pop %v870
    %v952 = vmul.f32 1.0, %v951
    %v953 = vrcp.pop %v871
    %v954 = vmul.f32 1.0, %v953
    %v955 = vrcp.pop %v872
    %v956 = vmul.f32 1.0, %v955
    %v957 = vrcp.pop %v873
    %v958 = vmul.f32 1.0, %v957
    %v959 = vrcp.pop %v874
    %v960 = vmul.f32 1.0, %v959
    %v961 = vrcp.pop %v875
    %v962 = vmul.f32 1.0, %v961
    %v963 = vrcp.pop %v876
    %v964 = vmul.f32 1.0, %v963
    %v965 = vrcp.pop %v877
    %v966 = vmul.f32 1.0, %v965
    %v967 = vrcp.pop %v878
    %v968 = vmul.f32 1.0, %v967
    %v969 = vrcp.pop %v879
    %v970 = vmul.f32 1.0, %v969
    %v971 = vrcp.pop %v880
    %v972 = vmul.f32 1.0, %v971
    %v973 = vrcp.pop %v881
    %v974 = vmul.f32 1.0, %v973
    %v975 = vrcp.pop %v882
    %v976 = vmul.f32 1.0, %v975
    %v977 = vrcp.pop %v883
    %v978 = vmul.f32 1.0, %v977
    %v979 = vrcp.pop %v884
    %v980 = vmul.f32 1.0, %v979
    %v981 = vrcp.pop %v885
    %v982 = vmul.f32 1.0, %v981
    %v983 = vrcp.pop %v886
    %v984 = vmul.f32 1.0, %v983
    %v985 = vrcp.pop %v887
    %v986 = vmul.f32 1.0, %v985
    %v987 = vrcp.pop %v888
    %v988 = vmul.f32 1.0, %v987
    %v989 = vrcp.pop %v889
    %v990 = vmul.f32 1.0, %v989
    %v991 = vrcp.pop %v890
    %v992 = vmul.f32 1.0, %v991
    %v993 = vrcp.pop %v891
    %v994 = vmul.f32 1.0, %v993
    %v995 = vrcp.pop %v892
    %v996 = vmul.f32 1.0, %v995
    %v997 = vrcp.pop %v893
    %v998 = vmul.f32 1.0, %v997
    %v999 = vrcp.pop %v894
    %v1000 = vmul.f32 1.0, %v999
    %v1001 = vrcp.pop %v895
    %v1002 = vmul.f32 1.0, %v1001
    %v1003 = vrcp.pop %v896
    %v1004 = vmul.f32 1.0, %v1003
    %v1005 = vrcp.pop %v897
    %v1006 = vmul.f32 1.0, %v1005
    %v1007 = vrcp.pop %v898
    %v1008 = vmul.f32 1.0, %v1007
    %v1009 = vrcp.pop %v899
    %v1010 = vmul.f32 1.0, %v1009
    %v1011 = vrcp.pop %v900
    %v1012 = vmul.f32 1.0, %v1011
    %v1013 = vrcp.pop %v901
    %v1014 = vmul.f32 1.0, %v1013
    %v1015 = vrcp.pop %v902
    %v1016 = vmul.f32 1.0, %v1015
    %v1017 = vrcp.pop %v903
    %v1018 = vmul.f32 1.0, %v1017
    %v1019 = vrcp.pop %v904
    %v1020 = vmul.f32 1.0, %v1019
    %v1021 = vrcp.pop %v905
    %v1022 = vmul.f32 1.0, %v1021
    %v1023 = vrcp.pop %v906
    %v1024 = vmul.f32 1.0, %v1023
    %v1025 = vrcp.pop %v907
    %v1026 = vmul.f32 1.0, %v1025
    %v1027 = vrcp.pop %v908
    %v1028 = vmul.f32 1.0, %v1027
    %v1029 = vrcp.pop %v909
    %v1030 = vmul.f32 1.0, %v1029
    %v1031 = vrcp.pop %v910
    %v1032 = vmul.f32 1.0, %v1031
    %v1033 = vrcp.pop %v911
    %v1034 = vmul.f32 1.0, %v1033
    %v1035 = vrcp.pop %v912
    %v1036 = vmul.f32 1.0, %v1035
    %v1037 = vrcp.pop %v913
    %v1038 = vmul.f32 1.0, %v1037
    %v1039 = vrcp.pop %v914
    %v1040 = vmul.f32 1.0, %v1039
    %v1041 = vrcp.pop %v915
    %v1042 = vmul.f32 1.0, %v1041
    %v1043 = vrcp.pop %v916
    %v1044 = vmul.f32 1.0, %v1043
    %v1045 = vmul.f32 %v407, %v918
    %v1046 = vmul.f32 %v410, %v920
    %v1047 = vmul.f32 %v415, %v922
    %v1048 = vmul.f32 %v418, %v924
    %v1049 = vmul.f32 %v423, %v926
    %v1050 = vmul.f32 %v426, %v928
    %v1051 = vmul.f32 %v431, %v930
    %v1052 = vmul.f32 %v434, %v932
    %v1053 = vmul.f32 %v439, %v934
    %v1054 = vmul.f32 %v442, %v936
    %v1055 = vmul.f32 %v447, %v938
    %v1056 = vmul.f32 %v450, %v940
    %v1057 = vmul.f32 %v455, %v942
    %v1058 = vmul.f32 %v458, %v944
    %v1059 = vmul.f32 %v463, %v946
    %v1060 = vmul.f32 %v466, %v948
    %v1061 = vmul.f32 %v471, %v950
    %v1062 = vmul.f32 %v474, %v952
    %v1063 = vmul.f32 %v479, %v954
    %v1064 = vmul.f32 %v482, %v956
    %v1065 = vmul.f32 %v487, %v958
    %v1066 = vmul.f32 %v490, %v960
    %v1067 = vmul.f32 %v495, %v962
    %v1068 = vmul.f32 %v498, %v964
    %v1069 = vmul.f32 %v503, %v966
    %v1070 = vmul.f32 %v506, %v968
    %v1071 = vmul.f32 %v511, %v970
    %v1072 = vmul.f32 %v514, %v972
    %v1073 = vmul.f32 %v519, %v974
    %v1074 = vmul.f32 %v522, %v976
    %v1075 = vmul.f32 %v527, %v978
    %v1076 = vmul.f32 %v530, %v980
    %v1077 = vmul.f32 %v535, %v982
    %v1078 = vmul.f32 %v538, %v984
    %v1079 = vmul.f32 %v543, %v986
    %v1080 = vmul.f32 %v546, %v988
    %v1081 = vmul.f32 %v551, %v990
    %v1082 = vmul.f32 %v554, %v992
    %v1083 = vmul.f32 %v559, %v994
    %v1084 = vmul.f32 %v562, %v996
    %v1085 = vmul.f32 %v567, %v998
    %v1086 = vmul.f32 %v570, %v1000
    %v1087 = vmul.f32 %v575, %v1002
    %v1088 = vmul.f32 %v578, %v1004
    %v1089 = vmul.f32 %v583, %v1006
    %v1090 = vmul.f32 %v586, %v1008
    %v1091 = vmul.f32 %v591, %v1010
    %v1092 = vmul.f32 %v594, %v1012
    %v1093 = vmul.f32 %v599, %v1014
    %v1094 = vmul.f32 %v602, %v1016
    %v1095 = vmul.f32 %v607, %v1018
    %v1096 = vmul.f32 %v610, %v1020
    %v1097 = vmul.f32 %v615, %v1022
    %v1098 = vmul.f32 %v618, %v1024
    %v1099 = vmul.f32 %v623, %v1026
    %v1100 = vmul.f32 %v626, %v1028
    %v1101 = vmul.f32 %v631, %v1030
    %v1102 = vmul.f32 %v634, %v1032
    %v1103 = vmul.f32 %v639, %v1034
    %v1104 = vmul.f32 %v642, %v1036
    %v1105 = vmul.f32 %v647, %v1038
    %v1106 = vmul.f32 %v650, %v1040
    %v1107 = vmul.f32 %v655, %v1042
    %v1108 = vmul.f32 %v658, %v1044
    %v1109 = vpack.c.bf16 %v1046, %v1045
    %v1110 = vpack.c.bf16 %v1048, %v1047
    %v1111 = vpack.c.bf16 %v1050, %v1049
    %v1112 = vpack.c.bf16 %v1052, %v1051
    %v1113 = vpack.c.bf16 %v1054, %v1053
    %v1114 = vpack.c.bf16 %v1056, %v1055
    %v1115 = vpack.c.bf16 %v1058, %v1057
    %v1116 = vpack.c.bf16 %v1060, %v1059
    %v1117 = vpack.c.bf16 %v1062, %v1061
    %v1118 = vpack.c.bf16 %v1064, %v1063
    %v1119 = vpack.c.bf16 %v1066, %v1065
    %v1120 = vpack.c.bf16 %v1068, %v1067
    %v1121 = vpack.c.bf16 %v1070, %v1069
    %v1122 = vpack.c.bf16 %v1072, %v1071
    %v1123 = vpack.c.bf16 %v1074, %v1073
    %v1124 = vpack.c.bf16 %v1076, %v1075
    %v1125 = vpack.c.bf16 %v1078, %v1077
    %v1126 = vpack.c.bf16 %v1080, %v1079
    %v1127 = vpack.c.bf16 %v1082, %v1081
    %v1128 = vpack.c.bf16 %v1084, %v1083
    %v1129 = vpack.c.bf16 %v1086, %v1085
    %v1130 = vpack.c.bf16 %v1088, %v1087
    %v1131 = vpack.c.bf16 %v1090, %v1089
    %v1132 = vpack.c.bf16 %v1092, %v1091
    %v1133 = vpack.c.bf16 %v1094, %v1093
    %v1134 = vpack.c.bf16 %v1096, %v1095
    %v1135 = vpack.c.bf16 %v1098, %v1097
    %v1136 = vpack.c.bf16 %v1100, %v1099
    %v1137 = vpack.c.bf16 %v1102, %v1101
    %v1138 = vpack.c.bf16 %v1104, %v1103
    %v1139 = vpack.c.bf16 %v1106, %v1105
    %v1140 = vpack.c.bf16 %v1108, %v1107
    %v1173 = vunpack.c.l.b16 %v1109
    %v1174 = vunpack.c.h.b16 %v1109
    %v1175 = vunpack.c.l.b16 %v1110
    %v1176 = vunpack.c.h.b16 %v1110
    %v1177 = vunpack.c.l.b16 %v1111
    %v1178 = vunpack.c.h.b16 %v1111
    %v1179 = vunpack.c.l.b16 %v1112
    %v1180 = vunpack.c.h.b16 %v1112
    %v1181 = vunpack.c.l.b16 %v1113
    %v1182 = vunpack.c.h.b16 %v1113
    %v1183 = vunpack.c.l.b16 %v1114
    %v1184 = vunpack.c.h.b16 %v1114
    %v1185 = vunpack.c.l.b16 %v1115
    %v1186 = vunpack.c.h.b16 %v1115
    %v1187 = vunpack.c.l.b16 %v1116
    %v1188 = vunpack.c.h.b16 %v1116
    %v1189 = vunpack.c.l.b16 %v1117
    %v1190 = vunpack.c.h.b16 %v1117
    %v1191 = vunpack.c.l.b16 %v1118
    %v1192 = vunpack.c.h.b16 %v1118
    %v1193 = vunpack.c.l.b16 %v1119
    %v1194 = vunpack.c.h.b16 %v1119
    %v1195 = vunpack.c.l.b16 %v1120
    %v1196 = vunpack.c.h.b16 %v1120
    %v1197 = vunpack.c.l.b16 %v1121
    %v1198 = vunpack.c.h.b16 %v1121
    %v1199 = vunpack.c.l.b16 %v1122
    %v1200 = vunpack.c.h.b16 %v1122
    %v1201 = vunpack.c.l.b16 %v1123
    %v1202 = vunpack.c.h.b16 %v1123
    %v1203 = vunpack.c.l.b16 %v1124
    %v1204 = vunpack.c.h.b16 %v1124
    %v1205 = vunpack.c.l.b16 %v1125
    %v1206 = vunpack.c.h.b16 %v1125
    %v1207 = vunpack.c.l.b16 %v1126
    %v1208 = vunpack.c.h.b16 %v1126
    %v1209 = vunpack.c.l.b16 %v1127
    %v1210 = vunpack.c.h.b16 %v1127
    %v1211 = vunpack.c.l.b16 %v1128
    %v1212 = vunpack.c.h.b16 %v1128
    %v1213 = vunpack.c.l.b16 %v1129
    %v1214 = vunpack.c.h.b16 %v1129
    %v1215 = vunpack.c.l.b16 %v1130
    %v1216 = vunpack.c.h.b16 %v1130
    %v1217 = vunpack.c.l.b16 %v1131
    %v1218 = vunpack.c.h.b16 %v1131
    %v1219 = vunpack.c.l.b16 %v1132
    %v1220 = vunpack.c.h.b16 %v1132
    %v1221 = vunpack.c.l.b16 %v1133
    %v1222 = vunpack.c.h.b16 %v1133
    %v1223 = vunpack.c.l.b16 %v1134
    %v1224 = vunpack.c.h.b16 %v1134
    %v1225 = vunpack.c.l.b16 %v1135
    %v1226 = vunpack.c.h.b16 %v1135
    %v1227 = vunpack.c.l.b16 %v1136
    %v1228 = vunpack.c.h.b16 %v1136
    %v1229 = vunpack.c.l.b16 %v1137
    %v1230 = vunpack.c.h.b16 %v1137
    %v1231 = vunpack.c.l.b16 %v1138
    %v1232 = vunpack.c.h.b16 %v1138
    %v1233 = vunpack.c.l.b16 %v1139
    %v1234 = vunpack.c.h.b16 %v1139
    %v1235 = vunpack.c.l.b16 %v1140
    %v1236 = vunpack.c.h.b16 %v1140
    %v1237 = vpack.c.b16 %v1173, %v1173
    %v1238 = vpack.c.b16 %v1174, %v1174
    %v1239 = vpack.c.b16 %v1175, %v1175
    %v1240 = vpack.c.b16 %v1176, %v1176
    %v1241 = vpack.c.b16 %v1177, %v1177
    %v1242 = vpack.c.b16 %v1178, %v1178
    %v1243 = vpack.c.b16 %v1179, %v1179
    %v1244 = vpack.c.b16 %v1180, %v1180
    %v1245 = vpack.c.b16 %v1181, %v1181
    %v1246 = vpack.c.b16 %v1182, %v1182
    %v1247 = vpack.c.b16 %v1183, %v1183
    %v1248 = vpack.c.b16 %v1184, %v1184
    %v1249 = vpack.c.b16 %v1185, %v1185
    %v1250 = vpack.c.b16 %v1186, %v1186
    %v1251 = vpack.c.b16 %v1187, %v1187
    %v1252 = vpack.c.b16 %v1188, %v1188
    %v1253 = vpack.c.b16 %v1189, %v1189
    %v1254 = vpack.c.b16 %v1190, %v1190
    %v1255 = vpack.c.b16 %v1191, %v1191
    %v1256 = vpack.c.b16 %v1192, %v1192
    %v1257 = vpack.c.b16 %v1193, %v1193
    %v1258 = vpack.c.b16 %v1194, %v1194
    %v1259 = vpack.c.b16 %v1195, %v1195
    %v1260 = vpack.c.b16 %v1196, %v1196
    %v1261 = vpack.c.b16 %v1197, %v1197
    %v1262 = vpack.c.b16 %v1198, %v1198
    %v1263 = vpack.c.b16 %v1199, %v1199
    %v1264 = vpack.c.b16 %v1200, %v1200
    %v1265 = vpack.c.b16 %v1201, %v1201
    %v1266 = vpack.c.b16 %v1202, %v1202
    %v1267 = vpack.c.b16 %v1203, %v1203
    %v1268 = vpack.c.b16 %v1204, %v1204
    %v1269 = vpack.c.b16 %v1205, %v1205
    %v1270 = vpack.c.b16 %v1206, %v1206
    %v1271 = vpack.c.b16 %v1207, %v1207
    %v1272 = vpack.c.b16 %v1208, %v1208
    %v1273 = vpack.c.b16 %v1209, %v1209
    %v1274 = vpack.c.b16 %v1210, %v1210
    %v1275 = vpack.c.b16 %v1211, %v1211
    %v1276 = vpack.c.b16 %v1212, %v1212
    %v1277 = vpack.c.b16 %v1213, %v1213
    %v1278 = vpack.c.b16 %v1214, %v1214
    %v1279 = vpack.c.b16 %v1215, %v1215
    %v1280 = vpack.c.b16 %v1216, %v1216
    %v1281 = vpack.c.b16 %v1217, %v1217
    %v1282 = vpack.c.b16 %v1218, %v1218
    %v1283 = vpack.c.b16 %v1219, %v1219
    %v1284 = vpack.c.b16 %v1220, %v1220
    %v1285 = vpack.c.b16 %v1221, %v1221
    %v1286 = vpack.c.b16 %v1222, %v1222
    %v1287 = vpack.c.b16 %v1223, %v1223
    %v1288 = vpack.c.b16 %v1224, %v1224
    %v1289 = vpack.c.b16 %v1225, %v1225
    %v1290 = vpack.c.b16 %v1226, %v1226
    %v1291 = vpack.c.b16 %v1227, %v1227
    %v1292 = vpack.c.b16 %v1228, %v1228
    %v1293 = vpack.c.b16 %v1229, %v1229
    %v1294 = vpack.c.b16 %v1230, %v1230
    %v1295 = vpack.c.b16 %v1231, %v1231
    %v1296 = vpack.c.b16 %v1232, %v1232
    %v1297 = vpack.c.b16 %v1233, %v1233
    %v1298 = vpack.c.b16 %v1234, %v1234
    %v1299 = vpack.c.b16 %v1235, %v1235
    %v1300 = vpack.c.b16 %v1236, %v1236
    %1365 = vst [vmem:[%s3] sm:$0xf] %v1237
    %1366 = vst [vmem:[%s3 + $0x4] sm:$0xf] %v1238
    %1367 = vst [vmem:[%s3 + $0x8] sm:$0xf] %v1239
    %1368 = vst [vmem:[%s3 + $0xc] sm:$0xf] %v1240
    %1369 = vst [vmem:[%s3 + $0x10] sm:$0xf] %v1241
    %1370 = vst [vmem:[%s3 + $0x14] sm:$0xf] %v1242
    %1371 = vst [vmem:[%s3 + $0x18] sm:$0xf] %v1243
    %1372 = vst [vmem:[%s3 + $0x1c] sm:$0xf] %v1244
    %1373 = vst [vmem:[%s3 + $0x20] sm:$0xf] %v1245
    %1374 = vst [vmem:[%s3 + $0x24] sm:$0xf] %v1246
    %1375 = vst [vmem:[%s3 + $0x28] sm:$0xf] %v1247
    %1376 = vst [vmem:[%s3 + $0x2c] sm:$0xf] %v1248
    %1377 = vst [vmem:[%s3 + $0x30] sm:$0xf] %v1249
    %1378 = vst [vmem:[%s3 + $0x34] sm:$0xf] %v1250
    %1379 = vst [vmem:[%s3 + $0x38] sm:$0xf] %v1251
    %1380 = vst [vmem:[%s3 + $0x3c] sm:$0xf] %v1252
    %1381 = vst [vmem:[%s3 + $0x40] sm:$0xf] %v1253
    %1382 = vst [vmem:[%s3 + $0x44] sm:$0xf] %v1254
    %1383 = vst [vmem:[%s3 + $0x48] sm:$0xf] %v1255
    %1384 = vst [vmem:[%s3 + $0x4c] sm:$0xf] %v1256
    %1385 = vst [vmem:[%s3 + $0x50] sm:$0xf] %v1257
    %1386 = vst [vmem:[%s3 + $0x54] sm:$0xf] %v1258
    %1387 = vst [vmem:[%s3 + $0x58] sm:$0xf] %v1259
    %1388 = vst [vmem:[%s3 + $0x5c] sm:$0xf] %v1260
    %1389 = vst [vmem:[%s3 + $0x60] sm:$0xf] %v1261
    %1390 = vst [vmem:[%s3 + $0x64] sm:$0xf] %v1262
    %1391 = vst [vmem:[%s3 + $0x68] sm:$0xf] %v1263
    %1392 = vst [vmem:[%s3 + $0x6c] sm:$0xf] %v1264
    %1393 = vst [vmem:[%s3 + $0x70] sm:$0xf] %v1265
    %1394 = vst [vmem:[%s3 + $0x74] sm:$0xf] %v1266
    %1395 = vst [vmem:[%s3 + $0x78] sm:$0xf] %v1267
    %1396 = vst [vmem:[%s3 + $0x7c] sm:$0xf] %v1268
    %1397 = vst [vmem:[%s3 + $0x80] sm:$0xf] %v1269
    %1398 = vst [vmem:[%s3 + $0x84] sm:$0xf] %v1270
    %1399 = vst [vmem:[%s3 + $0x88] sm:$0xf] %v1271
    %1400 = vst [vmem:[%s3 + $0x8c] sm:$0xf] %v1272
    %1401 = vst [vmem:[%s3 + $0x90] sm:$0xf] %v1273
    %1402 = vst [vmem:[%s3 + $0x94] sm:$0xf] %v1274
    %1403 = vst [vmem:[%s3 + $0x98] sm:$0xf] %v1275
    %1404 = vst [vmem:[%s3 + $0x9c] sm:$0xf] %v1276
    %1405 = vst [vmem:[%s3 + $0xa0] sm:$0xf] %v1277
    %1406 = vst [vmem:[%s3 + $0xa4] sm:$0xf] %v1278
    %1407 = vst [vmem:[%s3 + $0xa8] sm:$0xf] %v1279
    %1408 = vst [vmem:[%s3 + $0xac] sm:$0xf] %v1280
    %1409 = vst [vmem:[%s3 + $0xb0] sm:$0xf] %v1281
    %1410 = vst [vmem:[%s3 + $0xb4] sm:$0xf] %v1282
    %1411 = vst [vmem:[%s3 + $0xb8] sm:$0xf] %v1283
    %1412 = vst [vmem:[%s3 + $0xbc] sm:$0xf] %v1284
    %1413 = vst [vmem:[%s3 + $0xc0] sm:$0xf] %v1285
    %1414 = vst [vmem:[%s3 + $0xc4] sm:$0xf] %v1286
    %1415 = vst [vmem:[%s3 + $0xc8] sm:$0xf] %v1287
    %1416 = vst [vmem:[%s3 + $0xcc] sm:$0xf] %v1288
    %1417 = vst [vmem:[%s3 + $0xd0] sm:$0xf] %v1289
    %1418 = vst [vmem:[%s3 + $0xd4] sm:$0xf] %v1290
    %1419 = vst [vmem:[%s3 + $0xd8] sm:$0xf] %v1291
    %1420 = vst [vmem:[%s3 + $0xdc] sm:$0xf] %v1292
    %1421 = vst [vmem:[%s3 + $0xe0] sm:$0xf] %v1293
    %1422 = vst [vmem:[%s3 + $0xe4] sm:$0xf] %v1294
    %1423 = vst [vmem:[%s3 + $0xe8] sm:$0xf] %v1295
    %1424 = vst [vmem:[%s3 + $0xec] sm:$0xf] %v1296
    %1425 = vst [vmem:[%s3 + $0xf0] sm:$0xf] %v1297
    %1426 = vst [vmem:[%s3 + $0xf4] sm:$0xf] %v1298
    %1427 = vst [vmem:[%s3 + $0xf8] sm:$0xf] %v1299
    %1428 = vst [vmem:[%s3 + $0xfc] sm:$0xf] %v1300
    // Predicated region
    $region22: #{c1_forward.2} parent=1 // pred_check
      _
    $region23: #{c1_forward.2} parent=1 // pred_check_branch
      %1430 = sbr.rel (0) target = $region25
    $region24: #{c1_forward.2} parent=1 // pred_region
      _
    $region25: #{c1_forward.2} parent=1 // pred_fallthru
      _
    // Predicated region
    $region26: #{c1_forward.2} parent=1 // pred_check
      _
    $region27: #{c1_forward.2} parent=1 // pred_check_branch
      %1432 = sbr.rel (0) target = $region29
    $region28: #{c1_forward.2} parent=1 // pred_region
      _
    $region29: #{c1_forward.2} parent=1 // pred_fallthru
      _
    %1433 = vsyncpa [#allocation3], 1
    %1434 = vsyncpa [#allocation5], 1

// kernel: c1_forward.3
$region0: #{c1_forward.3}
  #allocation0 [shape = 'u32[]', space=smem, size = 0x4, offset = 0x4, fixed_abs, tag = 'smem constant byte address 0x4 - core index']
  #allocation1 [shape = 'u32[144,128]{1,0:T(1,128)}', space=vmem, size = 0x12000, scoped, tag = 'internal scratch']
  #allocation2 [shape = 'bf16[2,18,16,128]{3,2,1,0:T(8,128)(2,1)}', space=vmem, size = 0x24000, scoped, tag = 'scratch operand']
  #allocation3 [shape = 's32[6]{0}', space=sflag, size = 0x18, scoped, tag = 'scratch operand']
  #allocation4 [shape = 's32[]', space=sflag, size = 0x4, offset = 0, fixed_abs, tag = 'sflag constant byte address 0x0 - dummy sync flag']
  #allocation5 [shape = 's32[]', space=sflag, size = 0x4, offset = 0, fixed_abs, tag = 'sflag constant byte address 0x0 - dummy sync flag']
  #allocation6 [shape = 's32[]', space=sflag, size = 0x4, offset = 0, fixed_abs, tag = 'sflag constant byte address 0x0 - dummy sync flag']
  #allocation7 [shape = 's32[]', space=sflag, size = 0x4, offset = 0, fixed_abs, tag = 'sflag constant byte address 0x0 - dummy sync flag']
  #allocation8 [shape = 's32[]', space=sflag, size = 0x4, offset = 0, fixed_abs, tag = 'sflag constant byte address 0x0 - dummy sync flag']
  #allocation9 [shape = 's32[]', space=sflag, size = 0x4, offset = 0, fixed_abs, tag = 'sflag constant byte address 0x0 - dummy sync flag']
  %s0 = inlined_call_operand.vmem [shape: bf16[2,16,16,128], index: 0, kind: input, shape index: {}, may-alias: {0,3}]
  %s1 = inlined_call_operand.vmem [shape: bf16[9,128,128], index: 1, kind: input, shape index: {}]
  %s2 = inlined_call_operand.vmem [shape: f32[1,128], index: 2, kind: input, shape index: {}]
  %s3 = inlined_call_operand.vmem [shape: bf16[2,16,16,128], index: 3, kind: input, shape index: {}, may-alias: {0,3}]
  %s4 = inlined_call_operand.vmem [shape: bf16[2,16,16,128], index: 4, kind: output, shape index: {}]
  %s5 = sld [smem:[#allocation0]]
  $region261: #{c1_forward.3} parent=0
    _
  %s7 = ssub.s32 1, %s5
  %s8 = scalar_select 0, %s7, %s5
  loop: start=0, step=1, limit=4
  $region2: #{c1_forward.3} parent=0 // loop_pre_header
    _
  $region3: #{c1_forward.3} parent=0 // loop_header
    %s10 = sphi 0, %s14
    %p11 = scmp.ge.s32.totalorder %s10, 4
    %s17 = sphi 0, %s29
    %s18 = sphi 0, %s25
    %s19 = sphi 0, %s17
    %s20 = sphi 0, %s18
    %s21 = sphi 0, %s19
    %s22 = sphi 0, %s20
    %s30 = sphi 0, %s30
    %s32 = sphi 0, %s30
    %s33 = sphi 0, %s32
    %s47 = sphi 0, %s33
    %s51 = sphi 0, %s51
    %s53 = sphi 0, %s51
    %s54 = sphi 0, %s53
    %s68 = sphi 0, %s54
    %s76 = sphi 0, %s78
    %s79 = sphi 0, %s76
    %s80 = sphi 0, %s79
    %s96 = sphi 0, %s80
    %s104 = sphi 0, %s106
    %s107 = sphi 0, %s104
    %s108 = sphi 0, %s107
    %s124 = sphi 0, %s108
  $region4: #{c1_forward.3} parent=0 // loop_header_branch
    %13 = sbr.rel (%p11) target = $region8
  $region5: #{c1_forward.3} parent=0 // loop_body
    %s15 = ssub.s32 %s10, 1
    %s16 = ssub.s32 %s10, 2
    %s23 = sadd.s32 1, %s18
    %p24 = scmp.ge.s32.totalorder %s23, 1
    %s25 = scalar_select %p24, 0, %s23
    %s26 = sadd.s32 1, %s17
    %s27 = scalar_select %p24, %s26, %s17
    %p28 = scmp.ge.s32.totalorder %s27, 2
    %s29 = scalar_select %p28, 0, %s27
    %s31 = sadd.s32 %s30, 1
    %p34 = scmp.eq.s32.totalorder %s10, 1
    %p35 = scmp.ne.s32.totalorder %s30, %s32
    %p36 = scmp.eq.s32.totalorder %s10, 0
    %p37 = por %p35, %p36
    %p38 = scmp.ne.s32.totalorder %s30, %s32
    %p39 = scmp.eq.s32.totalorder %s15, 1
    %p40 = por %p38, %p39
    %p41 = scmp.ne.s32.totalorder %s32, %s33
    %p42 = scmp.eq.s32.totalorder %s15, 0
    %p43 = por %p41, %p42
    %p44 = scmp.ne.s32.totalorder %s32, %s33
    %p45 = scmp.eq.s32.totalorder %s16, 1
    %p46 = por %p44, %p45
    %p48 = scmp.ne.s32.totalorder %s33, %s47
    %p49 = scmp.eq.s32.totalorder %s16, 0
    %p50 = por %p48, %p49
    %s52 = sadd.s32 %s51, 1
    %p55 = scmp.eq.s32.totalorder %s10, 1
    %p56 = scmp.ne.s32.totalorder %s51, %s53
    %p57 = scmp.eq.s32.totalorder %s10, 0
    %p58 = por %p56, %p57
    %p59 = scmp.ne.s32.totalorder %s51, %s53
    %p60 = scmp.eq.s32.totalorder %s15, 1
    %p61 = por %p59, %p60
    %p62 = scmp.ne.s32.totalorder %s53, %s54
    %p63 = scmp.eq.s32.totalorder %s15, 0
    %p64 = por %p62, %p63
    %p65 = scmp.ne.s32.totalorder %s53, %s54
    %p66 = scmp.eq.s32.totalorder %s16, 1
    %p67 = por %p65, %p66
    %p69 = scmp.ne.s32.totalorder %s54, %s68
    %p70 = scmp.eq.s32.totalorder %s16, 0
    %p71 = por %p69, %p70
    %s72 = ssub.s32 %s17, %s29
    %s73 = ssub.s32 %s18, %s25
    %s74 = sor.u32 %s72, %s73
    %p75 = scmp.eq.s32.totalorder %s74, 0
    %s77 = sadd.s32 %s76, 1
    %s78 = scalar_select %p75, %s76, %s77
    %p81 = pneg %p75
    %p82 = scmp.eq.s32.totalorder %s10, 1
    %p83 = por %p81, %p82
    %p84 = scmp.ne.s32.totalorder %s76, %s79
    %p85 = scmp.eq.s32.totalorder %s10, 0
    %p86 = por %p84, %p85
    %p87 = scmp.ne.s32.totalorder %s76, %s79
    %p88 = scmp.eq.s32.totalorder %s15, 1
    %p89 = por %p87, %p88
    %p90 = scmp.ne.s32.totalorder %s79, %s80
    %p91 = scmp.eq.s32.totalorder %s15, 0
    %p92 = por %p90, %p91
    %p93 = scmp.ne.s32.totalorder %s79, %s80
    %p94 = scmp.eq.s32.totalorder %s16, 1
    %p95 = por %p93, %p94
    %p97 = scmp.ne.s32.totalorder %s80, %s96
    %p98 = scmp.eq.s32.totalorder %s16, 0
    %p99 = por %p97, %p98
    %s100 = ssub.s32 %s17, %s29
    %s101 = ssub.s32 %s18, %s25
    %s102 = sor.u32 %s100, %s101
    %p103 = scmp.eq.s32.totalorder %s102, 0
    %s105 = sadd.s32 %s104, 1
    %s106 = scalar_select %p103, %s104, %s105
    %p109 = pneg %p103
    %p110 = scmp.eq.s32.totalorder %s10, 1
    %p111 = por %p109, %p110
    %p112 = scmp.ne.s32.totalorder %s104, %s107
    %p113 = scmp.eq.s32.totalorder %s10, 0
    %p114 = por %p112, %p113
    %p115 = scmp.ne.s32.totalorder %s104, %s107
    %p116 = scmp.eq.s32.totalorder %s15, 1
    %p117 = por %p115, %p116
    %p118 = scmp.ne.s32.totalorder %s107, %s108
    %p119 = scmp.eq.s32.totalorder %s15, 0
    %p120 = por %p118, %p119
    %p121 = scmp.ne.s32.totalorder %s107, %s108
    %p122 = scmp.eq.s32.totalorder %s16, 1
    %p123 = por %p121, %p122
    %p125 = scmp.ne.s32.totalorder %s108, %s124
    %p126 = scmp.eq.s32.totalorder %s16, 0
    %p127 = por %p125, %p126
    %p128 = scmp.le.s32.totalorder 1, %s10
    %p129 = scmp.lt.s32.totalorder %s10, 3
    %p130 = pnand %p128, %p129
    %p131 = pneg %p130
    // Predicated region
    $region9: #{c1_forward.3} parent=5 // pred_check
      _
    $region10: #{c1_forward.3} parent=5 // pred_check_branch
      %133 = sbr.rel (%p130) target = $region12
    $region11: #{c1_forward.3} parent=5 // pred_region
      %s134 = ssub.s32 %s10, 1
      // Predicated region
      $region13: #{c1_forward.3} parent=11 // pred_check
        %p135 = pneg %p43
      $region14: #{c1_forward.3} parent=11 // pred_check_branch
        %137 = sbr.rel (%p135) target = $region16
      $region15: #{c1_forward.3} parent=11 // pred_region
        _
      $region16: #{c1_forward.3} parent=11 // pred_fallthru
        _
      // Predicated region
      $region17: #{c1_forward.3} parent=11 // pred_check
        %p138 = pneg %p64
      $region18: #{c1_forward.3} parent=11 // pred_check_branch
        %140 = sbr.rel (%p138) target = $region20
      $region19: #{c1_forward.3} parent=11 // pred_region
        _
      $region20: #{c1_forward.3} parent=11 // pred_fallthru
        _
    $region12: #{c1_forward.3} parent=5 // pred_fallthru
      _
    %p141 = scmp.lt.s32.totalorder %s10, 2
    // Predicated region
    $region21: #{c1_forward.3} parent=5 // pred_check
      %p142 = pneg %p141
    $region22: #{c1_forward.3} parent=5 // pred_check_branch
      %144 = sbr.rel (%p142) target = $region24
    $region23: #{c1_forward.3} parent=5 // pred_region
      // Predicated region
      $region25: #{c1_forward.3} parent=23 // pred_check
        %p145 = pneg %p86
      $region26: #{c1_forward.3} parent=23 // pred_check_branch
        %147 = sbr.rel (%p145) target = $region28
      $region27: #{c1_forward.3} parent=23 // pred_region
        %s148 = smul.u32 16, %s18
        %p149 = scmp.lt.s32.totalorder %s17, 1
        %s150 = scalar_select %p149, %s17, 1
        %p151 = scmp.lt.s32.totalorder %s148, 15
        %s152 = scalar_select %p151, %s148, 15
        %s153 = smul.addr %s152, 2
        %s154 = smul.addr %s150, 32
        %s155 = sadd.s32 %s153, %s154
        %s156 = smul.addr %s155, 4
        %s157 = scalar_lea.vmem %s3, %s156
        %s158 = smul.u32 16, %s18
      $region28: #{c1_forward.3} parent=23 // pred_fallthru
        _
    $region24: #{c1_forward.3} parent=5 // pred_fallthru
      _
    %p159 = scmp.le.s32.totalorder 1, %s10
    %p160 = scmp.lt.s32.totalorder %s10, 3
    %p161 = pnand %p159, %p160
    %p162 = pneg %p161
    // Predicated region
    $region29: #{c1_forward.3} parent=5 // pred_check
      _
    $region30: #{c1_forward.3} parent=5 // pred_check_branch
      %164 = sbr.rel (%p161) target = $region32
    $region31: #{c1_forward.3} parent=5 // pred_region
      %s165 = ssub.s32 %s10, 1
      %p166 = pneg %p43
      %p167 = pneg %p40
      %p168 = pneg %p64
      %p169 = pneg %p61
      %s170 = smul.u32 16, %s20
      %p171 = scmp.lt.s32.totalorder %s19, 1
      %s172 = scalar_select %p171, %s19, 1
      %p173 = scmp.lt.s32.totalorder %s170, 15
      %s174 = scalar_select %p173, %s170, 15
      %s175 = smul.addr %s174, 2
      %s176 = smul.addr %s172, 32
      %s177 = sadd.s32 %s175, %s176
      %s178 = smul.addr %s177, 4
      %s179 = scalar_lea.vmem %s3, %s178
      %p180 = pneg %p92
      %p181 = pneg %p89
      %p182 = pneg %p120
      %p183 = pneg %p117
      %s184 = smul.u32 16, %s20
      %p185 = scmp.lt.s32.totalorder %s19, 1
      %s186 = scalar_select %p185, %s19, 1
      %p187 = scmp.lt.s32.totalorder %s184, 15
      %s188 = scalar_select %p187, %s184, 15
      %s189 = smul.addr %s188, 2
      %s190 = smul.addr %s186, 32
      %s191 = sadd.s32 %s189, %s190
      %s192 = smul.addr %s191, 4
      %s193 = scalar_lea.vmem %s4, %s192
      %s194 = smul.u32 16, %s20
      %p195 = scmp.lt.s32.totalorder %s19, 1
      %s196 = scalar_select %p195, %s19, 1
      %p197 = scmp.lt.s32.totalorder %s194, 15
      %s198 = scalar_select %p197, %s194, 15
      %s199 = smul.addr %s198, 2
      %s200 = smul.addr %s196, 32
      %s201 = sadd.s32 %s199, %s200
      %s202 = smul.addr %s201, 4
      %s203 = scalar_lea.vmem %s3, %s202
      %s204 = smul.u32 16, %s20
      %s205 = smul.u32 16, %s20
      %p206 = scmp.lt.s32.totalorder %s19, 1
      %s207 = scalar_select %p206, %s19, 1
      %p208 = scmp.lt.s32.totalorder %s205, 15
      %s209 = scalar_select %p208, %s205, 15
      %s210 = smul.addr %s209, 2
      %s211 = smul.addr %s207, 32
      %s212 = sadd.s32 %s210, %s211
      %s213 = smul.addr %s212, 4
      %s214 = scalar_lea.vmem %s4, %s213
      %s215 = smul.u32 16, %s20
      %p217 = scmp.lt.s32.totalorder %s20, 0
      %s218 = ssub.s32 0, %s20
      %s219 = scalar_select %p217, %s218, %s20
      %s220 = sand.u32 %s219, 1
      %s221 = ssub.s32 0, %s220
      %s222 = scalar_select %p217, %s221, %s220
      %p223 = scmp.ne.s32.totalorder %s222, 0
      %p224 = scmp.lt.s32.totalorder %s222, 0
      %p225 = pnand %p224, %p223
      %p226 = pneg %p225
      %s227 = sadd.s32 %s222, 2
      %s228 = scalar_select %p226, %s227, %s222
      %p229 = scmp.eq.s32.totalorder %s20, 0
      // Predicated region
      $region33: #{c1_forward.3} parent=31 // pred_check
        %p230 = pneg %p229
      $region34: #{c1_forward.3} parent=31 // pred_check_branch
        %232 = sbr.rel (%p230) target = $region36
      $region35: #{c1_forward.3} parent=31 // pred_region
        %s233 = smul.u32 %s19, 32
        %s234 = smul.addr %s233, 4
        %s235 = scalar_lea.vmem %s0, %s234
        %s236 = scalar_lea.vmem [#allocation2], 8
        %p238 = scmp.lt.u32.totalorder 128, 8
        %p239 = pneg %p238
        // Predicated region
        $region37: #{c1_forward.3} parent=35 // pred_check
          _
        $region38: #{c1_forward.3} parent=35 // pred_check_branch
          %241 = sbr.rel (%p238) target = $region40
        $region39: #{c1_forward.3} parent=35 // pred_region
          %s257 = sand.u32 128, 7
          %p258 = scmp.eq.s32.totalorder %s257, 0
          // Predicated region
          $region52: #{c1_forward.3} parent=39 // pred_check
            %p259 = pneg %p258
          $region53: #{c1_forward.3} parent=39 // pred_check_branch
            %261 = sbr.rel (%p259) target = $region55
          $region54: #{c1_forward.3} parent=39 // pred_region
            loop: start=0, step=1, limit=1
            $region56: #{c1_forward.3} parent=54 // loop_pre_header
              _
            $region57: #{c1_forward.3} parent=54 // loop_header
              %s263 = sphi 0, %s267
              %p264 = scmp.ge.s32.totalorder %s263, 1
              %s268 = sphi %s235, %s235
              %s269 = sphi %s236, %s236
            $region58: #{c1_forward.3} parent=54 // loop_header_branch
              %266 = sbr.rel (%p264) target = $region62
            $region59: #{c1_forward.3} parent=54 // loop_body
              %v270 = vld [vmem:[%s268] sm:$0xff]
              %271 = vst [vmem:[%s269] sm:$0xff] %v270
              %v272 = vld [vmem:[%s268 + $0x8] sm:$0xff]
              %273 = vst [vmem:[%s269 + $0x8] sm:$0xff] %v272
              %v274 = vld [vmem:[%s268 + $0x10] sm:$0xff]
              %275 = vst [vmem:[%s269 + $0x10] sm:$0xff] %v274
              %v276 = vld [vmem:[%s268 + $0x18] sm:$0xff]
              %277 = vst [vmem:[%s269 + $0x18] sm:$0xff] %v276
              %v278 = vld [vmem:[%s268 + $0x20] sm:$0xff]
              %279 = vst [vmem:[%s269 + $0x20] sm:$0xff] %v278
              %v280 = vld [vmem:[%s268 + $0x28] sm:$0xff]
              %281 = vst [vmem:[%s269 + $0x28] sm:$0xff] %v280
              %v282 = vld [vmem:[%s268 + $0x30] sm:$0xff]
              %283 = vst [vmem:[%s269 + $0x30] sm:$0xff] %v282
              %v284 = vld [vmem:[%s268 + $0x38] sm:$0xff]
              %285 = vst [vmem:[%s269 + $0x38] sm:$0xff] %v284
              %v286 = vld [vmem:[%s268 + $0x40] sm:$0xff]
              %287 = vst [vmem:[%s269 + $0x40] sm:$0xff] %v286
              %v288 = vld [vmem:[%s268 + $0x48] sm:$0xff]
              %289 = vst [vmem:[%s269 + $0x48] sm:$0xff] %v288
              %v290 = vld [vmem:[%s268 + $0x50] sm:$0xff]
              %291 = vst [vmem:[%s269 + $0x50] sm:$0xff] %v290
              %v292 = vld [vmem:[%s268 + $0x58] sm:$0xff]
              %293 = vst [vmem:[%s269 + $0x58] sm:$0xff] %v292
              %v294 = vld [vmem:[%s268 + $0x60] sm:$0xff]
              %295 = vst [vmem:[%s269 + $0x60] sm:$0xff] %v294
              %v296 = vld [vmem:[%s268 + $0x68] sm:$0xff]
              %297 = vst [vmem:[%s269 + $0x68] sm:$0xff] %v296
              %v298 = vld [vmem:[%s268 + $0x70] sm:$0xff]
              %299 = vst [vmem:[%s269 + $0x70] sm:$0xff] %v298
              %v300 = vld [vmem:[%s268 + $0x78] sm:$0xff]
              %301 = vst [vmem:[%s269 + $0x78] sm:$0xff] %v300
            $region60: #{c1_forward.3} parent=54 // loop_footer
              %s267 = sadd.s32 1, %s263
            $region61: #{c1_forward.3} parent=54 // loop_footer_branch
              %262 = sbr.rel target = $region57
            $region62: #{c1_forward.3} parent=54 // loop_exit
              _
          $region55: #{c1_forward.3} parent=39 // pred_fallthru
            _
          %p302 = pneg %p258
          // Predicated region
          $region63: #{c1_forward.3} parent=39 // pred_check
            _
          $region64: #{c1_forward.3} parent=39 // pred_check_branch
            %304 = sbr.rel (%p258) target = $region66
          $region65: #{c1_forward.3} parent=39 // pred_region
            %s305 = sand.u32 128, 7
          $region66: #{c1_forward.3} parent=39 // pred_fallthru
            _
        $region40: #{c1_forward.3} parent=35 // pred_fallthru
          _
        // Predicated region
        $region41: #{c1_forward.3} parent=35 // pred_check
          %p242 = pneg %p238
        $region42: #{c1_forward.3} parent=35 // pred_check_branch
          %244 = sbr.rel (%p242) target = $region44
        $region43: #{c1_forward.3} parent=35 // pred_region
          %s245 = sshll.u32 1, 128
          %s246 = ssub.s32 %s245, 1
          loop: start=0, step=1, limit=1
          $region45: #{c1_forward.3} parent=43 // loop_pre_header
            _
          $region46: #{c1_forward.3} parent=43 // loop_header
            %s248 = sphi 0, %s252
            %p249 = scmp.ge.s32.totalorder %s248, 1
            %s253 = sphi %s235, %s235
            %s254 = sphi %s236, %s236
          $region47: #{c1_forward.3} parent=43 // loop_header_branch
            %251 = sbr.rel (%p249) target = $region51
          $region48: #{c1_forward.3} parent=43 // loop_body
            %v255 = vld [vmem:[%s253] sm:%s246]
            %256 = vst [vmem:[%s254] sm:%s246] %v255
          $region49: #{c1_forward.3} parent=43 // loop_footer
            %s252 = sadd.s32 1, %s248
          $region50: #{c1_forward.3} parent=43 // loop_footer_branch
            %247 = sbr.rel target = $region46
          $region51: #{c1_forward.3} parent=43 // loop_exit
            _
        $region44: #{c1_forward.3} parent=35 // pred_fallthru
          _
        // Predicated region
        $region67: #{c1_forward.3} parent=35 // pred_check
          _
        $region68: #{c1_forward.3} parent=35 // pred_check_branch
          %308 = sbr.rel (0) target = $region70
        $region69: #{c1_forward.3} parent=35 // pred_region
          %309 = vsyncadd [#allocation3], 2048
        $region70: #{c1_forward.3} parent=35 // pred_fallthru
          _
        %s310 = scalar_lea.sflag [#allocation3], 1
        %p312 = scmp.lt.u32.totalorder 8, 8
        %p313 = pneg %p312
        // Predicated region
        $region71: #{c1_forward.3} parent=35 // pred_check
          _
        $region72: #{c1_forward.3} parent=35 // pred_check_branch
          %315 = sbr.rel (%p312) target = $region74
        $region73: #{c1_forward.3} parent=35 // pred_region
          %s331 = sand.u32 8, 7
          %p332 = scmp.eq.s32.totalorder %s331, 0
          // Predicated region
          $region86: #{c1_forward.3} parent=73 // pred_check
            %p333 = pneg %p332
          $region87: #{c1_forward.3} parent=73 // pred_check_branch
            %335 = sbr.rel (%p333) target = $region89
          $region88: #{c1_forward.3} parent=73 // pred_region
            loop: start=0, step=1, limit=1
            $region90: #{c1_forward.3} parent=88 // loop_pre_header
              _
            $region91: #{c1_forward.3} parent=88 // loop_header
              %s337 = sphi 0, %s341
              %p338 = scmp.ge.s32.totalorder %s337, 1
              %s342 = sphi %s235, %s235
              %s343 = sphi [#allocation2], [#allocation2]
            $region92: #{c1_forward.3} parent=88 // loop_header_branch
              %340 = sbr.rel (%p338) target = $region96
            $region93: #{c1_forward.3} parent=88 // loop_body
              %v344 = vld [vmem:[%s342] sm:$0xff]
              %345 = vst [vmem:[%s343] sm:$0xff] %v344
            $region94: #{c1_forward.3} parent=88 // loop_footer
              %s341 = sadd.s32 1, %s337
            $region95: #{c1_forward.3} parent=88 // loop_footer_branch
              %336 = sbr.rel target = $region91
            $region96: #{c1_forward.3} parent=88 // loop_exit
              _
          $region89: #{c1_forward.3} parent=73 // pred_fallthru
            _
          %p346 = pneg %p332
          // Predicated region
          $region97: #{c1_forward.3} parent=73 // pred_check
            _
          $region98: #{c1_forward.3} parent=73 // pred_check_branch
            %348 = sbr.rel (%p332) target = $region100
          $region99: #{c1_forward.3} parent=73 // pred_region
            %s349 = sand.u32 8, 7
          $region100: #{c1_forward.3} parent=73 // pred_fallthru
            _
        $region74: #{c1_forward.3} parent=35 // pred_fallthru
          _
        // Predicated region
        $region75: #{c1_forward.3} parent=35 // pred_check
          %p316 = pneg %p312
        $region76: #{c1_forward.3} parent=35 // pred_check_branch
          %318 = sbr.rel (%p316) target = $region78
        $region77: #{c1_forward.3} parent=35 // pred_region
          %s319 = sshll.u32 1, 8
          %s320 = ssub.s32 %s319, 1
          loop: start=0, step=1, limit=1
          $region79: #{c1_forward.3} parent=77 // loop_pre_header
            _
          $region80: #{c1_forward.3} parent=77 // loop_header
            %s322 = sphi 0, %s326
            %p323 = scmp.ge.s32.totalorder %s322, 1
            %s327 = sphi %s235, %s235
            %s328 = sphi [#allocation2], [#allocation2]
          $region81: #{c1_forward.3} parent=77 // loop_header_branch
            %325 = sbr.rel (%p323) target = $region85
          $region82: #{c1_forward.3} parent=77 // loop_body
            %v329 = vld [vmem:[%s327] sm:%s320]
            %330 = vst [vmem:[%s328] sm:%s320] %v329
          $region83: #{c1_forward.3} parent=77 // loop_footer
            %s326 = sadd.s32 1, %s322
          $region84: #{c1_forward.3} parent=77 // loop_footer_branch
            %321 = sbr.rel target = $region80
          $region85: #{c1_forward.3} parent=77 // loop_exit
            _
        $region78: #{c1_forward.3} parent=35 // pred_fallthru
          _
        // Predicated region
        $region101: #{c1_forward.3} parent=35 // pred_check
          _
        $region102: #{c1_forward.3} parent=35 // pred_check_branch
          %352 = sbr.rel (0) target = $region104
        $region103: #{c1_forward.3} parent=35 // pred_region
          %353 = vsyncadd %s310, 128
        $region104: #{c1_forward.3} parent=35 // pred_fallthru
          _
        %s354 = sadd.s32 30, %s233
        %s355 = smul.addr %s354, 4
        %s356 = scalar_lea.vmem %s0, %s355
        %s357 = scalar_lea.vmem [#allocation2], 136
        %s358 = scalar_lea.sflag [#allocation3], 2
        %p360 = scmp.lt.u32.totalorder 8, 8
        %p361 = pneg %p360
        // Predicated region
        $region105: #{c1_forward.3} parent=35 // pred_check
          _
        $region106: #{c1_forward.3} parent=35 // pred_check_branch
          %363 = sbr.rel (%p360) target = $region108
        $region107: #{c1_forward.3} parent=35 // pred_region
          %s379 = sand.u32 8, 7
          %p380 = scmp.eq.s32.totalorder %s379, 0
          // Predicated region
          $region120: #{c1_forward.3} parent=107 // pred_check
            %p381 = pneg %p380
          $region121: #{c1_forward.3} parent=107 // pred_check_branch
            %383 = sbr.rel (%p381) target = $region123
          $region122: #{c1_forward.3} parent=107 // pred_region
            loop: start=0, step=1, limit=1
            $region124: #{c1_forward.3} parent=122 // loop_pre_header
              _
            $region125: #{c1_forward.3} parent=122 // loop_header
              %s385 = sphi 0, %s389
              %p386 = scmp.ge.s32.totalorder %s385, 1
              %s390 = sphi %s356, %s356
              %s391 = sphi %s357, %s357
            $region126: #{c1_forward.3} parent=122 // loop_header_branch
              %388 = sbr.rel (%p386) target = $region130
            $region127: #{c1_forward.3} parent=122 // loop_body
              %v392 = vld [vmem:[%s390] sm:$0xff]
              %393 = vst [vmem:[%s391] sm:$0xff] %v392
            $region128: #{c1_forward.3} parent=122 // loop_footer
              %s389 = sadd.s32 1, %s385
            $region129: #{c1_forward.3} parent=122 // loop_footer_branch
              %384 = sbr.rel target = $region125
            $region130: #{c1_forward.3} parent=122 // loop_exit
              _
          $region123: #{c1_forward.3} parent=107 // pred_fallthru
            _
          %p394 = pneg %p380
          // Predicated region
          $region131: #{c1_forward.3} parent=107 // pred_check
            _
          $region132: #{c1_forward.3} parent=107 // pred_check_branch
            %396 = sbr.rel (%p380) target = $region134
          $region133: #{c1_forward.3} parent=107 // pred_region
            %s397 = sand.u32 8, 7
          $region134: #{c1_forward.3} parent=107 // pred_fallthru
            _
        $region108: #{c1_forward.3} parent=35 // pred_fallthru
          _
        // Predicated region
        $region109: #{c1_forward.3} parent=35 // pred_check
          %p364 = pneg %p360
        $region110: #{c1_forward.3} parent=35 // pred_check_branch
          %366 = sbr.rel (%p364) target = $region112
        $region111: #{c1_forward.3} parent=35 // pred_region
          %s367 = sshll.u32 1, 8
          %s368 = ssub.s32 %s367, 1
          loop: start=0, step=1, limit=1
          $region113: #{c1_forward.3} parent=111 // loop_pre_header
            _
          $region114: #{c1_forward.3} parent=111 // loop_header
            %s370 = sphi 0, %s374
            %p371 = scmp.ge.s32.totalorder %s370, 1
            %s375 = sphi %s356, %s356
            %s376 = sphi %s357, %s357
          $region115: #{c1_forward.3} parent=111 // loop_header_branch
            %373 = sbr.rel (%p371) target = $region119
          $region116: #{c1_forward.3} parent=111 // loop_body
            %v377 = vld [vmem:[%s375] sm:%s368]
            %378 = vst [vmem:[%s376] sm:%s368] %v377
          $region117: #{c1_forward.3} parent=111 // loop_footer
            %s374 = sadd.s32 1, %s370
          $region118: #{c1_forward.3} parent=111 // loop_footer_branch
            %369 = sbr.rel target = $region114
          $region119: #{c1_forward.3} parent=111 // loop_exit
            _
        $region112: #{c1_forward.3} parent=35 // pred_fallthru
          _
        // Predicated region
        $region135: #{c1_forward.3} parent=35 // pred_check
          _
        $region136: #{c1_forward.3} parent=35 // pred_check_branch
          %400 = sbr.rel (0) target = $region138
        $region137: #{c1_forward.3} parent=35 // pred_region
          %401 = vsyncadd %s358, 128
        $region138: #{c1_forward.3} parent=35 // pred_fallthru
          _
      $region36: #{c1_forward.3} parent=31 // pred_fallthru
        _
      %s402 = sadd.s32 %s20, 1
      %p403 = scmp.lt.s32.totalorder %s402, 1
      // Predicated region
      $region139: #{c1_forward.3} parent=31 // pred_check
        %p404 = pneg %p403
      $region140: #{c1_forward.3} parent=31 // pred_check_branch
        %406 = sbr.rel (%p404) target = $region142
      $region141: #{c1_forward.3} parent=31 // pred_region
        %s407 = ssub.s32 1, %s228
        %s408 = smul.u32 %s402, 16
        %s409 = ssub.s32 %s408, 1
        %p410 = scmp.gt.s32.totalorder %s409, 0
        %s411 = scalar_select %p410, %s409, 0
        %s412 = sadd.s32 %s408, 16
        %p413 = scmp.lt.s32.totalorder %s412, 15
        %s414 = scalar_select %p413, %s412, 15
        %s415 = smul.u32 %s408, 2
        %s416 = smul.u32 %s19, 32
        %s417 = sadd.s32 %s415, %s416
        %s418 = smul.addr %s417, 4
        %s419 = scalar_lea.vmem %s0, %s418
        %s420 = smul.u32 %s407, 36
        %s421 = sadd.s32 2, %s420
        %s422 = smul.addr %s421, 4
        %s423 = scalar_lea.vmem [#allocation2], %s422
        %s424 = smul.u32 %s407, 3
        %s425 = scalar_lea.sflag [#allocation3], %s424
        %p427 = scmp.lt.u32.totalorder 128, 8
        %p428 = pneg %p427
        // Predicated region
        $region143: #{c1_forward.3} parent=141 // pred_check
          _
        $region144: #{c1_forward.3} parent=141 // pred_check_branch
          %430 = sbr.rel (%p427) target = $region146
        $region145: #{c1_forward.3} parent=141 // pred_region
          %s446 = sand.u32 128, 7
          %p447 = scmp.eq.s32.totalorder %s446, 0
          // Predicated region
          $region158: #{c1_forward.3} parent=145 // pred_check
            %p448 = pneg %p447
          $region159: #{c1_forward.3} parent=145 // pred_check_branch
            %450 = sbr.rel (%p448) target = $region161
          $region160: #{c1_forward.3} parent=145 // pred_region
            loop: start=0, step=1, limit=1
            $region162: #{c1_forward.3} parent=160 // loop_pre_header
              _
            $region163: #{c1_forward.3} parent=160 // loop_header
              %s452 = sphi 0, %s456
              %p453 = scmp.ge.s32.totalorder %s452, 1
              %s457 = sphi %s419, %s419
              %s458 = sphi %s423, %s423
            $region164: #{c1_forward.3} parent=160 // loop_header_branch
              %455 = sbr.rel (%p453) target = $region168
            $region165: #{c1_forward.3} parent=160 // loop_body
              %v459 = vld [vmem:[%s457] sm:$0xff]
              %460 = vst [vmem:[%s458] sm:$0xff] %v459
              %v461 = vld [vmem:[%s457 + $0x8] sm:$0xff]
              %462 = vst [vmem:[%s458 + $0x8] sm:$0xff] %v461
              %v463 = vld [vmem:[%s457 + $0x10] sm:$0xff]
              %464 = vst [vmem:[%s458 + $0x10] sm:$0xff] %v463
              %v465 = vld [vmem:[%s457 + $0x18] sm:$0xff]
              %466 = vst [vmem:[%s458 + $0x18] sm:$0xff] %v465
              %v467 = vld [vmem:[%s457 + $0x20] sm:$0xff]
              %468 = vst [vmem:[%s458 + $0x20] sm:$0xff] %v467
              %v469 = vld [vmem:[%s457 + $0x28] sm:$0xff]
              %470 = vst [vmem:[%s458 + $0x28] sm:$0xff] %v469
              %v471 = vld [vmem:[%s457 + $0x30] sm:$0xff]
              %472 = vst [vmem:[%s458 + $0x30] sm:$0xff] %v471
              %v473 = vld [vmem:[%s457 + $0x38] sm:$0xff]
              %474 = vst [vmem:[%s458 + $0x38] sm:$0xff] %v473
              %v475 = vld [vmem:[%s457 + $0x40] sm:$0xff]
              %476 = vst [vmem:[%s458 + $0x40] sm:$0xff] %v475
              %v477 = vld [vmem:[%s457 + $0x48] sm:$0xff]
              %478 = vst [vmem:[%s458 + $0x48] sm:$0xff] %v477
              %v479 = vld [vmem:[%s457 + $0x50] sm:$0xff]
              %480 = vst [vmem:[%s458 + $0x50] sm:$0xff] %v479
              %v481 = vld [vmem:[%s457 + $0x58] sm:$0xff]
              %482 = vst [vmem:[%s458 + $0x58] sm:$0xff] %v481
              %v483 = vld [vmem:[%s457 + $0x60] sm:$0xff]
              %484 = vst [vmem:[%s458 + $0x60] sm:$0xff] %v483
              %v485 = vld [vmem:[%s457 + $0x68] sm:$0xff]
              %486 = vst [vmem:[%s458 + $0x68] sm:$0xff] %v485
              %v487 = vld [vmem:[%s457 + $0x70] sm:$0xff]
              %488 = vst [vmem:[%s458 + $0x70] sm:$0xff] %v487
              %v489 = vld [vmem:[%s457 + $0x78] sm:$0xff]
              %490 = vst [vmem:[%s458 + $0x78] sm:$0xff] %v489
            $region166: #{c1_forward.3} parent=160 // loop_footer
              %s456 = sadd.s32 1, %s452
            $region167: #{c1_forward.3} parent=160 // loop_footer_branch
              %451 = sbr.rel target = $region163
            $region168: #{c1_forward.3} parent=160 // loop_exit
              _
          $region161: #{c1_forward.3} parent=145 // pred_fallthru
            _
          %p491 = pneg %p447
          // Predicated region
          $region169: #{c1_forward.3} parent=145 // pred_check
            _
          $region170: #{c1_forward.3} parent=145 // pred_check_branch
            %493 = sbr.rel (%p447) target = $region172
          $region171: #{c1_forward.3} parent=145 // pred_region
            %s494 = sand.u32 128, 7
          $region172: #{c1_forward.3} parent=145 // pred_fallthru
            _
        $region146: #{c1_forward.3} parent=141 // pred_fallthru
          _
        // Predicated region
        $region147: #{c1_forward.3} parent=141 // pred_check
          %p431 = pneg %p427
        $region148: #{c1_forward.3} parent=141 // pred_check_branch
          %433 = sbr.rel (%p431) target = $region150
        $region149: #{c1_forward.3} parent=141 // pred_region
          %s434 = sshll.u32 1, 128
          %s435 = ssub.s32 %s434, 1
          loop: start=0, step=1, limit=1
          $region151: #{c1_forward.3} parent=149 // loop_pre_header
            _
          $region152: #{c1_forward.3} parent=149 // loop_header
            %s437 = sphi 0, %s441
            %p438 = scmp.ge.s32.totalorder %s437, 1
            %s442 = sphi %s419, %s419
            %s443 = sphi %s423, %s423
          $region153: #{c1_forward.3} parent=149 // loop_header_branch
            %440 = sbr.rel (%p438) target = $region157
          $region154: #{c1_forward.3} parent=149 // loop_body
            %v444 = vld [vmem:[%s442] sm:%s435]
            %445 = vst [vmem:[%s443] sm:%s435] %v444
          $region155: #{c1_forward.3} parent=149 // loop_footer
            %s441 = sadd.s32 1, %s437
          $region156: #{c1_forward.3} parent=149 // loop_footer_branch
            %436 = sbr.rel target = $region152
          $region157: #{c1_forward.3} parent=149 // loop_exit
            _
        $region150: #{c1_forward.3} parent=141 // pred_fallthru
          _
        // Predicated region
        $region173: #{c1_forward.3} parent=141 // pred_check
          _
        $region174: #{c1_forward.3} parent=141 // pred_check_branch
          %497 = sbr.rel (0) target = $region176
        $region175: #{c1_forward.3} parent=141 // pred_region
          %498 = vsyncadd %s425, 2048
        $region176: #{c1_forward.3} parent=141 // pred_fallthru
          _
        %s499 = smul.u32 %s411, 2
        %s500 = sadd.s32 %s499, %s416
        %s501 = smul.addr %s500, 4
        %s502 = scalar_lea.vmem %s0, %s501
        %s503 = smul.addr %s420, 4
        %s504 = scalar_lea.vmem [#allocation2], %s503
        %s505 = sadd.s32 1, %s424
        %s506 = scalar_lea.sflag [#allocation3], %s505
        %p508 = scmp.lt.u32.totalorder 8, 8
        %p509 = pneg %p508
        // Predicated region
        $region177: #{c1_forward.3} parent=141 // pred_check
          _
        $region178: #{c1_forward.3} parent=141 // pred_check_branch
          %511 = sbr.rel (%p508) target = $region180
        $region179: #{c1_forward.3} parent=141 // pred_region
          %s527 = sand.u32 8, 7
          %p528 = scmp.eq.s32.totalorder %s527, 0
          // Predicated region
          $region192: #{c1_forward.3} parent=179 // pred_check
            %p529 = pneg %p528
          $region193: #{c1_forward.3} parent=179 // pred_check_branch
            %531 = sbr.rel (%p529) target = $region195
          $region194: #{c1_forward.3} parent=179 // pred_region
            loop: start=0, step=1, limit=1
            $region196: #{c1_forward.3} parent=194 // loop_pre_header
              _
            $region197: #{c1_forward.3} parent=194 // loop_header
              %s533 = sphi 0, %s537
              %p534 = scmp.ge.s32.totalorder %s533, 1
              %s538 = sphi %s502, %s502
              %s539 = sphi %s504, %s504
            $region198: #{c1_forward.3} parent=194 // loop_header_branch
              %536 = sbr.rel (%p534) target = $region202
            $region199: #{c1_forward.3} parent=194 // loop_body
              %v540 = vld [vmem:[%s538] sm:$0xff]
              %541 = vst [vmem:[%s539] sm:$0xff] %v540
            $region200: #{c1_forward.3} parent=194 // loop_footer
              %s537 = sadd.s32 1, %s533
            $region201: #{c1_forward.3} parent=194 // loop_footer_branch
              %532 = sbr.rel target = $region197
            $region202: #{c1_forward.3} parent=194 // loop_exit
              _
          $region195: #{c1_forward.3} parent=179 // pred_fallthru
            _
          %p542 = pneg %p528
          // Predicated region
          $region203: #{c1_forward.3} parent=179 // pred_check
            _
          $region204: #{c1_forward.3} parent=179 // pred_check_branch
            %544 = sbr.rel (%p528) target = $region206
          $region205: #{c1_forward.3} parent=179 // pred_region
            %s545 = sand.u32 8, 7
          $region206: #{c1_forward.3} parent=179 // pred_fallthru
            _
        $region180: #{c1_forward.3} parent=141 // pred_fallthru
          _
        // Predicated region
        $region181: #{c1_forward.3} parent=141 // pred_check
          %p512 = pneg %p508
        $region182: #{c1_forward.3} parent=141 // pred_check_branch
          %514 = sbr.rel (%p512) target = $region184
        $region183: #{c1_forward.3} parent=141 // pred_region
          %s515 = sshll.u32 1, 8
          %s516 = ssub.s32 %s515, 1
          loop: start=0, step=1, limit=1
          $region185: #{c1_forward.3} parent=183 // loop_pre_header
            _
          $region186: #{c1_forward.3} parent=183 // loop_header
            %s518 = sphi 0, %s522
            %p519 = scmp.ge.s32.totalorder %s518, 1
            %s523 = sphi %s502, %s502
            %s524 = sphi %s504, %s504
          $region187: #{c1_forward.3} parent=183 // loop_header_branch
            %521 = sbr.rel (%p519) target = $region191
          $region188: #{c1_forward.3} parent=183 // loop_body
            %v525 = vld [vmem:[%s523] sm:%s516]
            %526 = vst [vmem:[%s524] sm:%s516] %v525
          $region189: #{c1_forward.3} parent=183 // loop_footer
            %s522 = sadd.s32 1, %s518
          $region190: #{c1_forward.3} parent=183 // loop_footer_branch
            %517 = sbr.rel target = $region186
          $region191: #{c1_forward.3} parent=183 // loop_exit
            _
        $region184: #{c1_forward.3} parent=141 // pred_fallthru
          _
        // Predicated region
        $region207: #{c1_forward.3} parent=141 // pred_check
          _
        $region208: #{c1_forward.3} parent=141 // pred_check_branch
          %548 = sbr.rel (0) target = $region210
        $region209: #{c1_forward.3} parent=141 // pred_region
          %549 = vsyncadd %s506, 128
        $region210: #{c1_forward.3} parent=141 // pred_fallthru
          _
        %s550 = smul.u32 %s414, 2
        %s551 = sadd.s32 %s550, %s416
        %s552 = smul.addr %s551, 4
        %s553 = scalar_lea.vmem %s0, %s552
        %s554 = sadd.s32 34, %s420
        %s555 = smul.addr %s554, 4
        %s556 = scalar_lea.vmem [#allocation2], %s555
        %s557 = sadd.s32 2, %s424
        %s558 = scalar_lea.sflag [#allocation3], %s557
        %p560 = scmp.lt.u32.totalorder 8, 8
        %p561 = pneg %p560
        // Predicated region
        $region211: #{c1_forward.3} parent=141 // pred_check
          _
        $region212: #{c1_forward.3} parent=141 // pred_check_branch
          %563 = sbr.rel (%p560) target = $region214
        $region213: #{c1_forward.3} parent=141 // pred_region
          %s579 = sand.u32 8, 7
          %p580 = scmp.eq.s32.totalorder %s579, 0
          // Predicated region
          $region226: #{c1_forward.3} parent=213 // pred_check
            %p581 = pneg %p580
          $region227: #{c1_forward.3} parent=213 // pred_check_branch
            %583 = sbr.rel (%p581) target = $region229
          $region228: #{c1_forward.3} parent=213 // pred_region
            loop: start=0, step=1, limit=1
            $region230: #{c1_forward.3} parent=228 // loop_pre_header
              _
            $region231: #{c1_forward.3} parent=228 // loop_header
              %s585 = sphi 0, %s589
              %p586 = scmp.ge.s32.totalorder %s585, 1
              %s590 = sphi %s553, %s553
              %s591 = sphi %s556, %s556
            $region232: #{c1_forward.3} parent=228 // loop_header_branch
              %588 = sbr.rel (%p586) target = $region236
            $region233: #{c1_forward.3} parent=228 // loop_body
              %v592 = vld [vmem:[%s590] sm:$0xff]
              %593 = vst [vmem:[%s591] sm:$0xff] %v592
            $region234: #{c1_forward.3} parent=228 // loop_footer
              %s589 = sadd.s32 1, %s585
            $region235: #{c1_forward.3} parent=228 // loop_footer_branch
              %584 = sbr.rel target = $region231
            $region236: #{c1_forward.3} parent=228 // loop_exit
              _
          $region229: #{c1_forward.3} parent=213 // pred_fallthru
            _
          %p594 = pneg %p580
          // Predicated region
          $region237: #{c1_forward.3} parent=213 // pred_check
            _
          $region238: #{c1_forward.3} parent=213 // pred_check_branch
            %596 = sbr.rel (%p580) target = $region240
          $region239: #{c1_forward.3} parent=213 // pred_region
            %s597 = sand.u32 8, 7
          $region240: #{c1_forward.3} parent=213 // pred_fallthru
            _
        $region214: #{c1_forward.3} parent=141 // pred_fallthru
          _
        // Predicated region
        $region215: #{c1_forward.3} parent=141 // pred_check
          %p564 = pneg %p560
        $region216: #{c1_forward.3} parent=141 // pred_check_branch
          %566 = sbr.rel (%p564) target = $region218
        $region217: #{c1_forward.3} parent=141 // pred_region
          %s567 = sshll.u32 1, 8
          %s568 = ssub.s32 %s567, 1
          loop: start=0, step=1, limit=1
          $region219: #{c1_forward.3} parent=217 // loop_pre_header
            _
          $region220: #{c1_forward.3} parent=217 // loop_header
            %s570 = sphi 0, %s574
            %p571 = scmp.ge.s32.totalorder %s570, 1
            %s575 = sphi %s553, %s553
            %s576 = sphi %s556, %s556
          $region221: #{c1_forward.3} parent=217 // loop_header_branch
            %573 = sbr.rel (%p571) target = $region225
          $region222: #{c1_forward.3} parent=217 // loop_body
            %v577 = vld [vmem:[%s575] sm:%s568]
            %578 = vst [vmem:[%s576] sm:%s568] %v577
          $region223: #{c1_forward.3} parent=217 // loop_footer
            %s574 = sadd.s32 1, %s570
          $region224: #{c1_forward.3} parent=217 // loop_footer_branch
            %569 = sbr.rel target = $region220
          $region225: #{c1_forward.3} parent=217 // loop_exit
            _
        $region218: #{c1_forward.3} parent=141 // pred_fallthru
          _
        // Predicated region
        $region241: #{c1_forward.3} parent=141 // pred_check
          _
        $region242: #{c1_forward.3} parent=141 // pred_check_branch
          %600 = sbr.rel (0) target = $region244
        $region243: #{c1_forward.3} parent=141 // pred_region
          %601 = vsyncadd %s558, 128
        $region244: #{c1_forward.3} parent=141 // pred_fallthru
          _
      $region142: #{c1_forward.3} parent=31 // pred_fallthru
        _
      %s602 = smul.u32 %s228, 3
      %s603 = scalar_lea.sflag [#allocation3], %s602
      %s604 = smul.u32 4, 16
      %s605 = smul.u32 %s604, 2
      %s606 = smul.u32 %s605, 1
      %s607 = sshll.u32 %s606, 4
      %608 = dma.done %s603, %s607
      %s609 = sadd.s32 1, %s602
      %s610 = scalar_lea.sflag [#allocation3], %s609
      %s611 = smul.u32 4, 1
      %s612 = smul.u32 %s611, 2
      %s613 = smul.u32 %s612, 1
      %s614 = sshll.u32 %s613, 4
      %615 = dma.done %s610, %s614
      %s616 = sadd.s32 2, %s602
      %s617 = scalar_lea.sflag [#allocation3], %s616
      %s618 = sshll.u32 %s613, 4
      %619 = dma.done %s617, %s618
      // Predicated region
      $region245: #{c1_forward.3} parent=31 // pred_check
        %p620 = pneg %p229
      $region246: #{c1_forward.3} parent=31 // pred_check_branch
        %622 = sbr.rel (%p620) target = $region248
      $region247: #{c1_forward.3} parent=31 // pred_region
        %s623 = smul.u32 %s228, 36
        %s624 = smul.addr %s623, 4
        %s625 = scalar_lea.vmem [#allocation2], %s624
        %626 = vst [vmem:[%s625] sm:$0xf] 0
        %627 = vst [vmem:[%s625 + $0x4] sm:$0xf] 0
        %s628 = scalar_lea.vmem %s625, 136 [#allocation2]
        %629 = vst [vmem:[%s628] sm:$0xf] 0
        %630 = vst [vmem:[%s628 + $0x4] sm:$0xf] 0
      $region248: #{c1_forward.3} parent=31 // pred_fallthru
        _
      %v631 = vlaneseq
      %v632 = vshrl.u32 %v631, 7
      %v633 = vadd.s32 %v632, 8
      %v634 = vadd.s32 %v632, 16
      %v635 = vadd.s32 %v632, 24
      %v636 = vadd.s32 %v632, 32
      %v637 = vadd.s32 %v632, 40
      %v638 = vadd.s32 %v632, 48
      %v639 = vadd.s32 %v632, 56
      %v640 = vadd.s32 %v632, 64
      %v641 = vadd.s32 %v632, 72
      %v642 = vadd.s32 %v632, 80
      %v643 = vadd.s32 %v632, 88
      %v644 = vadd.s32 %v632, 96
      %v645 = vadd.s32 %v632, 104
      %v646 = vadd.s32 %v632, 112
      %v647 = vadd.s32 %v632, 120
      %v648 = vadd.s32 %v632, 128
      %v649 = vadd.s32 %v632, 136
      %v650 = vadd.s32 %v632, 144
      %v651 = vadd.s32 %v632, 152
      %v652 = vadd.s32 %v632, 160
      %v653 = vadd.s32 %v632, 168
      %v654 = vadd.s32 %v632, 176
      %v655 = vadd.s32 %v632, 184
      %v656 = vadd.s32 %v632, 192
      %v657 = vadd.s32 %v632, 200
      %v658 = vadd.s32 %v632, 208
      %v659 = vadd.s32 %v632, 216
      %v660 = vadd.s32 %v632, 224
      %v661 = vadd.s32 %v632, 232
      %v662 = vadd.s32 %v632, 240
      %v663 = vadd.s32 %v632, 248
      %vm664 = vcmp.lt.s32.totalorder %v632, 0
      %v665 = vsub.s32 0, %v632
      %v666 = vsel %vm664, %v665, %v632
      %v667 = vshrl.u32 %v666, 4
      %v668 = vand.u32 %v666, 15
      %v669 = vsub.s32 0, %v668
      %v670 = vsel %vm664, %v669, %v668
      %vm671 = vcmp.lt.s32.totalorder %v633, 0
      %v672 = vsub.s32 0, %v633
      %v673 = vsel %vm671, %v672, %v633
      %v674 = vshrl.u32 %v673, 4
      %v675 = vand.u32 %v673, 15
      %v676 = vsub.s32 0, %v675
      %v677 = vsel %vm671, %v676, %v675
      %vm678 = vcmp.lt.s32.totalorder %v634, 0
      %v679 = vsub.s32 0, %v634
      %v680 = vsel %vm678, %v679, %v634
      %v681 = vshrl.u32 %v680, 4
      %v682 = vand.u32 %v680, 15
      %v683 = vsub.s32 0, %v682
      %v684 = vsel %vm678, %v683, %v682
      %vm685 = vcmp.lt.s32.totalorder %v635, 0
      %v686 = vsub.s32 0, %v635
      %v687 = vsel %vm685, %v686, %v635
      %v688 = vshrl.u32 %v687, 4
      %v689 = vand.u32 %v687, 15
      %v690 = vsub.s32 0, %v689
      %v691 = vsel %vm685, %v690, %v689
      %vm692 = vcmp.lt.s32.totalorder %v636, 0
      %v693 = vsub.s32 0, %v636
      %v694 = vsel %vm692, %v693, %v636
      %v695 = vshrl.u32 %v694, 4
      %v696 = vand.u32 %v694, 15
      %v697 = vsub.s32 0, %v696
      %v698 = vsel %vm692, %v697, %v696
      %vm699 = vcmp.lt.s32.totalorder %v637, 0
      %v700 = vsub.s32 0, %v637
      %v701 = vsel %vm699, %v700, %v637
      %v702 = vshrl.u32 %v701, 4
      %v703 = vand.u32 %v701, 15
      %v704 = vsub.s32 0, %v703
      %v705 = vsel %vm699, %v704, %v703
      %vm706 = vcmp.lt.s32.totalorder %v638, 0
      %v707 = vsub.s32 0, %v638
      %v708 = vsel %vm706, %v707, %v638
      %v709 = vshrl.u32 %v708, 4
      %v710 = vand.u32 %v708, 15
      %v711 = vsub.s32 0, %v710
      %v712 = vsel %vm706, %v711, %v710
      %vm713 = vcmp.lt.s32.totalorder %v639, 0
      %v714 = vsub.s32 0, %v639
      %v715 = vsel %vm713, %v714, %v639
      %v716 = vshrl.u32 %v715, 4
      %v717 = vand.u32 %v715, 15
      %v718 = vsub.s32 0, %v717
      %v719 = vsel %vm713, %v718, %v717
      %vm720 = vcmp.lt.s32.totalorder %v640, 0
      %v721 = vsub.s32 0, %v640
      %v722 = vsel %vm720, %v721, %v640
      %v723 = vshrl.u32 %v722, 4
      %v724 = vand.u32 %v722, 15
      %v725 = vsub.s32 0, %v724
      %v726 = vsel %vm720, %v725, %v724
      %vm727 = vcmp.lt.s32.totalorder %v641, 0
      %v728 = vsub.s32 0, %v641
      %v729 = vsel %vm727, %v728, %v641
      %v730 = vshrl.u32 %v729, 4
      %v731 = vand.u32 %v729, 15
      %v732 = vsub.s32 0, %v731
      %v733 = vsel %vm727, %v732, %v731
      %vm734 = vcmp.lt.s32.totalorder %v642, 0
      %v735 = vsub.s32 0, %v642
      %v736 = vsel %vm734, %v735, %v642
      %v737 = vshrl.u32 %v736, 4
      %v738 = vand.u32 %v736, 15
      %v739 = vsub.s32 0, %v738
      %v740 = vsel %vm734, %v739, %v738
      %vm741 = vcmp.lt.s32.totalorder %v643, 0
      %v742 = vsub.s32 0, %v643
      %v743 = vsel %vm741, %v742, %v643
      %v744 = vshrl.u32 %v743, 4
      %v745 = vand.u32 %v743, 15
      %v746 = vsub.s32 0, %v745
      %v747 = vsel %vm741, %v746, %v745
      %vm748 = vcmp.lt.s32.totalorder %v644, 0
      %v749 = vsub.s32 0, %v644
      %v750 = vsel %vm748, %v749, %v644
      %v751 = vshrl.u32 %v750, 4
      %v752 = vand.u32 %v750, 15
      %v753 = vsub.s32 0, %v752
      %v754 = vsel %vm748, %v753, %v752
      %vm755 = vcmp.lt.s32.totalorder %v645, 0
      %v756 = vsub.s32 0, %v645
      %v757 = vsel %vm755, %v756, %v645
      %v758 = vshrl.u32 %v757, 4
      %v759 = vand.u32 %v757, 15
      %v760 = vsub.s32 0, %v759
      %v761 = vsel %vm755, %v760, %v759
      %vm762 = vcmp.lt.s32.totalorder %v646, 0
      %v763 = vsub.s32 0, %v646
      %v764 = vsel %vm762, %v763, %v646
      %v765 = vshrl.u32 %v764, 4
      %v766 = vand.u32 %v764, 15
      %v767 = vsub.s32 0, %v766
      %v768 = vsel %vm762, %v767, %v766
      %vm769 = vcmp.lt.s32.totalorder %v647, 0
      %v770 = vsub.s32 0, %v647
      %v771 = vsel %vm769, %v770, %v647
      %v772 = vshrl.u32 %v771, 4
      %v773 = vand.u32 %v771, 15
      %v774 = vsub.s32 0, %v773
      %v775 = vsel %vm769, %v774, %v773
      %vm776 = vcmp.lt.s32.totalorder %v648, 0
      %v777 = vsub.s32 0, %v648
      %v778 = vsel %vm776, %v777, %v648
      %v779 = vshrl.u32 %v778, 4
      %v780 = vand.u32 %v778, 15
      %v781 = vsub.s32 0, %v780
      %v782 = vsel %vm776, %v781, %v780
      %vm783 = vcmp.lt.s32.totalorder %v649, 0
      %v784 = vsub.s32 0, %v649
      %v785 = vsel %vm783, %v784, %v649
      %v786 = vshrl.u32 %v785, 4
      %v787 = vand.u32 %v785, 15
      %v788 = vsub.s32 0, %v787
      %v789 = vsel %vm783, %v788, %v787
      %vm790 = vcmp.lt.s32.totalorder %v650, 0
      %v791 = vsub.s32 0, %v650
      %v792 = vsel %vm790, %v791, %v650
      %v793 = vshrl.u32 %v792, 4
      %v794 = vand.u32 %v792, 15
      %v795 = vsub.s32 0, %v794
      %v796 = vsel %vm790, %v795, %v794
      %vm797 = vcmp.lt.s32.totalorder %v651, 0
      %v798 = vsub.s32 0, %v651
      %v799 = vsel %vm797, %v798, %v651
      %v800 = vshrl.u32 %v799, 4
      %v801 = vand.u32 %v799, 15
      %v802 = vsub.s32 0, %v801
      %v803 = vsel %vm797, %v802, %v801
      %vm804 = vcmp.lt.s32.totalorder %v652, 0
      %v805 = vsub.s32 0, %v652
      %v806 = vsel %vm804, %v805, %v652
      %v807 = vshrl.u32 %v806, 4
      %v808 = vand.u32 %v806, 15
      %v809 = vsub.s32 0, %v808
      %v810 = vsel %vm804, %v809, %v808
      %vm811 = vcmp.lt.s32.totalorder %v653, 0
      %v812 = vsub.s32 0, %v653
      %v813 = vsel %vm811, %v812, %v653
      %v814 = vshrl.u32 %v813, 4
      %v815 = vand.u32 %v813, 15
      %v816 = vsub.s32 0, %v815
      %v817 = vsel %vm811, %v816, %v815
      %vm818 = vcmp.lt.s32.totalorder %v654, 0
      %v819 = vsub.s32 0, %v654
      %v820 = vsel %vm818, %v819, %v654
      %v821 = vshrl.u32 %v820, 4
      %v822 = vand.u32 %v820, 15
      %v823 = vsub.s32 0, %v822
      %v824 = vsel %vm818, %v823, %v822
      %vm825 = vcmp.lt.s32.totalorder %v655, 0
      %v826 = vsub.s32 0, %v655
      %v827 = vsel %vm825, %v826, %v655
      %v828 = vshrl.u32 %v827, 4
      %v829 = vand.u32 %v827, 15
      %v830 = vsub.s32 0, %v829
      %v831 = vsel %vm825, %v830, %v829
      %vm832 = vcmp.lt.s32.totalorder %v656, 0
      %v833 = vsub.s32 0, %v656
      %v834 = vsel %vm832, %v833, %v656
      %v835 = vshrl.u32 %v834, 4
      %v836 = vand.u32 %v834, 15
      %v837 = vsub.s32 0, %v836
      %v838 = vsel %vm832, %v837, %v836
      %vm839 = vcmp.lt.s32.totalorder %v657, 0
      %v840 = vsub.s32 0, %v657
      %v841 = vsel %vm839, %v840, %v657
      %v842 = vshrl.u32 %v841, 4
      %v843 = vand.u32 %v841, 15
      %v844 = vsub.s32 0, %v843
      %v845 = vsel %vm839, %v844, %v843
      %vm846 = vcmp.lt.s32.totalorder %v658, 0
      %v847 = vsub.s32 0, %v658
      %v848 = vsel %vm846, %v847, %v658
      %v849 = vshrl.u32 %v848, 4
      %v850 = vand.u32 %v848, 15
      %v851 = vsub.s32 0, %v850
      %v852 = vsel %vm846, %v851, %v850
      %vm853 = vcmp.lt.s32.totalorder %v659, 0
      %v854 = vsub.s32 0, %v659
      %v855 = vsel %vm853, %v854, %v659
      %v856 = vshrl.u32 %v855, 4
      %v857 = vand.u32 %v855, 15
      %v858 = vsub.s32 0, %v857
      %v859 = vsel %vm853, %v858, %v857
      %vm860 = vcmp.lt.s32.totalorder %v660, 0
      %v861 = vsub.s32 0, %v660
      %v862 = vsel %vm860, %v861, %v660
      %v863 = vshrl.u32 %v862, 4
      %v864 = vand.u32 %v862, 15
      %v865 = vsub.s32 0, %v864
      %v866 = vsel %vm860, %v865, %v864
      %vm867 = vcmp.lt.s32.totalorder %v661, 0
      %v868 = vsub.s32 0, %v661
      %v869 = vsel %vm867, %v868, %v661
      %v870 = vshrl.u32 %v869, 4
      %v871 = vand.u32 %v869, 15
      %v872 = vsub.s32 0, %v871
      %v873 = vsel %vm867, %v872, %v871
      %vm874 = vcmp.lt.s32.totalorder %v662, 0
      %v875 = vsub.s32 0, %v662
      %v876 = vsel %vm874, %v875, %v662
      %v877 = vshrl.u32 %v876, 4
      %v878 = vand.u32 %v876, 15
      %v879 = vsub.s32 0, %v878
      %v880 = vsel %vm874, %v879, %v878
      %vm881 = vcmp.lt.s32.totalorder %v663, 0
      %v882 = vsub.s32 0, %v663
      %v883 = vsel %vm881, %v882, %v663
      %v884 = vshrl.u32 %v883, 4
      %v885 = vand.u32 %v883, 15
      %v886 = vsub.s32 0, %v885
      %v887 = vsel %vm881, %v886, %v885
      %vm888 = vcmp.ne.s32.totalorder %v670, 0
      %vm889 = vcmp.ne.s32.totalorder %v677, 0
      %vm890 = vcmp.ne.s32.totalorder %v684, 0
      %vm891 = vcmp.ne.s32.totalorder %v691, 0
      %vm892 = vcmp.ne.s32.totalorder %v698, 0
      %vm893 = vcmp.ne.s32.totalorder %v705, 0
      %vm894 = vcmp.ne.s32.totalorder %v712, 0
      %vm895 = vcmp.ne.s32.totalorder %v719, 0
      %vm896 = vcmp.ne.s32.totalorder %v726, 0
      %vm897 = vcmp.ne.s32.totalorder %v733, 0
      %vm898 = vcmp.ne.s32.totalorder %v740, 0
      %vm899 = vcmp.ne.s32.totalorder %v747, 0
      %vm900 = vcmp.ne.s32.totalorder %v754, 0
      %vm901 = vcmp.ne.s32.totalorder %v761, 0
      %vm902 = vcmp.ne.s32.totalorder %v768, 0
      %vm903 = vcmp.ne.s32.totalorder %v775, 0
      %vm904 = vcmp.ne.s32.totalorder %v782, 0
      %vm905 = vcmp.ne.s32.totalorder %v789, 0
      %vm906 = vcmp.ne.s32.totalorder %v796, 0
      %vm907 = vcmp.ne.s32.totalorder %v803, 0
      %vm908 = vcmp.ne.s32.totalorder %v810, 0
      %vm909 = vcmp.ne.s32.totalorder %v817, 0
      %vm910 = vcmp.ne.s32.totalorder %v824, 0
      %vm911 = vcmp.ne.s32.totalorder %v831, 0
      %vm912 = vcmp.ne.s32.totalorder %v838, 0
      %vm913 = vcmp.ne.s32.totalorder %v845, 0
      %vm914 = vcmp.ne.s32.totalorder %v852, 0
      %vm915 = vcmp.ne.s32.totalorder %v859, 0
      %vm916 = vcmp.ne.s32.totalorder %v866, 0
      %vm917 = vcmp.ne.s32.totalorder %v873, 0
      %vm918 = vcmp.ne.s32.totalorder %v880, 0
      %vm919 = vcmp.ne.s32.totalorder %v887, 0
      %vm920 = vcmp.lt.s32.totalorder %v670, 0
      %vm921 = vcmp.lt.s32.totalorder %v677, 0
      %vm922 = vcmp.lt.s32.totalorder %v684, 0
      %vm923 = vcmp.lt.s32.totalorder %v691, 0
      %vm924 = vcmp.lt.s32.totalorder %v698, 0
      %vm925 = vcmp.lt.s32.totalorder %v705, 0
      %vm926 = vcmp.lt.s32.totalorder %v712, 0
      %vm927 = vcmp.lt.s32.totalorder %v719, 0
      %vm928 = vcmp.lt.s32.totalorder %v726, 0
      %vm929 = vcmp.lt.s32.totalorder %v733, 0
      %vm930 = vcmp.lt.s32.totalorder %v740, 0
      %vm931 = vcmp.lt.s32.totalorder %v747, 0
      %vm932 = vcmp.lt.s32.totalorder %v754, 0
      %vm933 = vcmp.lt.s32.totalorder %v761, 0
      %vm934 = vcmp.lt.s32.totalorder %v768, 0
      %vm935 = vcmp.lt.s32.totalorder %v775, 0
      %vm936 = vcmp.lt.s32.totalorder %v782, 0
      %vm937 = vcmp.lt.s32.totalorder %v789, 0
      %vm938 = vcmp.lt.s32.totalorder %v796, 0
      %vm939 = vcmp.lt.s32.totalorder %v803, 0
      %vm940 = vcmp.lt.s32.totalorder %v810, 0
      %vm941 = vcmp.lt.s32.totalorder %v817, 0
      %vm942 = vcmp.lt.s32.totalorder %v824, 0
      %vm943 = vcmp.lt.s32.totalorder %v831, 0
      %vm944 = vcmp.lt.s32.totalorder %v838, 0
      %vm945 = vcmp.lt.s32.totalorder %v845, 0
      %vm946 = vcmp.lt.s32.totalorder %v852, 0
      %vm947 = vcmp.lt.s32.totalorder %v859, 0
      %vm948 = vcmp.lt.s32.totalorder %v866, 0
      %vm949 = vcmp.lt.s32.totalorder %v873, 0
      %vm950 = vcmp.lt.s32.totalorder %v880, 0
      %vm951 = vcmp.lt.s32.totalorder %v887, 0
      %vm952 = vmand %vm920, %vm888
      %vm953 = vmand %vm921, %vm889
      %vm954 = vmand %vm922, %vm890
      %vm955 = vmand %vm923, %vm891
      %vm956 = vmand %vm924, %vm892
      %vm957 = vmand %vm925, %vm893
      %vm958 = vmand %vm926, %vm894
      %vm959 = vmand %vm927, %vm895
      %vm960 = vmand %vm928, %vm896
      %vm961 = vmand %vm929, %vm897
      %vm962 = vmand %vm930, %vm898
      %vm963 = vmand %vm931, %vm899
      %vm964 = vmand %vm932, %vm900
      %vm965 = vmand %vm933, %vm901
      %vm966 = vmand %vm934, %vm902
      %vm967 = vmand %vm935, %vm903
      %vm968 = vmand %vm936, %vm904
      %vm969 = vmand %vm937, %vm905
      %vm970 = vmand %vm938, %vm906
      %vm971 = vmand %vm939, %vm907
      %vm972 = vmand %vm940, %vm908
      %vm973 = vmand %vm941, %vm909
      %vm974 = vmand %vm942, %vm910
      %vm975 = vmand %vm943, %vm911
      %vm976 = vmand %vm944, %vm912
      %vm977 = vmand %vm945, %vm913
      %vm978 = vmand %vm946, %vm914
      %vm979 = vmand %vm947, %vm915
      %vm980 = vmand %vm948, %vm916
      %vm981 = vmand %vm949, %vm917
      %vm982 = vmand %vm950, %vm918
      %vm983 = vmand %vm951, %vm919
      %v984 = vadd.s32 %v670, 16
      %v985 = vadd.s32 %v677, 16
      %v986 = vadd.s32 %v684, 16
      %v987 = vadd.s32 %v691, 16
      %v988 = vadd.s32 %v698, 16
      %v989 = vadd.s32 %v705, 16
      %v990 = vadd.s32 %v712, 16
      %v991 = vadd.s32 %v719, 16
      %v992 = vadd.s32 %v726, 16
      %v993 = vadd.s32 %v733, 16
      %v994 = vadd.s32 %v740, 16
      %v995 = vadd.s32 %v747, 16
      %v996 = vadd.s32 %v754, 16
      %v997 = vadd.s32 %v761, 16
      %v998 = vadd.s32 %v768, 16
      %v999 = vadd.s32 %v775, 16
      %v1000 = vadd.s32 %v782, 16
      %v1001 = vadd.s32 %v789, 16
      %v1002 = vadd.s32 %v796, 16
      %v1003 = vadd.s32 %v803, 16
      %v1004 = vadd.s32 %v810, 16
      %v1005 = vadd.s32 %v817, 16
      %v1006 = vadd.s32 %v824, 16
      %v1007 = vadd.s32 %v831, 16
      %v1008 = vadd.s32 %v838, 16
      %v1009 = vadd.s32 %v845, 16
      %v1010 = vadd.s32 %v852, 16
      %v1011 = vadd.s32 %v859, 16
      %v1012 = vadd.s32 %v866, 16
      %v1013 = vadd.s32 %v873, 16
      %v1014 = vadd.s32 %v880, 16
      %v1015 = vadd.s32 %v887, 16
      %v1016 = vsel %vm952, %v984, %v670
      %v1017 = vsel %vm953, %v985, %v677
      %v1018 = vsel %vm954, %v986, %v684
      %v1019 = vsel %vm955, %v987, %v691
      %v1020 = vsel %vm956, %v988, %v698
      %v1021 = vsel %vm957, %v989, %v705
      %v1022 = vsel %vm958, %v990, %v712
      %v1023 = vsel %vm959, %v991, %v719
      %v1024 = vsel %vm960, %v992, %v726
      %v1025 = vsel %vm961, %v993, %v733
      %v1026 = vsel %vm962, %v994, %v740
      %v1027 = vsel %vm963, %v995, %v747
      %v1028 = vsel %vm964, %v996, %v754
      %v1029 = vsel %vm965, %v997, %v761
      %v1030 = vsel %vm966, %v998, %v768
      %v1031 = vsel %vm967, %v999, %v775
      %v1032 = vsel %vm968, %v1000, %v782
      %v1033 = vsel %vm969, %v1001, %v789
      %v1034 = vsel %vm970, %v1002, %v796
      %v1035 = vsel %vm971, %v1003, %v803
      %v1036 = vsel %vm972, %v1004, %v810
      %v1037 = vsel %vm973, %v1005, %v817
      %v1038 = vsel %vm974, %v1006, %v824
      %v1039 = vsel %vm975, %v1007, %v831
      %v1040 = vsel %vm976, %v1008, %v838
      %v1041 = vsel %vm977, %v1009, %v845
      %v1042 = vsel %vm978, %v1010, %v852
      %v1043 = vsel %vm979, %v1011, %v859
      %v1044 = vsel %vm980, %v1012, %v866
      %v1045 = vsel %vm981, %v1013, %v873
      %v1046 = vsel %vm982, %v1014, %v880
      %v1047 = vsel %vm983, %v1015, %v887
      %s1048 = smul.u32 %s228, 36
      %s1049 = smul.addr %s1048, 4
      %s1050 = scalar_lea.vmem [#allocation2], %s1049
      %v1051 = vld [vmem:[%s1050] sm:$0xf]
      %v1052 = vld [vmem:[%s1050 + $0x4] sm:$0xf]
      %v1053 = vld [vmem:[%s1050 + $0x8] sm:$0xf]
      %v1054 = vld [vmem:[%s1050 + $0xc] sm:$0xf]
      %v1055 = vld [vmem:[%s1050 + $0x10] sm:$0xf]
      %v1056 = vld [vmem:[%s1050 + $0x14] sm:$0xf]
      %v1057 = vld [vmem:[%s1050 + $0x18] sm:$0xf]
      %v1058 = vld [vmem:[%s1050 + $0x1c] sm:$0xf]
      %v1059 = vld [vmem:[%s1050 + $0x20] sm:$0xf]
      %v1060 = vld [vmem:[%s1050 + $0x24] sm:$0xf]
      %v1061 = vld [vmem:[%s1050 + $0x28] sm:$0xf]
      %v1062 = vld [vmem:[%s1050 + $0x2c] sm:$0xf]
      %v1063 = vld [vmem:[%s1050 + $0x30] sm:$0xf]
      %v1064 = vld [vmem:[%s1050 + $0x34] sm:$0xf]
      %v1065 = vld [vmem:[%s1050 + $0x38] sm:$0xf]
      %v1066 = vld [vmem:[%s1050 + $0x3c] sm:$0xf]
      %v1067 = vld [vmem:[%s1050 + $0x40] sm:$0xf]
      %v1068 = vld [vmem:[%s1050 + $0x44] sm:$0xf]
      %v1069 = vld [vmem:[%s1050 + $0x48] sm:$0xf]
      %v1070 = vld [vmem:[%s1050 + $0x4c] sm:$0xf]
      %v1071 = vld [vmem:[%s1050 + $0x50] sm:$0xf]
      %v1072 = vld [vmem:[%s1050 + $0x54] sm:$0xf]
      %v1073 = vld [vmem:[%s1050 + $0x58] sm:$0xf]
      %v1074 = vld [vmem:[%s1050 + $0x5c] sm:$0xf]
      %v1075 = vld [vmem:[%s1050 + $0x60] sm:$0xf]
      %v1076 = vld [vmem:[%s1050 + $0x64] sm:$0xf]
      %v1077 = vld [vmem:[%s1050 + $0x68] sm:$0xf]
      %v1078 = vld [vmem:[%s1050 + $0x6c] sm:$0xf]
      %v1079 = vld [vmem:[%s1050 + $0x70] sm:$0xf]
      %v1080 = vld [vmem:[%s1050 + $0x74] sm:$0xf]
      %v1081 = vld [vmem:[%s1050 + $0x78] sm:$0xf]
      %v1082 = vld [vmem:[%s1050 + $0x7c] sm:$0xf]
      %v1083 = vld [vmem:[%s1] sm:$0xf]
      %v1084 = vld [vmem:[%s1 + $0x4] sm:$0xf]
      %v1085 = vld [vmem:[%s1 + $0x8] sm:$0xf]
      %v1086 = vld [vmem:[%s1 + $0xc] sm:$0xf]
      %v1087 = vld [vmem:[%s1 + $0x10] sm:$0xf]
      %v1088 = vld [vmem:[%s1 + $0x14] sm:$0xf]
      %v1089 = vld [vmem:[%s1 + $0x18] sm:$0xf]
      %v1090 = vld [vmem:[%s1 + $0x1c] sm:$0xf]
      %v1091 = vld [vmem:[%s1 + $0x20] sm:$0xf]
      %v1092 = vld [vmem:[%s1 + $0x24] sm:$0xf]
      %v1093 = vld [vmem:[%s1 + $0x28] sm:$0xf]
      %v1094 = vld [vmem:[%s1 + $0x2c] sm:$0xf]
      %v1095 = vld [vmem:[%s1 + $0x30] sm:$0xf]
      %v1096 = vld [vmem:[%s1 + $0x34] sm:$0xf]
      %v1097 = vld [vmem:[%s1 + $0x38] sm:$0xf]
      %v1098 = vld [vmem:[%s1 + $0x3c] sm:$0xf]
      %s1099 = scalar_lea.vmem %s1050, 8 [#allocation2]
      %v1100 = vld [vmem:[%s1099] sm:$0xf]
      %v1101 = vld [vmem:[%s1099 + $0x4] sm:$0xf]
      %v1102 = vld [vmem:[%s1099 + $0x8] sm:$0xf]
      %v1103 = vld [vmem:[%s1099 + $0xc] sm:$0xf]
      %v1104 = vld [vmem:[%s1099 + $0x10] sm:$0xf]
      %v1105 = vld [vmem:[%s1099 + $0x14] sm:$0xf]
      %v1106 = vld [vmem:[%s1099 + $0x18] sm:$0xf]
      %v1107 = vld [vmem:[%s1099 + $0x1c] sm:$0xf]
      %v1108 = vld [vmem:[%s1099 + $0x20] sm:$0xf]
      %v1109 = vld [vmem:[%s1099 + $0x24] sm:$0xf]
      %v1110 = vld [vmem:[%s1099 + $0x28] sm:$0xf]
      %v1111 = vld [vmem:[%s1099 + $0x2c] sm:$0xf]
      %v1112 = vld [vmem:[%s1099 + $0x30] sm:$0xf]
      %v1113 = vld [vmem:[%s1099 + $0x34] sm:$0xf]
      %v1114 = vld [vmem:[%s1099 + $0x38] sm:$0xf]
      %v1115 = vld [vmem:[%s1099 + $0x3c] sm:$0xf]
      %v1116 = vld [vmem:[%s1099 + $0x40] sm:$0xf]
      %v1117 = vld [vmem:[%s1099 + $0x44] sm:$0xf]
      %v1118 = vld [vmem:[%s1099 + $0x48] sm:$0xf]
      %v1119 = vld [vmem:[%s1099 + $0x4c] sm:$0xf]
      %v1120 = vld [vmem:[%s1099 + $0x50] sm:$0xf]
      %v1121 = vld [vmem:[%s1099 + $0x54] sm:$0xf]
      %v1122 = vld [vmem:[%s1099 + $0x58] sm:$0xf]
      %v1123 = vld [vmem:[%s1099 + $0x5c] sm:$0xf]
      %v1124 = vld [vmem:[%s1099 + $0x60] sm:$0xf]
      %v1125 = vld [vmem:[%s1099 + $0x64] sm:$0xf]
      %v1126 = vld [vmem:[%s1099 + $0x68] sm:$0xf]
      %v1127 = vld [vmem:[%s1099 + $0x6c] sm:$0xf]
      %v1128 = vld [vmem:[%s1099 + $0x70] sm:$0xf]
      %v1129 = vld [vmem:[%s1099 + $0x74] sm:$0xf]
      %v1130 = vld [vmem:[%s1099 + $0x78] sm:$0xf]
      %v1131 = vld [vmem:[%s1099 + $0x7c] sm:$0xf]
      %s1132 = scalar_lea.vmem %s1, 192
      %v1133 = vld [vmem:[%s1132] sm:$0xf]
      %v1134 = vld [vmem:[%s1132 + $0x4] sm:$0xf]
      %v1135 = vld [vmem:[%s1132 + $0x8] sm:$0xf]
      %v1136 = vld [vmem:[%s1132 + $0xc] sm:$0xf]
      %v1137 = vld [vmem:[%s1132 + $0x10] sm:$0xf]
      %v1138 = vld [vmem:[%s1132 + $0x14] sm:$0xf]
      %v1139 = vld [vmem:[%s1132 + $0x18] sm:$0xf]
      %v1140 = vld [vmem:[%s1132 + $0x1c] sm:$0xf]
      %v1141 = vld [vmem:[%s1132 + $0x20] sm:$0xf]
      %v1142 = vld [vmem:[%s1132 + $0x24] sm:$0xf]
      %v1143 = vld [vmem:[%s1132 + $0x28] sm:$0xf]
      %v1144 = vld [vmem:[%s1132 + $0x2c] sm:$0xf]
      %v1145 = vld [vmem:[%s1132 + $0x30] sm:$0xf]
      %v1146 = vld [vmem:[%s1132 + $0x34] sm:$0xf]
      %v1147 = vld [vmem:[%s1132 + $0x38] sm:$0xf]
      %v1148 = vld [vmem:[%s1132 + $0x3c] sm:$0xf]
      %v1181 = vunpack.c.l.b16 %v1100
      %v1182 = vunpack.c.l.b16 %v1101
      %v1183 = vunpack.c.l.b16 %v1102
      %v1184 = vunpack.c.l.b16 %v1103
      %v1185 = vunpack.c.l.b16 %v1104
      %v1186 = vunpack.c.l.b16 %v1105
      %v1187 = vunpack.c.l.b16 %v1106
      %v1188 = vunpack.c.l.b16 %v1107
      %v1189 = vunpack.c.l.b16 %v1108
      %v1190 = vunpack.c.l.b16 %v1109
      %v1191 = vunpack.c.l.b16 %v1110
      %v1192 = vunpack.c.l.b16 %v1111
      %v1193 = vunpack.c.l.b16 %v1112
      %v1194 = vunpack.c.l.b16 %v1113
      %v1195 = vunpack.c.l.b16 %v1114
      %v1196 = vunpack.c.l.b16 %v1115
      %v1197 = vunpack.c.l.b16 %v1116
      %v1198 = vunpack.c.l.b16 %v1117
      %v1199 = vunpack.c.l.b16 %v1118
      %v1200 = vunpack.c.l.b16 %v1119
      %v1201 = vunpack.c.l.b16 %v1120
      %v1202 = vunpack.c.l.b16 %v1121
      %v1203 = vunpack.c.l.b16 %v1122
      %v1204 = vunpack.c.l.b16 %v1123
      %v1205 = vunpack.c.l.b16 %v1124
      %v1206 = vunpack.c.l.b16 %v1125
      %v1207 = vunpack.c.l.b16 %v1126
      %v1208 = vunpack.c.l.b16 %v1127
      %v1209 = vunpack.c.l.b16 %v1128
      %v1210 = vunpack.c.l.b16 %v1129
      %v1211 = vunpack.c.l.b16 %v1130
      %v1212 = vunpack.c.l.b16 %v1131
      %v1213 = vpack.c.b16 %v1182, %v1181
      %v1214 = vpack.c.b16 %v1184, %v1183
      %v1215 = vpack.c.b16 %v1186, %v1185
      %v1216 = vpack.c.b16 %v1188, %v1187
      %v1217 = vpack.c.b16 %v1190, %v1189
      %v1218 = vpack.c.b16 %v1192, %v1191
      %v1219 = vpack.c.b16 %v1194, %v1193
      %v1220 = vpack.c.b16 %v1196, %v1195
      %v1221 = vpack.c.b16 %v1198, %v1197
      %v1222 = vpack.c.b16 %v1200, %v1199
      %v1223 = vpack.c.b16 %v1202, %v1201
      %v1224 = vpack.c.b16 %v1204, %v1203
      %v1225 = vpack.c.b16 %v1206, %v1205
      %v1226 = vpack.c.b16 %v1208, %v1207
      %v1227 = vpack.c.b16 %v1210, %v1209
      %v1228 = vpack.c.b16 %v1212, %v1211
      %v1261 = vunpack.c.l.b16 %v1133
      %v1262 = vunpack.c.l.b16 %v1134
      %v1263 = vunpack.c.l.b16 %v1135
      %v1264 = vunpack.c.l.b16 %v1136
      %v1265 = vunpack.c.l.b16 %v1137
      %v1266 = vunpack.c.l.b16 %v1138
      %v1267 = vunpack.c.l.b16 %v1139
      %v1268 = vunpack.c.l.b16 %v1140
      %v1269 = vunpack.c.l.b16 %v1141
      %v1270 = vunpack.c.l.b16 %v1142
      %v1271 = vunpack.c.l.b16 %v1143
      %v1272 = vunpack.c.l.b16 %v1144
      %v1273 = vunpack.c.l.b16 %v1145
      %v1274 = vunpack.c.l.b16 %v1146
      %v1275 = vunpack.c.l.b16 %v1147
      %v1276 = vunpack.c.l.b16 %v1148
      %v1277 = vpack.c.b16 %v1262, %v1261
      %v1278 = vpack.c.b16 %v1264, %v1263
      %v1279 = vpack.c.b16 %v1266, %v1265
      %v1280 = vpack.c.b16 %v1268, %v1267
      %v1281 = vpack.c.b16 %v1270, %v1269
      %v1282 = vpack.c.b16 %v1272, %v1271
      %v1283 = vpack.c.b16 %v1274, %v1273
      %v1284 = vpack.c.b16 %v1276, %v1275
      %1293 = vmatprep.subr.bf16.mxu0 0
      %1294 = vmatpush1.bf16.msra.mxu0 %v1284
      %1295 = vmatprep.subr.bf16.mxu0 0
      %1296 = vmatpush1.bf16.msra.mxu0 %v1283
      %1297 = vmatprep.subr.bf16.mxu0 0
      %1298 = vmatpush1.bf16.msra.mxu0 %v1282
      %1299 = vmatprep.subr.bf16.mxu0 0
      %1300 = vmatpush1.bf16.msra.mxu0 %v1281
      %1301 = vmatprep.subr.bf16.mxu0 0
      %1302 = vmatpush1.bf16.msra.mxu0 %v1280
      %1303 = vmatprep.subr.bf16.mxu0 0
      %1304 = vmatpush1.bf16.msra.mxu0 %v1279
      %1305 = vmatprep.subr.bf16.mxu0 0
      %1306 = vmatpush1.bf16.msra.mxu0 %v1278
      %1307 = vmatprep.subr.bf16.mxu0 0
      %1308 = vmatpush1.bf16.msra.mxu0 %v1277
      %1309 = vmatprep.subr.bf16.mxu0 0
      %1310 = vmatpush2.bf16.msra.mxu0 0
      %1311 = vmatprep.subr.bf16.mxu0 0
      %1312 = vmatpush2.bf16.msra.mxu0 0
      %1313 = vmatprep.subr.bf16.mxu0 0
      %1314 = vmatpush2.bf16.msra.mxu0 0
      %1315 = vmatprep.subr.bf16.mxu0 0
      %1316 = vmatpush2.bf16.msra.mxu0 0
      %1317 = vmatprep.subr.bf16.mxu0 0
      %1318 = vmatpush2.bf16.msra.mxu0 0
      %1319 = vmatprep.subr.bf16.mxu0 0
      %1320 = vmatpush2.bf16.msra.mxu0 0
      %1321 = vmatprep.subr.bf16.mxu0 0
      %1322 = vmatpush2.bf16.msra.mxu0 0
      %1323 = vmatprep.subr.bf16.mxu0 0
      %1324 = vmatpush2.bf16.msra.mxu0 0
      %1325 = vmatprep.mubr.bf16.mxu0 0
      %1326 = vmatmul.mubr.bf16.gmra.mxu0 %v1213
      %v1327 = vpop.f32.mrf.mxu0
      %v1328 = vadd.f32 0.0, %v1327
      %v1329 = vpop.f32.mrf.mxu0
      %v1330 = vpop.f32.mrf.mxu0
      %v1331 = vadd.f32 0.0, %v1330
      %v1332 = vpop.f32.mrf.mxu0
      %1333 = vmatprep.mubr.bf16.mxu0 0
      %1334 = vmatmul.mubr.bf16.gmra.mxu0 %v1214
      %v1335 = vpop.f32.mrf.mxu0
      %v1336 = vadd.f32 0.0, %v1335
      %v1337 = vpop.f32.mrf.mxu0
      %v1338 = vpop.f32.mrf.mxu0
      %v1339 = vadd.f32 0.0, %v1338
      %v1340 = vpop.f32.mrf.mxu0
      %1341 = vmatprep.mubr.bf16.mxu0 0
      %1342 = vmatmul.mubr.bf16.gmra.mxu0 %v1215
      %v1343 = vpop.f32.mrf.mxu0
      %v1344 = vadd.f32 0.0, %v1343
      %v1345 = vpop.f32.mrf.mxu0
      %v1346 = vpop.f32.mrf.mxu0
      %v1347 = vadd.f32 0.0, %v1346
      %v1348 = vpop.f32.mrf.mxu0
      %1349 = vmatprep.mubr.bf16.mxu0 0
      %1350 = vmatmul.mubr.bf16.gmra.mxu0 %v1216
      %v1351 = vpop.f32.mrf.mxu0
      %v1352 = vadd.f32 0.0, %v1351
      %v1353 = vpop.f32.mrf.mxu0
      %v1354 = vpop.f32.mrf.mxu0
      %v1355 = vadd.f32 0.0, %v1354
      %v1356 = vpop.f32.mrf.mxu0
      %1357 = vmatprep.mubr.bf16.mxu0 0
      %1358 = vmatmul.mubr.bf16.gmra.mxu0 %v1217
      %v1359 = vpop.f32.mrf.mxu0
      %v1360 = vadd.f32 0.0, %v1359
      %v1361 = vpop.f32.mrf.mxu0
      %v1362 = vpop.f32.mrf.mxu0
      %v1363 = vadd.f32 0.0, %v1362
      %v1364 = vpop.f32.mrf.mxu0
      %1365 = vmatprep.mubr.bf16.mxu0 0
      %1366 = vmatmul.mubr.bf16.gmra.mxu0 %v1218
      %v1367 = vpop.f32.mrf.mxu0
      %v1368 = vadd.f32 0.0, %v1367
      %v1369 = vpop.f32.mrf.mxu0
      %v1370 = vpop.f32.mrf.mxu0
      %v1371 = vadd.f32 0.0, %v1370
      %v1372 = vpop.f32.mrf.mxu0
      %1373 = vmatprep.mubr.bf16.mxu0 0
      %1374 = vmatmul.mubr.bf16.gmra.mxu0 %v1219
      %v1375 = vpop.f32.mrf.mxu0
      %v1376 = vadd.f32 0.0, %v1375
      %v1377 = vpop.f32.mrf.mxu0
      %v1378 = vpop.f32.mrf.mxu0
      %v1379 = vadd.f32 0.0, %v1378
      %v1380 = vpop.f32.mrf.mxu0
      %1381 = vmatprep.mubr.bf16.mxu0 0
      %1382 = vmatmul.mubr.bf16.gmra.mxu0 %v1220
      %v1383 = vpop.f32.mrf.mxu0
      %v1384 = vadd.f32 0.0, %v1383
      %v1385 = vpop.f32.mrf.mxu0
      %v1386 = vpop.f32.mrf.mxu0
      %v1387 = vadd.f32 0.0, %v1386
      %v1388 = vpop.f32.mrf.mxu0
      %1389 = vmatprep.mubr.bf16.mxu0 0
      %1390 = vmatmul.mubr.bf16.gmra.mxu0 %v1221
      %v1391 = vpop.f32.mrf.mxu0
      %v1392 = vadd.f32 0.0, %v1391
      %v1393 = vpop.f32.mrf.mxu0
      %v1394 = vpop.f32.mrf.mxu0
      %v1395 = vadd.f32 0.0, %v1394
      %v1396 = vpop.f32.mrf.mxu0
      %1397 = vmatprep.mubr.bf16.mxu0 0
      %1398 = vmatmul.mubr.bf16.gmra.mxu0 %v1222
      %v1399 = vpop.f32.mrf.mxu0
      %v1400 = vadd.f32 0.0, %v1399
      %v1401 = vpop.f32.mrf.mxu0
      %v1402 = vpop.f32.mrf.mxu0
      %v1403 = vadd.f32 0.0, %v1402
      %v1404 = vpop.f32.mrf.mxu0
      %1405 = vmatprep.mubr.bf16.mxu0 0
      %1406 = vmatmul.mubr.bf16.gmra.mxu0 %v1223
      %v1407 = vpop.f32.mrf.mxu0
      %v1408 = vadd.f32 0.0, %v1407
      %v1409 = vpop.f32.mrf.mxu0
      %v1410 = vpop.f32.mrf.mxu0
      %v1411 = vadd.f32 0.0, %v1410
      %v1412 = vpop.f32.mrf.mxu0
      %1413 = vmatprep.mubr.bf16.mxu0 0
      %1414 = vmatmul.mubr.bf16.gmra.mxu0 %v1224
      %v1415 = vpop.f32.mrf.mxu0
      %v1416 = vadd.f32 0.0, %v1415
      %v1417 = vpop.f32.mrf.mxu0
      %v1418 = vpop.f32.mrf.mxu0
      %v1419 = vadd.f32 0.0, %v1418
      %v1420 = vpop.f32.mrf.mxu0
      %1421 = vmatprep.mubr.bf16.mxu0 0
      %1422 = vmatmul.mubr.bf16.gmra.mxu0 %v1225
      %v1423 = vpop.f32.mrf.mxu0
      %v1424 = vadd.f32 0.0, %v1423
      %v1425 = vpop.f32.mrf.mxu0
      %v1426 = vpop.f32.mrf.mxu0
      %v1427 = vadd.f32 0.0, %v1426
      %v1428 = vpop.f32.mrf.mxu0
      %1429 = vmatprep.mubr.bf16.mxu0 0
      %1430 = vmatmul.mubr.bf16.gmra.mxu0 %v1226
      %v1431 = vpop.f32.mrf.mxu0
      %v1432 = vadd.f32 0.0, %v1431
      %v1433 = vpop.f32.mrf.mxu0
      %v1434 = vpop.f32.mrf.mxu0
      %v1435 = vadd.f32 0.0, %v1434
      %v1436 = vpop.f32.mrf.mxu0
      %1437 = vmatprep.mubr.bf16.mxu0 0
      %1438 = vmatmul.mubr.bf16.gmra.mxu0 %v1227
      %v1439 = vpop.f32.mrf.mxu0
      %v1440 = vadd.f32 0.0, %v1439
      %v1441 = vpop.f32.mrf.mxu0
      %v1442 = vpop.f32.mrf.mxu0
      %v1443 = vadd.f32 0.0, %v1442
      %v1444 = vpop.f32.mrf.mxu0
      %1445 = vmatprep.mubr.bf16.mxu0 0
      %1446 = vmatmul.mubr.bf16.gmra.mxu0 %v1228
      %v1447 = vpop.f32.mrf.mxu0
      %v1448 = vadd.f32 0.0, %v1447
      %v1449 = vpop.f32.mrf.mxu0
      %v1450 = vpop.f32.mrf.mxu0
      %v1451 = vadd.f32 0.0, %v1450
      %v1452 = vpop.f32.mrf.mxu0
      %1453 = vdwg.mxu0
      %s1454 = scalar_lea.vmem %s1050, 16 [#allocation2]
      %v1455 = vld [vmem:[%s1454] sm:$0xf]
      %v1456 = vld [vmem:[%s1454 + $0x4] sm:$0xf]
      %v1457 = vld [vmem:[%s1454 + $0x8] sm:$0xf]
      %v1458 = vld [vmem:[%s1454 + $0xc] sm:$0xf]
      %v1459 = vld [vmem:[%s1454 + $0x10] sm:$0xf]
      %v1460 = vld [vmem:[%s1454 + $0x14] sm:$0xf]
      %v1461 = vld [vmem:[%s1454 + $0x18] sm:$0xf]
      %v1462 = vld [vmem:[%s1454 + $0x1c] sm:$0xf]
      %v1463 = vld [vmem:[%s1454 + $0x20] sm:$0xf]
      %v1464 = vld [vmem:[%s1454 + $0x24] sm:$0xf]
      %v1465 = vld [vmem:[%s1454 + $0x28] sm:$0xf]
      %v1466 = vld [vmem:[%s1454 + $0x2c] sm:$0xf]
      %v1467 = vld [vmem:[%s1454 + $0x30] sm:$0xf]
      %v1468 = vld [vmem:[%s1454 + $0x34] sm:$0xf]
      %v1469 = vld [vmem:[%s1454 + $0x38] sm:$0xf]
      %v1470 = vld [vmem:[%s1454 + $0x3c] sm:$0xf]
      %v1471 = vld [vmem:[%s1454 + $0x40] sm:$0xf]
      %v1472 = vld [vmem:[%s1454 + $0x44] sm:$0xf]
      %v1473 = vld [vmem:[%s1454 + $0x48] sm:$0xf]
      %v1474 = vld [vmem:[%s1454 + $0x4c] sm:$0xf]
      %v1475 = vld [vmem:[%s1454 + $0x50] sm:$0xf]
      %v1476 = vld [vmem:[%s1454 + $0x54] sm:$0xf]
      %v1477 = vld [vmem:[%s1454 + $0x58] sm:$0xf]
      %v1478 = vld [vmem:[%s1454 + $0x5c] sm:$0xf]
      %v1479 = vld [vmem:[%s1454 + $0x60] sm:$0xf]
      %v1480 = vld [vmem:[%s1454 + $0x64] sm:$0xf]
      %v1481 = vld [vmem:[%s1454 + $0x68] sm:$0xf]
      %v1482 = vld [vmem:[%s1454 + $0x6c] sm:$0xf]
      %v1483 = vld [vmem:[%s1454 + $0x70] sm:$0xf]
      %v1484 = vld [vmem:[%s1454 + $0x74] sm:$0xf]
      %v1485 = vld [vmem:[%s1454 + $0x78] sm:$0xf]
      %v1486 = vld [vmem:[%s1454 + $0x7c] sm:$0xf]
      %s1487 = scalar_lea.vmem %s1, 384
      %v1488 = vld [vmem:[%s1487] sm:$0xf]
      %v1489 = vld [vmem:[%s1487 + $0x4] sm:$0xf]
      %v1490 = vld [vmem:[%s1487 + $0x8] sm:$0xf]
      %v1491 = vld [vmem:[%s1487 + $0xc] sm:$0xf]
      %v1492 = vld [vmem:[%s1487 + $0x10] sm:$0xf]
      %v1493 = vld [vmem:[%s1487 + $0x14] sm:$0xf]
      %v1494 = vld [vmem:[%s1487 + $0x18] sm:$0xf]
      %v1495 = vld [vmem:[%s1487 + $0x1c] sm:$0xf]
      %v1496 = vld [vmem:[%s1487 + $0x20] sm:$0xf]
      %v1497 = vld [vmem:[%s1487 + $0x24] sm:$0xf]
      %v1498 = vld [vmem:[%s1487 + $0x28] sm:$0xf]
      %v1499 = vld [vmem:[%s1487 + $0x2c] sm:$0xf]
      %v1500 = vld [vmem:[%s1487 + $0x30] sm:$0xf]
      %v1501 = vld [vmem:[%s1487 + $0x34] sm:$0xf]
      %v1502 = vld [vmem:[%s1487 + $0x38] sm:$0xf]
      %v1503 = vld [vmem:[%s1487 + $0x3c] sm:$0xf]
      %v1536 = vunpack.c.l.b16 %v1455
      %v1537 = vunpack.c.l.b16 %v1456
      %v1538 = vunpack.c.l.b16 %v1457
      %v1539 = vunpack.c.l.b16 %v1458
      %v1540 = vunpack.c.l.b16 %v1459
      %v1541 = vunpack.c.l.b16 %v1460
      %v1542 = vunpack.c.l.b16 %v1461
      %v1543 = vunpack.c.l.b16 %v1462
      %v1544 = vunpack.c.l.b16 %v1463
      %v1545 = vunpack.c.l.b16 %v1464
      %v1546 = vunpack.c.l.b16 %v1465
      %v1547 = vunpack.c.l.b16 %v1466
      %v1548 = vunpack.c.l.b16 %v1467
      %v1549 = vunpack.c.l.b16 %v1468
      %v1550 = vunpack.c.l.b16 %v1469
      %v1551 = vunpack.c.l.b16 %v1470
      %v1552 = vunpack.c.l.b16 %v1471
      %v1553 = vunpack.c.l.b16 %v1472
      %v1554 = vunpack.c.l.b16 %v1473
      %v1555 = vunpack.c.l.b16 %v1474
      %v1556 = vunpack.c.l.b16 %v1475
      %v1557 = vunpack.c.l.b16 %v1476
      %v1558 = vunpack.c.l.b16 %v1477
      %v1559 = vunpack.c.l.b16 %v1478
      %v1560 = vunpack.c.l.b16 %v1479
      %v1561 = vunpack.c.l.b16 %v1480
      %v1562 = vunpack.c.l.b16 %v1481
      %v1563 = vunpack.c.l.b16 %v1482
      %v1564 = vunpack.c.l.b16 %v1483
      %v1565 = vunpack.c.l.b16 %v1484
      %v1566 = vunpack.c.l.b16 %v1485
      %v1567 = vunpack.c.l.b16 %v1486
      %v1568 = vpack.c.b16 %v1537, %v1536
      %v1569 = vpack.c.b16 %v1539, %v1538
      %v1570 = vpack.c.b16 %v1541, %v1540
      %v1571 = vpack.c.b16 %v1543, %v1542
      %v1572 = vpack.c.b16 %v1545, %v1544
      %v1573 = vpack.c.b16 %v1547, %v1546
      %v1574 = vpack.c.b16 %v1549, %v1548
      %v1575 = vpack.c.b16 %v1551, %v1550
      %v1576 = vpack.c.b16 %v1553, %v1552
      %v1577 = vpack.c.b16 %v1555, %v1554
      %v1578 = vpack.c.b16 %v1557, %v1556
      %v1579 = vpack.c.b16 %v1559, %v1558
      %v1580 = vpack.c.b16 %v1561, %v1560
      %v1581 = vpack.c.b16 %v1563, %v1562
      %v1582 = vpack.c.b16 %v1565, %v1564
      %v1583 = vpack.c.b16 %v1567, %v1566
      %v1616 = vunpack.c.l.b16 %v1488
      %v1617 = vunpack.c.l.b16 %v1489
      %v1618 = vunpack.c.l.b16 %v1490
      %v1619 = vunpack.c.l.b16 %v1491
      %v1620 = vunpack.c.l.b16 %v1492
      %v1621 = vunpack.c.l.b16 %v1493
      %v1622 = vunpack.c.l.b16 %v1494
      %v1623 = vunpack.c.l.b16 %v1495
      %v1624 = vunpack.c.l.b16 %v1496
      %v1625 = vunpack.c.l.b16 %v1497
      %v1626 = vunpack.c.l.b16 %v1498
      %v1627 = vunpack.c.l.b16 %v1499
      %v1628 = vunpack.c.l.b16 %v1500
      %v1629 = vunpack.c.l.b16 %v1501
      %v1630 = vunpack.c.l.b16 %v1502
      %v1631 = vunpack.c.l.b16 %v1503
      %v1632 = vpack.c.b16 %v1617, %v1616
      %v1633 = vpack.c.b16 %v1619, %v1618
      %v1634 = vpack.c.b16 %v1621, %v1620
      %v1635 = vpack.c.b16 %v1623, %v1622
      %v1636 = vpack.c.b16 %v1625, %v1624
      %v1637 = vpack.c.b16 %v1627, %v1626
      %v1638 = vpack.c.b16 %v1629, %v1628
      %v1639 = vpack.c.b16 %v1631, %v1630
      %1648 = vmatprep.subr.bf16.mxu0 0
      %1649 = vmatpush1.bf16.msra.mxu0 %v1639
      %1650 = vmatprep.subr.bf16.mxu0 0
      %1651 = vmatpush1.bf16.msra.mxu0 %v1638
      %1652 = vmatprep.subr.bf16.mxu0 0
      %1653 = vmatpush1.bf16.msra.mxu0 %v1637
      %1654 = vmatprep.subr.bf16.mxu0 0
      %1655 = vmatpush1.bf16.msra.mxu0 %v1636
      %1656 = vmatprep.subr.bf16.mxu0 0
      %1657 = vmatpush1.bf16.msra.mxu0 %v1635
      %1658 = vmatprep.subr.bf16.mxu0 0
      %1659 = vmatpush1.bf16.msra.mxu0 %v1634
      %1660 = vmatprep.subr.bf16.mxu0 0
      %1661 = vmatpush1.bf16.msra.mxu0 %v1633
      %1662 = vmatprep.subr.bf16.mxu0 0
      %1663 = vmatpush1.bf16.msra.mxu0 %v1632
      %1664 = vmatprep.subr.bf16.mxu0 0
      %1665 = vmatpush2.bf16.msra.mxu0 0
      %1666 = vmatprep.subr.bf16.mxu0 0
      %1667 = vmatpush2.bf16.msra.mxu0 0
      %1668 = vmatprep.subr.bf16.mxu0 0
      %1669 = vmatpush2.bf16.msra.mxu0 0
      %1670 = vmatprep.subr.bf16.mxu0 0
      %1671 = vmatpush2.bf16.msra.mxu0 0
      %1672 = vmatprep.subr.bf16.mxu0 0
      %1673 = vmatpush2.bf16.msra.mxu0 0
      %1674 = vmatprep.subr.bf16.mxu0 0
      %1675 = vmatpush2.bf16.msra.mxu0 0
      %1676 = vmatprep.subr.bf16.mxu0 0
      %1677 = vmatpush2.bf16.msra.mxu0 0
      %1678 = vmatprep.subr.bf16.mxu0 0
      %1679 = vmatpush2.bf16.msra.mxu0 0
      %1680 = vmatprep.mubr.bf16.mxu0 0
      %1681 = vmatmul.mubr.bf16.gmra.mxu0 %v1568
      %v1682 = vpop.f32.mrf.mxu0
      %v1683 = vadd.f32 0.0, %v1682
      %v1684 = vpop.f32.mrf.mxu0
      %v1685 = vpop.f32.mrf.mxu0
      %v1686 = vadd.f32 0.0, %v1685
      %v1687 = vpop.f32.mrf.mxu0
      %1688 = vmatprep.mubr.bf16.mxu0 0
      %1689 = vmatmul.mubr.bf16.gmra.mxu0 %v1569
      %v1690 = vpop.f32.mrf.mxu0
      %v1691 = vadd.f32 0.0, %v1690
      %v1692 = vpop.f32.mrf.mxu0
      %v1693 = vpop.f32.mrf.mxu0
      %v1694 = vadd.f32 0.0, %v1693
      %v1695 = vpop.f32.mrf.mxu0
      %1696 = vmatprep.mubr.bf16.mxu0 0
      %1697 = vmatmul.mubr.bf16.gmra.mxu0 %v1570
      %v1698 = vpop.f32.mrf.mxu0
      %v1699 = vadd.f32 0.0, %v1698
      %v1700 = vpop.f32.mrf.mxu0
      %v1701 = vpop.f32.mrf.mxu0
      %v1702 = vadd.f32 0.0, %v1701
      %v1703 = vpop.f32.mrf.mxu0
      %1704 = vmatprep.mubr.bf16.mxu0 0
      %1705 = vmatmul.mubr.bf16.gmra.mxu0 %v1571
      %v1706 = vpop.f32.mrf.mxu0
      %v1707 = vadd.f32 0.0, %v1706
      %v1708 = vpop.f32.mrf.mxu0
      %v1709 = vpop.f32.mrf.mxu0
      %v1710 = vadd.f32 0.0, %v1709
      %v1711 = vpop.f32.mrf.mxu0
      %1712 = vmatprep.mubr.bf16.mxu0 0
      %1713 = vmatmul.mubr.bf16.gmra.mxu0 %v1572
      %v1714 = vpop.f32.mrf.mxu0
      %v1715 = vadd.f32 0.0, %v1714
      %v1716 = vpop.f32.mrf.mxu0
      %v1717 = vpop.f32.mrf.mxu0
      %v1718 = vadd.f32 0.0, %v1717
      %v1719 = vpop.f32.mrf.mxu0
      %1720 = vmatprep.mubr.bf16.mxu0 0
      %1721 = vmatmul.mubr.bf16.gmra.mxu0 %v1573
      %v1722 = vpop.f32.mrf.mxu0
      %v1723 = vadd.f32 0.0, %v1722
      %v1724 = vpop.f32.mrf.mxu0
      %v1725 = vpop.f32.mrf.mxu0
      %v1726 = vadd.f32 0.0, %v1725
      %v1727 = vpop.f32.mrf.mxu0
      %1728 = vmatprep.mubr.bf16.mxu0 0
      %1729 = vmatmul.mubr.bf16.gmra.mxu0 %v1574
      %v1730 = vpop.f32.mrf.mxu0
      %v1731 = vadd.f32 0.0, %v1730
      %v1732 = vpop.f32.mrf.mxu0
      %v1733 = vpop.f32.mrf.mxu0
      %v1734 = vadd.f32 0.0, %v1733
      %v1735 = vpop.f32.mrf.mxu0
      %1736 = vmatprep.mubr.bf16.mxu0 0
      %1737 = vmatmul.mubr.bf16.gmra.mxu0 %v1575
      %v1738 = vpop.f32.mrf.mxu0
      %v1739 = vadd.f32 0.0, %v1738
      %v1740 = vpop.f32.mrf.mxu0
      %v1741 = vpop.f32.mrf.mxu0
      %v1742 = vadd.f32 0.0, %v1741
      %v1743 = vpop.f32.mrf.mxu0
      %1744 = vmatprep.mubr.bf16.mxu0 0
      %1745 = vmatmul.mubr.bf16.gmra.mxu0 %v1576
      %v1746 = vpop.f32.mrf.mxu0
      %v1747 = vadd.f32 0.0, %v1746
      %v1748 = vpop.f32.mrf.mxu0
      %v1749 = vpop.f32.mrf.mxu0
      %v1750 = vadd.f32 0.0, %v1749
      %v1751 = vpop.f32.mrf.mxu0
      %1752 = vmatprep.mubr.bf16.mxu0 0
      %1753 = vmatmul.mubr.bf16.gmra.mxu0 %v1577
      %v1754 = vpop.f32.mrf.mxu0
      %v1755 = vadd.f32 0.0, %v1754
      %v1756 = vpop.f32.mrf.mxu0
      %v1757 = vpop.f32.mrf.mxu0
      %v1758 = vadd.f32 0.0, %v1757
      %v1759 = vpop.f32.mrf.mxu0
      %1760 = vmatprep.mubr.bf16.mxu0 0
      %1761 = vmatmul.mubr.bf16.gmra.mxu0 %v1578
      %v1762 = vpop.f32.mrf.mxu0
      %v1763 = vadd.f32 0.0, %v1762
      %v1764 = vpop.f32.mrf.mxu0
      %v1765 = vpop.f32.mrf.mxu0
      %v1766 = vadd.f32 0.0, %v1765
      %v1767 = vpop.f32.mrf.mxu0
      %1768 = vmatprep.mubr.bf16.mxu0 0
      %1769 = vmatmul.mubr.bf16.gmra.mxu0 %v1579
      %v1770 = vpop.f32.mrf.mxu0
      %v1771 = vadd.f32 0.0, %v1770
      %v1772 = vpop.f32.mrf.mxu0
      %v1773 = vpop.f32.mrf.mxu0
      %v1774 = vadd.f32 0.0, %v1773
      %v1775 = vpop.f32.mrf.mxu0
      %1776 = vmatprep.mubr.bf16.mxu0 0
      %1777 = vmatmul.mubr.bf16.gmra.mxu0 %v1580
      %v1778 = vpop.f32.mrf.mxu0
      %v1779 = vadd.f32 0.0, %v1778
      %v1780 = vpop.f32.mrf.mxu0
      %v1781 = vpop.f32.mrf.mxu0
      %v1782 = vadd.f32 0.0, %v1781
      %v1783 = vpop.f32.mrf.mxu0
      %1784 = vmatprep.mubr.bf16.mxu0 0
      %1785 = vmatmul.mubr.bf16.gmra.mxu0 %v1581
      %v1786 = vpop.f32.mrf.mxu0
      %v1787 = vadd.f32 0.0, %v1786
      %v1788 = vpop.f32.mrf.mxu0
      %v1789 = vpop.f32.mrf.mxu0
      %v1790 = vadd.f32 0.0, %v1789
      %v1791 = vpop.f32.mrf.mxu0
      %1792 = vmatprep.mubr.bf16.mxu0 0
      %1793 = vmatmul.mubr.bf16.gmra.mxu0 %v1582
      %v1794 = vpop.f32.mrf.mxu0
      %v1795 = vadd.f32 0.0, %v1794
      %v1796 = vpop.f32.mrf.mxu0
      %v1797 = vpop.f32.mrf.mxu0
      %v1798 = vadd.f32 0.0, %v1797
      %v1799 = vpop.f32.mrf.mxu0
      %1800 = vmatprep.mubr.bf16.mxu0 0
      %1801 = vmatmul.mubr.bf16.gmra.mxu0 %v1583
      %v1802 = vpop.f32.mrf.mxu0
      %v1803 = vadd.f32 0.0, %v1802
      %v1804 = vpop.f32.mrf.mxu0
      %v1805 = vpop.f32.mrf.mxu0
      %v1806 = vadd.f32 0.0, %v1805
      %v1807 = vpop.f32.mrf.mxu0
      %1808 = vdwg.mxu0
      %v1841 = vunpack.c.l.b16 %v1051
      %v1842 = vunpack.c.l.b16 %v1052
      %v1843 = vunpack.c.l.b16 %v1053
      %v1844 = vunpack.c.l.b16 %v1054
      %v1845 = vunpack.c.l.b16 %v1055
      %v1846 = vunpack.c.l.b16 %v1056
      %v1847 = vunpack.c.l.b16 %v1057
      %v1848 = vunpack.c.l.b16 %v1058
      %v1849 = vunpack.c.l.b16 %v1059
      %v1850 = vunpack.c.l.b16 %v1060
      %v1851 = vunpack.c.l.b16 %v1061
      %v1852 = vunpack.c.l.b16 %v1062
      %v1853 = vunpack.c.l.b16 %v1063
      %v1854 = vunpack.c.l.b16 %v1064
      %v1855 = vunpack.c.l.b16 %v1065
      %v1856 = vunpack.c.l.b16 %v1066
      %v1857 = vunpack.c.l.b16 %v1067
      %v1858 = vunpack.c.l.b16 %v1068
      %v1859 = vunpack.c.l.b16 %v1069
      %v1860 = vunpack.c.l.b16 %v1070
      %v1861 = vunpack.c.l.b16 %v1071
      %v1862 = vunpack.c.l.b16 %v1072
      %v1863 = vunpack.c.l.b16 %v1073
      %v1864 = vunpack.c.l.b16 %v1074
      %v1865 = vunpack.c.l.b16 %v1075
      %v1866 = vunpack.c.l.b16 %v1076
      %v1867 = vunpack.c.l.b16 %v1077
      %v1868 = vunpack.c.l.b16 %v1078
      %v1869 = vunpack.c.l.b16 %v1079
      %v1870 = vunpack.c.l.b16 %v1080
      %v1871 = vunpack.c.l.b16 %v1081
      %v1872 = vunpack.c.l.b16 %v1082
      %v1873 = vpack.c.b16 %v1842, %v1841
      %v1874 = vpack.c.b16 %v1844, %v1843
      %v1875 = vpack.c.b16 %v1846, %v1845
      %v1876 = vpack.c.b16 %v1848, %v1847
      %v1877 = vpack.c.b16 %v1850, %v1849
      %v1878 = vpack.c.b16 %v1852, %v1851
      %v1879 = vpack.c.b16 %v1854, %v1853
      %v1880 = vpack.c.b16 %v1856, %v1855
      %v1881 = vpack.c.b16 %v1858, %v1857
      %v1882 = vpack.c.b16 %v1860, %v1859
      %v1883 = vpack.c.b16 %v1862, %v1861
      %v1884 = vpack.c.b16 %v1864, %v1863
      %v1885 = vpack.c.b16 %v1866, %v1865
      %v1886 = vpack.c.b16 %v1868, %v1867
      %v1887 = vpack.c.b16 %v1870, %v1869
      %v1888 = vpack.c.b16 %v1872, %v1871
      %v1921 = vunpack.c.l.b16 %v1083
      %v1922 = vunpack.c.l.b16 %v1084
      %v1923 = vunpack.c.l.b16 %v1085
      %v1924 = vunpack.c.l.b16 %v1086
      %v1925 = vunpack.c.l.b16 %v1087
      %v1926 = vunpack.c.l.b16 %v1088
      %v1927 = vunpack.c.l.b16 %v1089
      %v1928 = vunpack.c.l.b16 %v1090
      %v1929 = vunpack.c.l.b16 %v1091
      %v1930 = vunpack.c.l.b16 %v1092
      %v1931 = vunpack.c.l.b16 %v1093
      %v1932 = vunpack.c.l.b16 %v1094
      %v1933 = vunpack.c.l.b16 %v1095
      %v1934 = vunpack.c.l.b16 %v1096
      %v1935 = vunpack.c.l.b16 %v1097
      %v1936 = vunpack.c.l.b16 %v1098
      %v1937 = vpack.c.b16 %v1922, %v1921
      %v1938 = vpack.c.b16 %v1924, %v1923
      %v1939 = vpack.c.b16 %v1926, %v1925
      %v1940 = vpack.c.b16 %v1928, %v1927
      %v1941 = vpack.c.b16 %v1930, %v1929
      %v1942 = vpack.c.b16 %v1932, %v1931
      %v1943 = vpack.c.b16 %v1934, %v1933
      %v1944 = vpack.c.b16 %v1936, %v1935
      %1953 = vmatprep.subr.bf16.mxu0 0
      %1954 = vmatpush1.bf16.msra.mxu0 %v1944
      %1955 = vmatprep.subr.bf16.mxu0 0
      %1956 = vmatpush1.bf16.msra.mxu0 %v1943
      %1957 = vmatprep.subr.bf16.mxu0 0
      %1958 = vmatpush1.bf16.msra.mxu0 %v1942
      %1959 = vmatprep.subr.bf16.mxu0 0
      %1960 = vmatpush1.bf16.msra.mxu0 %v1941
      %1961 = vmatprep.subr.bf16.mxu0 0
      %1962 = vmatpush1.bf16.msra.mxu0 %v1940
      %1963 = vmatprep.subr.bf16.mxu0 0
      %1964 = vmatpush1.bf16.msra.mxu0 %v1939
      %1965 = vmatprep.subr.bf16.mxu0 0
      %1966 = vmatpush1.bf16.msra.mxu0 %v1938
      %1967 = vmatprep.subr.bf16.mxu0 0
      %1968 = vmatpush1.bf16.msra.mxu0 %v1937
      %1969 = vmatprep.subr.bf16.mxu0 0
      %1970 = vmatpush2.bf16.msra.mxu0 0
      %1971 = vmatprep.subr.bf16.mxu0 0
      %1972 = vmatpush2.bf16.msra.mxu0 0
      %1973 = vmatprep.subr.bf16.mxu0 0
      %1974 = vmatpush2.bf16.msra.mxu0 0
      %1975 = vmatprep.subr.bf16.mxu0 0
      %1976 = vmatpush2.bf16.msra.mxu0 0
      %1977 = vmatprep.subr.bf16.mxu0 0
      %1978 = vmatpush2.bf16.msra.mxu0 0
      %1979 = vmatprep.subr.bf16.mxu0 0
      %1980 = vmatpush2.bf16.msra.mxu0 0
      %1981 = vmatprep.subr.bf16.mxu0 0
      %1982 = vmatpush2.bf16.msra.mxu0 0
      %1983 = vmatprep.subr.bf16.mxu0 0
      %1984 = vmatpush2.bf16.msra.mxu0 0
      %1985 = vmatprep.mubr.bf16.mxu0 0
      %1986 = vmatmul.mubr.bf16.gmra.mxu0 %v1873
      %v1987 = vpop.f32.mrf.mxu0
      %v1988 = vadd.f32 %v1328, %v1987
      %v1989 = vpop.f32.mrf.mxu0
      %v1990 = vpop.f32.mrf.mxu0
      %v1991 = vadd.f32 %v1331, %v1990
      %v1992 = vpop.f32.mrf.mxu0
      %1993 = vmatprep.mubr.bf16.mxu0 0
      %1994 = vmatmul.mubr.bf16.gmra.mxu0 %v1874
      %v1995 = vpop.f32.mrf.mxu0
      %v1996 = vadd.f32 %v1336, %v1995
      %v1997 = vpop.f32.mrf.mxu0
      %v1998 = vpop.f32.mrf.mxu0
      %v1999 = vadd.f32 %v1339, %v1998
      %v2000 = vpop.f32.mrf.mxu0
      %2001 = vmatprep.mubr.bf16.mxu0 0
      %2002 = vmatmul.mubr.bf16.gmra.mxu0 %v1875
      %v2003 = vpop.f32.mrf.mxu0
      %v2004 = vadd.f32 %v1344, %v2003
      %v2005 = vpop.f32.mrf.mxu0
      %v2006 = vpop.f32.mrf.mxu0
      %v2007 = vadd.f32 %v1347, %v2006
      %v2008 = vpop.f32.mrf.mxu0
      %2009 = vmatprep.mubr.bf16.mxu0 0
      %2010 = vmatmul.mubr.bf16.gmra.mxu0 %v1876
      %v2011 = vpop.f32.mrf.mxu0
      %v2012 = vadd.f32 %v1352, %v2011
      %v2013 = vpop.f32.mrf.mxu0
      %v2014 = vpop.f32.mrf.mxu0
      %v2015 = vadd.f32 %v1355, %v2014
      %v2016 = vpop.f32.mrf.mxu0
      %2017 = vmatprep.mubr.bf16.mxu0 0
      %2018 = vmatmul.mubr.bf16.gmra.mxu0 %v1877
      %v2019 = vpop.f32.mrf.mxu0
      %v2020 = vadd.f32 %v1360, %v2019
      %v2021 = vpop.f32.mrf.mxu0
      %v2022 = vpop.f32.mrf.mxu0
      %v2023 = vadd.f32 %v1363, %v2022
      %v2024 = vpop.f32.mrf.mxu0
      %2025 = vmatprep.mubr.bf16.mxu0 0
      %2026 = vmatmul.mubr.bf16.gmra.mxu0 %v1878
      %v2027 = vpop.f32.mrf.mxu0
      %v2028 = vadd.f32 %v1368, %v2027
      %v2029 = vpop.f32.mrf.mxu0
      %v2030 = vpop.f32.mrf.mxu0
      %v2031 = vadd.f32 %v1371, %v2030
      %v2032 = vpop.f32.mrf.mxu0
      %2033 = vmatprep.mubr.bf16.mxu0 0
      %2034 = vmatmul.mubr.bf16.gmra.mxu0 %v1879
      %v2035 = vpop.f32.mrf.mxu0
      %v2036 = vadd.f32 %v1376, %v2035
      %v2037 = vpop.f32.mrf.mxu0
      %v2038 = vpop.f32.mrf.mxu0
      %v2039 = vadd.f32 %v1379, %v2038
      %v2040 = vpop.f32.mrf.mxu0
      %2041 = vmatprep.mubr.bf16.mxu0 0
      %2042 = vmatmul.mubr.bf16.gmra.mxu0 %v1880
      %v2043 = vpop.f32.mrf.mxu0
      %v2044 = vadd.f32 %v1384, %v2043
      %v2045 = vpop.f32.mrf.mxu0
      %v2046 = vpop.f32.mrf.mxu0
      %v2047 = vadd.f32 %v1387, %v2046
      %v2048 = vpop.f32.mrf.mxu0
      %2049 = vmatprep.mubr.bf16.mxu0 0
      %2050 = vmatmul.mubr.bf16.gmra.mxu0 %v1881
      %v2051 = vpop.f32.mrf.mxu0
      %v2052 = vadd.f32 %v1392, %v2051
      %v2053 = vpop.f32.mrf.mxu0
      %v2054 = vpop.f32.mrf.mxu0
      %v2055 = vadd.f32 %v1395, %v2054
      %v2056 = vpop.f32.mrf.mxu0
      %2057 = vmatprep.mubr.bf16.mxu0 0
      %2058 = vmatmul.mubr.bf16.gmra.mxu0 %v1882
      %v2059 = vpop.f32.mrf.mxu0
      %v2060 = vadd.f32 %v1400, %v2059
      %v2061 = vpop.f32.mrf.mxu0
      %v2062 = vpop.f32.mrf.mxu0
      %v2063 = vadd.f32 %v1403, %v2062
      %v2064 = vpop.f32.mrf.mxu0
      %2065 = vmatprep.mubr.bf16.mxu0 0
      %2066 = vmatmul.mubr.bf16.gmra.mxu0 %v1883
      %v2067 = vpop.f32.mrf.mxu0
      %v2068 = vadd.f32 %v1408, %v2067
      %v2069 = vpop.f32.mrf.mxu0
      %v2070 = vpop.f32.mrf.mxu0
      %v2071 = vadd.f32 %v1411, %v2070
      %v2072 = vpop.f32.mrf.mxu0
      %2073 = vmatprep.mubr.bf16.mxu0 0
      %2074 = vmatmul.mubr.bf16.gmra.mxu0 %v1884
      %v2075 = vpop.f32.mrf.mxu0
      %v2076 = vadd.f32 %v1416, %v2075
      %v2077 = vpop.f32.mrf.mxu0
      %v2078 = vpop.f32.mrf.mxu0
      %v2079 = vadd.f32 %v1419, %v2078
      %v2080 = vpop.f32.mrf.mxu0
      %2081 = vmatprep.mubr.bf16.mxu0 0
      %2082 = vmatmul.mubr.bf16.gmra.mxu0 %v1885
      %v2083 = vpop.f32.mrf.mxu0
      %v2084 = vadd.f32 %v1424, %v2083
      %v2085 = vpop.f32.mrf.mxu0
      %v2086 = vpop.f32.mrf.mxu0
      %v2087 = vadd.f32 %v1427, %v2086
      %v2088 = vpop.f32.mrf.mxu0
      %2089 = vmatprep.mubr.bf16.mxu0 0
      %2090 = vmatmul.mubr.bf16.gmra.mxu0 %v1886
      %v2091 = vpop.f32.mrf.mxu0
      %v2092 = vadd.f32 %v1432, %v2091
      %v2093 = vpop.f32.mrf.mxu0
      %v2094 = vpop.f32.mrf.mxu0
      %v2095 = vadd.f32 %v1435, %v2094
      %v2096 = vpop.f32.mrf.mxu0
      %2097 = vmatprep.mubr.bf16.mxu0 0
      %2098 = vmatmul.mubr.bf16.gmra.mxu0 %v1887
      %v2099 = vpop.f32.mrf.mxu0
      %v2100 = vadd.f32 %v1440, %v2099
      %v2101 = vpop.f32.mrf.mxu0
      %v2102 = vpop.f32.mrf.mxu0
      %v2103 = vadd.f32 %v1443, %v2102
      %v2104 = vpop.f32.mrf.mxu0
      %2105 = vmatprep.mubr.bf16.mxu0 0
      %2106 = vmatmul.mubr.bf16.gmra.mxu0 %v1888
      %v2107 = vpop.f32.mrf.mxu0
      %v2108 = vadd.f32 %v1448, %v2107
      %v2109 = vpop.f32.mrf.mxu0
      %v2110 = vpop.f32.mrf.mxu0
      %v2111 = vadd.f32 %v1451, %v2110
      %v2112 = vpop.f32.mrf.mxu0
      %2113 = vdwg.mxu0
      %v2114 = vadd.f32 %v1988, %v1683
      %v2115 = vadd.f32 %v1991, %v1686
      %v2116 = vadd.f32 %v1996, %v1691
      %v2117 = vadd.f32 %v1999, %v1694
      %v2118 = vadd.f32 %v2004, %v1699
      %v2119 = vadd.f32 %v2007, %v1702
      %v2120 = vadd.f32 %v2012, %v1707
      %v2121 = vadd.f32 %v2015, %v1710
      %v2122 = vadd.f32 %v2020, %v1715
      %v2123 = vadd.f32 %v2023, %v1718
      %v2124 = vadd.f32 %v2028, %v1723
      %v2125 = vadd.f32 %v2031, %v1726
      %v2126 = vadd.f32 %v2036, %v1731
      %v2127 = vadd.f32 %v2039, %v1734
      %v2128 = vadd.f32 %v2044, %v1739
      %v2129 = vadd.f32 %v2047, %v1742
      %v2130 = vadd.f32 %v2052, %v1747
      %v2131 = vadd.f32 %v2055, %v1750
      %v2132 = vadd.f32 %v2060, %v1755
      %v2133 = vadd.f32 %v2063, %v1758
      %v2134 = vadd.f32 %v2068, %v1763
      %v2135 = vadd.f32 %v2071, %v1766
      %v2136 = vadd.f32 %v2076, %v1771
      %v2137 = vadd.f32 %v2079, %v1774
      %v2138 = vadd.f32 %v2084, %v1779
      %v2139 = vadd.f32 %v2087, %v1782
      %v2140 = vadd.f32 %v2092, %v1787
      %v2141 = vadd.f32 %v2095, %v1790
      %v2142 = vadd.f32 %v2100, %v1795
      %v2143 = vadd.f32 %v2103, %v1798
      %v2144 = vadd.f32 %v2108, %v1803
      %v2145 = vadd.f32 %v2111, %v1806
      %v2146 = vrot.slane %v2114, 7
      %v2147 = vrot.slane %v2115, 7
      %v2148 = vrot.slane %v2116, 7
      %v2149 = vrot.slane %v2117, 7
      %v2150 = vrot.slane %v2118, 7
      %v2151 = vrot.slane %v2119, 7
      %v2152 = vrot.slane %v2120, 7
      %v2153 = vrot.slane %v2121, 7
      %v2154 = vrot.slane %v2122, 7
      %v2155 = vrot.slane %v2123, 7
      %v2156 = vrot.slane %v2124, 7
      %v2157 = vrot.slane %v2125, 7
      %v2158 = vrot.slane %v2126, 7
      %v2159 = vrot.slane %v2127, 7
      %v2160 = vrot.slane %v2128, 7
      %v2161 = vrot.slane %v2129, 7
      %v2162 = vrot.slane %v2130, 7
      %v2163 = vrot.slane %v2131, 7
      %v2164 = vrot.slane %v2132, 7
      %v2165 = vrot.slane %v2133, 7
      %v2166 = vrot.slane %v2134, 7
      %v2167 = vrot.slane %v2135, 7
      %v2168 = vrot.slane %v2136, 7
      %v2169 = vrot.slane %v2137, 7
      %v2170 = vrot.slane %v2138, 7
      %v2171 = vrot.slane %v2139, 7
      %v2172 = vrot.slane %v2140, 7
      %v2173 = vrot.slane %v2141, 7
      %v2174 = vrot.slane %v2142, 7
      %v2175 = vrot.slane %v2143, 7
      %v2176 = vrot.slane %v2144, 7
      %v2177 = vrot.slane %v2145, 7
      %vm2178 = vcmp.lt.s32.totalorder %v632, 1
      %v2179 = vsel %vm2178, %v2176, %v2177
      %v2180 = vsel %vm2178, %v2175, %v2176
      %v2181 = vsel %vm2178, %v2174, %v2175
      %v2182 = vsel %vm2178, %v2173, %v2174
      %v2183 = vsel %vm2178, %v2172, %v2173
      %v2184 = vsel %vm2178, %v2171, %v2172
      %v2185 = vsel %vm2178, %v2170, %v2171
      %v2186 = vsel %vm2178, %v2169, %v2170
      %v2187 = vsel %vm2178, %v2168, %v2169
      %v2188 = vsel %vm2178, %v2167, %v2168
      %v2189 = vsel %vm2178, %v2166, %v2167
      %v2190 = vsel %vm2178, %v2165, %v2166
      %v2191 = vsel %vm2178, %v2164, %v2165
      %v2192 = vsel %vm2178, %v2163, %v2164
      %v2193 = vsel %vm2178, %v2162, %v2163
      %v2194 = vsel %vm2178, %v2161, %v2162
      %v2195 = vsel %vm2178, %v2160, %v2161
      %v2196 = vsel %vm2178, %v2159, %v2160
      %v2197 = vsel %vm2178, %v2158, %v2159
      %v2198 = vsel %vm2178, %v2157, %v2158
      %v2199 = vsel %vm2178, %v2156, %v2157
      %v2200 = vsel %vm2178, %v2155, %v2156
      %v2201 = vsel %vm2178, %v2154, %v2155
      %v2202 = vsel %vm2178, %v2153, %v2154
      %v2203 = vsel %vm2178, %v2152, %v2153
      %v2204 = vsel %vm2178, %v2151, %v2152
      %v2205 = vsel %vm2178, %v2150, %v2151
      %v2206 = vsel %vm2178, %v2149, %v2150
      %v2207 = vsel %vm2178, %v2148, %v2149
      %v2208 = vsel %vm2178, %v2147, %v2148
      %v2209 = vsel %vm2178, %v2146, %v2147
      %v2210 = vsel %vm2178, %v2177, %v2146
      %vm2211 = vcmp.ge.s32.totalorder %v1016, 1
      %vm2212 = vcmp.ge.s32.totalorder %v1017, 1
      %vm2213 = vcmp.ge.s32.totalorder %v1018, 1
      %vm2214 = vcmp.ge.s32.totalorder %v1019, 1
      %vm2215 = vcmp.ge.s32.totalorder %v1020, 1
      %vm2216 = vcmp.ge.s32.totalorder %v1021, 1
      %vm2217 = vcmp.ge.s32.totalorder %v1022, 1
      %vm2218 = vcmp.ge.s32.totalorder %v1023, 1
      %vm2219 = vcmp.ge.s32.totalorder %v1024, 1
      %vm2220 = vcmp.ge.s32.totalorder %v1025, 1
      %vm2221 = vcmp.ge.s32.totalorder %v1026, 1
      %vm2222 = vcmp.ge.s32.totalorder %v1027, 1
      %vm2223 = vcmp.ge.s32.totalorder %v1028, 1
      %vm2224 = vcmp.ge.s32.totalorder %v1029, 1
      %vm2225 = vcmp.ge.s32.totalorder %v1030, 1
      %vm2226 = vcmp.ge.s32.totalorder %v1031, 1
      %vm2227 = vcmp.ge.s32.totalorder %v1032, 1
      %vm2228 = vcmp.ge.s32.totalorder %v1033, 1
      %vm2229 = vcmp.ge.s32.totalorder %v1034, 1
      %vm2230 = vcmp.ge.s32.totalorder %v1035, 1
      %vm2231 = vcmp.ge.s32.totalorder %v1036, 1
      %vm2232 = vcmp.ge.s32.totalorder %v1037, 1
      %vm2233 = vcmp.ge.s32.totalorder %v1038, 1
      %vm2234 = vcmp.ge.s32.totalorder %v1039, 1
      %vm2235 = vcmp.ge.s32.totalorder %v1040, 1
      %vm2236 = vcmp.ge.s32.totalorder %v1041, 1
      %vm2237 = vcmp.ge.s32.totalorder %v1042, 1
      %vm2238 = vcmp.ge.s32.totalorder %v1043, 1
      %vm2239 = vcmp.ge.s32.totalorder %v1044, 1
      %vm2240 = vcmp.ge.s32.totalorder %v1045, 1
      %vm2241 = vcmp.ge.s32.totalorder %v1046, 1
      %vm2242 = vcmp.ge.s32.totalorder %v1047, 1
      %v2243 = vsel %vm2211, 1, 0
      %v2244 = vsel %vm2212, 1, 0
      %v2245 = vsel %vm2213, 1, 0
      %v2246 = vsel %vm2214, 1, 0
      %v2247 = vsel %vm2215, 1, 0
      %v2248 = vsel %vm2216, 1, 0
      %v2249 = vsel %vm2217, 1, 0
      %v2250 = vsel %vm2218, 1, 0
      %v2251 = vsel %vm2219, 1, 0
      %v2252 = vsel %vm2220, 1, 0
      %v2253 = vsel %vm2221, 1, 0
      %v2254 = vsel %vm2222, 1, 0
      %v2255 = vsel %vm2223, 1, 0
      %v2256 = vsel %vm2224, 1, 0
      %v2257 = vsel %vm2225, 1, 0
      %v2258 = vsel %vm2226, 1, 0
      %v2259 = vsel %vm2227, 1, 0
      %v2260 = vsel %vm2228, 1, 0
      %v2261 = vsel %vm2229, 1, 0
      %v2262 = vsel %vm2230, 1, 0
      %v2263 = vsel %vm2231, 1, 0
      %v2264 = vsel %vm2232, 1, 0
      %v2265 = vsel %vm2233, 1, 0
      %v2266 = vsel %vm2234, 1, 0
      %v2267 = vsel %vm2235, 1, 0
      %v2268 = vsel %vm2236, 1, 0
      %v2269 = vsel %vm2237, 1, 0
      %v2270 = vsel %vm2238, 1, 0
      %v2271 = vsel %vm2239, 1, 0
      %v2272 = vsel %vm2240, 1, 0
      %v2273 = vsel %vm2241, 1, 0
      %v2274 = vsel %vm2242, 1, 0
      %vm2275 = vcmp.eq.s32.totalorder %v2243, 1
      %vm2276 = vcmp.eq.s32.totalorder %v2244, 1
      %vm2277 = vcmp.eq.s32.totalorder %v2245, 1
      %vm2278 = vcmp.eq.s32.totalorder %v2246, 1
      %vm2279 = vcmp.eq.s32.totalorder %v2247, 1
      %vm2280 = vcmp.eq.s32.totalorder %v2248, 1
      %vm2281 = vcmp.eq.s32.totalorder %v2249, 1
      %vm2282 = vcmp.eq.s32.totalorder %v2250, 1
      %vm2283 = vcmp.eq.s32.totalorder %v2251, 1
      %vm2284 = vcmp.eq.s32.totalorder %v2252, 1
      %vm2285 = vcmp.eq.s32.totalorder %v2253, 1
      %vm2286 = vcmp.eq.s32.totalorder %v2254, 1
      %vm2287 = vcmp.eq.s32.totalorder %v2255, 1
      %vm2288 = vcmp.eq.s32.totalorder %v2256, 1
      %vm2289 = vcmp.eq.s32.totalorder %v2257, 1
      %vm2290 = vcmp.eq.s32.totalorder %v2258, 1
      %vm2291 = vcmp.eq.s32.totalorder %v2259, 1
      %vm2292 = vcmp.eq.s32.totalorder %v2260, 1
      %vm2293 = vcmp.eq.s32.totalorder %v2261, 1
      %vm2294 = vcmp.eq.s32.totalorder %v2262, 1
      %vm2295 = vcmp.eq.s32.totalorder %v2263, 1
      %vm2296 = vcmp.eq.s32.totalorder %v2264, 1
      %vm2297 = vcmp.eq.s32.totalorder %v2265, 1
      %vm2298 = vcmp.eq.s32.totalorder %v2266, 1
      %vm2299 = vcmp.eq.s32.totalorder %v2267, 1
      %vm2300 = vcmp.eq.s32.totalorder %v2268, 1
      %vm2301 = vcmp.eq.s32.totalorder %v2269, 1
      %vm2302 = vcmp.eq.s32.totalorder %v2270, 1
      %vm2303 = vcmp.eq.s32.totalorder %v2271, 1
      %vm2304 = vcmp.eq.s32.totalorder %v2272, 1
      %vm2305 = vcmp.eq.s32.totalorder %v2273, 1
      %vm2306 = vcmp.eq.s32.totalorder %v2274, 1
      %v2307 = vsel %vm2275, %v2210, 0.0
      %v2308 = vsel %vm2276, %v2209, 0.0
      %v2309 = vsel %vm2277, %v2208, 0.0
      %v2310 = vsel %vm2278, %v2207, 0.0
      %v2311 = vsel %vm2279, %v2206, 0.0
      %v2312 = vsel %vm2280, %v2205, 0.0
      %v2313 = vsel %vm2281, %v2204, 0.0
      %v2314 = vsel %vm2282, %v2203, 0.0
      %v2315 = vsel %vm2283, %v2202, 0.0
      %v2316 = vsel %vm2284, %v2201, 0.0
      %v2317 = vsel %vm2285, %v2200, 0.0
      %v2318 = vsel %vm2286, %v2199, 0.0
      %v2319 = vsel %vm2287, %v2198, 0.0
      %v2320 = vsel %vm2288, %v2197, 0.0
      %v2321 = vsel %vm2289, %v2196, 0.0
      %v2322 = vsel %vm2290, %v2195, 0.0
      %v2323 = vsel %vm2291, %v2194, 0.0
      %v2324 = vsel %vm2292, %v2193, 0.0
      %v2325 = vsel %vm2293, %v2192, 0.0
      %v2326 = vsel %vm2294, %v2191, 0.0
      %v2327 = vsel %vm2295, %v2190, 0.0
      %v2328 = vsel %vm2296, %v2189, 0.0
      %v2329 = vsel %vm2297, %v2188, 0.0
      %v2330 = vsel %vm2298, %v2187, 0.0
      %v2331 = vsel %vm2299, %v2186, 0.0
      %v2332 = vsel %vm2300, %v2185, 0.0
      %v2333 = vsel %vm2301, %v2184, 0.0
      %v2334 = vsel %vm2302, %v2183, 0.0
      %v2335 = vsel %vm2303, %v2182, 0.0
      %v2336 = vsel %vm2304, %v2181, 0.0
      %v2337 = vsel %vm2305, %v2180, 0.0
      %v2338 = vsel %vm2306, %v2179, 0.0
      %s2339 = scalar_lea.vmem %s1, 64
      %v2340 = vld [vmem:[%s2339] sm:$0xf]
      %v2341 = vld [vmem:[%s2339 + $0x4] sm:$0xf]
      %v2342 = vld [vmem:[%s2339 + $0x8] sm:$0xf]
      %v2343 = vld [vmem:[%s2339 + $0xc] sm:$0xf]
      %v2344 = vld [vmem:[%s2339 + $0x10] sm:$0xf]
      %v2345 = vld [vmem:[%s2339 + $0x14] sm:$0xf]
      %v2346 = vld [vmem:[%s2339 + $0x18] sm:$0xf]
      %v2347 = vld [vmem:[%s2339 + $0x1c] sm:$0xf]
      %v2348 = vld [vmem:[%s2339 + $0x20] sm:$0xf]
      %v2349 = vld [vmem:[%s2339 + $0x24] sm:$0xf]
      %v2350 = vld [vmem:[%s2339 + $0x28] sm:$0xf]
      %v2351 = vld [vmem:[%s2339 + $0x2c] sm:$0xf]
      %v2352 = vld [vmem:[%s2339 + $0x30] sm:$0xf]
      %v2353 = vld [vmem:[%s2339 + $0x34] sm:$0xf]
      %v2354 = vld [vmem:[%s2339 + $0x38] sm:$0xf]
      %v2355 = vld [vmem:[%s2339 + $0x3c] sm:$0xf]
      %v2372 = vunpack.c.l.b16 %v2340
      %v2373 = vunpack.c.l.b16 %v2341
      %v2374 = vunpack.c.l.b16 %v2342
      %v2375 = vunpack.c.l.b16 %v2343
      %v2376 = vunpack.c.l.b16 %v2344
      %v2377 = vunpack.c.l.b16 %v2345
      %v2378 = vunpack.c.l.b16 %v2346
      %v2379 = vunpack.c.l.b16 %v2347
      %v2380 = vunpack.c.l.b16 %v2348
      %v2381 = vunpack.c.l.b16 %v2349
      %v2382 = vunpack.c.l.b16 %v2350
      %v2383 = vunpack.c.l.b16 %v2351
      %v2384 = vunpack.c.l.b16 %v2352
      %v2385 = vunpack.c.l.b16 %v2353
      %v2386 = vunpack.c.l.b16 %v2354
      %v2387 = vunpack.c.l.b16 %v2355
      %v2388 = vpack.c.b16 %v2373, %v2372
      %v2389 = vpack.c.b16 %v2375, %v2374
      %v2390 = vpack.c.b16 %v2377, %v2376
      %v2391 = vpack.c.b16 %v2379, %v2378
      %v2392 = vpack.c.b16 %v2381, %v2380
      %v2393 = vpack.c.b16 %v2383, %v2382
      %v2394 = vpack.c.b16 %v2385, %v2384
      %v2395 = vpack.c.b16 %v2387, %v2386
      %2404 = vmatprep.subr.bf16.mxu0 0
      %2405 = vmatpush1.bf16.msra.mxu0 %v2395
      %2406 = vmatprep.subr.bf16.mxu0 0
      %2407 = vmatpush1.bf16.msra.mxu0 %v2394
      %2408 = vmatprep.subr.bf16.mxu0 0
      %2409 = vmatpush1.bf16.msra.mxu0 %v2393
      %2410 = vmatprep.subr.bf16.mxu0 0
      %2411 = vmatpush1.bf16.msra.mxu0 %v2392
      %2412 = vmatprep.subr.bf16.mxu0 0
      %2413 = vmatpush1.bf16.msra.mxu0 %v2391
      %2414 = vmatprep.subr.bf16.mxu0 0
      %2415 = vmatpush1.bf16.msra.mxu0 %v2390
      %2416 = vmatprep.subr.bf16.mxu0 0
      %2417 = vmatpush1.bf16.msra.mxu0 %v2389
      %2418 = vmatprep.subr.bf16.mxu0 0
      %2419 = vmatpush1.bf16.msra.mxu0 %v2388
      %2420 = vmatprep.subr.bf16.mxu0 0
      %2421 = vmatpush2.bf16.msra.mxu0 0
      %2422 = vmatprep.subr.bf16.mxu0 0
      %2423 = vmatpush2.bf16.msra.mxu0 0
      %2424 = vmatprep.subr.bf16.mxu0 0
      %2425 = vmatpush2.bf16.msra.mxu0 0
      %2426 = vmatprep.subr.bf16.mxu0 0
      %2427 = vmatpush2.bf16.msra.mxu0 0
      %2428 = vmatprep.subr.bf16.mxu0 0
      %2429 = vmatpush2.bf16.msra.mxu0 0
      %2430 = vmatprep.subr.bf16.mxu0 0
      %2431 = vmatpush2.bf16.msra.mxu0 0
      %2432 = vmatprep.subr.bf16.mxu0 0
      %2433 = vmatpush2.bf16.msra.mxu0 0
      %2434 = vmatprep.subr.bf16.mxu0 0
      %2435 = vmatpush2.bf16.msra.mxu0 0
      %2436 = vmatprep.mubr.bf16.mxu0 0
      %2437 = vmatmul.mubr.bf16.gmra.mxu0 %v1873
      %v2438 = vpop.f32.mrf.mxu0
      %v2439 = vadd.f32 0.0, %v2438
      %v2440 = vpop.f32.mrf.mxu0
      %v2441 = vpop.f32.mrf.mxu0
      %v2442 = vadd.f32 0.0, %v2441
      %v2443 = vpop.f32.mrf.mxu0
      %2444 = vmatprep.mubr.bf16.mxu0 0
      %2445 = vmatmul.mubr.bf16.gmra.mxu0 %v1874
      %v2446 = vpop.f32.mrf.mxu0
      %v2447 = vadd.f32 0.0, %v2446
      %v2448 = vpop.f32.mrf.mxu0
      %v2449 = vpop.f32.mrf.mxu0
      %v2450 = vadd.f32 0.0, %v2449
      %v2451 = vpop.f32.mrf.mxu0
      %2452 = vmatprep.mubr.bf16.mxu0 0
      %2453 = vmatmul.mubr.bf16.gmra.mxu0 %v1875
      %v2454 = vpop.f32.mrf.mxu0
      %v2455 = vadd.f32 0.0, %v2454
      %v2456 = vpop.f32.mrf.mxu0
      %v2457 = vpop.f32.mrf.mxu0
      %v2458 = vadd.f32 0.0, %v2457
      %v2459 = vpop.f32.mrf.mxu0
      %2460 = vmatprep.mubr.bf16.mxu0 0
      %2461 = vmatmul.mubr.bf16.gmra.mxu0 %v1876
      %v2462 = vpop.f32.mrf.mxu0
      %v2463 = vadd.f32 0.0, %v2462
      %v2464 = vpop.f32.mrf.mxu0
      %v2465 = vpop.f32.mrf.mxu0
      %v2466 = vadd.f32 0.0, %v2465
      %v2467 = vpop.f32.mrf.mxu0
      %2468 = vmatprep.mubr.bf16.mxu0 0
      %2469 = vmatmul.mubr.bf16.gmra.mxu0 %v1877
      %v2470 = vpop.f32.mrf.mxu0
      %v2471 = vadd.f32 0.0, %v2470
      %v2472 = vpop.f32.mrf.mxu0
      %v2473 = vpop.f32.mrf.mxu0
      %v2474 = vadd.f32 0.0, %v2473
      %v2475 = vpop.f32.mrf.mxu0
      %2476 = vmatprep.mubr.bf16.mxu0 0
      %2477 = vmatmul.mubr.bf16.gmra.mxu0 %v1878
      %v2478 = vpop.f32.mrf.mxu0
      %v2479 = vadd.f32 0.0, %v2478
      %v2480 = vpop.f32.mrf.mxu0
      %v2481 = vpop.f32.mrf.mxu0
      %v2482 = vadd.f32 0.0, %v2481
      %v2483 = vpop.f32.mrf.mxu0
      %2484 = vmatprep.mubr.bf16.mxu0 0
      %2485 = vmatmul.mubr.bf16.gmra.mxu0 %v1879
      %v2486 = vpop.f32.mrf.mxu0
      %v2487 = vadd.f32 0.0, %v2486
      %v2488 = vpop.f32.mrf.mxu0
      %v2489 = vpop.f32.mrf.mxu0
      %v2490 = vadd.f32 0.0, %v2489
      %v2491 = vpop.f32.mrf.mxu0
      %2492 = vmatprep.mubr.bf16.mxu0 0
      %2493 = vmatmul.mubr.bf16.gmra.mxu0 %v1880
      %v2494 = vpop.f32.mrf.mxu0
      %v2495 = vadd.f32 0.0, %v2494
      %v2496 = vpop.f32.mrf.mxu0
      %v2497 = vpop.f32.mrf.mxu0
      %v2498 = vadd.f32 0.0, %v2497
      %v2499 = vpop.f32.mrf.mxu0
      %2500 = vmatprep.mubr.bf16.mxu0 0
      %2501 = vmatmul.mubr.bf16.gmra.mxu0 %v1881
      %v2502 = vpop.f32.mrf.mxu0
      %v2503 = vadd.f32 0.0, %v2502
      %v2504 = vpop.f32.mrf.mxu0
      %v2505 = vpop.f32.mrf.mxu0
      %v2506 = vadd.f32 0.0, %v2505
      %v2507 = vpop.f32.mrf.mxu0
      %2508 = vmatprep.mubr.bf16.mxu0 0
      %2509 = vmatmul.mubr.bf16.gmra.mxu0 %v1882
      %v2510 = vpop.f32.mrf.mxu0
      %v2511 = vadd.f32 0.0, %v2510
      %v2512 = vpop.f32.mrf.mxu0
      %v2513 = vpop.f32.mrf.mxu0
      %v2514 = vadd.f32 0.0, %v2513
      %v2515 = vpop.f32.mrf.mxu0
      %2516 = vmatprep.mubr.bf16.mxu0 0
      %2517 = vmatmul.mubr.bf16.gmra.mxu0 %v1883
      %v2518 = vpop.f32.mrf.mxu0
      %v2519 = vadd.f32 0.0, %v2518
      %v2520 = vpop.f32.mrf.mxu0
      %v2521 = vpop.f32.mrf.mxu0
      %v2522 = vadd.f32 0.0, %v2521
      %v2523 = vpop.f32.mrf.mxu0
      %2524 = vmatprep.mubr.bf16.mxu0 0
      %2525 = vmatmul.mubr.bf16.gmra.mxu0 %v1884
      %v2526 = vpop.f32.mrf.mxu0
      %v2527 = vadd.f32 0.0, %v2526
      %v2528 = vpop.f32.mrf.mxu0
      %v2529 = vpop.f32.mrf.mxu0
      %v2530 = vadd.f32 0.0, %v2529
      %v2531 = vpop.f32.mrf.mxu0
      %2532 = vmatprep.mubr.bf16.mxu0 0
      %2533 = vmatmul.mubr.bf16.gmra.mxu0 %v1885
      %v2534 = vpop.f32.mrf.mxu0
      %v2535 = vadd.f32 0.0, %v2534
      %v2536 = vpop.f32.mrf.mxu0
      %v2537 = vpop.f32.mrf.mxu0
      %v2538 = vadd.f32 0.0, %v2537
      %v2539 = vpop.f32.mrf.mxu0
      %2540 = vmatprep.mubr.bf16.mxu0 0
      %2541 = vmatmul.mubr.bf16.gmra.mxu0 %v1886
      %v2542 = vpop.f32.mrf.mxu0
      %v2543 = vadd.f32 0.0, %v2542
      %v2544 = vpop.f32.mrf.mxu0
      %v2545 = vpop.f32.mrf.mxu0
      %v2546 = vadd.f32 0.0, %v2545
      %v2547 = vpop.f32.mrf.mxu0
      %2548 = vmatprep.mubr.bf16.mxu0 0
      %2549 = vmatmul.mubr.bf16.gmra.mxu0 %v1887
      %v2550 = vpop.f32.mrf.mxu0
      %v2551 = vadd.f32 0.0, %v2550
      %v2552 = vpop.f32.mrf.mxu0
      %v2553 = vpop.f32.mrf.mxu0
      %v2554 = vadd.f32 0.0, %v2553
      %v2555 = vpop.f32.mrf.mxu0
      %2556 = vmatprep.mubr.bf16.mxu0 0
      %2557 = vmatmul.mubr.bf16.gmra.mxu0 %v1888
      %v2558 = vpop.f32.mrf.mxu0
      %v2559 = vadd.f32 0.0, %v2558
      %v2560 = vpop.f32.mrf.mxu0
      %v2561 = vpop.f32.mrf.mxu0
      %v2562 = vadd.f32 0.0, %v2561
      %v2563 = vpop.f32.mrf.mxu0
      %2564 = vdwg.mxu0
      %s2565 = scalar_lea.vmem %s1, 256
      %v2566 = vld [vmem:[%s2565] sm:$0xf]
      %v2567 = vld [vmem:[%s2565 + $0x4] sm:$0xf]
      %v2568 = vld [vmem:[%s2565 + $0x8] sm:$0xf]
      %v2569 = vld [vmem:[%s2565 + $0xc] sm:$0xf]
      %v2570 = vld [vmem:[%s2565 + $0x10] sm:$0xf]
      %v2571 = vld [vmem:[%s2565 + $0x14] sm:$0xf]
      %v2572 = vld [vmem:[%s2565 + $0x18] sm:$0xf]
      %v2573 = vld [vmem:[%s2565 + $0x1c] sm:$0xf]
      %v2574 = vld [vmem:[%s2565 + $0x20] sm:$0xf]
      %v2575 = vld [vmem:[%s2565 + $0x24] sm:$0xf]
      %v2576 = vld [vmem:[%s2565 + $0x28] sm:$0xf]
      %v2577 = vld [vmem:[%s2565 + $0x2c] sm:$0xf]
      %v2578 = vld [vmem:[%s2565 + $0x30] sm:$0xf]
      %v2579 = vld [vmem:[%s2565 + $0x34] sm:$0xf]
      %v2580 = vld [vmem:[%s2565 + $0x38] sm:$0xf]
      %v2581 = vld [vmem:[%s2565 + $0x3c] sm:$0xf]
      %v2598 = vunpack.c.l.b16 %v2566
      %v2599 = vunpack.c.l.b16 %v2567
      %v2600 = vunpack.c.l.b16 %v2568
      %v2601 = vunpack.c.l.b16 %v2569
      %v2602 = vunpack.c.l.b16 %v2570
      %v2603 = vunpack.c.l.b16 %v2571
      %v2604 = vunpack.c.l.b16 %v2572
      %v2605 = vunpack.c.l.b16 %v2573
      %v2606 = vunpack.c.l.b16 %v2574
      %v2607 = vunpack.c.l.b16 %v2575
      %v2608 = vunpack.c.l.b16 %v2576
      %v2609 = vunpack.c.l.b16 %v2577
      %v2610 = vunpack.c.l.b16 %v2578
      %v2611 = vunpack.c.l.b16 %v2579
      %v2612 = vunpack.c.l.b16 %v2580
      %v2613 = vunpack.c.l.b16 %v2581
      %v2614 = vpack.c.b16 %v2599, %v2598
      %v2615 = vpack.c.b16 %v2601, %v2600
      %v2616 = vpack.c.b16 %v2603, %v2602
      %v2617 = vpack.c.b16 %v2605, %v2604
      %v2618 = vpack.c.b16 %v2607, %v2606
      %v2619 = vpack.c.b16 %v2609, %v2608
      %v2620 = vpack.c.b16 %v2611, %v2610
      %v2621 = vpack.c.b16 %v2613, %v2612
      %2630 = vmatprep.subr.bf16.mxu0 0
      %2631 = vmatpush1.bf16.msra.mxu0 %v2621
      %2632 = vmatprep.subr.bf16.mxu0 0
      %2633 = vmatpush1.bf16.msra.mxu0 %v2620
      %2634 = vmatprep.subr.bf16.mxu0 0
      %2635 = vmatpush1.bf16.msra.mxu0 %v2619
      %2636 = vmatprep.subr.bf16.mxu0 0
      %2637 = vmatpush1.bf16.msra.mxu0 %v2618
      %2638 = vmatprep.subr.bf16.mxu0 0
      %2639 = vmatpush1.bf16.msra.mxu0 %v2617
      %2640 = vmatprep.subr.bf16.mxu0 0
      %2641 = vmatpush1.bf16.msra.mxu0 %v2616
      %2642 = vmatprep.subr.bf16.mxu0 0
      %2643 = vmatpush1.bf16.msra.mxu0 %v2615
      %2644 = vmatprep.subr.bf16.mxu0 0
      %2645 = vmatpush1.bf16.msra.mxu0 %v2614
      %2646 = vmatprep.subr.bf16.mxu0 0
      %2647 = vmatpush2.bf16.msra.mxu0 0
      %2648 = vmatprep.subr.bf16.mxu0 0
      %2649 = vmatpush2.bf16.msra.mxu0 0
      %2650 = vmatprep.subr.bf16.mxu0 0
      %2651 = vmatpush2.bf16.msra.mxu0 0
      %2652 = vmatprep.subr.bf16.mxu0 0
      %2653 = vmatpush2.bf16.msra.mxu0 0
      %2654 = vmatprep.subr.bf16.mxu0 0
      %2655 = vmatpush2.bf16.msra.mxu0 0
      %2656 = vmatprep.subr.bf16.mxu0 0
      %2657 = vmatpush2.bf16.msra.mxu0 0
      %2658 = vmatprep.subr.bf16.mxu0 0
      %2659 = vmatpush2.bf16.msra.mxu0 0
      %2660 = vmatprep.subr.bf16.mxu0 0
      %2661 = vmatpush2.bf16.msra.mxu0 0
      %2662 = vmatprep.mubr.bf16.mxu0 0
      %2663 = vmatmul.mubr.bf16.gmra.mxu0 %v1213
      %v2664 = vpop.f32.mrf.mxu0
      %v2665 = vadd.f32 0.0, %v2664
      %v2666 = vpop.f32.mrf.mxu0
      %v2667 = vpop.f32.mrf.mxu0
      %v2668 = vadd.f32 0.0, %v2667
      %v2669 = vpop.f32.mrf.mxu0
      %2670 = vmatprep.mubr.bf16.mxu0 0
      %2671 = vmatmul.mubr.bf16.gmra.mxu0 %v1214
      %v2672 = vpop.f32.mrf.mxu0
      %v2673 = vadd.f32 0.0, %v2672
      %v2674 = vpop.f32.mrf.mxu0
      %v2675 = vpop.f32.mrf.mxu0
      %v2676 = vadd.f32 0.0, %v2675
      %v2677 = vpop.f32.mrf.mxu0
      %2678 = vmatprep.mubr.bf16.mxu0 0
      %2679 = vmatmul.mubr.bf16.gmra.mxu0 %v1215
      %v2680 = vpop.f32.mrf.mxu0
      %v2681 = vadd.f32 0.0, %v2680
      %v2682 = vpop.f32.mrf.mxu0
      %v2683 = vpop.f32.mrf.mxu0
      %v2684 = vadd.f32 0.0, %v2683
      %v2685 = vpop.f32.mrf.mxu0
      %2686 = vmatprep.mubr.bf16.mxu0 0
      %2687 = vmatmul.mubr.bf16.gmra.mxu0 %v1216
      %v2688 = vpop.f32.mrf.mxu0
      %v2689 = vadd.f32 0.0, %v2688
      %v2690 = vpop.f32.mrf.mxu0
      %v2691 = vpop.f32.mrf.mxu0
      %v2692 = vadd.f32 0.0, %v2691
      %v2693 = vpop.f32.mrf.mxu0
      %2694 = vmatprep.mubr.bf16.mxu0 0
      %2695 = vmatmul.mubr.bf16.gmra.mxu0 %v1217
      %v2696 = vpop.f32.mrf.mxu0
      %v2697 = vadd.f32 0.0, %v2696
      %v2698 = vpop.f32.mrf.mxu0
      %v2699 = vpop.f32.mrf.mxu0
      %v2700 = vadd.f32 0.0, %v2699
      %v2701 = vpop.f32.mrf.mxu0
      %2702 = vmatprep.mubr.bf16.mxu0 0
      %2703 = vmatmul.mubr.bf16.gmra.mxu0 %v1218
      %v2704 = vpop.f32.mrf.mxu0
      %v2705 = vadd.f32 0.0, %v2704
      %v2706 = vpop.f32.mrf.mxu0
      %v2707 = vpop.f32.mrf.mxu0
      %v2708 = vadd.f32 0.0, %v2707
      %v2709 = vpop.f32.mrf.mxu0
      %2710 = vmatprep.mubr.bf16.mxu0 0
      %2711 = vmatmul.mubr.bf16.gmra.mxu0 %v1219
      %v2712 = vpop.f32.mrf.mxu0
      %v2713 = vadd.f32 0.0, %v2712
      %v2714 = vpop.f32.mrf.mxu0
      %v2715 = vpop.f32.mrf.mxu0
      %v2716 = vadd.f32 0.0, %v2715
      %v2717 = vpop.f32.mrf.mxu0
      %2718 = vmatprep.mubr.bf16.mxu0 0
      %2719 = vmatmul.mubr.bf16.gmra.mxu0 %v1220
      %v2720 = vpop.f32.mrf.mxu0
      %v2721 = vadd.f32 0.0, %v2720
      %v2722 = vpop.f32.mrf.mxu0
      %v2723 = vpop.f32.mrf.mxu0
      %v2724 = vadd.f32 0.0, %v2723
      %v2725 = vpop.f32.mrf.mxu0
      %2726 = vmatprep.mubr.bf16.mxu0 0
      %2727 = vmatmul.mubr.bf16.gmra.mxu0 %v1221
      %v2728 = vpop.f32.mrf.mxu0
      %v2729 = vadd.f32 0.0, %v2728
      %v2730 = vpop.f32.mrf.mxu0
      %v2731 = vpop.f32.mrf.mxu0
      %v2732 = vadd.f32 0.0, %v2731
      %v2733 = vpop.f32.mrf.mxu0
      %2734 = vmatprep.mubr.bf16.mxu0 0
      %2735 = vmatmul.mubr.bf16.gmra.mxu0 %v1222
      %v2736 = vpop.f32.mrf.mxu0
      %v2737 = vadd.f32 0.0, %v2736
      %v2738 = vpop.f32.mrf.mxu0
      %v2739 = vpop.f32.mrf.mxu0
      %v2740 = vadd.f32 0.0, %v2739
      %v2741 = vpop.f32.mrf.mxu0
      %2742 = vmatprep.mubr.bf16.mxu0 0
      %2743 = vmatmul.mubr.bf16.gmra.mxu0 %v1223
      %v2744 = vpop.f32.mrf.mxu0
      %v2745 = vadd.f32 0.0, %v2744
      %v2746 = vpop.f32.mrf.mxu0
      %v2747 = vpop.f32.mrf.mxu0
      %v2748 = vadd.f32 0.0, %v2747
      %v2749 = vpop.f32.mrf.mxu0
      %2750 = vmatprep.mubr.bf16.mxu0 0
      %2751 = vmatmul.mubr.bf16.gmra.mxu0 %v1224
      %v2752 = vpop.f32.mrf.mxu0
      %v2753 = vadd.f32 0.0, %v2752
      %v2754 = vpop.f32.mrf.mxu0
      %v2755 = vpop.f32.mrf.mxu0
      %v2756 = vadd.f32 0.0, %v2755
      %v2757 = vpop.f32.mrf.mxu0
      %2758 = vmatprep.mubr.bf16.mxu0 0
      %2759 = vmatmul.mubr.bf16.gmra.mxu0 %v1225
      %v2760 = vpop.f32.mrf.mxu0
      %v2761 = vadd.f32 0.0, %v2760
      %v2762 = vpop.f32.mrf.mxu0
      %v2763 = vpop.f32.mrf.mxu0
      %v2764 = vadd.f32 0.0, %v2763
      %v2765 = vpop.f32.mrf.mxu0
      %2766 = vmatprep.mubr.bf16.mxu0 0
      %2767 = vmatmul.mubr.bf16.gmra.mxu0 %v1226
      %v2768 = vpop.f32.mrf.mxu0
      %v2769 = vadd.f32 0.0, %v2768
      %v2770 = vpop.f32.mrf.mxu0
      %v2771 = vpop.f32.mrf.mxu0
      %v2772 = vadd.f32 0.0, %v2771
      %v2773 = vpop.f32.mrf.mxu0
      %2774 = vmatprep.mubr.bf16.mxu0 0
      %2775 = vmatmul.mubr.bf16.gmra.mxu0 %v1227
      %v2776 = vpop.f32.mrf.mxu0
      %v2777 = vadd.f32 0.0, %v2776
      %v2778 = vpop.f32.mrf.mxu0
      %v2779 = vpop.f32.mrf.mxu0
      %v2780 = vadd.f32 0.0, %v2779
      %v2781 = vpop.f32.mrf.mxu0
      %2782 = vmatprep.mubr.bf16.mxu0 0
      %2783 = vmatmul.mubr.bf16.gmra.mxu0 %v1228
      %v2784 = vpop.f32.mrf.mxu0
      %v2785 = vadd.f32 0.0, %v2784
      %v2786 = vpop.f32.mrf.mxu0
      %v2787 = vpop.f32.mrf.mxu0
      %v2788 = vadd.f32 0.0, %v2787
      %v2789 = vpop.f32.mrf.mxu0
      %2790 = vdwg.mxu0
      %s2791 = scalar_lea.vmem %s1, 448
      %v2792 = vld [vmem:[%s2791] sm:$0xf]
      %v2793 = vld [vmem:[%s2791 + $0x4] sm:$0xf]
      %v2794 = vld [vmem:[%s2791 + $0x8] sm:$0xf]
      %v2795 = vld [vmem:[%s2791 + $0xc] sm:$0xf]
      %v2796 = vld [vmem:[%s2791 + $0x10] sm:$0xf]
      %v2797 = vld [vmem:[%s2791 + $0x14] sm:$0xf]
      %v2798 = vld [vmem:[%s2791 + $0x18] sm:$0xf]
      %v2799 = vld [vmem:[%s2791 + $0x1c] sm:$0xf]
      %v2800 = vld [vmem:[%s2791 + $0x20] sm:$0xf]
      %v2801 = vld [vmem:[%s2791 + $0x24] sm:$0xf]
      %v2802 = vld [vmem:[%s2791 + $0x28] sm:$0xf]
      %v2803 = vld [vmem:[%s2791 + $0x2c] sm:$0xf]
      %v2804 = vld [vmem:[%s2791 + $0x30] sm:$0xf]
      %v2805 = vld [vmem:[%s2791 + $0x34] sm:$0xf]
      %v2806 = vld [vmem:[%s2791 + $0x38] sm:$0xf]
      %v2807 = vld [vmem:[%s2791 + $0x3c] sm:$0xf]
      %v2824 = vunpack.c.l.b16 %v2792
      %v2825 = vunpack.c.l.b16 %v2793
      %v2826 = vunpack.c.l.b16 %v2794
      %v2827 = vunpack.c.l.b16 %v2795
      %v2828 = vunpack.c.l.b16 %v2796
      %v2829 = vunpack.c.l.b16 %v2797
      %v2830 = vunpack.c.l.b16 %v2798
      %v2831 = vunpack.c.l.b16 %v2799
      %v2832 = vunpack.c.l.b16 %v2800
      %v2833 = vunpack.c.l.b16 %v2801
      %v2834 = vunpack.c.l.b16 %v2802
      %v2835 = vunpack.c.l.b16 %v2803
      %v2836 = vunpack.c.l.b16 %v2804
      %v2837 = vunpack.c.l.b16 %v2805
      %v2838 = vunpack.c.l.b16 %v2806
      %v2839 = vunpack.c.l.b16 %v2807
      %v2840 = vpack.c.b16 %v2825, %v2824
      %v2841 = vpack.c.b16 %v2827, %v2826
      %v2842 = vpack.c.b16 %v2829, %v2828
      %v2843 = vpack.c.b16 %v2831, %v2830
      %v2844 = vpack.c.b16 %v2833, %v2832
      %v2845 = vpack.c.b16 %v2835, %v2834
      %v2846 = vpack.c.b16 %v2837, %v2836
      %v2847 = vpack.c.b16 %v2839, %v2838
      %2856 = vmatprep.subr.bf16.mxu0 0
      %2857 = vmatpush1.bf16.msra.mxu0 %v2847
      %2858 = vmatprep.subr.bf16.mxu0 0
      %2859 = vmatpush1.bf16.msra.mxu0 %v2846
      %2860 = vmatprep.subr.bf16.mxu0 0
      %2861 = vmatpush1.bf16.msra.mxu0 %v2845
      %2862 = vmatprep.subr.bf16.mxu0 0
      %2863 = vmatpush1.bf16.msra.mxu0 %v2844
      %2864 = vmatprep.subr.bf16.mxu0 0
      %2865 = vmatpush1.bf16.msra.mxu0 %v2843
      %2866 = vmatprep.subr.bf16.mxu0 0
      %2867 = vmatpush1.bf16.msra.mxu0 %v2842
      %2868 = vmatprep.subr.bf16.mxu0 0
      %2869 = vmatpush1.bf16.msra.mxu0 %v2841
      %2870 = vmatprep.subr.bf16.mxu0 0
      %2871 = vmatpush1.bf16.msra.mxu0 %v2840
      %2872 = vmatprep.subr.bf16.mxu0 0
      %2873 = vmatpush2.bf16.msra.mxu0 0
      %2874 = vmatprep.subr.bf16.mxu0 0
      %2875 = vmatpush2.bf16.msra.mxu0 0
      %2876 = vmatprep.subr.bf16.mxu0 0
      %2877 = vmatpush2.bf16.msra.mxu0 0
      %2878 = vmatprep.subr.bf16.mxu0 0
      %2879 = vmatpush2.bf16.msra.mxu0 0
      %2880 = vmatprep.subr.bf16.mxu0 0
      %2881 = vmatpush2.bf16.msra.mxu0 0
      %2882 = vmatprep.subr.bf16.mxu0 0
      %2883 = vmatpush2.bf16.msra.mxu0 0
      %2884 = vmatprep.subr.bf16.mxu0 0
      %2885 = vmatpush2.bf16.msra.mxu0 0
      %2886 = vmatprep.subr.bf16.mxu0 0
      %2887 = vmatpush2.bf16.msra.mxu0 0
      %2888 = vmatprep.mubr.bf16.mxu0 0
      %2889 = vmatmul.mubr.bf16.gmra.mxu0 %v1568
      %v2890 = vpop.f32.mrf.mxu0
      %v2891 = vadd.f32 0.0, %v2890
      %v2892 = vpop.f32.mrf.mxu0
      %v2893 = vpop.f32.mrf.mxu0
      %v2894 = vadd.f32 0.0, %v2893
      %v2895 = vpop.f32.mrf.mxu0
      %2896 = vmatprep.mubr.bf16.mxu0 0
      %2897 = vmatmul.mubr.bf16.gmra.mxu0 %v1569
      %v2898 = vpop.f32.mrf.mxu0
      %v2899 = vadd.f32 0.0, %v2898
      %v2900 = vpop.f32.mrf.mxu0
      %v2901 = vpop.f32.mrf.mxu0
      %v2902 = vadd.f32 0.0, %v2901
      %v2903 = vpop.f32.mrf.mxu0
      %2904 = vmatprep.mubr.bf16.mxu0 0
      %2905 = vmatmul.mubr.bf16.gmra.mxu0 %v1570
      %v2906 = vpop.f32.mrf.mxu0
      %v2907 = vadd.f32 0.0, %v2906
      %v2908 = vpop.f32.mrf.mxu0
      %v2909 = vpop.f32.mrf.mxu0
      %v2910 = vadd.f32 0.0, %v2909
      %v2911 = vpop.f32.mrf.mxu0
      %2912 = vmatprep.mubr.bf16.mxu0 0
      %2913 = vmatmul.mubr.bf16.gmra.mxu0 %v1571
      %v2914 = vpop.f32.mrf.mxu0
      %v2915 = vadd.f32 0.0, %v2914
      %v2916 = vpop.f32.mrf.mxu0
      %v2917 = vpop.f32.mrf.mxu0
      %v2918 = vadd.f32 0.0, %v2917
      %v2919 = vpop.f32.mrf.mxu0
      %2920 = vmatprep.mubr.bf16.mxu0 0
      %2921 = vmatmul.mubr.bf16.gmra.mxu0 %v1572
      %v2922 = vpop.f32.mrf.mxu0
      %v2923 = vadd.f32 0.0, %v2922
      %v2924 = vpop.f32.mrf.mxu0
      %v2925 = vpop.f32.mrf.mxu0
      %v2926 = vadd.f32 0.0, %v2925
      %v2927 = vpop.f32.mrf.mxu0
      %2928 = vmatprep.mubr.bf16.mxu0 0
      %2929 = vmatmul.mubr.bf16.gmra.mxu0 %v1573
      %v2930 = vpop.f32.mrf.mxu0
      %v2931 = vadd.f32 0.0, %v2930
      %v2932 = vpop.f32.mrf.mxu0
      %v2933 = vpop.f32.mrf.mxu0
      %v2934 = vadd.f32 0.0, %v2933
      %v2935 = vpop.f32.mrf.mxu0
      %2936 = vmatprep.mubr.bf16.mxu0 0
      %2937 = vmatmul.mubr.bf16.gmra.mxu0 %v1574
      %v2938 = vpop.f32.mrf.mxu0
      %v2939 = vadd.f32 0.0, %v2938
      %v2940 = vpop.f32.mrf.mxu0
      %v2941 = vpop.f32.mrf.mxu0
      %v2942 = vadd.f32 0.0, %v2941
      %v2943 = vpop.f32.mrf.mxu0
      %2944 = vmatprep.mubr.bf16.mxu0 0
      %2945 = vmatmul.mubr.bf16.gmra.mxu0 %v1575
      %v2946 = vpop.f32.mrf.mxu0
      %v2947 = vadd.f32 0.0, %v2946
      %v2948 = vpop.f32.mrf.mxu0
      %v2949 = vpop.f32.mrf.mxu0
      %v2950 = vadd.f32 0.0, %v2949
      %v2951 = vpop.f32.mrf.mxu0
      %2952 = vmatprep.mubr.bf16.mxu0 0
      %2953 = vmatmul.mubr.bf16.gmra.mxu0 %v1576
      %v2954 = vpop.f32.mrf.mxu0
      %v2955 = vadd.f32 0.0, %v2954
      %v2956 = vpop.f32.mrf.mxu0
      %v2957 = vpop.f32.mrf.mxu0
      %v2958 = vadd.f32 0.0, %v2957
      %v2959 = vpop.f32.mrf.mxu0
      %2960 = vmatprep.mubr.bf16.mxu0 0
      %2961 = vmatmul.mubr.bf16.gmra.mxu0 %v1577
      %v2962 = vpop.f32.mrf.mxu0
      %v2963 = vadd.f32 0.0, %v2962
      %v2964 = vpop.f32.mrf.mxu0
      %v2965 = vpop.f32.mrf.mxu0
      %v2966 = vadd.f32 0.0, %v2965
      %v2967 = vpop.f32.mrf.mxu0
      %2968 = vmatprep.mubr.bf16.mxu0 0
      %2969 = vmatmul.mubr.bf16.gmra.mxu0 %v1578
      %v2970 = vpop.f32.mrf.mxu0
      %v2971 = vadd.f32 0.0, %v2970
      %v2972 = vpop.f32.mrf.mxu0
      %v2973 = vpop.f32.mrf.mxu0
      %v2974 = vadd.f32 0.0, %v2973
      %v2975 = vpop.f32.mrf.mxu0
      %2976 = vmatprep.mubr.bf16.mxu0 0
      %2977 = vmatmul.mubr.bf16.gmra.mxu0 %v1579
      %v2978 = vpop.f32.mrf.mxu0
      %v2979 = vadd.f32 0.0, %v2978
      %v2980 = vpop.f32.mrf.mxu0
      %v2981 = vpop.f32.mrf.mxu0
      %v2982 = vadd.f32 0.0, %v2981
      %v2983 = vpop.f32.mrf.mxu0
      %2984 = vmatprep.mubr.bf16.mxu0 0
      %2985 = vmatmul.mubr.bf16.gmra.mxu0 %v1580
      %v2986 = vpop.f32.mrf.mxu0
      %v2987 = vadd.f32 0.0, %v2986
      %v2988 = vpop.f32.mrf.mxu0
      %v2989 = vpop.f32.mrf.mxu0
      %v2990 = vadd.f32 0.0, %v2989
      %v2991 = vpop.f32.mrf.mxu0
      %2992 = vmatprep.mubr.bf16.mxu0 0
      %2993 = vmatmul.mubr.bf16.gmra.mxu0 %v1581
      %v2994 = vpop.f32.mrf.mxu0
      %v2995 = vadd.f32 0.0, %v2994
      %v2996 = vpop.f32.mrf.mxu0
      %v2997 = vpop.f32.mrf.mxu0
      %v2998 = vadd.f32 0.0, %v2997
      %v2999 = vpop.f32.mrf.mxu0
      %3000 = vmatprep.mubr.bf16.mxu0 0
      %3001 = vmatmul.mubr.bf16.gmra.mxu0 %v1582
      %v3002 = vpop.f32.mrf.mxu0
      %v3003 = vadd.f32 0.0, %v3002
      %v3004 = vpop.f32.mrf.mxu0
      %v3005 = vpop.f32.mrf.mxu0
      %v3006 = vadd.f32 0.0, %v3005
      %v3007 = vpop.f32.mrf.mxu0
      %3008 = vmatprep.mubr.bf16.mxu0 0
      %3009 = vmatmul.mubr.bf16.gmra.mxu0 %v1583
      %v3010 = vpop.f32.mrf.mxu0
      %v3011 = vadd.f32 0.0, %v3010
      %v3012 = vpop.f32.mrf.mxu0
      %v3013 = vpop.f32.mrf.mxu0
      %v3014 = vadd.f32 0.0, %v3013
      %v3015 = vpop.f32.mrf.mxu0
      %3016 = vdwg.mxu0
      %v3017 = vadd.f32 %v2307, %v2439
      %v3018 = vadd.f32 %v2308, %v2442
      %v3019 = vadd.f32 %v2309, %v2447
      %v3020 = vadd.f32 %v2310, %v2450
      %v3021 = vadd.f32 %v2311, %v2455
      %v3022 = vadd.f32 %v2312, %v2458
      %v3023 = vadd.f32 %v2313, %v2463
      %v3024 = vadd.f32 %v2314, %v2466
      %v3025 = vadd.f32 %v2315, %v2471
      %v3026 = vadd.f32 %v2316, %v2474
      %v3027 = vadd.f32 %v2317, %v2479
      %v3028 = vadd.f32 %v2318, %v2482
      %v3029 = vadd.f32 %v2319, %v2487
      %v3030 = vadd.f32 %v2320, %v2490
      %v3031 = vadd.f32 %v2321, %v2495
      %v3032 = vadd.f32 %v2322, %v2498
      %v3033 = vadd.f32 %v2323, %v2503
      %v3034 = vadd.f32 %v2324, %v2506
      %v3035 = vadd.f32 %v2325, %v2511
      %v3036 = vadd.f32 %v2326, %v2514
      %v3037 = vadd.f32 %v2327, %v2519
      %v3038 = vadd.f32 %v2328, %v2522
      %v3039 = vadd.f32 %v2329, %v2527
      %v3040 = vadd.f32 %v2330, %v2530
      %v3041 = vadd.f32 %v2331, %v2535
      %v3042 = vadd.f32 %v2332, %v2538
      %v3043 = vadd.f32 %v2333, %v2543
      %v3044 = vadd.f32 %v2334, %v2546
      %v3045 = vadd.f32 %v2335, %v2551
      %v3046 = vadd.f32 %v2336, %v2554
      %v3047 = vadd.f32 %v2337, %v2559
      %v3048 = vadd.f32 %v2338, %v2562
      %v3049 = vadd.f32 %v3017, %v2665
      %v3050 = vadd.f32 %v3018, %v2668
      %v3051 = vadd.f32 %v3019, %v2673
      %v3052 = vadd.f32 %v3020, %v2676
      %v3053 = vadd.f32 %v3021, %v2681
      %v3054 = vadd.f32 %v3022, %v2684
      %v3055 = vadd.f32 %v3023, %v2689
      %v3056 = vadd.f32 %v3024, %v2692
      %v3057 = vadd.f32 %v3025, %v2697
      %v3058 = vadd.f32 %v3026, %v2700
      %v3059 = vadd.f32 %v3027, %v2705
      %v3060 = vadd.f32 %v3028, %v2708
      %v3061 = vadd.f32 %v3029, %v2713
      %v3062 = vadd.f32 %v3030, %v2716
      %v3063 = vadd.f32 %v3031, %v2721
      %v3064 = vadd.f32 %v3032, %v2724
      %v3065 = vadd.f32 %v3033, %v2729
      %v3066 = vadd.f32 %v3034, %v2732
      %v3067 = vadd.f32 %v3035, %v2737
      %v3068 = vadd.f32 %v3036, %v2740
      %v3069 = vadd.f32 %v3037, %v2745
      %v3070 = vadd.f32 %v3038, %v2748
      %v3071 = vadd.f32 %v3039, %v2753
      %v3072 = vadd.f32 %v3040, %v2756
      %v3073 = vadd.f32 %v3041, %v2761
      %v3074 = vadd.f32 %v3042, %v2764
      %v3075 = vadd.f32 %v3043, %v2769
      %v3076 = vadd.f32 %v3044, %v2772
      %v3077 = vadd.f32 %v3045, %v2777
      %v3078 = vadd.f32 %v3046, %v2780
      %v3079 = vadd.f32 %v3047, %v2785
      %v3080 = vadd.f32 %v3048, %v2788
      %v3081 = vadd.f32 %v3049, %v2891
      %v3082 = vadd.f32 %v3050, %v2894
      %v3083 = vadd.f32 %v3051, %v2899
      %v3084 = vadd.f32 %v3052, %v2902
      %v3085 = vadd.f32 %v3053, %v2907
      %v3086 = vadd.f32 %v3054, %v2910
      %v3087 = vadd.f32 %v3055, %v2915
      %v3088 = vadd.f32 %v3056, %v2918
      %v3089 = vadd.f32 %v3057, %v2923
      %v3090 = vadd.f32 %v3058, %v2926
      %v3091 = vadd.f32 %v3059, %v2931
      %v3092 = vadd.f32 %v3060, %v2934
      %v3093 = vadd.f32 %v3061, %v2939
      %v3094 = vadd.f32 %v3062, %v2942
      %v3095 = vadd.f32 %v3063, %v2947
      %v3096 = vadd.f32 %v3064, %v2950
      %v3097 = vadd.f32 %v3065, %v2955
      %v3098 = vadd.f32 %v3066, %v2958
      %v3099 = vadd.f32 %v3067, %v2963
      %v3100 = vadd.f32 %v3068, %v2966
      %v3101 = vadd.f32 %v3069, %v2971
      %v3102 = vadd.f32 %v3070, %v2974
      %v3103 = vadd.f32 %v3071, %v2979
      %v3104 = vadd.f32 %v3072, %v2982
      %v3105 = vadd.f32 %v3073, %v2987
      %v3106 = vadd.f32 %v3074, %v2990
      %v3107 = vadd.f32 %v3075, %v2995
      %v3108 = vadd.f32 %v3076, %v2998
      %v3109 = vadd.f32 %v3077, %v3003
      %v3110 = vadd.f32 %v3078, %v3006
      %v3111 = vadd.f32 %v3079, %v3011
      %v3112 = vadd.f32 %v3080, %v3014
      %s3113 = scalar_lea.vmem %s1, 128
      %v3114 = vld [vmem:[%s3113] sm:$0xf]
      %v3115 = vld [vmem:[%s3113 + $0x4] sm:$0xf]
      %v3116 = vld [vmem:[%s3113 + $0x8] sm:$0xf]
      %v3117 = vld [vmem:[%s3113 + $0xc] sm:$0xf]
      %v3118 = vld [vmem:[%s3113 + $0x10] sm:$0xf]
      %v3119 = vld [vmem:[%s3113 + $0x14] sm:$0xf]
      %v3120 = vld [vmem:[%s3113 + $0x18] sm:$0xf]
      %v3121 = vld [vmem:[%s3113 + $0x1c] sm:$0xf]
      %v3122 = vld [vmem:[%s3113 + $0x20] sm:$0xf]
      %v3123 = vld [vmem:[%s3113 + $0x24] sm:$0xf]
      %v3124 = vld [vmem:[%s3113 + $0x28] sm:$0xf]
      %v3125 = vld [vmem:[%s3113 + $0x2c] sm:$0xf]
      %v3126 = vld [vmem:[%s3113 + $0x30] sm:$0xf]
      %v3127 = vld [vmem:[%s3113 + $0x34] sm:$0xf]
      %v3128 = vld [vmem:[%s3113 + $0x38] sm:$0xf]
      %v3129 = vld [vmem:[%s3113 + $0x3c] sm:$0xf]
      %s3130 = scalar_lea.vmem %s1, 320
      %v3131 = vld [vmem:[%s3130] sm:$0xf]
      %v3132 = vld [vmem:[%s3130 + $0x4] sm:$0xf]
      %v3133 = vld [vmem:[%s3130 + $0x8] sm:$0xf]
      %v3134 = vld [vmem:[%s3130 + $0xc] sm:$0xf]
      %v3135 = vld [vmem:[%s3130 + $0x10] sm:$0xf]
      %v3136 = vld [vmem:[%s3130 + $0x14] sm:$0xf]
      %v3137 = vld [vmem:[%s3130 + $0x18] sm:$0xf]
      %v3138 = vld [vmem:[%s3130 + $0x1c] sm:$0xf]
      %v3139 = vld [vmem:[%s3130 + $0x20] sm:$0xf]
      %v3140 = vld [vmem:[%s3130 + $0x24] sm:$0xf]
      %v3141 = vld [vmem:[%s3130 + $0x28] sm:$0xf]
      %v3142 = vld [vmem:[%s3130 + $0x2c] sm:$0xf]
      %v3143 = vld [vmem:[%s3130 + $0x30] sm:$0xf]
      %v3144 = vld [vmem:[%s3130 + $0x34] sm:$0xf]
      %v3145 = vld [vmem:[%s3130 + $0x38] sm:$0xf]
      %v3146 = vld [vmem:[%s3130 + $0x3c] sm:$0xf]
      %v3163 = vunpack.c.l.b16 %v3131
      %v3164 = vunpack.c.l.b16 %v3132
      %v3165 = vunpack.c.l.b16 %v3133
      %v3166 = vunpack.c.l.b16 %v3134
      %v3167 = vunpack.c.l.b16 %v3135
      %v3168 = vunpack.c.l.b16 %v3136
      %v3169 = vunpack.c.l.b16 %v3137
      %v3170 = vunpack.c.l.b16 %v3138
      %v3171 = vunpack.c.l.b16 %v3139
      %v3172 = vunpack.c.l.b16 %v3140
      %v3173 = vunpack.c.l.b16 %v3141
      %v3174 = vunpack.c.l.b16 %v3142
      %v3175 = vunpack.c.l.b16 %v3143
      %v3176 = vunpack.c.l.b16 %v3144
      %v3177 = vunpack.c.l.b16 %v3145
      %v3178 = vunpack.c.l.b16 %v3146
      %v3179 = vpack.c.b16 %v3164, %v3163
      %v3180 = vpack.c.b16 %v3166, %v3165
      %v3181 = vpack.c.b16 %v3168, %v3167
      %v3182 = vpack.c.b16 %v3170, %v3169
      %v3183 = vpack.c.b16 %v3172, %v3171
      %v3184 = vpack.c.b16 %v3174, %v3173
      %v3185 = vpack.c.b16 %v3176, %v3175
      %v3186 = vpack.c.b16 %v3178, %v3177
      %3195 = vmatprep.subr.bf16.mxu0 0
      %3196 = vmatpush1.bf16.msra.mxu0 %v3186
      %3197 = vmatprep.subr.bf16.mxu0 0
      %3198 = vmatpush1.bf16.msra.mxu0 %v3185
      %3199 = vmatprep.subr.bf16.mxu0 0
      %3200 = vmatpush1.bf16.msra.mxu0 %v3184
      %3201 = vmatprep.subr.bf16.mxu0 0
      %3202 = vmatpush1.bf16.msra.mxu0 %v3183
      %3203 = vmatprep.subr.bf16.mxu0 0
      %3204 = vmatpush1.bf16.msra.mxu0 %v3182
      %3205 = vmatprep.subr.bf16.mxu0 0
      %3206 = vmatpush1.bf16.msra.mxu0 %v3181
      %3207 = vmatprep.subr.bf16.mxu0 0
      %3208 = vmatpush1.bf16.msra.mxu0 %v3180
      %3209 = vmatprep.subr.bf16.mxu0 0
      %3210 = vmatpush1.bf16.msra.mxu0 %v3179
      %3211 = vmatprep.subr.bf16.mxu0 0
      %3212 = vmatpush2.bf16.msra.mxu0 0
      %3213 = vmatprep.subr.bf16.mxu0 0
      %3214 = vmatpush2.bf16.msra.mxu0 0
      %3215 = vmatprep.subr.bf16.mxu0 0
      %3216 = vmatpush2.bf16.msra.mxu0 0
      %3217 = vmatprep.subr.bf16.mxu0 0
      %3218 = vmatpush2.bf16.msra.mxu0 0
      %3219 = vmatprep.subr.bf16.mxu0 0
      %3220 = vmatpush2.bf16.msra.mxu0 0
      %3221 = vmatprep.subr.bf16.mxu0 0
      %3222 = vmatpush2.bf16.msra.mxu0 0
      %3223 = vmatprep.subr.bf16.mxu0 0
      %3224 = vmatpush2.bf16.msra.mxu0 0
      %3225 = vmatprep.subr.bf16.mxu0 0
      %3226 = vmatpush2.bf16.msra.mxu0 0
      %3227 = vmatprep.mubr.bf16.mxu0 0
      %3228 = vmatmul.mubr.bf16.gmra.mxu0 %v1213
      %v3229 = vpop.f32.mrf.mxu0
      %v3230 = vadd.f32 0.0, %v3229
      %v3231 = vpop.f32.mrf.mxu0
      %v3232 = vpop.f32.mrf.mxu0
      %v3233 = vadd.f32 0.0, %v3232
      %v3234 = vpop.f32.mrf.mxu0
      %3235 = vmatprep.mubr.bf16.mxu0 0
      %3236 = vmatmul.mubr.bf16.gmra.mxu0 %v1214
      %v3237 = vpop.f32.mrf.mxu0
      %v3238 = vadd.f32 0.0, %v3237
      %v3239 = vpop.f32.mrf.mxu0
      %v3240 = vpop.f32.mrf.mxu0
      %v3241 = vadd.f32 0.0, %v3240
      %v3242 = vpop.f32.mrf.mxu0
      %3243 = vmatprep.mubr.bf16.mxu0 0
      %3244 = vmatmul.mubr.bf16.gmra.mxu0 %v1215
      %v3245 = vpop.f32.mrf.mxu0
      %v3246 = vadd.f32 0.0, %v3245
      %v3247 = vpop.f32.mrf.mxu0
      %v3248 = vpop.f32.mrf.mxu0
      %v3249 = vadd.f32 0.0, %v3248
      %v3250 = vpop.f32.mrf.mxu0
      %3251 = vmatprep.mubr.bf16.mxu0 0
      %3252 = vmatmul.mubr.bf16.gmra.mxu0 %v1216
      %v3253 = vpop.f32.mrf.mxu0
      %v3254 = vadd.f32 0.0, %v3253
      %v3255 = vpop.f32.mrf.mxu0
      %v3256 = vpop.f32.mrf.mxu0
      %v3257 = vadd.f32 0.0, %v3256
      %v3258 = vpop.f32.mrf.mxu0
      %3259 = vmatprep.mubr.bf16.mxu0 0
      %3260 = vmatmul.mubr.bf16.gmra.mxu0 %v1217
      %v3261 = vpop.f32.mrf.mxu0
      %v3262 = vadd.f32 0.0, %v3261
      %v3263 = vpop.f32.mrf.mxu0
      %v3264 = vpop.f32.mrf.mxu0
      %v3265 = vadd.f32 0.0, %v3264
      %v3266 = vpop.f32.mrf.mxu0
      %3267 = vmatprep.mubr.bf16.mxu0 0
      %3268 = vmatmul.mubr.bf16.gmra.mxu0 %v1218
      %v3269 = vpop.f32.mrf.mxu0
      %v3270 = vadd.f32 0.0, %v3269
      %v3271 = vpop.f32.mrf.mxu0
      %v3272 = vpop.f32.mrf.mxu0
      %v3273 = vadd.f32 0.0, %v3272
      %v3274 = vpop.f32.mrf.mxu0
      %3275 = vmatprep.mubr.bf16.mxu0 0
      %3276 = vmatmul.mubr.bf16.gmra.mxu0 %v1219
      %v3277 = vpop.f32.mrf.mxu0
      %v3278 = vadd.f32 0.0, %v3277
      %v3279 = vpop.f32.mrf.mxu0
      %v3280 = vpop.f32.mrf.mxu0
      %v3281 = vadd.f32 0.0, %v3280
      %v3282 = vpop.f32.mrf.mxu0
      %3283 = vmatprep.mubr.bf16.mxu0 0
      %3284 = vmatmul.mubr.bf16.gmra.mxu0 %v1220
      %v3285 = vpop.f32.mrf.mxu0
      %v3286 = vadd.f32 0.0, %v3285
      %v3287 = vpop.f32.mrf.mxu0
      %v3288 = vpop.f32.mrf.mxu0
      %v3289 = vadd.f32 0.0, %v3288
      %v3290 = vpop.f32.mrf.mxu0
      %3291 = vmatprep.mubr.bf16.mxu0 0
      %3292 = vmatmul.mubr.bf16.gmra.mxu0 %v1221
      %v3293 = vpop.f32.mrf.mxu0
      %v3294 = vadd.f32 0.0, %v3293
      %v3295 = vpop.f32.mrf.mxu0
      %v3296 = vpop.f32.mrf.mxu0
      %v3297 = vadd.f32 0.0, %v3296
      %v3298 = vpop.f32.mrf.mxu0
      %3299 = vmatprep.mubr.bf16.mxu0 0
      %3300 = vmatmul.mubr.bf16.gmra.mxu0 %v1222
      %v3301 = vpop.f32.mrf.mxu0
      %v3302 = vadd.f32 0.0, %v3301
      %v3303 = vpop.f32.mrf.mxu0
      %v3304 = vpop.f32.mrf.mxu0
      %v3305 = vadd.f32 0.0, %v3304
      %v3306 = vpop.f32.mrf.mxu0
      %3307 = vmatprep.mubr.bf16.mxu0 0
      %3308 = vmatmul.mubr.bf16.gmra.mxu0 %v1223
      %v3309 = vpop.f32.mrf.mxu0
      %v3310 = vadd.f32 0.0, %v3309
      %v3311 = vpop.f32.mrf.mxu0
      %v3312 = vpop.f32.mrf.mxu0
      %v3313 = vadd.f32 0.0, %v3312
      %v3314 = vpop.f32.mrf.mxu0
      %3315 = vmatprep.mubr.bf16.mxu0 0
      %3316 = vmatmul.mubr.bf16.gmra.mxu0 %v1224
      %v3317 = vpop.f32.mrf.mxu0
      %v3318 = vadd.f32 0.0, %v3317
      %v3319 = vpop.f32.mrf.mxu0
      %v3320 = vpop.f32.mrf.mxu0
      %v3321 = vadd.f32 0.0, %v3320
      %v3322 = vpop.f32.mrf.mxu0
      %3323 = vmatprep.mubr.bf16.mxu0 0
      %3324 = vmatmul.mubr.bf16.gmra.mxu0 %v1225
      %v3325 = vpop.f32.mrf.mxu0
      %v3326 = vadd.f32 0.0, %v3325
      %v3327 = vpop.f32.mrf.mxu0
      %v3328 = vpop.f32.mrf.mxu0
      %v3329 = vadd.f32 0.0, %v3328
      %v3330 = vpop.f32.mrf.mxu0
      %3331 = vmatprep.mubr.bf16.mxu0 0
      %3332 = vmatmul.mubr.bf16.gmra.mxu0 %v1226
      %v3333 = vpop.f32.mrf.mxu0
      %v3334 = vadd.f32 0.0, %v3333
      %v3335 = vpop.f32.mrf.mxu0
      %v3336 = vpop.f32.mrf.mxu0
      %v3337 = vadd.f32 0.0, %v3336
      %v3338 = vpop.f32.mrf.mxu0
      %3339 = vmatprep.mubr.bf16.mxu0 0
      %3340 = vmatmul.mubr.bf16.gmra.mxu0 %v1227
      %v3341 = vpop.f32.mrf.mxu0
      %v3342 = vadd.f32 0.0, %v3341
      %v3343 = vpop.f32.mrf.mxu0
      %v3344 = vpop.f32.mrf.mxu0
      %v3345 = vadd.f32 0.0, %v3344
      %v3346 = vpop.f32.mrf.mxu0
      %3347 = vmatprep.mubr.bf16.mxu0 0
      %3348 = vmatmul.mubr.bf16.gmra.mxu0 %v1228
      %v3349 = vpop.f32.mrf.mxu0
      %v3350 = vadd.f32 0.0, %v3349
      %v3351 = vpop.f32.mrf.mxu0
      %v3352 = vpop.f32.mrf.mxu0
      %v3353 = vadd.f32 0.0, %v3352
      %v3354 = vpop.f32.mrf.mxu0
      %3355 = vdwg.mxu0
      %s3356 = scalar_lea.vmem %s1, 512
      %v3357 = vld [vmem:[%s3356] sm:$0xf]
      %v3358 = vld [vmem:[%s3356 + $0x4] sm:$0xf]
      %v3359 = vld [vmem:[%s3356 + $0x8] sm:$0xf]
      %v3360 = vld [vmem:[%s3356 + $0xc] sm:$0xf]
      %v3361 = vld [vmem:[%s3356 + $0x10] sm:$0xf]
      %v3362 = vld [vmem:[%s3356 + $0x14] sm:$0xf]
      %v3363 = vld [vmem:[%s3356 + $0x18] sm:$0xf]
      %v3364 = vld [vmem:[%s3356 + $0x1c] sm:$0xf]
      %v3365 = vld [vmem:[%s3356 + $0x20] sm:$0xf]
      %v3366 = vld [vmem:[%s3356 + $0x24] sm:$0xf]
      %v3367 = vld [vmem:[%s3356 + $0x28] sm:$0xf]
      %v3368 = vld [vmem:[%s3356 + $0x2c] sm:$0xf]
      %v3369 = vld [vmem:[%s3356 + $0x30] sm:$0xf]
      %v3370 = vld [vmem:[%s3356 + $0x34] sm:$0xf]
      %v3371 = vld [vmem:[%s3356 + $0x38] sm:$0xf]
      %v3372 = vld [vmem:[%s3356 + $0x3c] sm:$0xf]
      %v3389 = vunpack.c.l.b16 %v3357
      %v3390 = vunpack.c.l.b16 %v3358
      %v3391 = vunpack.c.l.b16 %v3359
      %v3392 = vunpack.c.l.b16 %v3360
      %v3393 = vunpack.c.l.b16 %v3361
      %v3394 = vunpack.c.l.b16 %v3362
      %v3395 = vunpack.c.l.b16 %v3363
      %v3396 = vunpack.c.l.b16 %v3364
      %v3397 = vunpack.c.l.b16 %v3365
      %v3398 = vunpack.c.l.b16 %v3366
      %v3399 = vunpack.c.l.b16 %v3367
      %v3400 = vunpack.c.l.b16 %v3368
      %v3401 = vunpack.c.l.b16 %v3369
      %v3402 = vunpack.c.l.b16 %v3370
      %v3403 = vunpack.c.l.b16 %v3371
      %v3404 = vunpack.c.l.b16 %v3372
      %v3405 = vpack.c.b16 %v3390, %v3389
      %v3406 = vpack.c.b16 %v3392, %v3391
      %v3407 = vpack.c.b16 %v3394, %v3393
      %v3408 = vpack.c.b16 %v3396, %v3395
      %v3409 = vpack.c.b16 %v3398, %v3397
      %v3410 = vpack.c.b16 %v3400, %v3399
      %v3411 = vpack.c.b16 %v3402, %v3401
      %v3412 = vpack.c.b16 %v3404, %v3403
      %3421 = vmatprep.subr.bf16.mxu0 0
      %3422 = vmatpush1.bf16.msra.mxu0 %v3412
      %3423 = vmatprep.subr.bf16.mxu0 0
      %3424 = vmatpush1.bf16.msra.mxu0 %v3411
      %3425 = vmatprep.subr.bf16.mxu0 0
      %3426 = vmatpush1.bf16.msra.mxu0 %v3410
      %3427 = vmatprep.subr.bf16.mxu0 0
      %3428 = vmatpush1.bf16.msra.mxu0 %v3409
      %3429 = vmatprep.subr.bf16.mxu0 0
      %3430 = vmatpush1.bf16.msra.mxu0 %v3408
      %3431 = vmatprep.subr.bf16.mxu0 0
      %3432 = vmatpush1.bf16.msra.mxu0 %v3407
      %3433 = vmatprep.subr.bf16.mxu0 0
      %3434 = vmatpush1.bf16.msra.mxu0 %v3406
      %3435 = vmatprep.subr.bf16.mxu0 0
      %3436 = vmatpush1.bf16.msra.mxu0 %v3405
      %3437 = vmatprep.subr.bf16.mxu0 0
      %3438 = vmatpush2.bf16.msra.mxu0 0
      %3439 = vmatprep.subr.bf16.mxu0 0
      %3440 = vmatpush2.bf16.msra.mxu0 0
      %3441 = vmatprep.subr.bf16.mxu0 0
      %3442 = vmatpush2.bf16.msra.mxu0 0
      %3443 = vmatprep.subr.bf16.mxu0 0
      %3444 = vmatpush2.bf16.msra.mxu0 0
      %3445 = vmatprep.subr.bf16.mxu0 0
      %3446 = vmatpush2.bf16.msra.mxu0 0
      %3447 = vmatprep.subr.bf16.mxu0 0
      %3448 = vmatpush2.bf16.msra.mxu0 0
      %3449 = vmatprep.subr.bf16.mxu0 0
      %3450 = vmatpush2.bf16.msra.mxu0 0
      %3451 = vmatprep.subr.bf16.mxu0 0
      %3452 = vmatpush2.bf16.msra.mxu0 0
      %3453 = vmatprep.mubr.bf16.mxu0 0
      %3454 = vmatmul.mubr.bf16.gmra.mxu0 %v1568
      %v3455 = vpop.f32.mrf.mxu0
      %v3456 = vadd.f32 0.0, %v3455
      %v3457 = vpop.f32.mrf.mxu0
      %v3458 = vpop.f32.mrf.mxu0
      %v3459 = vadd.f32 0.0, %v3458
      %v3460 = vpop.f32.mrf.mxu0
      %3461 = vmatprep.mubr.bf16.mxu0 0
      %3462 = vmatmul.mubr.bf16.gmra.mxu0 %v1569
      %v3463 = vpop.f32.mrf.mxu0
      %v3464 = vadd.f32 0.0, %v3463
      %v3465 = vpop.f32.mrf.mxu0
      %v3466 = vpop.f32.mrf.mxu0
      %v3467 = vadd.f32 0.0, %v3466
      %v3468 = vpop.f32.mrf.mxu0
      %3469 = vmatprep.mubr.bf16.mxu0 0
      %3470 = vmatmul.mubr.bf16.gmra.mxu0 %v1570
      %v3471 = vpop.f32.mrf.mxu0
      %v3472 = vadd.f32 0.0, %v3471
      %v3473 = vpop.f32.mrf.mxu0
      %v3474 = vpop.f32.mrf.mxu0
      %v3475 = vadd.f32 0.0, %v3474
      %v3476 = vpop.f32.mrf.mxu0
      %3477 = vmatprep.mubr.bf16.mxu0 0
      %3478 = vmatmul.mubr.bf16.gmra.mxu0 %v1571
      %v3479 = vpop.f32.mrf.mxu0
      %v3480 = vadd.f32 0.0, %v3479
      %v3481 = vpop.f32.mrf.mxu0
      %v3482 = vpop.f32.mrf.mxu0
      %v3483 = vadd.f32 0.0, %v3482
      %v3484 = vpop.f32.mrf.mxu0
      %3485 = vmatprep.mubr.bf16.mxu0 0
      %3486 = vmatmul.mubr.bf16.gmra.mxu0 %v1572
      %v3487 = vpop.f32.mrf.mxu0
      %v3488 = vadd.f32 0.0, %v3487
      %v3489 = vpop.f32.mrf.mxu0
      %v3490 = vpop.f32.mrf.mxu0
      %v3491 = vadd.f32 0.0, %v3490
      %v3492 = vpop.f32.mrf.mxu0
      %3493 = vmatprep.mubr.bf16.mxu0 0
      %3494 = vmatmul.mubr.bf16.gmra.mxu0 %v1573
      %v3495 = vpop.f32.mrf.mxu0
      %v3496 = vadd.f32 0.0, %v3495
      %v3497 = vpop.f32.mrf.mxu0
      %v3498 = vpop.f32.mrf.mxu0
      %v3499 = vadd.f32 0.0, %v3498
      %v3500 = vpop.f32.mrf.mxu0
      %3501 = vmatprep.mubr.bf16.mxu0 0
      %3502 = vmatmul.mubr.bf16.gmra.mxu0 %v1574
      %v3503 = vpop.f32.mrf.mxu0
      %v3504 = vadd.f32 0.0, %v3503
      %v3505 = vpop.f32.mrf.mxu0
      %v3506 = vpop.f32.mrf.mxu0
      %v3507 = vadd.f32 0.0, %v3506
      %v3508 = vpop.f32.mrf.mxu0
      %3509 = vmatprep.mubr.bf16.mxu0 0
      %3510 = vmatmul.mubr.bf16.gmra.mxu0 %v1575
      %v3511 = vpop.f32.mrf.mxu0
      %v3512 = vadd.f32 0.0, %v3511
      %v3513 = vpop.f32.mrf.mxu0
      %v3514 = vpop.f32.mrf.mxu0
      %v3515 = vadd.f32 0.0, %v3514
      %v3516 = vpop.f32.mrf.mxu0
      %3517 = vmatprep.mubr.bf16.mxu0 0
      %3518 = vmatmul.mubr.bf16.gmra.mxu0 %v1576
      %v3519 = vpop.f32.mrf.mxu0
      %v3520 = vadd.f32 0.0, %v3519
      %v3521 = vpop.f32.mrf.mxu0
      %v3522 = vpop.f32.mrf.mxu0
      %v3523 = vadd.f32 0.0, %v3522
      %v3524 = vpop.f32.mrf.mxu0
      %3525 = vmatprep.mubr.bf16.mxu0 0
      %3526 = vmatmul.mubr.bf16.gmra.mxu0 %v1577
      %v3527 = vpop.f32.mrf.mxu0
      %v3528 = vadd.f32 0.0, %v3527
      %v3529 = vpop.f32.mrf.mxu0
      %v3530 = vpop.f32.mrf.mxu0
      %v3531 = vadd.f32 0.0, %v3530
      %v3532 = vpop.f32.mrf.mxu0
      %3533 = vmatprep.mubr.bf16.mxu0 0
      %3534 = vmatmul.mubr.bf16.gmra.mxu0 %v1578
      %v3535 = vpop.f32.mrf.mxu0
      %v3536 = vadd.f32 0.0, %v3535
      %v3537 = vpop.f32.mrf.mxu0
      %v3538 = vpop.f32.mrf.mxu0
      %v3539 = vadd.f32 0.0, %v3538
      %v3540 = vpop.f32.mrf.mxu0
      %3541 = vmatprep.mubr.bf16.mxu0 0
      %3542 = vmatmul.mubr.bf16.gmra.mxu0 %v1579
      %v3543 = vpop.f32.mrf.mxu0
      %v3544 = vadd.f32 0.0, %v3543
      %v3545 = vpop.f32.mrf.mxu0
      %v3546 = vpop.f32.mrf.mxu0
      %v3547 = vadd.f32 0.0, %v3546
      %v3548 = vpop.f32.mrf.mxu0
      %3549 = vmatprep.mubr.bf16.mxu0 0
      %3550 = vmatmul.mubr.bf16.gmra.mxu0 %v1580
      %v3551 = vpop.f32.mrf.mxu0
      %v3552 = vadd.f32 0.0, %v3551
      %v3553 = vpop.f32.mrf.mxu0
      %v3554 = vpop.f32.mrf.mxu0
      %v3555 = vadd.f32 0.0, %v3554
      %v3556 = vpop.f32.mrf.mxu0
      %3557 = vmatprep.mubr.bf16.mxu0 0
      %3558 = vmatmul.mubr.bf16.gmra.mxu0 %v1581
      %v3559 = vpop.f32.mrf.mxu0
      %v3560 = vadd.f32 0.0, %v3559
      %v3561 = vpop.f32.mrf.mxu0
      %v3562 = vpop.f32.mrf.mxu0
      %v3563 = vadd.f32 0.0, %v3562
      %v3564 = vpop.f32.mrf.mxu0
      %3565 = vmatprep.mubr.bf16.mxu0 0
      %3566 = vmatmul.mubr.bf16.gmra.mxu0 %v1582
      %v3567 = vpop.f32.mrf.mxu0
      %v3568 = vadd.f32 0.0, %v3567
      %v3569 = vpop.f32.mrf.mxu0
      %v3570 = vpop.f32.mrf.mxu0
      %v3571 = vadd.f32 0.0, %v3570
      %v3572 = vpop.f32.mrf.mxu0
      %3573 = vmatprep.mubr.bf16.mxu0 0
      %3574 = vmatmul.mubr.bf16.gmra.mxu0 %v1583
      %v3575 = vpop.f32.mrf.mxu0
      %v3576 = vadd.f32 0.0, %v3575
      %v3577 = vpop.f32.mrf.mxu0
      %v3578 = vpop.f32.mrf.mxu0
      %v3579 = vadd.f32 0.0, %v3578
      %v3580 = vpop.f32.mrf.mxu0
      %3581 = vdwg.mxu0
      %v3598 = vunpack.c.l.b16 %v3114
      %v3599 = vunpack.c.l.b16 %v3115
      %v3600 = vunpack.c.l.b16 %v3116
      %v3601 = vunpack.c.l.b16 %v3117
      %v3602 = vunpack.c.l.b16 %v3118
      %v3603 = vunpack.c.l.b16 %v3119
      %v3604 = vunpack.c.l.b16 %v3120
      %v3605 = vunpack.c.l.b16 %v3121
      %v3606 = vunpack.c.l.b16 %v3122
      %v3607 = vunpack.c.l.b16 %v3123
      %v3608 = vunpack.c.l.b16 %v3124
      %v3609 = vunpack.c.l.b16 %v3125
      %v3610 = vunpack.c.l.b16 %v3126
      %v3611 = vunpack.c.l.b16 %v3127
      %v3612 = vunpack.c.l.b16 %v3128
      %v3613 = vunpack.c.l.b16 %v3129
      %v3614 = vpack.c.b16 %v3599, %v3598
      %v3615 = vpack.c.b16 %v3601, %v3600
      %v3616 = vpack.c.b16 %v3603, %v3602
      %v3617 = vpack.c.b16 %v3605, %v3604
      %v3618 = vpack.c.b16 %v3607, %v3606
      %v3619 = vpack.c.b16 %v3609, %v3608
      %v3620 = vpack.c.b16 %v3611, %v3610
      %v3621 = vpack.c.b16 %v3613, %v3612
      %3630 = vmatprep.subr.bf16.mxu0 0
      %3631 = vmatpush1.bf16.msra.mxu0 %v3621
      %3632 = vmatprep.subr.bf16.mxu0 0
      %3633 = vmatpush1.bf16.msra.mxu0 %v3620
      %3634 = vmatprep.subr.bf16.mxu0 0
      %3635 = vmatpush1.bf16.msra.mxu0 %v3619
      %3636 = vmatprep.subr.bf16.mxu0 0
      %3637 = vmatpush1.bf16.msra.mxu0 %v3618
      %3638 = vmatprep.subr.bf16.mxu0 0
      %3639 = vmatpush1.bf16.msra.mxu0 %v3617
      %3640 = vmatprep.subr.bf16.mxu0 0
      %3641 = vmatpush1.bf16.msra.mxu0 %v3616
      %3642 = vmatprep.subr.bf16.mxu0 0
      %3643 = vmatpush1.bf16.msra.mxu0 %v3615
      %3644 = vmatprep.subr.bf16.mxu0 0
      %3645 = vmatpush1.bf16.msra.mxu0 %v3614
      %3646 = vmatprep.subr.bf16.mxu0 0
      %3647 = vmatpush2.bf16.msra.mxu0 0
      %3648 = vmatprep.subr.bf16.mxu0 0
      %3649 = vmatpush2.bf16.msra.mxu0 0
      %3650 = vmatprep.subr.bf16.mxu0 0
      %3651 = vmatpush2.bf16.msra.mxu0 0
      %3652 = vmatprep.subr.bf16.mxu0 0
      %3653 = vmatpush2.bf16.msra.mxu0 0
      %3654 = vmatprep.subr.bf16.mxu0 0
      %3655 = vmatpush2.bf16.msra.mxu0 0
      %3656 = vmatprep.subr.bf16.mxu0 0
      %3657 = vmatpush2.bf16.msra.mxu0 0
      %3658 = vmatprep.subr.bf16.mxu0 0
      %3659 = vmatpush2.bf16.msra.mxu0 0
      %3660 = vmatprep.subr.bf16.mxu0 0
      %3661 = vmatpush2.bf16.msra.mxu0 0
      %3662 = vmatprep.mubr.bf16.mxu0 0
      %3663 = vmatmul.mubr.bf16.gmra.mxu0 %v1873
      %v3664 = vpop.f32.mrf.mxu0
      %v3665 = vadd.f32 %v3230, %v3664
      %v3666 = vpop.f32.mrf.mxu0
      %v3667 = vpop.f32.mrf.mxu0
      %v3668 = vadd.f32 %v3233, %v3667
      %v3669 = vpop.f32.mrf.mxu0
      %3670 = vmatprep.mubr.bf16.mxu0 0
      %3671 = vmatmul.mubr.bf16.gmra.mxu0 %v1874
      %v3672 = vpop.f32.mrf.mxu0
      %v3673 = vadd.f32 %v3238, %v3672
      %v3674 = vpop.f32.mrf.mxu0
      %v3675 = vpop.f32.mrf.mxu0
      %v3676 = vadd.f32 %v3241, %v3675
      %v3677 = vpop.f32.mrf.mxu0
      %3678 = vmatprep.mubr.bf16.mxu0 0
      %3679 = vmatmul.mubr.bf16.gmra.mxu0 %v1875
      %v3680 = vpop.f32.mrf.mxu0
      %v3681 = vadd.f32 %v3246, %v3680
      %v3682 = vpop.f32.mrf.mxu0
      %v3683 = vpop.f32.mrf.mxu0
      %v3684 = vadd.f32 %v3249, %v3683
      %v3685 = vpop.f32.mrf.mxu0
      %3686 = vmatprep.mubr.bf16.mxu0 0
      %3687 = vmatmul.mubr.bf16.gmra.mxu0 %v1876
      %v3688 = vpop.f32.mrf.mxu0
      %v3689 = vadd.f32 %v3254, %v3688
      %v3690 = vpop.f32.mrf.mxu0
      %v3691 = vpop.f32.mrf.mxu0
      %v3692 = vadd.f32 %v3257, %v3691
      %v3693 = vpop.f32.mrf.mxu0
      %3694 = vmatprep.mubr.bf16.mxu0 0
      %3695 = vmatmul.mubr.bf16.gmra.mxu0 %v1877
      %v3696 = vpop.f32.mrf.mxu0
      %v3697 = vadd.f32 %v3262, %v3696
      %v3698 = vpop.f32.mrf.mxu0
      %v3699 = vpop.f32.mrf.mxu0
      %v3700 = vadd.f32 %v3265, %v3699
      %v3701 = vpop.f32.mrf.mxu0
      %3702 = vmatprep.mubr.bf16.mxu0 0
      %3703 = vmatmul.mubr.bf16.gmra.mxu0 %v1878
      %v3704 = vpop.f32.mrf.mxu0
      %v3705 = vadd.f32 %v3270, %v3704
      %v3706 = vpop.f32.mrf.mxu0
      %v3707 = vpop.f32.mrf.mxu0
      %v3708 = vadd.f32 %v3273, %v3707
      %v3709 = vpop.f32.mrf.mxu0
      %3710 = vmatprep.mubr.bf16.mxu0 0
      %3711 = vmatmul.mubr.bf16.gmra.mxu0 %v1879
      %v3712 = vpop.f32.mrf.mxu0
      %v3713 = vadd.f32 %v3278, %v3712
      %v3714 = vpop.f32.mrf.mxu0
      %v3715 = vpop.f32.mrf.mxu0
      %v3716 = vadd.f32 %v3281, %v3715
      %v3717 = vpop.f32.mrf.mxu0
      %3718 = vmatprep.mubr.bf16.mxu0 0
      %3719 = vmatmul.mubr.bf16.gmra.mxu0 %v1880
      %v3720 = vpop.f32.mrf.mxu0
      %v3721 = vadd.f32 %v3286, %v3720
      %v3722 = vpop.f32.mrf.mxu0
      %v3723 = vpop.f32.mrf.mxu0
      %v3724 = vadd.f32 %v3289, %v3723
      %v3725 = vpop.f32.mrf.mxu0
      %3726 = vmatprep.mubr.bf16.mxu0 0
      %3727 = vmatmul.mubr.bf16.gmra.mxu0 %v1881
      %v3728 = vpop.f32.mrf.mxu0
      %v3729 = vadd.f32 %v3294, %v3728
      %v3730 = vpop.f32.mrf.mxu0
      %v3731 = vpop.f32.mrf.mxu0
      %v3732 = vadd.f32 %v3297, %v3731
      %v3733 = vpop.f32.mrf.mxu0
      %3734 = vmatprep.mubr.bf16.mxu0 0
      %3735 = vmatmul.mubr.bf16.gmra.mxu0 %v1882
      %v3736 = vpop.f32.mrf.mxu0
      %v3737 = vadd.f32 %v3302, %v3736
      %v3738 = vpop.f32.mrf.mxu0
      %v3739 = vpop.f32.mrf.mxu0
      %v3740 = vadd.f32 %v3305, %v3739
      %v3741 = vpop.f32.mrf.mxu0
      %3742 = vmatprep.mubr.bf16.mxu0 0
      %3743 = vmatmul.mubr.bf16.gmra.mxu0 %v1883
      %v3744 = vpop.f32.mrf.mxu0
      %v3745 = vadd.f32 %v3310, %v3744
      %v3746 = vpop.f32.mrf.mxu0
      %v3747 = vpop.f32.mrf.mxu0
      %v3748 = vadd.f32 %v3313, %v3747
      %v3749 = vpop.f32.mrf.mxu0
      %3750 = vmatprep.mubr.bf16.mxu0 0
      %3751 = vmatmul.mubr.bf16.gmra.mxu0 %v1884
      %v3752 = vpop.f32.mrf.mxu0
      %v3753 = vadd.f32 %v3318, %v3752
      %v3754 = vpop.f32.mrf.mxu0
      %v3755 = vpop.f32.mrf.mxu0
      %v3756 = vadd.f32 %v3321, %v3755
      %v3757 = vpop.f32.mrf.mxu0
      %3758 = vmatprep.mubr.bf16.mxu0 0
      %3759 = vmatmul.mubr.bf16.gmra.mxu0 %v1885
      %v3760 = vpop.f32.mrf.mxu0
      %v3761 = vadd.f32 %v3326, %v3760
      %v3762 = vpop.f32.mrf.mxu0
      %v3763 = vpop.f32.mrf.mxu0
      %v3764 = vadd.f32 %v3329, %v3763
      %v3765 = vpop.f32.mrf.mxu0
      %3766 = vmatprep.mubr.bf16.mxu0 0
      %3767 = vmatmul.mubr.bf16.gmra.mxu0 %v1886
      %v3768 = vpop.f32.mrf.mxu0
      %v3769 = vadd.f32 %v3334, %v3768
      %v3770 = vpop.f32.mrf.mxu0
      %v3771 = vpop.f32.mrf.mxu0
      %v3772 = vadd.f32 %v3337, %v3771
      %v3773 = vpop.f32.mrf.mxu0
      %3774 = vmatprep.mubr.bf16.mxu0 0
      %3775 = vmatmul.mubr.bf16.gmra.mxu0 %v1887
      %v3776 = vpop.f32.mrf.mxu0
      %v3777 = vadd.f32 %v3342, %v3776
      %v3778 = vpop.f32.mrf.mxu0
      %v3779 = vpop.f32.mrf.mxu0
      %v3780 = vadd.f32 %v3345, %v3779
      %v3781 = vpop.f32.mrf.mxu0
      %3782 = vmatprep.mubr.bf16.mxu0 0
      %3783 = vmatmul.mubr.bf16.gmra.mxu0 %v1888
      %v3784 = vpop.f32.mrf.mxu0
      %v3785 = vadd.f32 %v3350, %v3784
      %v3786 = vpop.f32.mrf.mxu0
      %v3787 = vpop.f32.mrf.mxu0
      %v3788 = vadd.f32 %v3353, %v3787
      %v3789 = vpop.f32.mrf.mxu0
      %3790 = vdwg.mxu0
      %v3791 = vadd.f32 %v3665, %v3456
      %v3792 = vadd.f32 %v3668, %v3459
      %v3793 = vadd.f32 %v3673, %v3464
      %v3794 = vadd.f32 %v3676, %v3467
      %v3795 = vadd.f32 %v3681, %v3472
      %v3796 = vadd.f32 %v3684, %v3475
      %v3797 = vadd.f32 %v3689, %v3480
      %v3798 = vadd.f32 %v3692, %v3483
      %v3799 = vadd.f32 %v3697, %v3488
      %v3800 = vadd.f32 %v3700, %v3491
      %v3801 = vadd.f32 %v3705, %v3496
      %v3802 = vadd.f32 %v3708, %v3499
      %v3803 = vadd.f32 %v3713, %v3504
      %v3804 = vadd.f32 %v3716, %v3507
      %v3805 = vadd.f32 %v3721, %v3512
      %v3806 = vadd.f32 %v3724, %v3515
      %v3807 = vadd.f32 %v3729, %v3520
      %v3808 = vadd.f32 %v3732, %v3523
      %v3809 = vadd.f32 %v3737, %v3528
      %v3810 = vadd.f32 %v3740, %v3531
      %v3811 = vadd.f32 %v3745, %v3536
      %v3812 = vadd.f32 %v3748, %v3539
      %v3813 = vadd.f32 %v3753, %v3544
      %v3814 = vadd.f32 %v3756, %v3547
      %v3815 = vadd.f32 %v3761, %v3552
      %v3816 = vadd.f32 %v3764, %v3555
      %v3817 = vadd.f32 %v3769, %v3560
      %v3818 = vadd.f32 %v3772, %v3563
      %v3819 = vadd.f32 %v3777, %v3568
      %v3820 = vadd.f32 %v3780, %v3571
      %v3821 = vadd.f32 %v3785, %v3576
      %v3822 = vadd.f32 %v3788, %v3579
      %v3823 = vrot.slane %v3791, 1
      %v3824 = vrot.slane %v3792, 1
      %v3825 = vrot.slane %v3793, 1
      %v3826 = vrot.slane %v3794, 1
      %v3827 = vrot.slane %v3795, 1
      %v3828 = vrot.slane %v3796, 1
      %v3829 = vrot.slane %v3797, 1
      %v3830 = vrot.slane %v3798, 1
      %v3831 = vrot.slane %v3799, 1
      %v3832 = vrot.slane %v3800, 1
      %v3833 = vrot.slane %v3801, 1
      %v3834 = vrot.slane %v3802, 1
      %v3835 = vrot.slane %v3803, 1
      %v3836 = vrot.slane %v3804, 1
      %v3837 = vrot.slane %v3805, 1
      %v3838 = vrot.slane %v3806, 1
      %v3839 = vrot.slane %v3807, 1
      %v3840 = vrot.slane %v3808, 1
      %v3841 = vrot.slane %v3809, 1
      %v3842 = vrot.slane %v3810, 1
      %v3843 = vrot.slane %v3811, 1
      %v3844 = vrot.slane %v3812, 1
      %v3845 = vrot.slane %v3813, 1
      %v3846 = vrot.slane %v3814, 1
      %v3847 = vrot.slane %v3815, 1
      %v3848 = vrot.slane %v3816, 1
      %v3849 = vrot.slane %v3817, 1
      %v3850 = vrot.slane %v3818, 1
      %v3851 = vrot.slane %v3819, 1
      %v3852 = vrot.slane %v3820, 1
      %v3853 = vrot.slane %v3821, 1
      %v3854 = vrot.slane %v3822, 1
      %vm3855 = vcmp.lt.s32.totalorder %v632, 7
      %v3856 = vsel %vm3855, %v3853, %v3854
      %v3857 = vsel %vm3855, %v3852, %v3853
      %v3858 = vsel %vm3855, %v3851, %v3852
      %v3859 = vsel %vm3855, %v3850, %v3851
      %v3860 = vsel %vm3855, %v3849, %v3850
      %v3861 = vsel %vm3855, %v3848, %v3849
      %v3862 = vsel %vm3855, %v3847, %v3848
      %v3863 = vsel %vm3855, %v3846, %v3847
      %v3864 = vsel %vm3855, %v3845, %v3846
      %v3865 = vsel %vm3855, %v3844, %v3845
      %v3866 = vsel %vm3855, %v3843, %v3844
      %v3867 = vsel %vm3855, %v3842, %v3843
      %v3868 = vsel %vm3855, %v3841, %v3842
      %v3869 = vsel %vm3855, %v3840, %v3841
      %v3870 = vsel %vm3855, %v3839, %v3840
      %v3871 = vsel %vm3855, %v3838, %v3839
      %v3872 = vsel %vm3855, %v3837, %v3838
      %v3873 = vsel %vm3855, %v3836, %v3837
      %v3874 = vsel %vm3855, %v3835, %v3836
      %v3875 = vsel %vm3855, %v3834, %v3835
      %v3876 = vsel %vm3855, %v3833, %v3834
      %v3877 = vsel %vm3855, %v3832, %v3833
      %v3878 = vsel %vm3855, %v3831, %v3832
      %v3879 = vsel %vm3855, %v3830, %v3831
      %v3880 = vsel %vm3855, %v3829, %v3830
      %v3881 = vsel %vm3855, %v3828, %v3829
      %v3882 = vsel %vm3855, %v3827, %v3828
      %v3883 = vsel %vm3855, %v3826, %v3827
      %v3884 = vsel %vm3855, %v3825, %v3826
      %v3885 = vsel %vm3855, %v3824, %v3825
      %v3886 = vsel %vm3855, %v3823, %v3824
      %v3887 = vsel %vm3855, %v3854, %v3823
      %vm3888 = vcmp.le.s32.totalorder %v1016, 14
      %vm3889 = vcmp.le.s32.totalorder %v1017, 14
      %vm3890 = vcmp.le.s32.totalorder %v1018, 14
      %vm3891 = vcmp.le.s32.totalorder %v1019, 14
      %vm3892 = vcmp.le.s32.totalorder %v1020, 14
      %vm3893 = vcmp.le.s32.totalorder %v1021, 14
      %vm3894 = vcmp.le.s32.totalorder %v1022, 14
      %vm3895 = vcmp.le.s32.totalorder %v1023, 14
      %vm3896 = vcmp.le.s32.totalorder %v1024, 14
      %vm3897 = vcmp.le.s32.totalorder %v1025, 14
      %vm3898 = vcmp.le.s32.totalorder %v1026, 14
      %vm3899 = vcmp.le.s32.totalorder %v1027, 14
      %vm3900 = vcmp.le.s32.totalorder %v1028, 14
      %vm3901 = vcmp.le.s32.totalorder %v1029, 14
      %vm3902 = vcmp.le.s32.totalorder %v1030, 14
      %vm3903 = vcmp.le.s32.totalorder %v1031, 14
      %vm3904 = vcmp.le.s32.totalorder %v1032, 14
      %vm3905 = vcmp.le.s32.totalorder %v1033, 14
      %vm3906 = vcmp.le.s32.totalorder %v1034, 14
      %vm3907 = vcmp.le.s32.totalorder %v1035, 14
      %vm3908 = vcmp.le.s32.totalorder %v1036, 14
      %vm3909 = vcmp.le.s32.totalorder %v1037, 14
      %vm3910 = vcmp.le.s32.totalorder %v1038, 14
      %vm3911 = vcmp.le.s32.totalorder %v1039, 14
      %vm3912 = vcmp.le.s32.totalorder %v1040, 14
      %vm3913 = vcmp.le.s32.totalorder %v1041, 14
      %vm3914 = vcmp.le.s32.totalorder %v1042, 14
      %vm3915 = vcmp.le.s32.totalorder %v1043, 14
      %vm3916 = vcmp.le.s32.totalorder %v1044, 14
      %vm3917 = vcmp.le.s32.totalorder %v1045, 14
      %vm3918 = vcmp.le.s32.totalorder %v1046, 14
      %vm3919 = vcmp.le.s32.totalorder %v1047, 14
      %v3920 = vsel %vm3888, 1, 0
      %v3921 = vsel %vm3889, 1, 0
      %v3922 = vsel %vm3890, 1, 0
      %v3923 = vsel %vm3891, 1, 0
      %v3924 = vsel %vm3892, 1, 0
      %v3925 = vsel %vm3893, 1, 0
      %v3926 = vsel %vm3894, 1, 0
      %v3927 = vsel %vm3895, 1, 0
      %v3928 = vsel %vm3896, 1, 0
      %v3929 = vsel %vm3897, 1, 0
      %v3930 = vsel %vm3898, 1, 0
      %v3931 = vsel %vm3899, 1, 0
      %v3932 = vsel %vm3900, 1, 0
      %v3933 = vsel %vm3901, 1, 0
      %v3934 = vsel %vm3902, 1, 0
      %v3935 = vsel %vm3903, 1, 0
      %v3936 = vsel %vm3904, 1, 0
      %v3937 = vsel %vm3905, 1, 0
      %v3938 = vsel %vm3906, 1, 0
      %v3939 = vsel %vm3907, 1, 0
      %v3940 = vsel %vm3908, 1, 0
      %v3941 = vsel %vm3909, 1, 0
      %v3942 = vsel %vm3910, 1, 0
      %v3943 = vsel %vm3911, 1, 0
      %v3944 = vsel %vm3912, 1, 0
      %v3945 = vsel %vm3913, 1, 0
      %v3946 = vsel %vm3914, 1, 0
      %v3947 = vsel %vm3915, 1, 0
      %v3948 = vsel %vm3916, 1, 0
      %v3949 = vsel %vm3917, 1, 0
      %v3950 = vsel %vm3918, 1, 0
      %v3951 = vsel %vm3919, 1, 0
      %vm3952 = vcmp.eq.s32.totalorder %v3920, 1
      %vm3953 = vcmp.eq.s32.totalorder %v3921, 1
      %vm3954 = vcmp.eq.s32.totalorder %v3922, 1
      %vm3955 = vcmp.eq.s32.totalorder %v3923, 1
      %vm3956 = vcmp.eq.s32.totalorder %v3924, 1
      %vm3957 = vcmp.eq.s32.totalorder %v3925, 1
      %vm3958 = vcmp.eq.s32.totalorder %v3926, 1
      %vm3959 = vcmp.eq.s32.totalorder %v3927, 1
      %vm3960 = vcmp.eq.s32.totalorder %v3928, 1
      %vm3961 = vcmp.eq.s32.totalorder %v3929, 1
      %vm3962 = vcmp.eq.s32.totalorder %v3930, 1
      %vm3963 = vcmp.eq.s32.totalorder %v3931, 1
      %vm3964 = vcmp.eq.s32.totalorder %v3932, 1
      %vm3965 = vcmp.eq.s32.totalorder %v3933, 1
      %vm3966 = vcmp.eq.s32.totalorder %v3934, 1
      %vm3967 = vcmp.eq.s32.totalorder %v3935, 1
      %vm3968 = vcmp.eq.s32.totalorder %v3936, 1
      %vm3969 = vcmp.eq.s32.totalorder %v3937, 1
      %vm3970 = vcmp.eq.s32.totalorder %v3938, 1
      %vm3971 = vcmp.eq.s32.totalorder %v3939, 1
      %vm3972 = vcmp.eq.s32.totalorder %v3940, 1
      %vm3973 = vcmp.eq.s32.totalorder %v3941, 1
      %vm3974 = vcmp.eq.s32.totalorder %v3942, 1
      %vm3975 = vcmp.eq.s32.totalorder %v3943, 1
      %vm3976 = vcmp.eq.s32.totalorder %v3944, 1
      %vm3977 = vcmp.eq.s32.totalorder %v3945, 1
      %vm3978 = vcmp.eq.s32.totalorder %v3946, 1
      %vm3979 = vcmp.eq.s32.totalorder %v3947, 1
      %vm3980 = vcmp.eq.s32.totalorder %v3948, 1
      %vm3981 = vcmp.eq.s32.totalorder %v3949, 1
      %vm3982 = vcmp.eq.s32.totalorder %v3950, 1
      %vm3983 = vcmp.eq.s32.totalorder %v3951, 1
      %v3984 = vsel %vm3952, %v3886, 0.0
      %v3985 = vsel %vm3953, %v3885, 0.0
      %v3986 = vsel %vm3954, %v3884, 0.0
      %v3987 = vsel %vm3955, %v3883, 0.0
      %v3988 = vsel %vm3956, %v3882, 0.0
      %v3989 = vsel %vm3957, %v3881, 0.0
      %v3990 = vsel %vm3958, %v3880, 0.0
      %v3991 = vsel %vm3959, %v3879, 0.0
      %v3992 = vsel %vm3960, %v3878, 0.0
      %v3993 = vsel %vm3961, %v3877, 0.0
      %v3994 = vsel %vm3962, %v3876, 0.0
      %v3995 = vsel %vm3963, %v3875, 0.0
      %v3996 = vsel %vm3964, %v3874, 0.0
      %v3997 = vsel %vm3965, %v3873, 0.0
      %v3998 = vsel %vm3966, %v3872, 0.0
      %v3999 = vsel %vm3967, %v3871, 0.0
      %v4000 = vsel %vm3968, %v3870, 0.0
      %v4001 = vsel %vm3969, %v3869, 0.0
      %v4002 = vsel %vm3970, %v3868, 0.0
      %v4003 = vsel %vm3971, %v3867, 0.0
      %v4004 = vsel %vm3972, %v3866, 0.0
      %v4005 = vsel %vm3973, %v3865, 0.0
      %v4006 = vsel %vm3974, %v3864, 0.0
      %v4007 = vsel %vm3975, %v3863, 0.0
      %v4008 = vsel %vm3976, %v3862, 0.0
      %v4009 = vsel %vm3977, %v3861, 0.0
      %v4010 = vsel %vm3978, %v3860, 0.0
      %v4011 = vsel %vm3979, %v3859, 0.0
      %v4012 = vsel %vm3980, %v3858, 0.0
      %v4013 = vsel %vm3981, %v3857, 0.0
      %v4014 = vsel %vm3982, %v3856, 0.0
      %v4015 = vsel %vm3983, %v3887, 0.0
      %v4016 = vadd.f32 %v3081, %v3984
      %v4017 = vadd.f32 %v3082, %v3985
      %v4018 = vadd.f32 %v3083, %v3986
      %v4019 = vadd.f32 %v3084, %v3987
      %v4020 = vadd.f32 %v3085, %v3988
      %v4021 = vadd.f32 %v3086, %v3989
      %v4022 = vadd.f32 %v3087, %v3990
      %v4023 = vadd.f32 %v3088, %v3991
      %v4024 = vadd.f32 %v3089, %v3992
      %v4025 = vadd.f32 %v3090, %v3993
      %v4026 = vadd.f32 %v3091, %v3994
      %v4027 = vadd.f32 %v3092, %v3995
      %v4028 = vadd.f32 %v3093, %v3996
      %v4029 = vadd.f32 %v3094, %v3997
      %v4030 = vadd.f32 %v3095, %v3998
      %v4031 = vadd.f32 %v3096, %v3999
      %v4032 = vadd.f32 %v3097, %v4000
      %v4033 = vadd.f32 %v3098, %v4001
      %v4034 = vadd.f32 %v3099, %v4002
      %v4035 = vadd.f32 %v3100, %v4003
      %v4036 = vadd.f32 %v3101, %v4004
      %v4037 = vadd.f32 %v3102, %v4005
      %v4038 = vadd.f32 %v3103, %v4006
      %v4039 = vadd.f32 %v3104, %v4007
      %v4040 = vadd.f32 %v3105, %v4008
      %v4041 = vadd.f32 %v3106, %v4009
      %v4042 = vadd.f32 %v3107, %v4010
      %v4043 = vadd.f32 %v3108, %v4011
      %v4044 = vadd.f32 %v3109, %v4012
      %v4045 = vadd.f32 %v3110, %v4013
      %v4046 = vadd.f32 %v3111, %v4014
      %v4047 = vadd.f32 %v3112, %v4015
      %v4048 = vld [vmem:[%s2] sm:$0x1]
      %v4050 = vlaneseq
      %v4051 = vshrl.u32 %v4050, 7
      %v4052 = vsub.s32 0, %v4051
      %v4053 = vrot.slane %v4048, %v4052
      %v4055 = vadd.f32 %v4016, %v4053
      %v4056 = vadd.f32 %v4017, %v4053
      %v4057 = vadd.f32 %v4018, %v4053
      %v4058 = vadd.f32 %v4019, %v4053
      %v4059 = vadd.f32 %v4020, %v4053
      %v4060 = vadd.f32 %v4021, %v4053
      %v4061 = vadd.f32 %v4022, %v4053
      %v4062 = vadd.f32 %v4023, %v4053
      %v4063 = vadd.f32 %v4024, %v4053
      %v4064 = vadd.f32 %v4025, %v4053
      %v4065 = vadd.f32 %v4026, %v4053
      %v4066 = vadd.f32 %v4027, %v4053
      %v4067 = vadd.f32 %v4028, %v4053
      %v4068 = vadd.f32 %v4029, %v4053
      %v4069 = vadd.f32 %v4030, %v4053
      %v4070 = vadd.f32 %v4031, %v4053
      %v4071 = vadd.f32 %v4032, %v4053
      %v4072 = vadd.f32 %v4033, %v4053
      %v4073 = vadd.f32 %v4034, %v4053
      %v4074 = vadd.f32 %v4035, %v4053
      %v4075 = vadd.f32 %v4036, %v4053
      %v4076 = vadd.f32 %v4037, %v4053
      %v4077 = vadd.f32 %v4038, %v4053
      %v4078 = vadd.f32 %v4039, %v4053
      %v4079 = vadd.f32 %v4040, %v4053
      %v4080 = vadd.f32 %v4041, %v4053
      %v4081 = vadd.f32 %v4042, %v4053
      %v4082 = vadd.f32 %v4043, %v4053
      %v4083 = vadd.f32 %v4044, %v4053
      %v4084 = vadd.f32 %v4045, %v4053
      %v4085 = vadd.f32 %v4046, %v4053
      %v4086 = vadd.f32 %v4047, %v4053
      %v4087 = vxor.u32 %v4055, 2147483648
      %v4088 = vxor.u32 %v4056, 2147483648
      %v4089 = vxor.u32 %v4057, 2147483648
      %v4090 = vxor.u32 %v4058, 2147483648
      %v4091 = vxor.u32 %v4059, 2147483648
      %v4092 = vxor.u32 %v4060, 2147483648
      %v4093 = vxor.u32 %v4061, 2147483648
      %v4094 = vxor.u32 %v4062, 2147483648
      %v4095 = vxor.u32 %v4063, 2147483648
      %v4096 = vxor.u32 %v4064, 2147483648
      %v4097 = vxor.u32 %v4065, 2147483648
      %v4098 = vxor.u32 %v4066, 2147483648
      %v4099 = vxor.u32 %v4067, 2147483648
      %v4100 = vxor.u32 %v4068, 2147483648
      %v4101 = vxor.u32 %v4069, 2147483648
      %v4102 = vxor.u32 %v4070, 2147483648
      %v4103 = vxor.u32 %v4071, 2147483648
      %v4104 = vxor.u32 %v4072, 2147483648
      %v4105 = vxor.u32 %v4073, 2147483648
      %v4106 = vxor.u32 %v4074, 2147483648
      %v4107 = vxor.u32 %v4075, 2147483648
      %v4108 = vxor.u32 %v4076, 2147483648
      %v4109 = vxor.u32 %v4077, 2147483648
      %v4110 = vxor.u32 %v4078, 2147483648
      %v4111 = vxor.u32 %v4079, 2147483648
      %v4112 = vxor.u32 %v4080, 2147483648
      %v4113 = vxor.u32 %v4081, 2147483648
      %v4114 = vxor.u32 %v4082, 2147483648
      %v4115 = vxor.u32 %v4083, 2147483648
      %v4116 = vxor.u32 %v4084, 2147483648
      %v4117 = vxor.u32 %v4085, 2147483648
      %v4118 = vxor.u32 %v4086, 2147483648
      %v4119 = vmul.f32 %v4087, 1.442695
      %v4120 = vpow.pop %v4119
      %v4121 = vmul.f32 %v4088, 1.442695
      %v4122 = vpow.pop %v4121
      %v4123 = vmul.f32 %v4089, 1.442695
      %v4124 = vpow.pop %v4123
      %v4125 = vmul.f32 %v4090, 1.442695
      %v4126 = vpow.pop %v4125
      %v4127 = vmul.f32 %v4091, 1.442695
      %v4128 = vpow.pop %v4127
      %v4129 = vmul.f32 %v4092, 1.442695
      %v4130 = vpow.pop %v4129
      %v4131 = vmul.f32 %v4093, 1.442695
      %v4132 = vpow.pop %v4131
      %v4133 = vmul.f32 %v4094, 1.442695
      %v4134 = vpow.pop %v4133
      %v4135 = vmul.f32 %v4095, 1.442695
      %v4136 = vpow.pop %v4135
      %v4137 = vmul.f32 %v4096, 1.442695
      %v4138 = vpow.pop %v4137
      %v4139 = vmul.f32 %v4097, 1.442695
      %v4140 = vpow.pop %v4139
      %v4141 = vmul.f32 %v4098, 1.442695
      %v4142 = vpow.pop %v4141
      %v4143 = vmul.f32 %v4099, 1.442695
      %v4144 = vpow.pop %v4143
      %v4145 = vmul.f32 %v4100, 1.442695
      %v4146 = vpow.pop %v4145
      %v4147 = vmul.f32 %v4101, 1.442695
      %v4148 = vpow.pop %v4147
      %v4149 = vmul.f32 %v4102, 1.442695
      %v4150 = vpow.pop %v4149
      %v4151 = vmul.f32 %v4103, 1.442695
      %v4152 = vpow.pop %v4151
      %v4153 = vmul.f32 %v4104, 1.442695
      %v4154 = vpow.pop %v4153
      %v4155 = vmul.f32 %v4105, 1.442695
      %v4156 = vpow.pop %v4155
      %v4157 = vmul.f32 %v4106, 1.442695
      %v4158 = vpow.pop %v4157
      %v4159 = vmul.f32 %v4107, 1.442695
      %v4160 = vpow.pop %v4159
      %v4161 = vmul.f32 %v4108, 1.442695
      %v4162 = vpow.pop %v4161
      %v4163 = vmul.f32 %v4109, 1.442695
      %v4164 = vpow.pop %v4163
      %v4165 = vmul.f32 %v4110, 1.442695
      %v4166 = vpow.pop %v4165
      %v4167 = vmul.f32 %v4111, 1.442695
      %v4168 = vpow.pop %v4167
      %v4169 = vmul.f32 %v4112, 1.442695
      %v4170 = vpow.pop %v4169
      %v4171 = vmul.f32 %v4113, 1.442695
      %v4172 = vpow.pop %v4171
      %v4173 = vmul.f32 %v4114, 1.442695
      %v4174 = vpow.pop %v4173
      %v4175 = vmul.f32 %v4115, 1.442695
      %v4176 = vpow.pop %v4175
      %v4177 = vmul.f32 %v4116, 1.442695
      %v4178 = vpow.pop %v4177
      %v4179 = vmul.f32 %v4117, 1.442695
      %v4180 = vpow.pop %v4179
      %v4181 = vmul.f32 %v4118, 1.442695
      %v4182 = vpow.pop %v4181
      %v4183 = vadd.f32 %v4120, 1.0
      %v4184 = vadd.f32 %v4122, 1.0
      %v4185 = vadd.f32 %v4124, 1.0
      %v4186 = vadd.f32 %v4126, 1.0
      %v4187 = vadd.f32 %v4128, 1.0
      %v4188 = vadd.f32 %v4130, 1.0
      %v4189 = vadd.f32 %v4132, 1.0
      %v4190 = vadd.f32 %v4134, 1.0
      %v4191 = vadd.f32 %v4136, 1.0
      %v4192 = vadd.f32 %v4138, 1.0
      %v4193 = vadd.f32 %v4140, 1.0
      %v4194 = vadd.f32 %v4142, 1.0
      %v4195 = vadd.f32 %v4144, 1.0
      %v4196 = vadd.f32 %v4146, 1.0
      %v4197 = vadd.f32 %v4148, 1.0
      %v4198 = vadd.f32 %v4150, 1.0
      %v4199 = vadd.f32 %v4152, 1.0
      %v4200 = vadd.f32 %v4154, 1.0
      %v4201 = vadd.f32 %v4156, 1.0
      %v4202 = vadd.f32 %v4158, 1.0
      %v4203 = vadd.f32 %v4160, 1.0
      %v4204 = vadd.f32 %v4162, 1.0
      %v4205 = vadd.f32 %v4164, 1.0
      %v4206 = vadd.f32 %v4166, 1.0
      %v4207 = vadd.f32 %v4168, 1.0
      %v4208 = vadd.f32 %v4170, 1.0
      %v4209 = vadd.f32 %v4172, 1.0
      %v4210 = vadd.f32 %v4174, 1.0
      %v4211 = vadd.f32 %v4176, 1.0
      %v4212 = vadd.f32 %v4178, 1.0
      %v4213 = vadd.f32 %v4180, 1.0
      %v4214 = vadd.f32 %v4182, 1.0
      %v4215 = vrcp.pop %v4183
      %v4216 = vmul.f32 1.0, %v4215
      %v4217 = vrcp.pop %v4184
      %v4218 = vmul.f32 1.0, %v4217
      %v4219 = vrcp.pop %v4185
      %v4220 = vmul.f32 1.0, %v4219
      %v4221 = vrcp.pop %v4186
      %v4222 = vmul.f32 1.0, %v4221
      %v4223 = vrcp.pop %v4187
      %v4224 = vmul.f32 1.0, %v4223
      %v4225 = vrcp.pop %v4188
      %v4226 = vmul.f32 1.0, %v4225
      %v4227 = vrcp.pop %v4189
      %v4228 = vmul.f32 1.0, %v4227
      %v4229 = vrcp.pop %v4190
      %v4230 = vmul.f32 1.0, %v4229
      %v4231 = vrcp.pop %v4191
      %v4232 = vmul.f32 1.0, %v4231
      %v4233 = vrcp.pop %v4192
      %v4234 = vmul.f32 1.0, %v4233
      %v4235 = vrcp.pop %v4193
      %v4236 = vmul.f32 1.0, %v4235
      %v4237 = vrcp.pop %v4194
      %v4238 = vmul.f32 1.0, %v4237
      %v4239 = vrcp.pop %v4195
      %v4240 = vmul.f32 1.0, %v4239
      %v4241 = vrcp.pop %v4196
      %v4242 = vmul.f32 1.0, %v4241
      %v4243 = vrcp.pop %v4197
      %v4244 = vmul.f32 1.0, %v4243
      %v4245 = vrcp.pop %v4198
      %v4246 = vmul.f32 1.0, %v4245
      %v4247 = vrcp.pop %v4199
      %v4248 = vmul.f32 1.0, %v4247
      %v4249 = vrcp.pop %v4200
      %v4250 = vmul.f32 1.0, %v4249
      %v4251 = vrcp.pop %v4201
      %v4252 = vmul.f32 1.0, %v4251
      %v4253 = vrcp.pop %v4202
      %v4254 = vmul.f32 1.0, %v4253
      %v4255 = vrcp.pop %v4203
      %v4256 = vmul.f32 1.0, %v4255
      %v4257 = vrcp.pop %v4204
      %v4258 = vmul.f32 1.0, %v4257
      %v4259 = vrcp.pop %v4205
      %v4260 = vmul.f32 1.0, %v4259
      %v4261 = vrcp.pop %v4206
      %v4262 = vmul.f32 1.0, %v4261
      %v4263 = vrcp.pop %v4207
      %v4264 = vmul.f32 1.0, %v4263
      %v4265 = vrcp.pop %v4208
      %v4266 = vmul.f32 1.0, %v4265
      %v4267 = vrcp.pop %v4209
      %v4268 = vmul.f32 1.0, %v4267
      %v4269 = vrcp.pop %v4210
      %v4270 = vmul.f32 1.0, %v4269
      %v4271 = vrcp.pop %v4211
      %v4272 = vmul.f32 1.0, %v4271
      %v4273 = vrcp.pop %v4212
      %v4274 = vmul.f32 1.0, %v4273
      %v4275 = vrcp.pop %v4213
      %v4276 = vmul.f32 1.0, %v4275
      %v4277 = vrcp.pop %v4214
      %v4278 = vmul.f32 1.0, %v4277
      %v4279 = vmul.f32 %v4055, %v4216
      %v4280 = vmul.f32 %v4056, %v4218
      %v4281 = vmul.f32 %v4057, %v4220
      %v4282 = vmul.f32 %v4058, %v4222
      %v4283 = vmul.f32 %v4059, %v4224
      %v4284 = vmul.f32 %v4060, %v4226
      %v4285 = vmul.f32 %v4061, %v4228
      %v4286 = vmul.f32 %v4062, %v4230
      %v4287 = vmul.f32 %v4063, %v4232
      %v4288 = vmul.f32 %v4064, %v4234
      %v4289 = vmul.f32 %v4065, %v4236
      %v4290 = vmul.f32 %v4066, %v4238
      %v4291 = vmul.f32 %v4067, %v4240
      %v4292 = vmul.f32 %v4068, %v4242
      %v4293 = vmul.f32 %v4069, %v4244
      %v4294 = vmul.f32 %v4070, %v4246
      %v4295 = vmul.f32 %v4071, %v4248
      %v4296 = vmul.f32 %v4072, %v4250
      %v4297 = vmul.f32 %v4073, %v4252
      %v4298 = vmul.f32 %v4074, %v4254
      %v4299 = vmul.f32 %v4075, %v4256
      %v4300 = vmul.f32 %v4076, %v4258
      %v4301 = vmul.f32 %v4077, %v4260
      %v4302 = vmul.f32 %v4078, %v4262
      %v4303 = vmul.f32 %v4079, %v4264
      %v4304 = vmul.f32 %v4080, %v4266
      %v4305 = vmul.f32 %v4081, %v4268
      %v4306 = vmul.f32 %v4082, %v4270
      %v4307 = vmul.f32 %v4083, %v4272
      %v4308 = vmul.f32 %v4084, %v4274
      %v4309 = vmul.f32 %v4085, %v4276
      %v4310 = vmul.f32 %v4086, %v4278
      %v4311 = vld [vmem:[%s203] sm:$0xf]
      %v4312 = vld [vmem:[%s203 + $0x4] sm:$0xf]
      %v4313 = vld [vmem:[%s203 + $0x8] sm:$0xf]
      %v4314 = vld [vmem:[%s203 + $0xc] sm:$0xf]
      %v4315 = vld [vmem:[%s203 + $0x10] sm:$0xf]
      %v4316 = vld [vmem:[%s203 + $0x14] sm:$0xf]
      %v4317 = vld [vmem:[%s203 + $0x18] sm:$0xf]
      %v4318 = vld [vmem:[%s203 + $0x1c] sm:$0xf]
      %v4319 = vld [vmem:[%s203 + $0x20] sm:$0xf]
      %v4320 = vld [vmem:[%s203 + $0x24] sm:$0xf]
      %v4321 = vld [vmem:[%s203 + $0x28] sm:$0xf]
      %v4322 = vld [vmem:[%s203 + $0x2c] sm:$0xf]
      %v4323 = vld [vmem:[%s203 + $0x30] sm:$0xf]
      %v4324 = vld [vmem:[%s203 + $0x34] sm:$0xf]
      %v4325 = vld [vmem:[%s203 + $0x38] sm:$0xf]
      %v4326 = vld [vmem:[%s203 + $0x3c] sm:$0xf]
      %v4327 = vld [vmem:[%s203 + $0x40] sm:$0xf]
      %v4328 = vld [vmem:[%s203 + $0x44] sm:$0xf]
      %v4329 = vld [vmem:[%s203 + $0x48] sm:$0xf]
      %v4330 = vld [vmem:[%s203 + $0x4c] sm:$0xf]
      %v4331 = vld [vmem:[%s203 + $0x50] sm:$0xf]
      %v4332 = vld [vmem:[%s203 + $0x54] sm:$0xf]
      %v4333 = vld [vmem:[%s203 + $0x58] sm:$0xf]
      %v4334 = vld [vmem:[%s203 + $0x5c] sm:$0xf]
      %v4335 = vld [vmem:[%s203 + $0x60] sm:$0xf]
      %v4336 = vld [vmem:[%s203 + $0x64] sm:$0xf]
      %v4337 = vld [vmem:[%s203 + $0x68] sm:$0xf]
      %v4338 = vld [vmem:[%s203 + $0x6c] sm:$0xf]
      %v4339 = vld [vmem:[%s203 + $0x70] sm:$0xf]
      %v4340 = vld [vmem:[%s203 + $0x74] sm:$0xf]
      %v4341 = vld [vmem:[%s203 + $0x78] sm:$0xf]
      %v4342 = vld [vmem:[%s203 + $0x7c] sm:$0xf]
      %v4343 = vunpack.c.l.bf16 %v4311
      %v4344 = vunpack.c.l.bf16 %v4312
      %v4345 = vunpack.c.l.bf16 %v4313
      %v4346 = vunpack.c.l.bf16 %v4314
      %v4347 = vunpack.c.l.bf16 %v4315
      %v4348 = vunpack.c.l.bf16 %v4316
      %v4349 = vunpack.c.l.bf16 %v4317
      %v4350 = vunpack.c.l.bf16 %v4318
      %v4351 = vunpack.c.l.bf16 %v4319
      %v4352 = vunpack.c.l.bf16 %v4320
      %v4353 = vunpack.c.l.bf16 %v4321
      %v4354 = vunpack.c.l.bf16 %v4322
      %v4355 = vunpack.c.l.bf16 %v4323
      %v4356 = vunpack.c.l.bf16 %v4324
      %v4357 = vunpack.c.l.bf16 %v4325
      %v4358 = vunpack.c.l.bf16 %v4326
      %v4359 = vunpack.c.l.bf16 %v4327
      %v4360 = vunpack.c.l.bf16 %v4328
      %v4361 = vunpack.c.l.bf16 %v4329
      %v4362 = vunpack.c.l.bf16 %v4330
      %v4363 = vunpack.c.l.bf16 %v4331
      %v4364 = vunpack.c.l.bf16 %v4332
      %v4365 = vunpack.c.l.bf16 %v4333
      %v4366 = vunpack.c.l.bf16 %v4334
      %v4367 = vunpack.c.l.bf16 %v4335
      %v4368 = vunpack.c.l.bf16 %v4336
      %v4369 = vunpack.c.l.bf16 %v4337
      %v4370 = vunpack.c.l.bf16 %v4338
      %v4371 = vunpack.c.l.bf16 %v4339
      %v4372 = vunpack.c.l.bf16 %v4340
      %v4373 = vunpack.c.l.bf16 %v4341
      %v4374 = vunpack.c.l.bf16 %v4342
      %v4375 = vadd.f32 %v4279, %v4343
      %v4376 = vadd.f32 %v4280, %v4344
      %v4377 = vadd.f32 %v4281, %v4345
      %v4378 = vadd.f32 %v4282, %v4346
      %v4379 = vadd.f32 %v4283, %v4347
      %v4380 = vadd.f32 %v4284, %v4348
      %v4381 = vadd.f32 %v4285, %v4349
      %v4382 = vadd.f32 %v4286, %v4350
      %v4383 = vadd.f32 %v4287, %v4351
      %v4384 = vadd.f32 %v4288, %v4352
      %v4385 = vadd.f32 %v4289, %v4353
      %v4386 = vadd.f32 %v4290, %v4354
      %v4387 = vadd.f32 %v4291, %v4355
      %v4388 = vadd.f32 %v4292, %v4356
      %v4389 = vadd.f32 %v4293, %v4357
      %v4390 = vadd.f32 %v4294, %v4358
      %v4391 = vadd.f32 %v4295, %v4359
      %v4392 = vadd.f32 %v4296, %v4360
      %v4393 = vadd.f32 %v4297, %v4361
      %v4394 = vadd.f32 %v4298, %v4362
      %v4395 = vadd.f32 %v4299, %v4363
      %v4396 = vadd.f32 %v4300, %v4364
      %v4397 = vadd.f32 %v4301, %v4365
      %v4398 = vadd.f32 %v4302, %v4366
      %v4399 = vadd.f32 %v4303, %v4367
      %v4400 = vadd.f32 %v4304, %v4368
      %v4401 = vadd.f32 %v4305, %v4369
      %v4402 = vadd.f32 %v4306, %v4370
      %v4403 = vadd.f32 %v4307, %v4371
      %v4404 = vadd.f32 %v4308, %v4372
      %v4405 = vadd.f32 %v4309, %v4373
      %v4406 = vadd.f32 %v4310, %v4374
      %v4407 = vpack.c.bf16 %v4376, %v4375
      %v4408 = vpack.c.bf16 %v4378, %v4377
      %v4409 = vpack.c.bf16 %v4380, %v4379
      %v4410 = vpack.c.bf16 %v4382, %v4381
      %v4411 = vpack.c.bf16 %v4384, %v4383
      %v4412 = vpack.c.bf16 %v4386, %v4385
      %v4413 = vpack.c.bf16 %v4388, %v4387
      %v4414 = vpack.c.bf16 %v4390, %v4389
      %v4415 = vpack.c.bf16 %v4392, %v4391
      %v4416 = vpack.c.bf16 %v4394, %v4393
      %v4417 = vpack.c.bf16 %v4396, %v4395
      %v4418 = vpack.c.bf16 %v4398, %v4397
      %v4419 = vpack.c.bf16 %v4400, %v4399
      %v4420 = vpack.c.bf16 %v4402, %v4401
      %v4421 = vpack.c.bf16 %v4404, %v4403
      %v4422 = vpack.c.bf16 %v4406, %v4405
      %v4439 = vunpack.c.l.b16 %v4407
      %v4440 = vunpack.c.h.b16 %v4407
      %v4441 = vunpack.c.l.b16 %v4408
      %v4442 = vunpack.c.h.b16 %v4408
      %v4443 = vunpack.c.l.b16 %v4409
      %v4444 = vunpack.c.h.b16 %v4409
      %v4445 = vunpack.c.l.b16 %v4410
      %v4446 = vunpack.c.h.b16 %v4410
      %v4447 = vunpack.c.l.b16 %v4411
      %v4448 = vunpack.c.h.b16 %v4411
      %v4449 = vunpack.c.l.b16 %v4412
      %v4450 = vunpack.c.h.b16 %v4412
      %v4451 = vunpack.c.l.b16 %v4413
      %v4452 = vunpack.c.h.b16 %v4413
      %v4453 = vunpack.c.l.b16 %v4414
      %v4454 = vunpack.c.h.b16 %v4414
      %v4455 = vunpack.c.l.b16 %v4415
      %v4456 = vunpack.c.h.b16 %v4415
      %v4457 = vunpack.c.l.b16 %v4416
      %v4458 = vunpack.c.h.b16 %v4416
      %v4459 = vunpack.c.l.b16 %v4417
      %v4460 = vunpack.c.h.b16 %v4417
      %v4461 = vunpack.c.l.b16 %v4418
      %v4462 = vunpack.c.h.b16 %v4418
      %v4463 = vunpack.c.l.b16 %v4419
      %v4464 = vunpack.c.h.b16 %v4419
      %v4465 = vunpack.c.l.b16 %v4420
      %v4466 = vunpack.c.h.b16 %v4420
      %v4467 = vunpack.c.l.b16 %v4421
      %v4468 = vunpack.c.h.b16 %v4421
      %v4469 = vunpack.c.l.b16 %v4422
      %v4470 = vunpack.c.h.b16 %v4422
      %v4471 = vpack.c.b16 %v4439, %v4439
      %v4472 = vpack.c.b16 %v4440, %v4440
      %v4473 = vpack.c.b16 %v4441, %v4441
      %v4474 = vpack.c.b16 %v4442, %v4442
      %v4475 = vpack.c.b16 %v4443, %v4443
      %v4476 = vpack.c.b16 %v4444, %v4444
      %v4477 = vpack.c.b16 %v4445, %v4445
      %v4478 = vpack.c.b16 %v4446, %v4446
      %v4479 = vpack.c.b16 %v4447, %v4447
      %v4480 = vpack.c.b16 %v4448, %v4448
      %v4481 = vpack.c.b16 %v4449, %v4449
      %v4482 = vpack.c.b16 %v4450, %v4450
      %v4483 = vpack.c.b16 %v4451, %v4451
      %v4484 = vpack.c.b16 %v4452, %v4452
      %v4485 = vpack.c.b16 %v4453, %v4453
      %v4486 = vpack.c.b16 %v4454, %v4454
      %v4487 = vpack.c.b16 %v4455, %v4455
      %v4488 = vpack.c.b16 %v4456, %v4456
      %v4489 = vpack.c.b16 %v4457, %v4457
      %v4490 = vpack.c.b16 %v4458, %v4458
      %v4491 = vpack.c.b16 %v4459, %v4459
      %v4492 = vpack.c.b16 %v4460, %v4460
      %v4493 = vpack.c.b16 %v4461, %v4461
      %v4494 = vpack.c.b16 %v4462, %v4462
      %v4495 = vpack.c.b16 %v4463, %v4463
      %v4496 = vpack.c.b16 %v4464, %v4464
      %v4497 = vpack.c.b16 %v4465, %v4465
      %v4498 = vpack.c.b16 %v4466, %v4466
      %v4499 = vpack.c.b16 %v4467, %v4467
      %v4500 = vpack.c.b16 %v4468, %v4468
      %v4501 = vpack.c.b16 %v4469, %v4469
      %v4502 = vpack.c.b16 %v4470, %v4470
      %4535 = vst [vmem:[%s214] sm:$0xf] %v4471
      %4536 = vst [vmem:[%s214 + $0x4] sm:$0xf] %v4472
      %4537 = vst [vmem:[%s214 + $0x8] sm:$0xf] %v4473
      %4538 = vst [vmem:[%s214 + $0xc] sm:$0xf] %v4474
      %4539 = vst [vmem:[%s214 + $0x10] sm:$0xf] %v4475
      %4540 = vst [vmem:[%s214 + $0x14] sm:$0xf] %v4476
      %4541 = vst [vmem:[%s214 + $0x18] sm:$0xf] %v4477
      %4542 = vst [vmem:[%s214 + $0x1c] sm:$0xf] %v4478
      %4543 = vst [vmem:[%s214 + $0x20] sm:$0xf] %v4479
      %4544 = vst [vmem:[%s214 + $0x24] sm:$0xf] %v4480
      %4545 = vst [vmem:[%s214 + $0x28] sm:$0xf] %v4481
      %4546 = vst [vmem:[%s214 + $0x2c] sm:$0xf] %v4482
      %4547 = vst [vmem:[%s214 + $0x30] sm:$0xf] %v4483
      %4548 = vst [vmem:[%s214 + $0x34] sm:$0xf] %v4484
      %4549 = vst [vmem:[%s214 + $0x38] sm:$0xf] %v4485
      %4550 = vst [vmem:[%s214 + $0x3c] sm:$0xf] %v4486
      %4551 = vst [vmem:[%s214 + $0x40] sm:$0xf] %v4487
      %4552 = vst [vmem:[%s214 + $0x44] sm:$0xf] %v4488
      %4553 = vst [vmem:[%s214 + $0x48] sm:$0xf] %v4489
      %4554 = vst [vmem:[%s214 + $0x4c] sm:$0xf] %v4490
      %4555 = vst [vmem:[%s214 + $0x50] sm:$0xf] %v4491
      %4556 = vst [vmem:[%s214 + $0x54] sm:$0xf] %v4492
      %4557 = vst [vmem:[%s214 + $0x58] sm:$0xf] %v4493
      %4558 = vst [vmem:[%s214 + $0x5c] sm:$0xf] %v4494
      %4559 = vst [vmem:[%s214 + $0x60] sm:$0xf] %v4495
      %4560 = vst [vmem:[%s214 + $0x64] sm:$0xf] %v4496
      %4561 = vst [vmem:[%s214 + $0x68] sm:$0xf] %v4497
      %4562 = vst [vmem:[%s214 + $0x6c] sm:$0xf] %v4498
      %4563 = vst [vmem:[%s214 + $0x70] sm:$0xf] %v4499
      %4564 = vst [vmem:[%s214 + $0x74] sm:$0xf] %v4500
      %4565 = vst [vmem:[%s214 + $0x78] sm:$0xf] %v4501
      %4566 = vst [vmem:[%s214 + $0x7c] sm:$0xf] %v4502
      %s4567 = smul.u32 16, %s20
      %p4568 = scmp.lt.s32.totalorder %s19, 1
      %s4569 = scalar_select %p4568, %s19, 1
      %p4570 = scmp.lt.s32.totalorder %s4567, 15
      %s4571 = scalar_select %p4570, %s4567, 15
      %s4572 = smul.addr %s4571, 2
      %s4573 = smul.addr %s4569, 32
      %s4574 = sadd.s32 %s4572, %s4573
      %s4575 = smul.addr %s4574, 4
      %s4576 = scalar_lea.vmem %s4, %s4575
      // Predicated region
      $region249: #{c1_forward.3} parent=31 // pred_check
        %p4577 = pneg %p117
      $region250: #{c1_forward.3} parent=31 // pred_check_branch
        %4579 = sbr.rel (%p4577) target = $region252
      $region251: #{c1_forward.3} parent=31 // pred_region
        %s4580 = smul.u32 16, %s20
      $region252: #{c1_forward.3} parent=31 // pred_fallthru
        _
    $region32: #{c1_forward.3} parent=5 // pred_fallthru
      _
    %p4581 = scmp.le.s32.totalorder 2, %s10
    // Predicated region
    $region253: #{c1_forward.3} parent=5 // pred_check
      %p4582 = pneg %p4581
    $region254: #{c1_forward.3} parent=5 // pred_check_branch
      %4584 = sbr.rel (%p4582) target = $region256
    $region255: #{c1_forward.3} parent=5 // pred_region
      %s4585 = ssub.s32 %s10, 2
      // Predicated region
      $region257: #{c1_forward.3} parent=255 // pred_check
        %p4586 = pneg %p123
      $region258: #{c1_forward.3} parent=255 // pred_check_branch
        %4588 = sbr.rel (%p4586) target = $region260
      $region259: #{c1_forward.3} parent=255 // pred_region
        %s4589 = smul.u32 16, %s22
        %p4590 = scmp.lt.s32.totalorder %s21, 1
        %s4591 = scalar_select %p4590, %s21, 1
        %p4592 = scmp.lt.s32.totalorder %s4589, 15
        %s4593 = scalar_select %p4592, %s4589, 15
        %s4594 = smul.addr %s4593, 2
        %s4595 = smul.addr %s4591, 32
        %s4596 = sadd.s32 %s4594, %s4595
        %s4597 = smul.addr %s4596, 4
        %s4598 = scalar_lea.vmem %s4, %s4597
      $region260: #{c1_forward.3} parent=255 // pred_fallthru
        _
    $region256: #{c1_forward.3} parent=5 // pred_fallthru
      _
  $region6: #{c1_forward.3} parent=0 // loop_footer
    %s14 = sadd.s32 1, %s10
  $region7: #{c1_forward.3} parent=0 // loop_footer_branch
    %9 = sbr.rel target = $region3
  $region8: #{c1_forward.3} parent=0 // loop_exit
    _
  %4599 = vsyncmov [#allocation3]
  %s4600 = vpop.sfrf %4599
  %p4601 = scmp.eq.s32.totalorder %s4600, 0
  %p4602 = pneg %p4601
  %4604 = shalt.err (%p4602)
  %s4605 = scalar_lea.sflag [#allocation3], 1
  %4606 = vsyncmov %s4605
  %s4607 = vpop.sfrf %4606
  %p4608 = scmp.eq.s32.totalorder %s4607, 0
  %p4609 = pneg %p4608
  %4611 = shalt.err (%p4609)
  %s4612 = scalar_lea.sflag [#allocation3], 2
  %4613 = vsyncmov %s4612
  %s4614 = vpop.sfrf %4613
  %p4615 = scmp.eq.s32.totalorder %s4614, 0
  %p4616 = pneg %p4615
  %4618 = shalt.err (%p4616)
  %s4619 = scalar_lea.sflag [#allocation3], 3
  %4620 = vsyncmov %s4619
  %s4621 = vpop.sfrf %4620
  %p4622 = scmp.eq.s32.totalorder %s4621, 0
  %p4623 = pneg %p4622
  %4625 = shalt.err (%p4623)
  %s4626 = scalar_lea.sflag [#allocation3], 4
  %4627 = vsyncmov %s4626
  %s4628 = vpop.sfrf %4627
  %p4629 = scmp.eq.s32.totalorder %s4628, 0
  %p4630 = pneg %p4629
  %4632 = shalt.err (%p4630)
  %s4633 = scalar_lea.sflag [#allocation3], 5
  %4634 = vsyncmov %s4633
  %s4635 = vpop.sfrf %4634
  %p4636 = scmp.eq.s32.totalorder %s4635, 0
  %p4637 = pneg %p4636
  %4639 = shalt.err (%p4637)

</llo_original>
